<compile_context>
chip_gen: v6e
topology: v6e:2x2x1
jax: 0.10.0
libtpu: 0.0.40
codegen_flags: <defaults>
</compile_context>

<pallas_src>
import functools

import numpy as np

import jax
import jax.numpy as jnp
from jax.experimental import pallas as pl
from jax.experimental.pallas import tpu as pltpu

KSIZE = 5
STRIDE = 2
PAD = 2
NTAPS = KSIZE * KSIZE
BN_EPS = 1e-5
LRELU_SLOPE = 0.01  # PyTorch nn.LeakyReLU default negative_slope


# ----------------------------- fused Pallas kernel ------------------------------- #
def _cae_fused_kernel(p1_ref, w1_ref, g2_ref, w2_ref, g3_ref, w3_ref,
                      g4_ref, w4_ref, gb_ref, o_ref, *, counts):
    """counts = true (unpadded) row counts P = N*Ho*Wo for layers 1..4."""

    def bn_act(y, count, layer, lrelu):
        # One-pass batch-norm statistics over the row axis (padded rows are
        # exact zeros, so plain sums with the true count are correct).
        inv_p = 1.0 / float(count)
        mean = jnp.sum(y, axis=0, keepdims=True) * inv_p
        ex2 = jnp.sum(y * y, axis=0, keepdims=True) * inv_p
        var = ex2 - mean * mean                      # biased variance (PyTorch train mode)
        c = y.shape[1]
        gamma = gb_ref[2 * layer:2 * layer + 1, 0:c]   # (1, c) static prefix slices
        beta = gb_ref[2 * layer + 1:2 * layer + 2, 0:c]
        scale = gamma * jax.lax.rsqrt(var + BN_EPS)
        z = y * scale + (beta - mean * scale)
        if lrelu:
            z = jnp.where(z > 0, z, LRELU_SLOPE * z)
        return z

    def tree_sum(parts):
        # Balanced reduction: shortens the f32 accumulate chain (ILP for VALU).
        while len(parts) > 1:
            nxt = [parts[i] + parts[i + 1] for i in range(0, len(parts) - 1, 2)]
            if len(parts) % 2:
                nxt.append(parts[-1])
            parts = nxt
        return parts[0]

    def conv_gather(a_prev, g_ref, w_ref):
        # Strided im2col gather as a single MXU matmul against a constant 0/1
        # selection matrix, followed by 25 per-tap weight matmuls (f32 accum).
        pp = g_ref.shape[0] // NTAPS          # sublane-aligned rows per tap block
        a_bf = a_prev.astype(jnp.bfloat16)
        # Gather result is exactly the selected bf16 values (or 0), so the
        # single downcast below is lossless.
        s = jnp.dot(g_ref[...], a_bf,
                    preferred_element_type=jnp.float32).astype(jnp.bfloat16)
        parts = [
            jnp.dot(s[t * pp:(t + 1) * pp, :], w_ref[t],
                    preferred_element_type=jnp.float32)
            for t in range(NTAPS)
        ]
        return tree_sum(parts)

    # layer 1: host-provided im2col patches of the raw input
    y1 = jnp.dot(p1_ref[...], w1_ref[...], preferred_element_type=jnp.float32)
    a = bn_act(y1, counts[0], 0, True)
    # layers 2-4: in-VMEM gather + conv
    a = bn_act(conv_gather(a, g2_ref, w2_ref), counts[1], 1, True)
    a = bn_act(conv_gather(a, g3_ref, w3_ref), counts[2], 2, True)
    # last layer: BN only, channel dim padded to 128 -> single lane-dense store
    o_ref[...] = bn_act(conv_gather(a, g4_ref, w4_ref), counts[3], 3, False)


# ------------------------------ host-side helpers ----------------------------- #
def _out_size(s):
    return (s + 2 * PAD - KSIZE) // STRIDE + 1


def _round_up8(v):
    return ((v + 7) // 8) * 8


def _gather_matrix(n, h_in, w_in, h_out, w_out, p_in_pad, p_out_pad):
    """(25*p_out_pad, p_in_pad) 0/1 bf16 selection matrix: row t*p_out_pad + q picks
    the input row of output position q for tap t (zero row when out of bounds or
    q >= true P_out). Built with numpy at trace time -> baked-in constant."""
    p_out = n * h_out * w_out
    g = np.zeros((NTAPS * p_out_pad, p_in_pad), np.float32)
    for t in range(NTAPS):
        ki, kj = divmod(t, KSIZE)
        for q in range(p_out):
            nn, rem = divmod(q, h_out * w_out)
            a, b = divmod(rem, w_out)
            hh = STRIDE * a - PAD + ki
            ww = STRIDE * b - PAD + kj
            if 0 <= hh < h_in and 0 <= ww < w_in:
                g[t * p_out_pad + q, (nn * h_in + hh) * w_in + ww] = 1.0
    return jnp.asarray(g, jnp.bfloat16)


def _im2col_layer1(x_nhw):
    """im2col for the single-channel raw input only: (N*Ho*Wo, 25)."""
    n, h, w = x_nhw.shape
    ho, wo = _out_size(h), _out_size(w)
    xp = jnp.pad(x_nhw, ((0, 0), (PAD, PAD), (PAD, PAD)))
    cols = [xp[:, ki:ki + STRIDE * ho:STRIDE, kj:kj + STRIDE * wo:STRIDE]
            for ki in range(KSIZE) for kj in range(KSIZE)]
    return jnp.stack(cols, axis=-1).reshape(n * ho * wo, NTAPS)


def _weight_taps(w_oihw):
    # (C_out, C_in, kh, kw) -> (25, C_in, C_out), tap index t = ki*5 + kj
    c_out, c_in = w_oihw.shape[0], w_oihw.shape[1]
    return jnp.transpose(w_oihw, (2, 3, 1, 0)).reshape(NTAPS, c_in, c_out)


def _full_spec(shape):
    rank = len(shape)
    return pl.BlockSpec(shape, lambda i: (0,) * rank)


def init_cae_params(key):
    """Deterministic parameters matching the PyTorch module's shapes (OIHW weights)."""
    chans = [(1, 8), (8, 16), (16, 32), (32, 64)]
    params = []
    for cin, cout in chans:
        key, kw, kg, kb = jax.random.split(key, 4)
        fan_in = cin * NTAPS
        w = jax.random.normal(kw, (cout, cin, KSIZE, KSIZE), jnp.float32) / jnp.sqrt(fan_in)
        gamma = 1.0 + 0.1 * jax.random.normal(kg, (1, cout), jnp.float32)
        beta = 0.1 * jax.random.normal(kb, (1, cout), jnp.float32)
        params.append({"w": w, "gamma": gamma, "beta": beta})
    return params


@jax.jit
def cae_forward(x_nchw, params):
    """x_nchw: (N, 1, H, W) float32 -> (N, 64, H/16, W/16), same as the PyTorch module."""
    n, cin, h, w = x_nchw.shape
    assert cin == 1
    sh1, sw1 = _out_size(h), _out_size(w)
    sh2, sw2 = _out_size(sh1), _out_size(sw1)
    sh3, sw3 = _out_size(sh2), _out_size(sw2)
    sh4, sw4 = _out_size(sh3), _out_size(sw3)
    p1 = n * sh1 * sw1
    p2, p3, p4 = n * sh2 * sw2, n * sh3 * sw3, n * sh4 * sw4
    p2p, p3p, p4p = _round_up8(p2), _round_up8(p3), _round_up8(p4)

    # Layer-1 patches from the raw input (tiny), bf16 for the MXU.
    patches1 = _im2col_layer1(x_nchw[:, 0]).astype(jnp.bfloat16)          # (p1, 25)
    w1f = _weight_taps(params[0]["w"]).reshape(NTAPS, -1).astype(jnp.bfloat16)  # (25, 8)

    # Per-tap weights for layers 2-4 (last layer channel-padded to 128 lanes).
    w2t = _weight_taps(params[1]["w"]).astype(jnp.bfloat16)               # (25, 8, 16)
    w3t = _weight_taps(params[2]["w"]).astype(jnp.bfloat16)               # (25, 16, 32)
    w4n = _weight_taps(params[3]["w"])                                    # (25, 32, 64)
    c4 = w4n.shape[2]
    w4t = jnp.pad(w4n, ((0, 0), (0, 0), (0, 128 - c4))).astype(jnp.bfloat16)

    # Constant gather (selection) matrices — built with numpy at trace time.
    g2 = _gather_matrix(n, sh1, sw1, sh2, sw2, p1, p2p)
    g3 = _gather_matrix(n, sh2, sw2, sh3, sw3, p2p, p3p)
    g4 = _gather_matrix(n, sh3, sw3, sh4, sw4, p3p, p4p)

    # Pack all gamma/beta into one (8, 128) f32 block: rows (2l, 2l+1) = (gamma_l, beta_l).
    gb = jnp.zeros((8, 128), jnp.float32)
    for li, pr in enumerate(params):
        c = pr["gamma"].shape[-1]
        gb = gb.at[2 * li, :c].set(pr["gamma"].reshape(-1))
        gb = gb.at[2 * li + 1, :c].set(pr["beta"].reshape(-1))

    out = pl.pallas_call(
        functools.partial(_cae_fused_kernel, counts=(p1, p2, p3, p4)),
        out_shape=jax.ShapeDtypeStruct((p4p, 128), jnp.float32),
        grid=(1,),
        in_specs=[
            _full_spec(patches1.shape),
            _full_spec(w1f.shape),
            _full_spec(g2.shape),
            _full_spec(w2t.shape),
            _full_spec(g3.shape),
            _full_spec(w3t.shape),
            _full_spec(g4.shape),
            _full_spec(w4t.shape),
            _full_spec(gb.shape),
        ],
        out_specs=_full_spec((p4p, 128)),
        compiler_params=pltpu.CompilerParams(
            dimension_semantics=("arbitrary",),
        ),
    )(patches1, w1f, g2, w2t, g3, w3t, g4, w4t, gb)

    # Drop row/lane padding, restore NCHW like the PyTorch module.
    y = out[:p4, :c4].reshape(n, sh4, sw4, c4)
    return jnp.transpose(y, (0, 3, 1, 2))


if __name__ == "__main__":
    key = jax.random.PRNGKey(0)
    kx, kp = jax.random.split(key)
    # Input consistent with Conv2d(in_channels=1, ...): NCHW = (2, 1, 16, 16)
    x = jax.random.normal(kx, (2, 1, 16, 16), jnp.float32)
    params = init_cae_params(kp)

    out = cae_forward(x, params)
    out = jax.block_until_ready(out)
    assert out.shape == (2, 64, 1, 1), out.shape
    assert bool(jnp.all(jnp.isfinite(out)))
    print("KERNEL_OK")
</pallas_src>

<mosaic_0001>
module attributes {stable_mosaic.version = 11 : i64} {
  func.func @_cae_fused_kernel(%arg0: i32, %arg1: memref<128x25xbf16, #tpu.memory_space<vmem>>, %arg2: memref<25x8xbf16, #tpu.memory_space<vmem>>, %arg3: memref<800x128xbf16, #tpu.memory_space<vmem>>, %arg4: memref<25x8x16xbf16, #tpu.memory_space<vmem>>, %arg5: memref<200x32xbf16, #tpu.memory_space<vmem>>, %arg6: memref<25x16x32xbf16, #tpu.memory_space<vmem>>, %arg7: memref<200x8xbf16, #tpu.memory_space<vmem>>, %arg8: memref<25x32x128xbf16, #tpu.memory_space<vmem>>, %arg9: memref<8x128xf32, #tpu.memory_space<vmem>>, %arg10: memref<8x128xf32, #tpu.memory_space<vmem>>) attributes {dimension_semantics = [#tpu.dimension_semantics<arbitrary>], iteration_bounds = array<i64: 1>, scalar_prefetch = 0 : i64, scratch_operands = 0 : i64, tpu.core_type = #tpu.core_type<tc>, window_params = [{pipeline_mode = #tpu.pipeline_mode<synchronous>, transform_indices = @transform_0, window_bounds = array<i64: 128, 25>}, {pipeline_mode = #tpu.pipeline_mode<synchronous>, transform_indices = @transform_1, window_bounds = array<i64: 25, 8>}, {pipeline_mode = #tpu.pipeline_mode<synchronous>, transform_indices = @transform_2, window_bounds = array<i64: 800, 128>}, {pipeline_mode = #tpu.pipeline_mode<synchronous>, transform_indices = @transform_3, window_bounds = array<i64: 25, 8, 16>}, {pipeline_mode = #tpu.pipeline_mode<synchronous>, transform_indices = @transform_4, window_bounds = array<i64: 200, 32>}, {pipeline_mode = #tpu.pipeline_mode<synchronous>, transform_indices = @transform_5, window_bounds = array<i64: 25, 16, 32>}, {pipeline_mode = #tpu.pipeline_mode<synchronous>, transform_indices = @transform_6, window_bounds = array<i64: 200, 8>}, {pipeline_mode = #tpu.pipeline_mode<synchronous>, transform_indices = @transform_7, window_bounds = array<i64: 25, 32, 128>}, {pipeline_mode = #tpu.pipeline_mode<synchronous>, transform_indices = @transform_8, window_bounds = array<i64: 8, 128>}, {pipeline_mode = #tpu.pipeline_mode<synchronous>, transform_indices = @transform_9, window_bounds = array<i64: 8, 128>}]} {
    %c0 = arith.constant 0 : index
    %c0_0 = arith.constant 0 : index
    %0 = vector.load %arg1[%c0, %c0_0] : memref<128x25xbf16, #tpu.memory_space<vmem>>, vector<128x25xbf16>
    %c0_1 = arith.constant 0 : index
    %c0_2 = arith.constant 0 : index
    %1 = vector.load %arg2[%c0_1, %c0_2] : memref<25x8xbf16, #tpu.memory_space<vmem>>, vector<25x8xbf16>
    %cst = arith.constant dense<0.000000e+00> : vector<128x8xf32>
    %2 = tpu.matmul %0, %1, %cst {dimension_numbers = #tpu.dot_dimension_numbers<[1], [0], [0], [1], [0, 0, 1, 1], [], []>} : vector<128x25xbf16>, vector<25x8xbf16>, vector<128x8xf32> -> vector<128x8xf32>
    %cst_3 = arith.constant dense<0.000000e+00> : vector<8xf32>
    %3 = vector.multi_reduction <add>, %2, %cst_3 [0] : vector<128x8xf32> to vector<8xf32>
    %4 = vector.shape_cast %3 : vector<8xf32> to vector<1x8xf32>
    %cst_4 = arith.constant 7.812500e-03 : f32
    %5 = vector.broadcast %cst_4 : f32 to vector<1x8xf32>
    %6 = arith.mulf %4, %5 : vector<1x8xf32>
    %7 = arith.mulf %2, %2 : vector<128x8xf32>
    %cst_5 = arith.constant dense<0.000000e+00> : vector<8xf32>
    %8 = vector.multi_reduction <add>, %7, %cst_5 [0] : vector<128x8xf32> to vector<8xf32>
    %9 = vector.shape_cast %8 : vector<8xf32> to vector<1x8xf32>
    %cst_6 = arith.constant 7.812500e-03 : f32
    %10 = vector.broadcast %cst_6 : f32 to vector<1x8xf32>
    %11 = arith.mulf %9, %10 : vector<1x8xf32>
    %12 = arith.mulf %6, %6 : vector<1x8xf32>
    %13 = arith.subf %11, %12 : vector<1x8xf32>
    %c0_7 = arith.constant 0 : index
    %c0_8 = arith.constant 0 : index
    %14 = vector.load %arg9[%c0_7, %c0_8] : memref<8x128xf32, #tpu.memory_space<vmem>>, vector<1x8xf32>
    %c1 = arith.constant 1 : index
    %c0_9 = arith.constant 0 : index
    %15 = vector.load %arg9[%c1, %c0_9] : memref<8x128xf32, #tpu.memory_space<vmem>>, vector<1x8xf32>
    %cst_10 = arith.constant 9.99999974E-6 : f32
    %16 = vector.broadcast %cst_10 : f32 to vector<1x8xf32>
    %17 = arith.addf %13, %16 : vector<1x8xf32>
    %18 = math.rsqrt %17 : vector<1x8xf32>
    %19 = arith.mulf %14, %18 : vector<1x8xf32>
    %20 = vector.broadcast %19 : vector<1x8xf32> to vector<128x8xf32>
    %21 = arith.mulf %2, %20 : vector<128x8xf32>
    %22 = arith.mulf %6, %19 : vector<1x8xf32>
    %23 = arith.subf %15, %22 : vector<1x8xf32>
    %24 = vector.broadcast %23 : vector<1x8xf32> to vector<128x8xf32>
    %25 = arith.addf %21, %24 : vector<128x8xf32>
    %cst_11 = arith.constant 0.000000e+00 : f32
    %26 = vector.broadcast %cst_11 : f32 to vector<128x8xf32>
    %27 = arith.cmpf ogt, %25, %26 : vector<128x8xf32>
    %cst_12 = arith.constant 0.00999999977 : f32
    %28 = vector.broadcast %cst_12 : f32 to vector<128x8xf32>
    %29 = arith.mulf %28, %25 : vector<128x8xf32>
    %30 = arith.select %27, %25, %29 : vector<128x8xi1>, vector<128x8xf32>
    %31 = arith.truncf %30 : vector<128x8xf32> to vector<128x8xbf16>
    %c0_13 = arith.constant 0 : index
    %c0_14 = arith.constant 0 : index
    %32 = vector.load %arg3[%c0_13, %c0_14] : memref<800x128xbf16, #tpu.memory_space<vmem>>, vector<800x128xbf16>
    %cst_15 = arith.constant dense<0.000000e+00> : vector<800x8xf32>
    %33 = tpu.matmul %32, %31, %cst_15 {dimension_numbers = #tpu.dot_dimension_numbers<[1], [0], [0], [1], [0, 0, 1, 1], [], []>} : vector<800x128xbf16>, vector<128x8xbf16>, vector<800x8xf32> -> vector<800x8xf32>
    %34 = arith.truncf %33 : vector<800x8xf32> to vector<800x8xbf16>
    %35 = vector.extract_strided_slice %34 {offsets = [0, 0], sizes = [32, 8], strides = [1, 1]} : vector<800x8xbf16> to vector<32x8xbf16>
    %c0_16 = arith.constant 0 : index
    %c0_17 = arith.constant 0 : index
    %c0_18 = arith.constant 0 : index
    %36 = vector.load %arg4[%c0_16, %c0_17, %c0_18] : memref<25x8x16xbf16, #tpu.memory_space<vmem>>, vector<1x8x16xbf16>
    %37 = vector.shape_cast %36 : vector<1x8x16xbf16> to vector<8x16xbf16>
    %cst_19 = arith.constant dense<0.000000e+00> : vector<32x16xf32>
    %38 = tpu.matmul %35, %37, %cst_19 {dimension_numbers = #tpu.dot_dimension_numbers<[1], [0], [0], [1], [0, 0, 1, 1], [], []>} : vector<32x8xbf16>, vector<8x16xbf16>, vector<32x16xf32> -> vector<32x16xf32>
    %39 = vector.extract_strided_slice %34 {offsets = [32, 0], sizes = [32, 8], strides = [1, 1]} : vector<800x8xbf16> to vector<32x8xbf16>
    %c1_20 = arith.constant 1 : index
    %c0_21 = arith.constant 0 : index
    %c0_22 = arith.constant 0 : index
    %40 = vector.load %arg4[%c1_20, %c0_21, %c0_22] : memref<25x8x16xbf16, #tpu.memory_space<vmem>>, vector<1x8x16xbf16>
    %41 = vector.shape_cast %40 : vector<1x8x16xbf16> to vector<8x16xbf16>
    %cst_23 = arith.constant dense<0.000000e+00> : vector<32x16xf32>
    %42 = tpu.matmul %39, %41, %cst_23 {dimension_numbers = #tpu.dot_dimension_numbers<[1], [0], [0], [1], [0, 0, 1, 1], [], []>} : vector<32x8xbf16>, vector<8x16xbf16>, vector<32x16xf32> -> vector<32x16xf32>
    %43 = vector.extract_strided_slice %34 {offsets = [64, 0], sizes = [32, 8], strides = [1, 1]} : vector<800x8xbf16> to vector<32x8xbf16>
    %c2 = arith.constant 2 : index
    %c0_24 = arith.constant 0 : index
    %c0_25 = arith.constant 0 : index
    %44 = vector.load %arg4[%c2, %c0_24, %c0_25] : memref<25x8x16xbf16, #tpu.memory_space<vmem>>, vector<1x8x16xbf16>
    %45 = vector.shape_cast %44 : vector<1x8x16xbf16> to vector<8x16xbf16>
    %cst_26 = arith.constant dense<0.000000e+00> : vector<32x16xf32>
    %46 = tpu.matmul %43, %45, %cst_26 {dimension_numbers = #tpu.dot_dimension_numbers<[1], [0], [0], [1], [0, 0, 1, 1], [], []>} : vector<32x8xbf16>, vector<8x16xbf16>, vector<32x16xf32> -> vector<32x16xf32>
    %47 = vector.extract_strided_slice %34 {offsets = [96, 0], sizes = [32, 8], strides = [1, 1]} : vector<800x8xbf16> to vector<32x8xbf16>
    %c3 = arith.constant 3 : index
    %c0_27 = arith.constant 0 : index
    %c0_28 = arith.constant 0 : index
    %48 = vector.load %arg4[%c3, %c0_27, %c0_28] : memref<25x8x16xbf16, #tpu.memory_space<vmem>>, vector<1x8x16xbf16>
    %49 = vector.shape_cast %48 : vector<1x8x16xbf16> to vector<8x16xbf16>
    %cst_29 = arith.constant dense<0.000000e+00> : vector<32x16xf32>
    %50 = tpu.matmul %47, %49, %cst_29 {dimension_numbers = #tpu.dot_dimension_numbers<[1], [0], [0], [1], [0, 0, 1, 1], [], []>} : vector<32x8xbf16>, vector<8x16xbf16>, vector<32x16xf32> -> vector<32x16xf32>
    %51 = vector.extract_strided_slice %34 {offsets = [128, 0], sizes = [32, 8], strides = [1, 1]} : vector<800x8xbf16> to vector<32x8xbf16>
    %c4 = arith.constant 4 : index
    %c0_30 = arith.constant 0 : index
    %c0_31 = arith.constant 0 : index
    %52 = vector.load %arg4[%c4, %c0_30, %c0_31] : memref<25x8x16xbf16, #tpu.memory_space<vmem>>, vector<1x8x16xbf16>
    %53 = vector.shape_cast %52 : vector<1x8x16xbf16> to vector<8x16xbf16>
    %cst_32 = arith.constant dense<0.000000e+00> : vector<32x16xf32>
    %54 = tpu.matmul %51, %53, %cst_32 {dimension_numbers = #tpu.dot_dimension_numbers<[1], [0], [0], [1], [0, 0, 1, 1], [], []>} : vector<32x8xbf16>, vector<8x16xbf16>, vector<32x16xf32> -> vector<32x16xf32>
    %55 = vector.extract_strided_slice %34 {offsets = [160, 0], sizes = [32, 8], strides = [1, 1]} : vector<800x8xbf16> to vector<32x8xbf16>
    %c5 = arith.constant 5 : index
    %c0_33 = arith.constant 0 : index
    %c0_34 = arith.constant 0 : index
    %56 = vector.load %arg4[%c5, %c0_33, %c0_34] : memref<25x8x16xbf16, #tpu.memory_space<vmem>>, vector<1x8x16xbf16>
    %57 = vector.shape_cast %56 : vector<1x8x16xbf16> to vector<8x16xbf16>
    %cst_35 = arith.constant dense<0.000000e+00> : vector<32x16xf32>
    %58 = tpu.matmul %55, %57, %cst_35 {dimension_numbers = #tpu.dot_dimension_numbers<[1], [0], [0], [1], [0, 0, 1, 1], [], []>} : vector<32x8xbf16>, vector<8x16xbf16>, vector<32x16xf32> -> vector<32x16xf32>
    %59 = vector.extract_strided_slice %34 {offsets = [192, 0], sizes = [32, 8], strides = [1, 1]} : vector<800x8xbf16> to vector<32x8xbf16>
    %c6 = arith.constant 6 : index
    %c0_36 = arith.constant 0 : index
    %c0_37 = arith.constant 0 : index
    %60 = vector.load %arg4[%c6, %c0_36, %c0_37] : memref<25x8x16xbf16, #tpu.memory_space<vmem>>, vector<1x8x16xbf16>
    %61 = vector.shape_cast %60 : vector<1x8x16xbf16> to vector<8x16xbf16>
    %cst_38 = arith.constant dense<0.000000e+00> : vector<32x16xf32>
    %62 = tpu.matmul %59, %61, %cst_38 {dimension_numbers = #tpu.dot_dimension_numbers<[1], [0], [0], [1], [0, 0, 1, 1], [], []>} : vector<32x8xbf16>, vector<8x16xbf16>, vector<32x16xf32> -> vector<32x16xf32>
    %63 = vector.extract_strided_slice %34 {offsets = [224, 0], sizes = [32, 8], strides = [1, 1]} : vector<800x8xbf16> to vector<32x8xbf16>
    %c7 = arith.constant 7 : index
    %c0_39 = arith.constant 0 : index
    %c0_40 = arith.constant 0 : index
    %64 = vector.load %arg4[%c7, %c0_39, %c0_40] : memref<25x8x16xbf16, #tpu.memory_space<vmem>>, vector<1x8x16xbf16>
    %65 = vector.shape_cast %64 : vector<1x8x16xbf16> to vector<8x16xbf16>
    %cst_41 = arith.constant dense<0.000000e+00> : vector<32x16xf32>
    %66 = tpu.matmul %63, %65, %cst_41 {dimension_numbers = #tpu.dot_dimension_numbers<[1], [0], [0], [1], [0, 0, 1, 1], [], []>} : vector<32x8xbf16>, vector<8x16xbf16>, vector<32x16xf32> -> vector<32x16xf32>
    %67 = vector.extract_strided_slice %34 {offsets = [256, 0], sizes = [32, 8], strides = [1, 1]} : vector<800x8xbf16> to vector<32x8xbf16>
    %c8 = arith.constant 8 : index
    %c0_42 = arith.constant 0 : index
    %c0_43 = arith.constant 0 : index
    %68 = vector.load %arg4[%c8, %c0_42, %c0_43] : memref<25x8x16xbf16, #tpu.memory_space<vmem>>, vector<1x8x16xbf16>
    %69 = vector.shape_cast %68 : vector<1x8x16xbf16> to vector<8x16xbf16>
    %cst_44 = arith.constant dense<0.000000e+00> : vector<32x16xf32>
    %70 = tpu.matmul %67, %69, %cst_44 {dimension_numbers = #tpu.dot_dimension_numbers<[1], [0], [0], [1], [0, 0, 1, 1], [], []>} : vector<32x8xbf16>, vector<8x16xbf16>, vector<32x16xf32> -> vector<32x16xf32>
    %71 = vector.extract_strided_slice %34 {offsets = [288, 0], sizes = [32, 8], strides = [1, 1]} : vector<800x8xbf16> to vector<32x8xbf16>
    %c9 = arith.constant 9 : index
    %c0_45 = arith.constant 0 : index
    %c0_46 = arith.constant 0 : index
    %72 = vector.load %arg4[%c9, %c0_45, %c0_46] : memref<25x8x16xbf16, #tpu.memory_space<vmem>>, vector<1x8x16xbf16>
    %73 = vector.shape_cast %72 : vector<1x8x16xbf16> to vector<8x16xbf16>
    %cst_47 = arith.constant dense<0.000000e+00> : vector<32x16xf32>
    %74 = tpu.matmul %71, %73, %cst_47 {dimension_numbers = #tpu.dot_dimension_numbers<[1], [0], [0], [1], [0, 0, 1, 1], [], []>} : vector<32x8xbf16>, vector<8x16xbf16>, vector<32x16xf32> -> vector<32x16xf32>
    %75 = vector.extract_strided_slice %34 {offsets = [320, 0], sizes = [32, 8], strides = [1, 1]} : vector<800x8xbf16> to vector<32x8xbf16>
    %c10 = arith.constant 10 : index
    %c0_48 = arith.constant 0 : index
    %c0_49 = arith.constant 0 : index
    %76 = vector.load %arg4[%c10, %c0_48, %c0_49] : memref<25x8x16xbf16, #tpu.memory_space<vmem>>, vector<1x8x16xbf16>
    %77 = vector.shape_cast %76 : vector<1x8x16xbf16> to vector<8x16xbf16>
    %cst_50 = arith.constant dense<0.000000e+00> : vector<32x16xf32>
    %78 = tpu.matmul %75, %77, %cst_50 {dimension_numbers = #tpu.dot_dimension_numbers<[1], [0], [0], [1], [0, 0, 1, 1], [], []>} : vector<32x8xbf16>, vector<8x16xbf16>, vector<32x16xf32> -> vector<32x16xf32>
    %79 = vector.extract_strided_slice %34 {offsets = [352, 0], sizes = [32, 8], strides = [1, 1]} : vector<800x8xbf16> to vector<32x8xbf16>
    %c11 = arith.constant 11 : index
    %c0_51 = arith.constant 0 : index
    %c0_52 = arith.constant 0 : index
    %80 = vector.load %arg4[%c11, %c0_51, %c0_52] : memref<25x8x16xbf16, #tpu.memory_space<vmem>>, vector<1x8x16xbf16>
    %81 = vector.shape_cast %80 : vector<1x8x16xbf16> to vector<8x16xbf16>
    %cst_53 = arith.constant dense<0.000000e+00> : vector<32x16xf32>
    %82 = tpu.matmul %79, %81, %cst_53 {dimension_numbers = #tpu.dot_dimension_numbers<[1], [0], [0], [1], [0, 0, 1, 1], [], []>} : vector<32x8xbf16>, vector<8x16xbf16>, vector<32x16xf32> -> vector<32x16xf32>
    %83 = vector.extract_strided_slice %34 {offsets = [384, 0], sizes = [32, 8], strides = [1, 1]} : vector<800x8xbf16> to vector<32x8xbf16>
    %c12 = arith.constant 12 : index
    %c0_54 = arith.constant 0 : index
    %c0_55 = arith.constant 0 : index
    %84 = vector.load %arg4[%c12, %c0_54, %c0_55] : memref<25x8x16xbf16, #tpu.memory_space<vmem>>, vector<1x8x16xbf16>
    %85 = vector.shape_cast %84 : vector<1x8x16xbf16> to vector<8x16xbf16>
    %cst_56 = arith.constant dense<0.000000e+00> : vector<32x16xf32>
    %86 = tpu.matmul %83, %85, %cst_56 {dimension_numbers = #tpu.dot_dimension_numbers<[1], [0], [0], [1], [0, 0, 1, 1], [], []>} : vector<32x8xbf16>, vector<8x16xbf16>, vector<32x16xf32> -> vector<32x16xf32>
    %87 = vector.extract_strided_slice %34 {offsets = [416, 0], sizes = [32, 8], strides = [1, 1]} : vector<800x8xbf16> to vector<32x8xbf16>
    %c13 = arith.constant 13 : index
    %c0_57 = arith.constant 0 : index
    %c0_58 = arith.constant 0 : index
    %88 = vector.load %arg4[%c13, %c0_57, %c0_58] : memref<25x8x16xbf16, #tpu.memory_space<vmem>>, vector<1x8x16xbf16>
    %89 = vector.shape_cast %88 : vector<1x8x16xbf16> to vector<8x16xbf16>
    %cst_59 = arith.constant dense<0.000000e+00> : vector<32x16xf32>
    %90 = tpu.matmul %87, %89, %cst_59 {dimension_numbers = #tpu.dot_dimension_numbers<[1], [0], [0], [1], [0, 0, 1, 1], [], []>} : vector<32x8xbf16>, vector<8x16xbf16>, vector<32x16xf32> -> vector<32x16xf32>
    %91 = vector.extract_strided_slice %34 {offsets = [448, 0], sizes = [32, 8], strides = [1, 1]} : vector<800x8xbf16> to vector<32x8xbf16>
    %c14 = arith.constant 14 : index
    %c0_60 = arith.constant 0 : index
    %c0_61 = arith.constant 0 : index
    %92 = vector.load %arg4[%c14, %c0_60, %c0_61] : memref<25x8x16xbf16, #tpu.memory_space<vmem>>, vector<1x8x16xbf16>
    %93 = vector.shape_cast %92 : vector<1x8x16xbf16> to vector<8x16xbf16>
    %cst_62 = arith.constant dense<0.000000e+00> : vector<32x16xf32>
    %94 = tpu.matmul %91, %93, %cst_62 {dimension_numbers = #tpu.dot_dimension_numbers<[1], [0], [0], [1], [0, 0, 1, 1], [], []>} : vector<32x8xbf16>, vector<8x16xbf16>, vector<32x16xf32> -> vector<32x16xf32>
    %95 = vector.extract_strided_slice %34 {offsets = [480, 0], sizes = [32, 8], strides = [1, 1]} : vector<800x8xbf16> to vector<32x8xbf16>
    %c15 = arith.constant 15 : index
    %c0_63 = arith.constant 0 : index
    %c0_64 = arith.constant 0 : index
    %96 = vector.load %arg4[%c15, %c0_63, %c0_64] : memref<25x8x16xbf16, #tpu.memory_space<vmem>>, vector<1x8x16xbf16>
    %97 = vector.shape_cast %96 : vector<1x8x16xbf16> to vector<8x16xbf16>
    %cst_65 = arith.constant dense<0.000000e+00> : vector<32x16xf32>
    %98 = tpu.matmul %95, %97, %cst_65 {dimension_numbers = #tpu.dot_dimension_numbers<[1], [0], [0], [1], [0, 0, 1, 1], [], []>} : vector<32x8xbf16>, vector<8x16xbf16>, vector<32x16xf32> -> vector<32x16xf32>
    %99 = vector.extract_strided_slice %34 {offsets = [512, 0], sizes = [32, 8], strides = [1, 1]} : vector<800x8xbf16> to vector<32x8xbf16>
    %c16 = arith.constant 16 : index
    %c0_66 = arith.constant 0 : index
    %c0_67 = arith.constant 0 : index
    %100 = vector.load %arg4[%c16, %c0_66, %c0_67] : memref<25x8x16xbf16, #tpu.memory_space<vmem>>, vector<1x8x16xbf16>
    %101 = vector.shape_cast %100 : vector<1x8x16xbf16> to vector<8x16xbf16>
    %cst_68 = arith.constant dense<0.000000e+00> : vector<32x16xf32>
    %102 = tpu.matmul %99, %101, %cst_68 {dimension_numbers = #tpu.dot_dimension_numbers<[1], [0], [0], [1], [0, 0, 1, 1], [], []>} : vector<32x8xbf16>, vector<8x16xbf16>, vector<32x16xf32> -> vector<32x16xf32>
    %103 = vector.extract_strided_slice %34 {offsets = [544, 0], sizes = [32, 8], strides = [1, 1]} : vector<800x8xbf16> to vector<32x8xbf16>
    %c17 = arith.constant 17 : index
    %c0_69 = arith.constant 0 : index
    %c0_70 = arith.constant 0 : index
    %104 = vector.load %arg4[%c17, %c0_69, %c0_70] : memref<25x8x16xbf16, #tpu.memory_space<vmem>>, vector<1x8x16xbf16>
    %105 = vector.shape_cast %104 : vector<1x8x16xbf16> to vector<8x16xbf16>
    %cst_71 = arith.constant dense<0.000000e+00> : vector<32x16xf32>
    %106 = tpu.matmul %103, %105, %cst_71 {dimension_numbers = #tpu.dot_dimension_numbers<[1], [0], [0], [1], [0, 0, 1, 1], [], []>} : vector<32x8xbf16>, vector<8x16xbf16>, vector<32x16xf32> -> vector<32x16xf32>
    %107 = vector.extract_strided_slice %34 {offsets = [576, 0], sizes = [32, 8], strides = [1, 1]} : vector<800x8xbf16> to vector<32x8xbf16>
    %c18 = arith.constant 18 : index
    %c0_72 = arith.constant 0 : index
    %c0_73 = arith.constant 0 : index
    %108 = vector.load %arg4[%c18, %c0_72, %c0_73] : memref<25x8x16xbf16, #tpu.memory_space<vmem>>, vector<1x8x16xbf16>
    %109 = vector.shape_cast %108 : vector<1x8x16xbf16> to vector<8x16xbf16>
    %cst_74 = arith.constant dense<0.000000e+00> : vector<32x16xf32>
    %110 = tpu.matmul %107, %109, %cst_74 {dimension_numbers = #tpu.dot_dimension_numbers<[1], [0], [0], [1], [0, 0, 1, 1], [], []>} : vector<32x8xbf16>, vector<8x16xbf16>, vector<32x16xf32> -> vector<32x16xf32>
    %111 = vector.extract_strided_slice %34 {offsets = [608, 0], sizes = [32, 8], strides = [1, 1]} : vector<800x8xbf16> to vector<32x8xbf16>
    %c19 = arith.constant 19 : index
    %c0_75 = arith.constant 0 : index
    %c0_76 = arith.constant 0 : index
    %112 = vector.load %arg4[%c19, %c0_75, %c0_76] : memref<25x8x16xbf16, #tpu.memory_space<vmem>>, vector<1x8x16xbf16>
    %113 = vector.shape_cast %112 : vector<1x8x16xbf16> to vector<8x16xbf16>
    %cst_77 = arith.constant dense<0.000000e+00> : vector<32x16xf32>
    %114 = tpu.matmul %111, %113, %cst_77 {dimension_numbers = #tpu.dot_dimension_numbers<[1], [0], [0], [1], [0, 0, 1, 1], [], []>} : vector<32x8xbf16>, vector<8x16xbf16>, vector<32x16xf32> -> vector<32x16xf32>
    %115 = vector.extract_strided_slice %34 {offsets = [640, 0], sizes = [32, 8], strides = [1, 1]} : vector<800x8xbf16> to vector<32x8xbf16>
    %c20 = arith.constant 20 : index
    %c0_78 = arith.constant 0 : index
    %c0_79 = arith.constant 0 : index
    %116 = vector.load %arg4[%c20, %c0_78, %c0_79] : memref<25x8x16xbf16, #tpu.memory_space<vmem>>, vector<1x8x16xbf16>
    %117 = vector.shape_cast %116 : vector<1x8x16xbf16> to vector<8x16xbf16>
    %cst_80 = arith.constant dense<0.000000e+00> : vector<32x16xf32>
    %118 = tpu.matmul %115, %117, %cst_80 {dimension_numbers = #tpu.dot_dimension_numbers<[1], [0], [0], [1], [0, 0, 1, 1], [], []>} : vector<32x8xbf16>, vector<8x16xbf16>, vector<32x16xf32> -> vector<32x16xf32>
    %119 = vector.extract_strided_slice %34 {offsets = [672, 0], sizes = [32, 8], strides = [1, 1]} : vector<800x8xbf16> to vector<32x8xbf16>
    %c21 = arith.constant 21 : index
    %c0_81 = arith.constant 0 : index
    %c0_82 = arith.constant 0 : index
    %120 = vector.load %arg4[%c21, %c0_81, %c0_82] : memref<25x8x16xbf16, #tpu.memory_space<vmem>>, vector<1x8x16xbf16>
    %121 = vector.shape_cast %120 : vector<1x8x16xbf16> to vector<8x16xbf16>
    %cst_83 = arith.constant dense<0.000000e+00> : vector<32x16xf32>
    %122 = tpu.matmul %119, %121, %cst_83 {dimension_numbers = #tpu.dot_dimension_numbers<[1], [0], [0], [1], [0, 0, 1, 1], [], []>} : vector<32x8xbf16>, vector<8x16xbf16>, vector<32x16xf32> -> vector<32x16xf32>
    %123 = vector.extract_strided_slice %34 {offsets = [704, 0], sizes = [32, 8], strides = [1, 1]} : vector<800x8xbf16> to vector<32x8xbf16>
    %c22 = arith.constant 22 : index
    %c0_84 = arith.constant 0 : index
    %c0_85 = arith.constant 0 : index
    %124 = vector.load %arg4[%c22, %c0_84, %c0_85] : memref<25x8x16xbf16, #tpu.memory_space<vmem>>, vector<1x8x16xbf16>
    %125 = vector.shape_cast %124 : vector<1x8x16xbf16> to vector<8x16xbf16>
    %cst_86 = arith.constant dense<0.000000e+00> : vector<32x16xf32>
    %126 = tpu.matmul %123, %125, %cst_86 {dimension_numbers = #tpu.dot_dimension_numbers<[1], [0], [0], [1], [0, 0, 1, 1], [], []>} : vector<32x8xbf16>, vector<8x16xbf16>, vector<32x16xf32> -> vector<32x16xf32>
    %127 = vector.extract_strided_slice %34 {offsets = [736, 0], sizes = [32, 8], strides = [1, 1]} : vector<800x8xbf16> to vector<32x8xbf16>
    %c23 = arith.constant 23 : index
    %c0_87 = arith.constant 0 : index
    %c0_88 = arith.constant 0 : index
    %128 = vector.load %arg4[%c23, %c0_87, %c0_88] : memref<25x8x16xbf16, #tpu.memory_space<vmem>>, vector<1x8x16xbf16>
    %129 = vector.shape_cast %128 : vector<1x8x16xbf16> to vector<8x16xbf16>
    %cst_89 = arith.constant dense<0.000000e+00> : vector<32x16xf32>
    %130 = tpu.matmul %127, %129, %cst_89 {dimension_numbers = #tpu.dot_dimension_numbers<[1], [0], [0], [1], [0, 0, 1, 1], [], []>} : vector<32x8xbf16>, vector<8x16xbf16>, vector<32x16xf32> -> vector<32x16xf32>
    %131 = vector.extract_strided_slice %34 {offsets = [768, 0], sizes = [32, 8], strides = [1, 1]} : vector<800x8xbf16> to vector<32x8xbf16>
    %c24 = arith.constant 24 : index
    %c0_90 = arith.constant 0 : index
    %c0_91 = arith.constant 0 : index
    %132 = vector.load %arg4[%c24, %c0_90, %c0_91] : memref<25x8x16xbf16, #tpu.memory_space<vmem>>, vector<1x8x16xbf16>
    %133 = vector.shape_cast %132 : vector<1x8x16xbf16> to vector<8x16xbf16>
    %cst_92 = arith.constant dense<0.000000e+00> : vector<32x16xf32>
    %134 = tpu.matmul %131, %133, %cst_92 {dimension_numbers = #tpu.dot_dimension_numbers<[1], [0], [0], [1], [0, 0, 1, 1], [], []>} : vector<32x8xbf16>, vector<8x16xbf16>, vector<32x16xf32> -> vector<32x16xf32>
    %135 = arith.addf %38, %42 : vector<32x16xf32>
    %136 = arith.addf %46, %50 : vector<32x16xf32>
    %137 = arith.addf %54, %58 : vector<32x16xf32>
    %138 = arith.addf %62, %66 : vector<32x16xf32>
    %139 = arith.addf %70, %74 : vector<32x16xf32>
    %140 = arith.addf %78, %82 : vector<32x16xf32>
    %141 = arith.addf %86, %90 : vector<32x16xf32>
    %142 = arith.addf %94, %98 : vector<32x16xf32>
    %143 = arith.addf %102, %106 : vector<32x16xf32>
    %144 = arith.addf %110, %114 : vector<32x16xf32>
    %145 = arith.addf %118, %122 : vector<32x16xf32>
    %146 = arith.addf %126, %130 : vector<32x16xf32>
    %147 = arith.addf %135, %136 : vector<32x16xf32>
    %148 = arith.addf %137, %138 : vector<32x16xf32>
    %149 = arith.addf %139, %140 : vector<32x16xf32>
    %150 = arith.addf %141, %142 : vector<32x16xf32>
    %151 = arith.addf %143, %144 : vector<32x16xf32>
    %152 = arith.addf %145, %146 : vector<32x16xf32>
    %153 = arith.addf %147, %148 : vector<32x16xf32>
    %154 = arith.addf %149, %150 : vector<32x16xf32>
    %155 = arith.addf %151, %152 : vector<32x16xf32>
    %156 = arith.addf %153, %154 : vector<32x16xf32>
    %157 = arith.addf %155, %134 : vector<32x16xf32>
    %158 = arith.addf %156, %157 : vector<32x16xf32>
    %cst_93 = arith.constant dense<0.000000e+00> : vector<16xf32>
    %159 = vector.multi_reduction <add>, %158, %cst_93 [0] : vector<32x16xf32> to vector<16xf32>
    %160 = vector.shape_cast %159 : vector<16xf32> to vector<1x16xf32>
    %cst_94 = arith.constant 3.125000e-02 : f32
    %161 = vector.broadcast %cst_94 : f32 to vector<1x16xf32>
    %162 = arith.mulf %160, %161 : vector<1x16xf32>
    %163 = arith.mulf %158, %158 : vector<32x16xf32>
    %cst_95 = arith.constant dense<0.000000e+00> : vector<16xf32>
    %164 = vector.multi_reduction <add>, %163, %cst_95 [0] : vector<32x16xf32> to vector<16xf32>
    %165 = vector.shape_cast %164 : vector<16xf32> to vector<1x16xf32>
    %cst_96 = arith.constant 3.125000e-02 : f32
    %166 = vector.broadcast %cst_96 : f32 to vector<1x16xf32>
    %167 = arith.mulf %165, %166 : vector<1x16xf32>
    %168 = arith.mulf %162, %162 : vector<1x16xf32>
    %169 = arith.subf %167, %168 : vector<1x16xf32>
    %c2_97 = arith.constant 2 : index
    %c0_98 = arith.constant 0 : index
    %170 = vector.load %arg9[%c2_97, %c0_98] : memref<8x128xf32, #tpu.memory_space<vmem>>, vector<1x16xf32>
    %c3_99 = arith.constant 3 : index
    %c0_100 = arith.constant 0 : index
    %171 = vector.load %arg9[%c3_99, %c0_100] : memref<8x128xf32, #tpu.memory_space<vmem>>, vector<1x16xf32>
    %cst_101 = arith.constant 9.99999974E-6 : f32
    %172 = vector.broadcast %cst_101 : f32 to vector<1x16xf32>
    %173 = arith.addf %169, %172 : vector<1x16xf32>
    %174 = math.rsqrt %173 : vector<1x16xf32>
    %175 = arith.mulf %170, %174 : vector<1x16xf32>
    %176 = vector.broadcast %175 : vector<1x16xf32> to vector<32x16xf32>
    %177 = arith.mulf %158, %176 : vector<32x16xf32>
    %178 = arith.mulf %162, %175 : vector<1x16xf32>
    %179 = arith.subf %171, %178 : vector<1x16xf32>
    %180 = vector.broadcast %179 : vector<1x16xf32> to vector<32x16xf32>
    %181 = arith.addf %177, %180 : vector<32x16xf32>
    %cst_102 = arith.constant 0.000000e+00 : f32
    %182 = vector.broadcast %cst_102 : f32 to vector<32x16xf32>
    %183 = arith.cmpf ogt, %181, %182 : vector<32x16xf32>
    %cst_103 = arith.constant 0.00999999977 : f32
    %184 = vector.broadcast %cst_103 : f32 to vector<32x16xf32>
    %185 = arith.mulf %184, %181 : vector<32x16xf32>
    %186 = arith.select %183, %181, %185 : vector<32x16xi1>, vector<32x16xf32>
    %187 = arith.truncf %186 : vector<32x16xf32> to vector<32x16xbf16>
    %c0_104 = arith.constant 0 : index
    %c0_105 = arith.constant 0 : index
    %188 = vector.load %arg5[%c0_104, %c0_105] : memref<200x32xbf16, #tpu.memory_space<vmem>>, vector<200x32xbf16>
    %cst_106 = arith.constant dense<0.000000e+00> : vector<200x16xf32>
    %189 = tpu.matmul %188, %187, %cst_106 {dimension_numbers = #tpu.dot_dimension_numbers<[1], [0], [0], [1], [0, 0, 1, 1], [], []>} : vector<200x32xbf16>, vector<32x16xbf16>, vector<200x16xf32> -> vector<200x16xf32>
    %190 = arith.truncf %189 : vector<200x16xf32> to vector<200x16xbf16>
    %191 = vector.extract_strided_slice %190 {offsets = [0, 0], sizes = [8, 16], strides = [1, 1]} : vector<200x16xbf16> to vector<8x16xbf16>
    %c0_107 = arith.constant 0 : index
    %c0_108 = arith.constant 0 : index
    %c0_109 = arith.constant 0 : index
    %192 = vector.load %arg6[%c0_107, %c0_108, %c0_109] : memref<25x16x32xbf16, #tpu.memory_space<vmem>>, vector<1x16x32xbf16>
    %193 = vector.shape_cast %192 : vector<1x16x32xbf16> to vector<16x32xbf16>
    %cst_110 = arith.constant dense<0.000000e+00> : vector<8x32xf32>
    %194 = tpu.matmul %191, %193, %cst_110 {dimension_numbers = #tpu.dot_dimension_numbers<[1], [0], [0], [1], [0, 0, 1, 1], [], []>} : vector<8x16xbf16>, vector<16x32xbf16>, vector<8x32xf32> -> vector<8x32xf32>
    %195 = vector.extract_strided_slice %190 {offsets = [8, 0], sizes = [8, 16], strides = [1, 1]} : vector<200x16xbf16> to vector<8x16xbf16>
    %c1_111 = arith.constant 1 : index
    %c0_112 = arith.constant 0 : index
    %c0_113 = arith.constant 0 : index
    %196 = vector.load %arg6[%c1_111, %c0_112, %c0_113] : memref<25x16x32xbf16, #tpu.memory_space<vmem>>, vector<1x16x32xbf16>
    %197 = vector.shape_cast %196 : vector<1x16x32xbf16> to vector<16x32xbf16>
    %cst_114 = arith.constant dense<0.000000e+00> : vector<8x32xf32>
    %198 = tpu.matmul %195, %197, %cst_114 {dimension_numbers = #tpu.dot_dimension_numbers<[1], [0], [0], [1], [0, 0, 1, 1], [], []>} : vector<8x16xbf16>, vector<16x32xbf16>, vector<8x32xf32> -> vector<8x32xf32>
    %199 = vector.extract_strided_slice %190 {offsets = [16, 0], sizes = [8, 16], strides = [1, 1]} : vector<200x16xbf16> to vector<8x16xbf16>
    %c2_115 = arith.constant 2 : index
    %c0_116 = arith.constant 0 : index
    %c0_117 = arith.constant 0 : index
    %200 = vector.load %arg6[%c2_115, %c0_116, %c0_117] : memref<25x16x32xbf16, #tpu.memory_space<vmem>>, vector<1x16x32xbf16>
    %201 = vector.shape_cast %200 : vector<1x16x32xbf16> to vector<16x32xbf16>
    %cst_118 = arith.constant dense<0.000000e+00> : vector<8x32xf32>
    %202 = tpu.matmul %199, %201, %cst_118 {dimension_numbers = #tpu.dot_dimension_numbers<[1], [0], [0], [1], [0, 0, 1, 1], [], []>} : vector<8x16xbf16>, vector<16x32xbf16>, vector<8x32xf32> -> vector<8x32xf32>
    %203 = vector.extract_strided_slice %190 {offsets = [24, 0], sizes = [8, 16], strides = [1, 1]} : vector<200x16xbf16> to vector<8x16xbf16>
    %c3_119 = arith.constant 3 : index
    %c0_120 = arith.constant 0 : index
    %c0_121 = arith.constant 0 : index
    %204 = vector.load %arg6[%c3_119, %c0_120, %c0_121] : memref<25x16x32xbf16, #tpu.memory_space<vmem>>, vector<1x16x32xbf16>
    %205 = vector.shape_cast %204 : vector<1x16x32xbf16> to vector<16x32xbf16>
    %cst_122 = arith.constant dense<0.000000e+00> : vector<8x32xf32>
    %206 = tpu.matmul %203, %205, %cst_122 {dimension_numbers = #tpu.dot_dimension_numbers<[1], [0], [0], [1], [0, 0, 1, 1], [], []>} : vector<8x16xbf16>, vector<16x32xbf16>, vector<8x32xf32> -> vector<8x32xf32>
    %207 = vector.extract_strided_slice %190 {offsets = [32, 0], sizes = [8, 16], strides = [1, 1]} : vector<200x16xbf16> to vector<8x16xbf16>
    %c4_123 = arith.constant 4 : index
    %c0_124 = arith.constant 0 : index
    %c0_125 = arith.constant 0 : index
    %208 = vector.load %arg6[%c4_123, %c0_124, %c0_125] : memref<25x16x32xbf16, #tpu.memory_space<vmem>>, vector<1x16x32xbf16>
    %209 = vector.shape_cast %208 : vector<1x16x32xbf16> to vector<16x32xbf16>
    %cst_126 = arith.constant dense<0.000000e+00> : vector<8x32xf32>
    %210 = tpu.matmul %207, %209, %cst_126 {dimension_numbers = #tpu.dot_dimension_numbers<[1], [0], [0], [1], [0, 0, 1, 1], [], []>} : vector<8x16xbf16>, vector<16x32xbf16>, vector<8x32xf32> -> vector<8x32xf32>
    %211 = vector.extract_strided_slice %190 {offsets = [40, 0], sizes = [8, 16], strides = [1, 1]} : vector<200x16xbf16> to vector<8x16xbf16>
    %c5_127 = arith.constant 5 : index
    %c0_128 = arith.constant 0 : index
    %c0_129 = arith.constant 0 : index
    %212 = vector.load %arg6[%c5_127, %c0_128, %c0_129] : memref<25x16x32xbf16, #tpu.memory_space<vmem>>, vector<1x16x32xbf16>
    %213 = vector.shape_cast %212 : vector<1x16x32xbf16> to vector<16x32xbf16>
    %cst_130 = arith.constant dense<0.000000e+00> : vector<8x32xf32>
    %214 = tpu.matmul %211, %213, %cst_130 {dimension_numbers = #tpu.dot_dimension_numbers<[1], [0], [0], [1], [0, 0, 1, 1], [], []>} : vector<8x16xbf16>, vector<16x32xbf16>, vector<8x32xf32> -> vector<8x32xf32>
    %215 = vector.extract_strided_slice %190 {offsets = [48, 0], sizes = [8, 16], strides = [1, 1]} : vector<200x16xbf16> to vector<8x16xbf16>
    %c6_131 = arith.constant 6 : index
    %c0_132 = arith.constant 0 : index
    %c0_133 = arith.constant 0 : index
    %216 = vector.load %arg6[%c6_131, %c0_132, %c0_133] : memref<25x16x32xbf16, #tpu.memory_space<vmem>>, vector<1x16x32xbf16>
    %217 = vector.shape_cast %216 : vector<1x16x32xbf16> to vector<16x32xbf16>
    %cst_134 = arith.constant dense<0.000000e+00> : vector<8x32xf32>
    %218 = tpu.matmul %215, %217, %cst_134 {dimension_numbers = #tpu.dot_dimension_numbers<[1], [0], [0], [1], [0, 0, 1, 1], [], []>} : vector<8x16xbf16>, vector<16x32xbf16>, vector<8x32xf32> -> vector<8x32xf32>
    %219 = vector.extract_strided_slice %190 {offsets = [56, 0], sizes = [8, 16], strides = [1, 1]} : vector<200x16xbf16> to vector<8x16xbf16>
    %c7_135 = arith.constant 7 : index
    %c0_136 = arith.constant 0 : index
    %c0_137 = arith.constant 0 : index
    %220 = vector.load %arg6[%c7_135, %c0_136, %c0_137] : memref<25x16x32xbf16, #tpu.memory_space<vmem>>, vector<1x16x32xbf16>
    %221 = vector.shape_cast %220 : vector<1x16x32xbf16> to vector<16x32xbf16>
    %cst_138 = arith.constant dense<0.000000e+00> : vector<8x32xf32>
    %222 = tpu.matmul %219, %221, %cst_138 {dimension_numbers = #tpu.dot_dimension_numbers<[1], [0], [0], [1], [0, 0, 1, 1], [], []>} : vector<8x16xbf16>, vector<16x32xbf16>, vector<8x32xf32> -> vector<8x32xf32>
    %223 = vector.extract_strided_slice %190 {offsets = [64, 0], sizes = [8, 16], strides = [1, 1]} : vector<200x16xbf16> to vector<8x16xbf16>
    %c8_139 = arith.constant 8 : index
    %c0_140 = arith.constant 0 : index
    %c0_141 = arith.constant 0 : index
    %224 = vector.load %arg6[%c8_139, %c0_140, %c0_141] : memref<25x16x32xbf16, #tpu.memory_space<vmem>>, vector<1x16x32xbf16>
    %225 = vector.shape_cast %224 : vector<1x16x32xbf16> to vector<16x32xbf16>
    %cst_142 = arith.constant dense<0.000000e+00> : vector<8x32xf32>
    %226 = tpu.matmul %223, %225, %cst_142 {dimension_numbers = #tpu.dot_dimension_numbers<[1], [0], [0], [1], [0, 0, 1, 1], [], []>} : vector<8x16xbf16>, vector<16x32xbf16>, vector<8x32xf32> -> vector<8x32xf32>
    %227 = vector.extract_strided_slice %190 {offsets = [72, 0], sizes = [8, 16], strides = [1, 1]} : vector<200x16xbf16> to vector<8x16xbf16>
    %c9_143 = arith.constant 9 : index
    %c0_144 = arith.constant 0 : index
    %c0_145 = arith.constant 0 : index
    %228 = vector.load %arg6[%c9_143, %c0_144, %c0_145] : memref<25x16x32xbf16, #tpu.memory_space<vmem>>, vector<1x16x32xbf16>
    %229 = vector.shape_cast %228 : vector<1x16x32xbf16> to vector<16x32xbf16>
    %cst_146 = arith.constant dense<0.000000e+00> : vector<8x32xf32>
    %230 = tpu.matmul %227, %229, %cst_146 {dimension_numbers = #tpu.dot_dimension_numbers<[1], [0], [0], [1], [0, 0, 1, 1], [], []>} : vector<8x16xbf16>, vector<16x32xbf16>, vector<8x32xf32> -> vector<8x32xf32>
    %231 = vector.extract_strided_slice %190 {offsets = [80, 0], sizes = [8, 16], strides = [1, 1]} : vector<200x16xbf16> to vector<8x16xbf16>
    %c10_147 = arith.constant 10 : index
    %c0_148 = arith.constant 0 : index
    %c0_149 = arith.constant 0 : index
    %232 = vector.load %arg6[%c10_147, %c0_148, %c0_149] : memref<25x16x32xbf16, #tpu.memory_space<vmem>>, vector<1x16x32xbf16>
    %233 = vector.shape_cast %232 : vector<1x16x32xbf16> to vector<16x32xbf16>
    %cst_150 = arith.constant dense<0.000000e+00> : vector<8x32xf32>
    %234 = tpu.matmul %231, %233, %cst_150 {dimension_numbers = #tpu.dot_dimension_numbers<[1], [0], [0], [1], [0, 0, 1, 1], [], []>} : vector<8x16xbf16>, vector<16x32xbf16>, vector<8x32xf32> -> vector<8x32xf32>
    %235 = vector.extract_strided_slice %190 {offsets = [88, 0], sizes = [8, 16], strides = [1, 1]} : vector<200x16xbf16> to vector<8x16xbf16>
    %c11_151 = arith.constant 11 : index
    %c0_152 = arith.constant 0 : index
    %c0_153 = arith.constant 0 : index
    %236 = vector.load %arg6[%c11_151, %c0_152, %c0_153] : memref<25x16x32xbf16, #tpu.memory_space<vmem>>, vector<1x16x32xbf16>
    %237 = vector.shape_cast %236 : vector<1x16x32xbf16> to vector<16x32xbf16>
    %cst_154 = arith.constant dense<0.000000e+00> : vector<8x32xf32>
    %238 = tpu.matmul %235, %237, %cst_154 {dimension_numbers = #tpu.dot_dimension_numbers<[1], [0], [0], [1], [0, 0, 1, 1], [], []>} : vector<8x16xbf16>, vector<16x32xbf16>, vector<8x32xf32> -> vector<8x32xf32>
    %239 = vector.extract_strided_slice %190 {offsets = [96, 0], sizes = [8, 16], strides = [1, 1]} : vector<200x16xbf16> to vector<8x16xbf16>
    %c12_155 = arith.constant 12 : index
    %c0_156 = arith.constant 0 : index
    %c0_157 = arith.constant 0 : index
    %240 = vector.load %arg6[%c12_155, %c0_156, %c0_157] : memref<25x16x32xbf16, #tpu.memory_space<vmem>>, vector<1x16x32xbf16>
    %241 = vector.shape_cast %240 : vector<1x16x32xbf16> to vector<16x32xbf16>
    %cst_158 = arith.constant dense<0.000000e+00> : vector<8x32xf32>
    %242 = tpu.matmul %239, %241, %cst_158 {dimension_numbers = #tpu.dot_dimension_numbers<[1], [0], [0], [1], [0, 0, 1, 1], [], []>} : vector<8x16xbf16>, vector<16x32xbf16>, vector<8x32xf32> -> vector<8x32xf32>
    %243 = vector.extract_strided_slice %190 {offsets = [104, 0], sizes = [8, 16], strides = [1, 1]} : vector<200x16xbf16> to vector<8x16xbf16>
    %c13_159 = arith.constant 13 : index
    %c0_160 = arith.constant 0 : index
    %c0_161 = arith.constant 0 : index
    %244 = vector.load %arg6[%c13_159, %c0_160, %c0_161] : memref<25x16x32xbf16, #tpu.memory_space<vmem>>, vector<1x16x32xbf16>
    %245 = vector.shape_cast %244 : vector<1x16x32xbf16> to vector<16x32xbf16>
    %cst_162 = arith.constant dense<0.000000e+00> : vector<8x32xf32>
    %246 = tpu.matmul %243, %245, %cst_162 {dimension_numbers = #tpu.dot_dimension_numbers<[1], [0], [0], [1], [0, 0, 1, 1], [], []>} : vector<8x16xbf16>, vector<16x32xbf16>, vector<8x32xf32> -> vector<8x32xf32>
    %247 = vector.extract_strided_slice %190 {offsets = [112, 0], sizes = [8, 16], strides = [1, 1]} : vector<200x16xbf16> to vector<8x16xbf16>
    %c14_163 = arith.constant 14 : index
    %c0_164 = arith.constant 0 : index
    %c0_165 = arith.constant 0 : index
    %248 = vector.load %arg6[%c14_163, %c0_164, %c0_165] : memref<25x16x32xbf16, #tpu.memory_space<vmem>>, vector<1x16x32xbf16>
    %249 = vector.shape_cast %248 : vector<1x16x32xbf16> to vector<16x32xbf16>
    %cst_166 = arith.constant dense<0.000000e+00> : vector<8x32xf32>
    %250 = tpu.matmul %247, %249, %cst_166 {dimension_numbers = #tpu.dot_dimension_numbers<[1], [0], [0], [1], [0, 0, 1, 1], [], []>} : vector<8x16xbf16>, vector<16x32xbf16>, vector<8x32xf32> -> vector<8x32xf32>
    %251 = vector.extract_strided_slice %190 {offsets = [120, 0], sizes = [8, 16], strides = [1, 1]} : vector<200x16xbf16> to vector<8x16xbf16>
    %c15_167 = arith.constant 15 : index
    %c0_168 = arith.constant 0 : index
    %c0_169 = arith.constant 0 : index
    %252 = vector.load %arg6[%c15_167, %c0_168, %c0_169] : memref<25x16x32xbf16, #tpu.memory_space<vmem>>, vector<1x16x32xbf16>
    %253 = vector.shape_cast %252 : vector<1x16x32xbf16> to vector<16x32xbf16>
    %cst_170 = arith.constant dense<0.000000e+00> : vector<8x32xf32>
    %254 = tpu.matmul %251, %253, %cst_170 {dimension_numbers = #tpu.dot_dimension_numbers<[1], [0], [0], [1], [0, 0, 1, 1], [], []>} : vector<8x16xbf16>, vector<16x32xbf16>, vector<8x32xf32> -> vector<8x32xf32>
    %255 = vector.extract_strided_slice %190 {offsets = [128, 0], sizes = [8, 16], strides = [1, 1]} : vector<200x16xbf16> to vector<8x16xbf16>
    %c16_171 = arith.constant 16 : index
    %c0_172 = arith.constant 0 : index
    %c0_173 = arith.constant 0 : index
    %256 = vector.load %arg6[%c16_171, %c0_172, %c0_173] : memref<25x16x32xbf16, #tpu.memory_space<vmem>>, vector<1x16x32xbf16>
    %257 = vector.shape_cast %256 : vector<1x16x32xbf16> to vector<16x32xbf16>
    %cst_174 = arith.constant dense<0.000000e+00> : vector<8x32xf32>
    %258 = tpu.matmul %255, %257, %cst_174 {dimension_numbers = #tpu.dot_dimension_numbers<[1], [0], [0], [1], [0, 0, 1, 1], [], []>} : vector<8x16xbf16>, vector<16x32xbf16>, vector<8x32xf32> -> vector<8x32xf32>
    %259 = vector.extract_strided_slice %190 {offsets = [136, 0], sizes = [8, 16], strides = [1, 1]} : vector<200x16xbf16> to vector<8x16xbf16>
    %c17_175 = arith.constant 17 : index
    %c0_176 = arith.constant 0 : index
    %c0_177 = arith.constant 0 : index
    %260 = vector.load %arg6[%c17_175, %c0_176, %c0_177] : memref<25x16x32xbf16, #tpu.memory_space<vmem>>, vector<1x16x32xbf16>
    %261 = vector.shape_cast %260 : vector<1x16x32xbf16> to vector<16x32xbf16>
    %cst_178 = arith.constant dense<0.000000e+00> : vector<8x32xf32>
    %262 = tpu.matmul %259, %261, %cst_178 {dimension_numbers = #tpu.dot_dimension_numbers<[1], [0], [0], [1], [0, 0, 1, 1], [], []>} : vector<8x16xbf16>, vector<16x32xbf16>, vector<8x32xf32> -> vector<8x32xf32>
    %263 = vector.extract_strided_slice %190 {offsets = [144, 0], sizes = [8, 16], strides = [1, 1]} : vector<200x16xbf16> to vector<8x16xbf16>
    %c18_179 = arith.constant 18 : index
    %c0_180 = arith.constant 0 : index
    %c0_181 = arith.constant 0 : index
    %264 = vector.load %arg6[%c18_179, %c0_180, %c0_181] : memref<25x16x32xbf16, #tpu.memory_space<vmem>>, vector<1x16x32xbf16>
    %265 = vector.shape_cast %264 : vector<1x16x32xbf16> to vector<16x32xbf16>
    %cst_182 = arith.constant dense<0.000000e+00> : vector<8x32xf32>
    %266 = tpu.matmul %263, %265, %cst_182 {dimension_numbers = #tpu.dot_dimension_numbers<[1], [0], [0], [1], [0, 0, 1, 1], [], []>} : vector<8x16xbf16>, vector<16x32xbf16>, vector<8x32xf32> -> vector<8x32xf32>
    %267 = vector.extract_strided_slice %190 {offsets = [152, 0], sizes = [8, 16], strides = [1, 1]} : vector<200x16xbf16> to vector<8x16xbf16>
    %c19_183 = arith.constant 19 : index
    %c0_184 = arith.constant 0 : index
    %c0_185 = arith.constant 0 : index
    %268 = vector.load %arg6[%c19_183, %c0_184, %c0_185] : memref<25x16x32xbf16, #tpu.memory_space<vmem>>, vector<1x16x32xbf16>
    %269 = vector.shape_cast %268 : vector<1x16x32xbf16> to vector<16x32xbf16>
    %cst_186 = arith.constant dense<0.000000e+00> : vector<8x32xf32>
    %270 = tpu.matmul %267, %269, %cst_186 {dimension_numbers = #tpu.dot_dimension_numbers<[1], [0], [0], [1], [0, 0, 1, 1], [], []>} : vector<8x16xbf16>, vector<16x32xbf16>, vector<8x32xf32> -> vector<8x32xf32>
    %271 = vector.extract_strided_slice %190 {offsets = [160, 0], sizes = [8, 16], strides = [1, 1]} : vector<200x16xbf16> to vector<8x16xbf16>
    %c20_187 = arith.constant 20 : index
    %c0_188 = arith.constant 0 : index
    %c0_189 = arith.constant 0 : index
    %272 = vector.load %arg6[%c20_187, %c0_188, %c0_189] : memref<25x16x32xbf16, #tpu.memory_space<vmem>>, vector<1x16x32xbf16>
    %273 = vector.shape_cast %272 : vector<1x16x32xbf16> to vector<16x32xbf16>
    %cst_190 = arith.constant dense<0.000000e+00> : vector<8x32xf32>
    %274 = tpu.matmul %271, %273, %cst_190 {dimension_numbers = #tpu.dot_dimension_numbers<[1], [0], [0], [1], [0, 0, 1, 1], [], []>} : vector<8x16xbf16>, vector<16x32xbf16>, vector<8x32xf32> -> vector<8x32xf32>
    %275 = vector.extract_strided_slice %190 {offsets = [168, 0], sizes = [8, 16], strides = [1, 1]} : vector<200x16xbf16> to vector<8x16xbf16>
    %c21_191 = arith.constant 21 : index
    %c0_192 = arith.constant 0 : index
    %c0_193 = arith.constant 0 : index
    %276 = vector.load %arg6[%c21_191, %c0_192, %c0_193] : memref<25x16x32xbf16, #tpu.memory_space<vmem>>, vector<1x16x32xbf16>
    %277 = vector.shape_cast %276 : vector<1x16x32xbf16> to vector<16x32xbf16>
    %cst_194 = arith.constant dense<0.000000e+00> : vector<8x32xf32>
    %278 = tpu.matmul %275, %277, %cst_194 {dimension_numbers = #tpu.dot_dimension_numbers<[1], [0], [0], [1], [0, 0, 1, 1], [], []>} : vector<8x16xbf16>, vector<16x32xbf16>, vector<8x32xf32> -> vector<8x32xf32>
    %279 = vector.extract_strided_slice %190 {offsets = [176, 0], sizes = [8, 16], strides = [1, 1]} : vector<200x16xbf16> to vector<8x16xbf16>
    %c22_195 = arith.constant 22 : index
    %c0_196 = arith.constant 0 : index
    %c0_197 = arith.constant 0 : index
    %280 = vector.load %arg6[%c22_195, %c0_196, %c0_197] : memref<25x16x32xbf16, #tpu.memory_space<vmem>>, vector<1x16x32xbf16>
    %281 = vector.shape_cast %280 : vector<1x16x32xbf16> to vector<16x32xbf16>
    %cst_198 = arith.constant dense<0.000000e+00> : vector<8x32xf32>
    %282 = tpu.matmul %279, %281, %cst_198 {dimension_numbers = #tpu.dot_dimension_numbers<[1], [0], [0], [1], [0, 0, 1, 1], [], []>} : vector<8x16xbf16>, vector<16x32xbf16>, vector<8x32xf32> -> vector<8x32xf32>
    %283 = vector.extract_strided_slice %190 {offsets = [184, 0], sizes = [8, 16], strides = [1, 1]} : vector<200x16xbf16> to vector<8x16xbf16>
    %c23_199 = arith.constant 23 : index
    %c0_200 = arith.constant 0 : index
    %c0_201 = arith.constant 0 : index
    %284 = vector.load %arg6[%c23_199, %c0_200, %c0_201] : memref<25x16x32xbf16, #tpu.memory_space<vmem>>, vector<1x16x32xbf16>
    %285 = vector.shape_cast %284 : vector<1x16x32xbf16> to vector<16x32xbf16>
    %cst_202 = arith.constant dense<0.000000e+00> : vector<8x32xf32>
    %286 = tpu.matmul %283, %285, %cst_202 {dimension_numbers = #tpu.dot_dimension_numbers<[1], [0], [0], [1], [0, 0, 1, 1], [], []>} : vector<8x16xbf16>, vector<16x32xbf16>, vector<8x32xf32> -> vector<8x32xf32>
    %287 = vector.extract_strided_slice %190 {offsets = [192, 0], sizes = [8, 16], strides = [1, 1]} : vector<200x16xbf16> to vector<8x16xbf16>
    %c24_203 = arith.constant 24 : index
    %c0_204 = arith.constant 0 : index
    %c0_205 = arith.constant 0 : index
    %288 = vector.load %arg6[%c24_203, %c0_204, %c0_205] : memref<25x16x32xbf16, #tpu.memory_space<vmem>>, vector<1x16x32xbf16>
    %289 = vector.shape_cast %288 : vector<1x16x32xbf16> to vector<16x32xbf16>
    %cst_206 = arith.constant dense<0.000000e+00> : vector<8x32xf32>
    %290 = tpu.matmul %287, %289, %cst_206 {dimension_numbers = #tpu.dot_dimension_numbers<[1], [0], [0], [1], [0, 0, 1, 1], [], []>} : vector<8x16xbf16>, vector<16x32xbf16>, vector<8x32xf32> -> vector<8x32xf32>
    %291 = arith.addf %194, %198 : vector<8x32xf32>
    %292 = arith.addf %202, %206 : vector<8x32xf32>
    %293 = arith.addf %210, %214 : vector<8x32xf32>
    %294 = arith.addf %218, %222 : vector<8x32xf32>
    %295 = arith.addf %226, %230 : vector<8x32xf32>
    %296 = arith.addf %234, %238 : vector<8x32xf32>
    %297 = arith.addf %242, %246 : vector<8x32xf32>
    %298 = arith.addf %250, %254 : vector<8x32xf32>
    %299 = arith.addf %258, %262 : vector<8x32xf32>
    %300 = arith.addf %266, %270 : vector<8x32xf32>
    %301 = arith.addf %274, %278 : vector<8x32xf32>
    %302 = arith.addf %282, %286 : vector<8x32xf32>
    %303 = arith.addf %291, %292 : vector<8x32xf32>
    %304 = arith.addf %293, %294 : vector<8x32xf32>
    %305 = arith.addf %295, %296 : vector<8x32xf32>
    %306 = arith.addf %297, %298 : vector<8x32xf32>
    %307 = arith.addf %299, %300 : vector<8x32xf32>
    %308 = arith.addf %301, %302 : vector<8x32xf32>
    %309 = arith.addf %303, %304 : vector<8x32xf32>
    %310 = arith.addf %305, %306 : vector<8x32xf32>
    %311 = arith.addf %307, %308 : vector<8x32xf32>
    %312 = arith.addf %309, %310 : vector<8x32xf32>
    %313 = arith.addf %311, %290 : vector<8x32xf32>
    %314 = arith.addf %312, %313 : vector<8x32xf32>
    %cst_207 = arith.constant dense<0.000000e+00> : vector<32xf32>
    %315 = vector.multi_reduction <add>, %314, %cst_207 [0] : vector<8x32xf32> to vector<32xf32>
    %316 = vector.shape_cast %315 : vector<32xf32> to vector<1x32xf32>
    %cst_208 = arith.constant 1.250000e-01 : f32
    %317 = vector.broadcast %cst_208 : f32 to vector<1x32xf32>
    %318 = arith.mulf %316, %317 : vector<1x32xf32>
    %319 = arith.mulf %314, %314 : vector<8x32xf32>
    %cst_209 = arith.constant dense<0.000000e+00> : vector<32xf32>
    %320 = vector.multi_reduction <add>, %319, %cst_209 [0] : vector<8x32xf32> to vector<32xf32>
    %321 = vector.shape_cast %320 : vector<32xf32> to vector<1x32xf32>
    %cst_210 = arith.constant 1.250000e-01 : f32
    %322 = vector.broadcast %cst_210 : f32 to vector<1x32xf32>
    %323 = arith.mulf %321, %322 : vector<1x32xf32>
    %324 = arith.mulf %318, %318 : vector<1x32xf32>
    %325 = arith.subf %323, %324 : vector<1x32xf32>
    %c4_211 = arith.constant 4 : index
    %c0_212 = arith.constant 0 : index
    %326 = vector.load %arg9[%c4_211, %c0_212] : memref<8x128xf32, #tpu.memory_space<vmem>>, vector<1x32xf32>
    %c5_213 = arith.constant 5 : index
    %c0_214 = arith.constant 0 : index
    %327 = vector.load %arg9[%c5_213, %c0_214] : memref<8x128xf32, #tpu.memory_space<vmem>>, vector<1x32xf32>
    %cst_215 = arith.constant 9.99999974E-6 : f32
    %328 = vector.broadcast %cst_215 : f32 to vector<1x32xf32>
    %329 = arith.addf %325, %328 : vector<1x32xf32>
    %330 = math.rsqrt %329 : vector<1x32xf32>
    %331 = arith.mulf %326, %330 : vector<1x32xf32>
    %332 = vector.broadcast %331 : vector<1x32xf32> to vector<8x32xf32>
    %333 = arith.mulf %314, %332 : vector<8x32xf32>
    %334 = arith.mulf %318, %331 : vector<1x32xf32>
    %335 = arith.subf %327, %334 : vector<1x32xf32>
    %336 = vector.broadcast %335 : vector<1x32xf32> to vector<8x32xf32>
    %337 = arith.addf %333, %336 : vector<8x32xf32>
    %cst_216 = arith.constant 0.000000e+00 : f32
    %338 = vector.broadcast %cst_216 : f32 to vector<8x32xf32>
    %339 = arith.cmpf ogt, %337, %338 : vector<8x32xf32>
    %cst_217 = arith.constant 0.00999999977 : f32
    %340 = vector.broadcast %cst_217 : f32 to vector<8x32xf32>
    %341 = arith.mulf %340, %337 : vector<8x32xf32>
    %342 = arith.select %339, %337, %341 : vector<8x32xi1>, vector<8x32xf32>
    %343 = arith.truncf %342 : vector<8x32xf32> to vector<8x32xbf16>
    %c0_218 = arith.constant 0 : index
    %c0_219 = arith.constant 0 : index
    %344 = vector.load %arg7[%c0_218, %c0_219] : memref<200x8xbf16, #tpu.memory_space<vmem>>, vector<200x8xbf16>
    %cst_220 = arith.constant dense<0.000000e+00> : vector<200x32xf32>
    %345 = tpu.matmul %344, %343, %cst_220 {dimension_numbers = #tpu.dot_dimension_numbers<[1], [0], [0], [1], [0, 0, 1, 1], [], []>} : vector<200x8xbf16>, vector<8x32xbf16>, vector<200x32xf32> -> vector<200x32xf32>
    %346 = arith.truncf %345 : vector<200x32xf32> to vector<200x32xbf16>
    %347 = vector.extract_strided_slice %346 {offsets = [0, 0], sizes = [8, 32], strides = [1, 1]} : vector<200x32xbf16> to vector<8x32xbf16>
    %c0_221 = arith.constant 0 : index
    %c0_222 = arith.constant 0 : index
    %c0_223 = arith.constant 0 : index
    %348 = vector.load %arg8[%c0_221, %c0_222, %c0_223] : memref<25x32x128xbf16, #tpu.memory_space<vmem>>, vector<1x32x128xbf16>
    %349 = vector.shape_cast %348 : vector<1x32x128xbf16> to vector<32x128xbf16>
    %cst_224 = arith.constant dense<0.000000e+00> : vector<8x128xf32>
    %350 = tpu.matmul %347, %349, %cst_224 {dimension_numbers = #tpu.dot_dimension_numbers<[1], [0], [0], [1], [0, 0, 1, 1], [], []>} : vector<8x32xbf16>, vector<32x128xbf16>, vector<8x128xf32> -> vector<8x128xf32>
    %351 = vector.extract_strided_slice %346 {offsets = [8, 0], sizes = [8, 32], strides = [1, 1]} : vector<200x32xbf16> to vector<8x32xbf16>
    %c1_225 = arith.constant 1 : index
    %c0_226 = arith.constant 0 : index
    %c0_227 = arith.constant 0 : index
    %352 = vector.load %arg8[%c1_225, %c0_226, %c0_227] : memref<25x32x128xbf16, #tpu.memory_space<vmem>>, vector<1x32x128xbf16>
    %353 = vector.shape_cast %352 : vector<1x32x128xbf16> to vector<32x128xbf16>
    %cst_228 = arith.constant dense<0.000000e+00> : vector<8x128xf32>
    %354 = tpu.matmul %351, %353, %cst_228 {dimension_numbers = #tpu.dot_dimension_numbers<[1], [0], [0], [1], [0, 0, 1, 1], [], []>} : vector<8x32xbf16>, vector<32x128xbf16>, vector<8x128xf32> -> vector<8x128xf32>
    %355 = vector.extract_strided_slice %346 {offsets = [16, 0], sizes = [8, 32], strides = [1, 1]} : vector<200x32xbf16> to vector<8x32xbf16>
    %c2_229 = arith.constant 2 : index
    %c0_230 = arith.constant 0 : index
    %c0_231 = arith.constant 0 : index
    %356 = vector.load %arg8[%c2_229, %c0_230, %c0_231] : memref<25x32x128xbf16, #tpu.memory_space<vmem>>, vector<1x32x128xbf16>
    %357 = vector.shape_cast %356 : vector<1x32x128xbf16> to vector<32x128xbf16>
    %cst_232 = arith.constant dense<0.000000e+00> : vector<8x128xf32>
    %358 = tpu.matmul %355, %357, %cst_232 {dimension_numbers = #tpu.dot_dimension_numbers<[1], [0], [0], [1], [0, 0, 1, 1], [], []>} : vector<8x32xbf16>, vector<32x128xbf16>, vector<8x128xf32> -> vector<8x128xf32>
    %359 = vector.extract_strided_slice %346 {offsets = [24, 0], sizes = [8, 32], strides = [1, 1]} : vector<200x32xbf16> to vector<8x32xbf16>
    %c3_233 = arith.constant 3 : index
    %c0_234 = arith.constant 0 : index
    %c0_235 = arith.constant 0 : index
    %360 = vector.load %arg8[%c3_233, %c0_234, %c0_235] : memref<25x32x128xbf16, #tpu.memory_space<vmem>>, vector<1x32x128xbf16>
    %361 = vector.shape_cast %360 : vector<1x32x128xbf16> to vector<32x128xbf16>
    %cst_236 = arith.constant dense<0.000000e+00> : vector<8x128xf32>
    %362 = tpu.matmul %359, %361, %cst_236 {dimension_numbers = #tpu.dot_dimension_numbers<[1], [0], [0], [1], [0, 0, 1, 1], [], []>} : vector<8x32xbf16>, vector<32x128xbf16>, vector<8x128xf32> -> vector<8x128xf32>
    %363 = vector.extract_strided_slice %346 {offsets = [32, 0], sizes = [8, 32], strides = [1, 1]} : vector<200x32xbf16> to vector<8x32xbf16>
    %c4_237 = arith.constant 4 : index
    %c0_238 = arith.constant 0 : index
    %c0_239 = arith.constant 0 : index
    %364 = vector.load %arg8[%c4_237, %c0_238, %c0_239] : memref<25x32x128xbf16, #tpu.memory_space<vmem>>, vector<1x32x128xbf16>
    %365 = vector.shape_cast %364 : vector<1x32x128xbf16> to vector<32x128xbf16>
    %cst_240 = arith.constant dense<0.000000e+00> : vector<8x128xf32>
    %366 = tpu.matmul %363, %365, %cst_240 {dimension_numbers = #tpu.dot_dimension_numbers<[1], [0], [0], [1], [0, 0, 1, 1], [], []>} : vector<8x32xbf16>, vector<32x128xbf16>, vector<8x128xf32> -> vector<8x128xf32>
    %367 = vector.extract_strided_slice %346 {offsets = [40, 0], sizes = [8, 32], strides = [1, 1]} : vector<200x32xbf16> to vector<8x32xbf16>
    %c5_241 = arith.constant 5 : index
    %c0_242 = arith.constant 0 : index
    %c0_243 = arith.constant 0 : index
    %368 = vector.load %arg8[%c5_241, %c0_242, %c0_243] : memref<25x32x128xbf16, #tpu.memory_space<vmem>>, vector<1x32x128xbf16>
    %369 = vector.shape_cast %368 : vector<1x32x128xbf16> to vector<32x128xbf16>
    %cst_244 = arith.constant dense<0.000000e+00> : vector<8x128xf32>
    %370 = tpu.matmul %367, %369, %cst_244 {dimension_numbers = #tpu.dot_dimension_numbers<[1], [0], [0], [1], [0, 0, 1, 1], [], []>} : vector<8x32xbf16>, vector<32x128xbf16>, vector<8x128xf32> -> vector<8x128xf32>
    %371 = vector.extract_strided_slice %346 {offsets = [48, 0], sizes = [8, 32], strides = [1, 1]} : vector<200x32xbf16> to vector<8x32xbf16>
    %c6_245 = arith.constant 6 : index
    %c0_246 = arith.constant 0 : index
    %c0_247 = arith.constant 0 : index
    %372 = vector.load %arg8[%c6_245, %c0_246, %c0_247] : memref<25x32x128xbf16, #tpu.memory_space<vmem>>, vector<1x32x128xbf16>
    %373 = vector.shape_cast %372 : vector<1x32x128xbf16> to vector<32x128xbf16>
    %cst_248 = arith.constant dense<0.000000e+00> : vector<8x128xf32>
    %374 = tpu.matmul %371, %373, %cst_248 {dimension_numbers = #tpu.dot_dimension_numbers<[1], [0], [0], [1], [0, 0, 1, 1], [], []>} : vector<8x32xbf16>, vector<32x128xbf16>, vector<8x128xf32> -> vector<8x128xf32>
    %375 = vector.extract_strided_slice %346 {offsets = [56, 0], sizes = [8, 32], strides = [1, 1]} : vector<200x32xbf16> to vector<8x32xbf16>
    %c7_249 = arith.constant 7 : index
    %c0_250 = arith.constant 0 : index
    %c0_251 = arith.constant 0 : index
    %376 = vector.load %arg8[%c7_249, %c0_250, %c0_251] : memref<25x32x128xbf16, #tpu.memory_space<vmem>>, vector<1x32x128xbf16>
    %377 = vector.shape_cast %376 : vector<1x32x128xbf16> to vector<32x128xbf16>
    %cst_252 = arith.constant dense<0.000000e+00> : vector<8x128xf32>
    %378 = tpu.matmul %375, %377, %cst_252 {dimension_numbers = #tpu.dot_dimension_numbers<[1], [0], [0], [1], [0, 0, 1, 1], [], []>} : vector<8x32xbf16>, vector<32x128xbf16>, vector<8x128xf32> -> vector<8x128xf32>
    %379 = vector.extract_strided_slice %346 {offsets = [64, 0], sizes = [8, 32], strides = [1, 1]} : vector<200x32xbf16> to vector<8x32xbf16>
    %c8_253 = arith.constant 8 : index
    %c0_254 = arith.constant 0 : index
    %c0_255 = arith.constant 0 : index
    %380 = vector.load %arg8[%c8_253, %c0_254, %c0_255] : memref<25x32x128xbf16, #tpu.memory_space<vmem>>, vector<1x32x128xbf16>
    %381 = vector.shape_cast %380 : vector<1x32x128xbf16> to vector<32x128xbf16>
    %cst_256 = arith.constant dense<0.000000e+00> : vector<8x128xf32>
    %382 = tpu.matmul %379, %381, %cst_256 {dimension_numbers = #tpu.dot_dimension_numbers<[1], [0], [0], [1], [0, 0, 1, 1], [], []>} : vector<8x32xbf16>, vector<32x128xbf16>, vector<8x128xf32> -> vector<8x128xf32>
    %383 = vector.extract_strided_slice %346 {offsets = [72, 0], sizes = [8, 32], strides = [1, 1]} : vector<200x32xbf16> to vector<8x32xbf16>
    %c9_257 = arith.constant 9 : index
    %c0_258 = arith.constant 0 : index
    %c0_259 = arith.constant 0 : index
    %384 = vector.load %arg8[%c9_257, %c0_258, %c0_259] : memref<25x32x128xbf16, #tpu.memory_space<vmem>>, vector<1x32x128xbf16>
    %385 = vector.shape_cast %384 : vector<1x32x128xbf16> to vector<32x128xbf16>
    %cst_260 = arith.constant dense<0.000000e+00> : vector<8x128xf32>
    %386 = tpu.matmul %383, %385, %cst_260 {dimension_numbers = #tpu.dot_dimension_numbers<[1], [0], [0], [1], [0, 0, 1, 1], [], []>} : vector<8x32xbf16>, vector<32x128xbf16>, vector<8x128xf32> -> vector<8x128xf32>
    %387 = vector.extract_strided_slice %346 {offsets = [80, 0], sizes = [8, 32], strides = [1, 1]} : vector<200x32xbf16> to vector<8x32xbf16>
    %c10_261 = arith.constant 10 : index
    %c0_262 = arith.constant 0 : index
    %c0_263 = arith.constant 0 : index
    %388 = vector.load %arg8[%c10_261, %c0_262, %c0_263] : memref<25x32x128xbf16, #tpu.memory_space<vmem>>, vector<1x32x128xbf16>
    %389 = vector.shape_cast %388 : vector<1x32x128xbf16> to vector<32x128xbf16>
    %cst_264 = arith.constant dense<0.000000e+00> : vector<8x128xf32>
    %390 = tpu.matmul %387, %389, %cst_264 {dimension_numbers = #tpu.dot_dimension_numbers<[1], [0], [0], [1], [0, 0, 1, 1], [], []>} : vector<8x32xbf16>, vector<32x128xbf16>, vector<8x128xf32> -> vector<8x128xf32>
    %391 = vector.extract_strided_slice %346 {offsets = [88, 0], sizes = [8, 32], strides = [1, 1]} : vector<200x32xbf16> to vector<8x32xbf16>
    %c11_265 = arith.constant 11 : index
    %c0_266 = arith.constant 0 : index
    %c0_267 = arith.constant 0 : index
    %392 = vector.load %arg8[%c11_265, %c0_266, %c0_267] : memref<25x32x128xbf16, #tpu.memory_space<vmem>>, vector<1x32x128xbf16>
    %393 = vector.shape_cast %392 : vector<1x32x128xbf16> to vector<32x128xbf16>
    %cst_268 = arith.constant dense<0.000000e+00> : vector<8x128xf32>
    %394 = tpu.matmul %391, %393, %cst_268 {dimension_numbers = #tpu.dot_dimension_numbers<[1], [0], [0], [1], [0, 0, 1, 1], [], []>} : vector<8x32xbf16>, vector<32x128xbf16>, vector<8x128xf32> -> vector<8x128xf32>
    %395 = vector.extract_strided_slice %346 {offsets = [96, 0], sizes = [8, 32], strides = [1, 1]} : vector<200x32xbf16> to vector<8x32xbf16>
    %c12_269 = arith.constant 12 : index
    %c0_270 = arith.constant 0 : index
    %c0_271 = arith.constant 0 : index
    %396 = vector.load %arg8[%c12_269, %c0_270, %c0_271] : memref<25x32x128xbf16, #tpu.memory_space<vmem>>, vector<1x32x128xbf16>
    %397 = vector.shape_cast %396 : vector<1x32x128xbf16> to vector<32x128xbf16>
    %cst_272 = arith.constant dense<0.000000e+00> : vector<8x128xf32>
    %398 = tpu.matmul %395, %397, %cst_272 {dimension_numbers = #tpu.dot_dimension_numbers<[1], [0], [0], [1], [0, 0, 1, 1], [], []>} : vector<8x32xbf16>, vector<32x128xbf16>, vector<8x128xf32> -> vector<8x128xf32>
    %399 = vector.extract_strided_slice %346 {offsets = [104, 0], sizes = [8, 32], strides = [1, 1]} : vector<200x32xbf16> to vector<8x32xbf16>
    %c13_273 = arith.constant 13 : index
    %c0_274 = arith.constant 0 : index
    %c0_275 = arith.constant 0 : index
    %400 = vector.load %arg8[%c13_273, %c0_274, %c0_275] : memref<25x32x128xbf16, #tpu.memory_space<vmem>>, vector<1x32x128xbf16>
    %401 = vector.shape_cast %400 : vector<1x32x128xbf16> to vector<32x128xbf16>
    %cst_276 = arith.constant dense<0.000000e+00> : vector<8x128xf32>
    %402 = tpu.matmul %399, %401, %cst_276 {dimension_numbers = #tpu.dot_dimension_numbers<[1], [0], [0], [1], [0, 0, 1, 1], [], []>} : vector<8x32xbf16>, vector<32x128xbf16>, vector<8x128xf32> -> vector<8x128xf32>
    %403 = vector.extract_strided_slice %346 {offsets = [112, 0], sizes = [8, 32], strides = [1, 1]} : vector<200x32xbf16> to vector<8x32xbf16>
    %c14_277 = arith.constant 14 : index
    %c0_278 = arith.constant 0 : index
    %c0_279 = arith.constant 0 : index
    %404 = vector.load %arg8[%c14_277, %c0_278, %c0_279] : memref<25x32x128xbf16, #tpu.memory_space<vmem>>, vector<1x32x128xbf16>
    %405 = vector.shape_cast %404 : vector<1x32x128xbf16> to vector<32x128xbf16>
    %cst_280 = arith.constant dense<0.000000e+00> : vector<8x128xf32>
    %406 = tpu.matmul %403, %405, %cst_280 {dimension_numbers = #tpu.dot_dimension_numbers<[1], [0], [0], [1], [0, 0, 1, 1], [], []>} : vector<8x32xbf16>, vector<32x128xbf16>, vector<8x128xf32> -> vector<8x128xf32>
    %407 = vector.extract_strided_slice %346 {offsets = [120, 0], sizes = [8, 32], strides = [1, 1]} : vector<200x32xbf16> to vector<8x32xbf16>
    %c15_281 = arith.constant 15 : index
    %c0_282 = arith.constant 0 : index
    %c0_283 = arith.constant 0 : index
    %408 = vector.load %arg8[%c15_281, %c0_282, %c0_283] : memref<25x32x128xbf16, #tpu.memory_space<vmem>>, vector<1x32x128xbf16>
    %409 = vector.shape_cast %408 : vector<1x32x128xbf16> to vector<32x128xbf16>
    %cst_284 = arith.constant dense<0.000000e+00> : vector<8x128xf32>
    %410 = tpu.matmul %407, %409, %cst_284 {dimension_numbers = #tpu.dot_dimension_numbers<[1], [0], [0], [1], [0, 0, 1, 1], [], []>} : vector<8x32xbf16>, vector<32x128xbf16>, vector<8x128xf32> -> vector<8x128xf32>
    %411 = vector.extract_strided_slice %346 {offsets = [128, 0], sizes = [8, 32], strides = [1, 1]} : vector<200x32xbf16> to vector<8x32xbf16>
    %c16_285 = arith.constant 16 : index
    %c0_286 = arith.constant 0 : index
    %c0_287 = arith.constant 0 : index
    %412 = vector.load %arg8[%c16_285, %c0_286, %c0_287] : memref<25x32x128xbf16, #tpu.memory_space<vmem>>, vector<1x32x128xbf16>
    %413 = vector.shape_cast %412 : vector<1x32x128xbf16> to vector<32x128xbf16>
    %cst_288 = arith.constant dense<0.000000e+00> : vector<8x128xf32>
    %414 = tpu.matmul %411, %413, %cst_288 {dimension_numbers = #tpu.dot_dimension_numbers<[1], [0], [0], [1], [0, 0, 1, 1], [], []>} : vector<8x32xbf16>, vector<32x128xbf16>, vector<8x128xf32> -> vector<8x128xf32>
    %415 = vector.extract_strided_slice %346 {offsets = [136, 0], sizes = [8, 32], strides = [1, 1]} : vector<200x32xbf16> to vector<8x32xbf16>
    %c17_289 = arith.constant 17 : index
    %c0_290 = arith.constant 0 : index
    %c0_291 = arith.constant 0 : index
    %416 = vector.load %arg8[%c17_289, %c0_290, %c0_291] : memref<25x32x128xbf16, #tpu.memory_space<vmem>>, vector<1x32x128xbf16>
    %417 = vector.shape_cast %416 : vector<1x32x128xbf16> to vector<32x128xbf16>
    %cst_292 = arith.constant dense<0.000000e+00> : vector<8x128xf32>
    %418 = tpu.matmul %415, %417, %cst_292 {dimension_numbers = #tpu.dot_dimension_numbers<[1], [0], [0], [1], [0, 0, 1, 1], [], []>} : vector<8x32xbf16>, vector<32x128xbf16>, vector<8x128xf32> -> vector<8x128xf32>
    %419 = vector.extract_strided_slice %346 {offsets = [144, 0], sizes = [8, 32], strides = [1, 1]} : vector<200x32xbf16> to vector<8x32xbf16>
    %c18_293 = arith.constant 18 : index
    %c0_294 = arith.constant 0 : index
    %c0_295 = arith.constant 0 : index
    %420 = vector.load %arg8[%c18_293, %c0_294, %c0_295] : memref<25x32x128xbf16, #tpu.memory_space<vmem>>, vector<1x32x128xbf16>
    %421 = vector.shape_cast %420 : vector<1x32x128xbf16> to vector<32x128xbf16>
    %cst_296 = arith.constant dense<0.000000e+00> : vector<8x128xf32>
    %422 = tpu.matmul %419, %421, %cst_296 {dimension_numbers = #tpu.dot_dimension_numbers<[1], [0], [0], [1], [0, 0, 1, 1], [], []>} : vector<8x32xbf16>, vector<32x128xbf16>, vector<8x128xf32> -> vector<8x128xf32>
    %423 = vector.extract_strided_slice %346 {offsets = [152, 0], sizes = [8, 32], strides = [1, 1]} : vector<200x32xbf16> to vector<8x32xbf16>
    %c19_297 = arith.constant 19 : index
    %c0_298 = arith.constant 0 : index
    %c0_299 = arith.constant 0 : index
    %424 = vector.load %arg8[%c19_297, %c0_298, %c0_299] : memref<25x32x128xbf16, #tpu.memory_space<vmem>>, vector<1x32x128xbf16>
    %425 = vector.shape_cast %424 : vector<1x32x128xbf16> to vector<32x128xbf16>
    %cst_300 = arith.constant dense<0.000000e+00> : vector<8x128xf32>
    %426 = tpu.matmul %423, %425, %cst_300 {dimension_numbers = #tpu.dot_dimension_numbers<[1], [0], [0], [1], [0, 0, 1, 1], [], []>} : vector<8x32xbf16>, vector<32x128xbf16>, vector<8x128xf32> -> vector<8x128xf32>
    %427 = vector.extract_strided_slice %346 {offsets = [160, 0], sizes = [8, 32], strides = [1, 1]} : vector<200x32xbf16> to vector<8x32xbf16>
    %c20_301 = arith.constant 20 : index
    %c0_302 = arith.constant 0 : index
    %c0_303 = arith.constant 0 : index
    %428 = vector.load %arg8[%c20_301, %c0_302, %c0_303] : memref<25x32x128xbf16, #tpu.memory_space<vmem>>, vector<1x32x128xbf16>
    %429 = vector.shape_cast %428 : vector<1x32x128xbf16> to vector<32x128xbf16>
    %cst_304 = arith.constant dense<0.000000e+00> : vector<8x128xf32>
    %430 = tpu.matmul %427, %429, %cst_304 {dimension_numbers = #tpu.dot_dimension_numbers<[1], [0], [0], [1], [0, 0, 1, 1], [], []>} : vector<8x32xbf16>, vector<32x128xbf16>, vector<8x128xf32> -> vector<8x128xf32>
    %431 = vector.extract_strided_slice %346 {offsets = [168, 0], sizes = [8, 32], strides = [1, 1]} : vector<200x32xbf16> to vector<8x32xbf16>
    %c21_305 = arith.constant 21 : index
    %c0_306 = arith.constant 0 : index
    %c0_307 = arith.constant 0 : index
    %432 = vector.load %arg8[%c21_305, %c0_306, %c0_307] : memref<25x32x128xbf16, #tpu.memory_space<vmem>>, vector<1x32x128xbf16>
    %433 = vector.shape_cast %432 : vector<1x32x128xbf16> to vector<32x128xbf16>
    %cst_308 = arith.constant dense<0.000000e+00> : vector<8x128xf32>
    %434 = tpu.matmul %431, %433, %cst_308 {dimension_numbers = #tpu.dot_dimension_numbers<[1], [0], [0], [1], [0, 0, 1, 1], [], []>} : vector<8x32xbf16>, vector<32x128xbf16>, vector<8x128xf32> -> vector<8x128xf32>
    %435 = vector.extract_strided_slice %346 {offsets = [176, 0], sizes = [8, 32], strides = [1, 1]} : vector<200x32xbf16> to vector<8x32xbf16>
    %c22_309 = arith.constant 22 : index
    %c0_310 = arith.constant 0 : index
    %c0_311 = arith.constant 0 : index
    %436 = vector.load %arg8[%c22_309, %c0_310, %c0_311] : memref<25x32x128xbf16, #tpu.memory_space<vmem>>, vector<1x32x128xbf16>
    %437 = vector.shape_cast %436 : vector<1x32x128xbf16> to vector<32x128xbf16>
    %cst_312 = arith.constant dense<0.000000e+00> : vector<8x128xf32>
    %438 = tpu.matmul %435, %437, %cst_312 {dimension_numbers = #tpu.dot_dimension_numbers<[1], [0], [0], [1], [0, 0, 1, 1], [], []>} : vector<8x32xbf16>, vector<32x128xbf16>, vector<8x128xf32> -> vector<8x128xf32>
    %439 = vector.extract_strided_slice %346 {offsets = [184, 0], sizes = [8, 32], strides = [1, 1]} : vector<200x32xbf16> to vector<8x32xbf16>
    %c23_313 = arith.constant 23 : index
    %c0_314 = arith.constant 0 : index
    %c0_315 = arith.constant 0 : index
    %440 = vector.load %arg8[%c23_313, %c0_314, %c0_315] : memref<25x32x128xbf16, #tpu.memory_space<vmem>>, vector<1x32x128xbf16>
    %441 = vector.shape_cast %440 : vector<1x32x128xbf16> to vector<32x128xbf16>
    %cst_316 = arith.constant dense<0.000000e+00> : vector<8x128xf32>
    %442 = tpu.matmul %439, %441, %cst_316 {dimension_numbers = #tpu.dot_dimension_numbers<[1], [0], [0], [1], [0, 0, 1, 1], [], []>} : vector<8x32xbf16>, vector<32x128xbf16>, vector<8x128xf32> -> vector<8x128xf32>
    %443 = vector.extract_strided_slice %346 {offsets = [192, 0], sizes = [8, 32], strides = [1, 1]} : vector<200x32xbf16> to vector<8x32xbf16>
    %c24_317 = arith.constant 24 : index
    %c0_318 = arith.constant 0 : index
    %c0_319 = arith.constant 0 : index
    %444 = vector.load %arg8[%c24_317, %c0_318, %c0_319] : memref<25x32x128xbf16, #tpu.memory_space<vmem>>, vector<1x32x128xbf16>
    %445 = vector.shape_cast %444 : vector<1x32x128xbf16> to vector<32x128xbf16>
    %cst_320 = arith.constant dense<0.000000e+00> : vector<8x128xf32>
    %446 = tpu.matmul %443, %445, %cst_320 {dimension_numbers = #tpu.dot_dimension_numbers<[1], [0], [0], [1], [0, 0, 1, 1], [], []>} : vector<8x32xbf16>, vector<32x128xbf16>, vector<8x128xf32> -> vector<8x128xf32>
    %447 = arith.addf %350, %354 : vector<8x128xf32>
    %448 = arith.addf %358, %362 : vector<8x128xf32>
    %449 = arith.addf %366, %370 : vector<8x128xf32>
    %450 = arith.addf %374, %378 : vector<8x128xf32>
    %451 = arith.addf %382, %386 : vector<8x128xf32>
    %452 = arith.addf %390, %394 : vector<8x128xf32>
    %453 = arith.addf %398, %402 : vector<8x128xf32>
    %454 = arith.addf %406, %410 : vector<8x128xf32>
    %455 = arith.addf %414, %418 : vector<8x128xf32>
    %456 = arith.addf %422, %426 : vector<8x128xf32>
    %457 = arith.addf %430, %434 : vector<8x128xf32>
    %458 = arith.addf %438, %442 : vector<8x128xf32>
    %459 = arith.addf %447, %448 : vector<8x128xf32>
    %460 = arith.addf %449, %450 : vector<8x128xf32>
    %461 = arith.addf %451, %452 : vector<8x128xf32>
    %462 = arith.addf %453, %454 : vector<8x128xf32>
    %463 = arith.addf %455, %456 : vector<8x128xf32>
    %464 = arith.addf %457, %458 : vector<8x128xf32>
    %465 = arith.addf %459, %460 : vector<8x128xf32>
    %466 = arith.addf %461, %462 : vector<8x128xf32>
    %467 = arith.addf %463, %464 : vector<8x128xf32>
    %468 = arith.addf %465, %466 : vector<8x128xf32>
    %469 = arith.addf %467, %446 : vector<8x128xf32>
    %470 = arith.addf %468, %469 : vector<8x128xf32>
    %cst_321 = arith.constant dense<0.000000e+00> : vector<128xf32>
    %471 = vector.multi_reduction <add>, %470, %cst_321 [0] : vector<8x128xf32> to vector<128xf32>
    %472 = vector.shape_cast %471 : vector<128xf32> to vector<1x128xf32>
    %cst_322 = arith.constant 5.000000e-01 : f32
    %473 = vector.broadcast %cst_322 : f32 to vector<1x128xf32>
    %474 = arith.mulf %472, %473 : vector<1x128xf32>
    %475 = arith.mulf %470, %470 : vector<8x128xf32>
    %cst_323 = arith.constant dense<0.000000e+00> : vector<128xf32>
    %476 = vector.multi_reduction <add>, %475, %cst_323 [0] : vector<8x128xf32> to vector<128xf32>
    %477 = vector.shape_cast %476 : vector<128xf32> to vector<1x128xf32>
    %cst_324 = arith.constant 5.000000e-01 : f32
    %478 = vector.broadcast %cst_324 : f32 to vector<1x128xf32>
    %479 = arith.mulf %477, %478 : vector<1x128xf32>
    %480 = arith.mulf %474, %474 : vector<1x128xf32>
    %481 = arith.subf %479, %480 : vector<1x128xf32>
    %c6_325 = arith.constant 6 : index
    %c0_326 = arith.constant 0 : index
    %482 = vector.load %arg9[%c6_325, %c0_326] : memref<8x128xf32, #tpu.memory_space<vmem>>, vector<1x128xf32>
    %c7_327 = arith.constant 7 : index
    %c0_328 = arith.constant 0 : index
    %483 = vector.load %arg9[%c7_327, %c0_328] : memref<8x128xf32, #tpu.memory_space<vmem>>, vector<1x128xf32>
    %cst_329 = arith.constant 9.99999974E-6 : f32
    %484 = vector.broadcast %cst_329 : f32 to vector<1x128xf32>
    %485 = arith.addf %481, %484 : vector<1x128xf32>
    %486 = math.rsqrt %485 : vector<1x128xf32>
    %487 = arith.mulf %482, %486 : vector<1x128xf32>
    %488 = vector.broadcast %487 : vector<1x128xf32> to vector<8x128xf32>
    %489 = arith.mulf %470, %488 : vector<8x128xf32>
    %490 = arith.mulf %474, %487 : vector<1x128xf32>
    %491 = arith.subf %483, %490 : vector<1x128xf32>
    %492 = vector.broadcast %491 : vector<1x128xf32> to vector<8x128xf32>
    %493 = arith.addf %489, %492 : vector<8x128xf32>
    %c0_330 = arith.constant 0 : index
    %c0_331 = arith.constant 0 : index
    %494 = vector.load %arg10[%c0_330, %c0_331] : memref<8x128xf32, #tpu.memory_space<vmem>>, vector<8x128xf32>
    tpu.vector_store %arg10[%c0_330, %c0_331], %493 {strides = array<i32>} : memref<8x128xf32, #tpu.memory_space<vmem>>, vector<8x128xf32>,
    return
  }
  func.func @transform_0(%arg0: i32) -> (i32, i32) {
    %c0_i32 = arith.constant 0 : i32
    %c0_i32_0 = arith.constant 0 : i32
    %c0_i32_1 = arith.constant 0 : i32
    return %c0_i32, %c0_i32_0 : i32, i32
  }
  func.func @transform_1(%arg0: i32) -> (i32, i32) {
    %c0_i32 = arith.constant 0 : i32
    %c0_i32_0 = arith.constant 0 : i32
    %c0_i32_1 = arith.constant 0 : i32
    return %c0_i32, %c0_i32_0 : i32, i32
  }
  func.func @transform_2(%arg0: i32) -> (i32, i32) {
    %c0_i32 = arith.constant 0 : i32
    %c0_i32_0 = arith.constant 0 : i32
    %c0_i32_1 = arith.constant 0 : i32
    return %c0_i32, %c0_i32_0 : i32, i32
  }
  func.func @transform_3(%arg0: i32) -> (i32, i32, i32) {
    %c0_i32 = arith.constant 0 : i32
    %c0_i32_0 = arith.constant 0 : i32
    %c0_i32_1 = arith.constant 0 : i32
    %c0_i32_2 = arith.constant 0 : i32
    return %c0_i32, %c0_i32_0, %c0_i32_1 : i32, i32, i32
  }
  func.func @transform_4(%arg0: i32) -> (i32, i32) {
    %c0_i32 = arith.constant 0 : i32
    %c0_i32_0 = arith.constant 0 : i32
    %c0_i32_1 = arith.constant 0 : i32
    return %c0_i32, %c0_i32_0 : i32, i32
  }
  func.func @transform_5(%arg0: i32) -> (i32, i32, i32) {
    %c0_i32 = arith.constant 0 : i32
    %c0_i32_0 = arith.constant 0 : i32
    %c0_i32_1 = arith.constant 0 : i32
    %c0_i32_2 = arith.constant 0 : i32
    return %c0_i32, %c0_i32_0, %c0_i32_1 : i32, i32, i32
  }
  func.func @transform_6(%arg0: i32) -> (i32, i32) {
    %c0_i32 = arith.constant 0 : i32
    %c0_i32_0 = arith.constant 0 : i32
    %c0_i32_1 = arith.constant 0 : i32
    return %c0_i32, %c0_i32_0 : i32, i32
  }
  func.func @transform_7(%arg0: i32) -> (i32, i32, i32) {
    %c0_i32 = arith.constant 0 : i32
    %c0_i32_0 = arith.constant 0 : i32
    %c0_i32_1 = arith.constant 0 : i32
    %c0_i32_2 = arith.constant 0 : i32
    return %c0_i32, %c0_i32_0, %c0_i32_1 : i32, i32, i32
  }
  func.func @transform_8(%arg0: i32) -> (i32, i32) {
    %c0_i32 = arith.constant 0 : i32
    %c0_i32_0 = arith.constant 0 : i32
    %c0_i32_1 = arith.constant 0 : i32
    return %c0_i32, %c0_i32_0 : i32, i32
  }
  func.func @transform_9(%arg0: i32) -> (i32, i32) {
    %c0_i32 = arith.constant 0 : i32
    %c0_i32_0 = arith.constant 0 : i32
    %c0_i32_1 = arith.constant 0 : i32
    return %c0_i32, %c0_i32_0 : i32, i32
  }
}

</mosaic_0001>

<llo_original>
// kernel: cae_forward.1
$region0: #{cae_forward.1}
  #allocation0 [shape = 'u32[]', space=smem, size = 0x4, offset = 0x4, fixed_abs, tag = 'smem constant byte address 0x4 - core index']
  #allocation1 [shape = 'u32[144,128]{1,0:T(1,128)}', space=vmem, size = 0x12000, scoped, tag = 'internal scratch']
  %s0 = inlined_call_operand.vmem [shape: bf16[128,25], index: 0, kind: input, shape index: {}]
  %s1 = inlined_call_operand.vmem [shape: bf16[25,8], index: 1, kind: input, shape index: {}]
  %s2 = inlined_call_operand.vmem [shape: bf16[800,128], index: 2, kind: input, shape index: {}]
  %s3 = inlined_call_operand.vmem [shape: bf16[25,8,16], index: 3, kind: input, shape index: {}]
  %s4 = inlined_call_operand.vmem [shape: bf16[200,32], index: 4, kind: input, shape index: {}]
  %s5 = inlined_call_operand.vmem [shape: bf16[25,16,32], index: 5, kind: input, shape index: {}]
  %s6 = inlined_call_operand.vmem [shape: bf16[200,8], index: 6, kind: input, shape index: {}]
  %s7 = inlined_call_operand.vmem [shape: bf16[25,32,128], index: 7, kind: input, shape index: {}]
  %s8 = inlined_call_operand.vmem [shape: f32[8,128], index: 8, kind: input, shape index: {}]
  %s9 = inlined_call_operand.vmem [shape: f32[8,128], index: 9, kind: output, shape index: {}]
  %s10 = sld [smem:[#allocation0]]
  $region46: #{cae_forward.1} parent=0
    _
  %s12 = ssub.s32 1, %s10
  %s13 = scalar_select 0, %s12, %s10
  // Predicated region
  $region2: #{cae_forward.1} parent=0 // pred_check
    _
  $region3: #{cae_forward.1} parent=0 // pred_check_branch
    %15 = sbr.rel (0) target = $region5
  $region4: #{cae_forward.1} parent=0 // pred_region
    _
  $region5: #{cae_forward.1} parent=0 // pred_fallthru
    _
  // Predicated region
  $region6: #{cae_forward.1} parent=0 // pred_check
    _
  $region7: #{cae_forward.1} parent=0 // pred_check_branch
    %17 = sbr.rel (0) target = $region9
  $region8: #{cae_forward.1} parent=0 // pred_region
    _
  $region9: #{cae_forward.1} parent=0 // pred_fallthru
    _
  // Predicated region
  $region10: #{cae_forward.1} parent=0 // pred_check
    _
  $region11: #{cae_forward.1} parent=0 // pred_check_branch
    %19 = sbr.rel (0) target = $region13
  $region12: #{cae_forward.1} parent=0 // pred_region
    _
  $region13: #{cae_forward.1} parent=0 // pred_fallthru
    _
  // Predicated region
  $region14: #{cae_forward.1} parent=0 // pred_check
    _
  $region15: #{cae_forward.1} parent=0 // pred_check_branch
    %21 = sbr.rel (0) target = $region17
  $region16: #{cae_forward.1} parent=0 // pred_region
    _
  $region17: #{cae_forward.1} parent=0 // pred_fallthru
    _
  // Predicated region
  $region18: #{cae_forward.1} parent=0 // pred_check
    _
  $region19: #{cae_forward.1} parent=0 // pred_check_branch
    %23 = sbr.rel (0) target = $region21
  $region20: #{cae_forward.1} parent=0 // pred_region
    _
  $region21: #{cae_forward.1} parent=0 // pred_fallthru
    _
  // Predicated region
  $region22: #{cae_forward.1} parent=0 // pred_check
    _
  $region23: #{cae_forward.1} parent=0 // pred_check_branch
    %25 = sbr.rel (0) target = $region25
  $region24: #{cae_forward.1} parent=0 // pred_region
    _
  $region25: #{cae_forward.1} parent=0 // pred_fallthru
    _
  // Predicated region
  $region26: #{cae_forward.1} parent=0 // pred_check
    _
  $region27: #{cae_forward.1} parent=0 // pred_check_branch
    %27 = sbr.rel (0) target = $region29
  $region28: #{cae_forward.1} parent=0 // pred_region
    _
  $region29: #{cae_forward.1} parent=0 // pred_fallthru
    _
  // Predicated region
  $region30: #{cae_forward.1} parent=0 // pred_check
    _
  $region31: #{cae_forward.1} parent=0 // pred_check_branch
    %29 = sbr.rel (0) target = $region33
  $region32: #{cae_forward.1} parent=0 // pred_region
    _
  $region33: #{cae_forward.1} parent=0 // pred_fallthru
    _
  // Predicated region
  $region34: #{cae_forward.1} parent=0 // pred_check
    _
  $region35: #{cae_forward.1} parent=0 // pred_check_branch
    %31 = sbr.rel (0) target = $region37
  $region36: #{cae_forward.1} parent=0 // pred_region
    _
  $region37: #{cae_forward.1} parent=0 // pred_fallthru
    _
  %v33 = vld [vmem:[%s0] sm:$0xf]
  %v34 = vld [vmem:[%s0 + $0x4] sm:$0xf]
  %v35 = vld [vmem:[%s0 + $0x8] sm:$0xf]
  %v36 = vld [vmem:[%s0 + $0xc] sm:$0xf]
  %v37 = vld [vmem:[%s0 + $0x10] sm:$0xf]
  %v38 = vld [vmem:[%s0 + $0x14] sm:$0xf]
  %v39 = vld [vmem:[%s0 + $0x18] sm:$0xf]
  %v40 = vld [vmem:[%s0 + $0x1c] sm:$0xf]
  %v41 = vld [vmem:[%s0 + $0x20] sm:$0xf]
  %v42 = vld [vmem:[%s0 + $0x24] sm:$0xf]
  %v43 = vld [vmem:[%s0 + $0x28] sm:$0xf]
  %v44 = vld [vmem:[%s0 + $0x2c] sm:$0xf]
  %v45 = vld [vmem:[%s0 + $0x30] sm:$0xf]
  %v46 = vld [vmem:[%s0 + $0x34] sm:$0xf]
  %v47 = vld [vmem:[%s0 + $0x38] sm:$0xf]
  %v48 = vld [vmem:[%s0 + $0x3c] sm:$0xf]
  %v49 = vld [vmem:[%s1] sm:$0xf]
  %v50 = vld [vmem:[%s1 + $0x4] sm:$0xf]
  %v51 = vld [vmem:[%s1 + $0x8] sm:$0xf]
  %v52 = vld [vmem:[%s1 + $0xc] sm:$0x1]
  %v69 = vunpack.c.l.b16 %v33
  %v70 = vunpack.c.l.b16 %v34
  %v71 = vunpack.c.l.b16 %v35
  %v72 = vunpack.c.l.b16 %v36
  %v73 = vunpack.c.l.b16 %v37
  %v74 = vunpack.c.l.b16 %v38
  %v75 = vunpack.c.l.b16 %v39
  %v76 = vunpack.c.l.b16 %v40
  %v77 = vunpack.c.l.b16 %v41
  %v78 = vunpack.c.l.b16 %v42
  %v79 = vunpack.c.l.b16 %v43
  %v80 = vunpack.c.l.b16 %v44
  %v81 = vunpack.c.l.b16 %v45
  %v82 = vunpack.c.l.b16 %v46
  %v83 = vunpack.c.l.b16 %v47
  %v84 = vunpack.c.l.b16 %v48
  %v85 = vpack.c.b16 %v70, %v69
  %v86 = vpack.c.b16 %v72, %v71
  %v87 = vpack.c.b16 %v74, %v73
  %v88 = vpack.c.b16 %v76, %v75
  %v89 = vpack.c.b16 %v78, %v77
  %v90 = vpack.c.b16 %v80, %v79
  %v91 = vpack.c.b16 %v82, %v81
  %v92 = vpack.c.b16 %v84, %v83
  %v97 = vunpack.c.l.b16 %v49
  %v98 = vunpack.c.l.b16 %v50
  %v99 = vunpack.c.l.b16 %v51
  %v100 = vunpack.c.l.b16 %v52
  %v101 = vpack.c.b16 %v98, %v97
  %v102 = vpack.c.b16 %v100, %v99
  %vm104 = vcmask 203776
  %v106 = vsel %vm104, %v85, 0
  %v109 = vsel %vm104, %v86, 0
  %v112 = vsel %vm104, %v87, 0
  %v115 = vsel %vm104, %v88, 0
  %v118 = vsel %vm104, %v89, 0
  %v121 = vsel %vm104, %v90, 0
  %v124 = vsel %vm104, %v91, 0
  %v127 = vsel %vm104, %v92, 0
  %vm129 = vcmask 1043456
  %vm130 = vcmask 1044480
  %v131 = vsel %vm129, 4294967295, 65535
  %v132 = vsel %vm130, %v131, 0
  %v134 = vand.u32 %v102, %v132
  %136 = vmatprep.subr.bf16.mxu0 0
  %137 = vmatpush1.bf16.msra.mxu0 0
  %138 = vmatprep.subr.bf16.mxu0 0
  %139 = vmatpush1.bf16.msra.mxu0 0
  %140 = vmatprep.subr.bf16.mxu0 0
  %141 = vmatpush1.bf16.msra.mxu0 0
  %142 = vmatprep.subr.bf16.mxu0 0
  %143 = vmatpush1.bf16.msra.mxu0 0
  %144 = vmatprep.subr.bf16.mxu0 0
  %145 = vmatpush1.bf16.msra.mxu0 0
  %146 = vmatprep.subr.bf16.mxu0 0
  %147 = vmatpush1.bf16.msra.mxu0 0
  %148 = vmatprep.subr.bf16.mxu0 0
  %149 = vmatpush1.bf16.msra.mxu0 %v134
  %150 = vmatprep.subr.bf16.mxu0 0
  %151 = vmatpush1.bf16.msra.mxu0 %v101
  %152 = vmatprep.subr.bf16.mxu0 0
  %153 = vmatpush2.bf16.msra.mxu0 0
  %154 = vmatprep.subr.bf16.mxu0 0
  %155 = vmatpush2.bf16.msra.mxu0 0
  %156 = vmatprep.subr.bf16.mxu0 0
  %157 = vmatpush2.bf16.msra.mxu0 0
  %158 = vmatprep.subr.bf16.mxu0 0
  %159 = vmatpush2.bf16.msra.mxu0 0
  %160 = vmatprep.subr.bf16.mxu0 0
  %161 = vmatpush2.bf16.msra.mxu0 0
  %162 = vmatprep.subr.bf16.mxu0 0
  %163 = vmatpush2.bf16.msra.mxu0 0
  %164 = vmatprep.subr.bf16.mxu0 0
  %165 = vmatpush2.bf16.msra.mxu0 0
  %166 = vmatprep.subr.bf16.mxu0 0
  %167 = vmatpush2.bf16.msra.mxu0 0
  %168 = vmatprep.mubr.bf16.mxu0 0
  %169 = vmatmul.mubr.bf16.gmra.mxu0 %v106
  %v170 = vpop.f32.mrf.mxu0
  %v171 = vadd.f32 0.0, %v170
  %v172 = vpop.f32.mrf.mxu0
  %v173 = vpop.f32.mrf.mxu0
  %v174 = vadd.f32 0.0, %v173
  %v175 = vpop.f32.mrf.mxu0
  %176 = vmatprep.mubr.bf16.mxu0 0
  %177 = vmatmul.mubr.bf16.gmra.mxu0 %v109
  %v178 = vpop.f32.mrf.mxu0
  %v179 = vadd.f32 0.0, %v178
  %v180 = vpop.f32.mrf.mxu0
  %v181 = vpop.f32.mrf.mxu0
  %v182 = vadd.f32 0.0, %v181
  %v183 = vpop.f32.mrf.mxu0
  %184 = vmatprep.mubr.bf16.mxu0 0
  %185 = vmatmul.mubr.bf16.gmra.mxu0 %v112
  %v186 = vpop.f32.mrf.mxu0
  %v187 = vadd.f32 0.0, %v186
  %v188 = vpop.f32.mrf.mxu0
  %v189 = vpop.f32.mrf.mxu0
  %v190 = vadd.f32 0.0, %v189
  %v191 = vpop.f32.mrf.mxu0
  %192 = vmatprep.mubr.bf16.mxu0 0
  %193 = vmatmul.mubr.bf16.gmra.mxu0 %v115
  %v194 = vpop.f32.mrf.mxu0
  %v195 = vadd.f32 0.0, %v194
  %v196 = vpop.f32.mrf.mxu0
  %v197 = vpop.f32.mrf.mxu0
  %v198 = vadd.f32 0.0, %v197
  %v199 = vpop.f32.mrf.mxu0
  %200 = vmatprep.mubr.bf16.mxu0 0
  %201 = vmatmul.mubr.bf16.gmra.mxu0 %v118
  %v202 = vpop.f32.mrf.mxu0
  %v203 = vadd.f32 0.0, %v202
  %v204 = vpop.f32.mrf.mxu0
  %v205 = vpop.f32.mrf.mxu0
  %v206 = vadd.f32 0.0, %v205
  %v207 = vpop.f32.mrf.mxu0
  %208 = vmatprep.mubr.bf16.mxu0 0
  %209 = vmatmul.mubr.bf16.gmra.mxu0 %v121
  %v210 = vpop.f32.mrf.mxu0
  %v211 = vadd.f32 0.0, %v210
  %v212 = vpop.f32.mrf.mxu0
  %v213 = vpop.f32.mrf.mxu0
  %v214 = vadd.f32 0.0, %v213
  %v215 = vpop.f32.mrf.mxu0
  %216 = vmatprep.mubr.bf16.mxu0 0
  %217 = vmatmul.mubr.bf16.gmra.mxu0 %v124
  %v218 = vpop.f32.mrf.mxu0
  %v219 = vadd.f32 0.0, %v218
  %v220 = vpop.f32.mrf.mxu0
  %v221 = vpop.f32.mrf.mxu0
  %v222 = vadd.f32 0.0, %v221
  %v223 = vpop.f32.mrf.mxu0
  %224 = vmatprep.mubr.bf16.mxu0 0
  %225 = vmatmul.mubr.bf16.gmra.mxu0 %v127
  %v226 = vpop.f32.mrf.mxu0
  %v227 = vadd.f32 0.0, %v226
  %v228 = vpop.f32.mrf.mxu0
  %v229 = vpop.f32.mrf.mxu0
  %v230 = vadd.f32 0.0, %v229
  %v231 = vpop.f32.mrf.mxu0
  %232 = vdwg.mxu0
  %vm233 = vcmask 64512
  %v234 = vsel %vm233, %v171, 0.0
  %v235 = vsel %vm233, %v174, 0.0
  %v236 = vadd.f32 %v234, %v235
  %v237 = vsel %vm233, %v179, 0.0
  %v238 = vadd.f32 %v236, %v237
  %v239 = vsel %vm233, %v182, 0.0
  %v240 = vadd.f32 %v238, %v239
  %v241 = vsel %vm233, %v187, 0.0
  %v242 = vadd.f32 %v240, %v241
  %v243 = vsel %vm233, %v190, 0.0
  %v244 = vadd.f32 %v242, %v243
  %v245 = vsel %vm233, %v195, 0.0
  %v246 = vadd.f32 %v244, %v245
  %v247 = vsel %vm233, %v198, 0.0
  %v248 = vadd.f32 %v246, %v247
  %v249 = vsel %vm233, %v203, 0.0
  %v250 = vadd.f32 %v248, %v249
  %v251 = vsel %vm233, %v206, 0.0
  %v252 = vadd.f32 %v250, %v251
  %v253 = vsel %vm233, %v211, 0.0
  %v254 = vadd.f32 %v252, %v253
  %v255 = vsel %vm233, %v214, 0.0
  %v256 = vadd.f32 %v254, %v255
  %v257 = vsel %vm233, %v219, 0.0
  %v258 = vadd.f32 %v256, %v257
  %v259 = vsel %vm233, %v222, 0.0
  %v260 = vadd.f32 %v258, %v259
  %v261 = vsel %vm233, %v227, 0.0
  %v262 = vadd.f32 %v260, %v261
  %v263 = vsel %vm233, %v230, 0.0
  %v264 = vadd.f32 %v262, %v263
  %v265 = vrot.slane %v264, 4
  %v266 = vadd.f32 %v264, %v265
  %v267 = vrot.slane %v266, 2
  %v268 = vadd.f32 %v266, %v267
  %v269 = vrot.slane %v268, 1
  %v270 = vadd.f32 %v268, %v269
  %v271 = vmul.f32 %v270, 0.0078125
  %v272 = vmul.f32 %v171, %v171
  %v273 = vmul.f32 %v174, %v174
  %v274 = vmul.f32 %v179, %v179
  %v275 = vmul.f32 %v182, %v182
  %v276 = vmul.f32 %v187, %v187
  %v277 = vmul.f32 %v190, %v190
  %v278 = vmul.f32 %v195, %v195
  %v279 = vmul.f32 %v198, %v198
  %v280 = vmul.f32 %v203, %v203
  %v281 = vmul.f32 %v206, %v206
  %v282 = vmul.f32 %v211, %v211
  %v283 = vmul.f32 %v214, %v214
  %v284 = vmul.f32 %v219, %v219
  %v285 = vmul.f32 %v222, %v222
  %v286 = vmul.f32 %v227, %v227
  %v287 = vmul.f32 %v230, %v230
  %v288 = vsel %vm233, %v272, 0.0
  %v289 = vsel %vm233, %v273, 0.0
  %v290 = vadd.f32 %v288, %v289
  %v291 = vsel %vm233, %v274, 0.0
  %v292 = vadd.f32 %v290, %v291
  %v293 = vsel %vm233, %v275, 0.0
  %v294 = vadd.f32 %v292, %v293
  %v295 = vsel %vm233, %v276, 0.0
  %v296 = vadd.f32 %v294, %v295
  %v297 = vsel %vm233, %v277, 0.0
  %v298 = vadd.f32 %v296, %v297
  %v299 = vsel %vm233, %v278, 0.0
  %v300 = vadd.f32 %v298, %v299
  %v301 = vsel %vm233, %v279, 0.0
  %v302 = vadd.f32 %v300, %v301
  %v303 = vsel %vm233, %v280, 0.0
  %v304 = vadd.f32 %v302, %v303
  %v305 = vsel %vm233, %v281, 0.0
  %v306 = vadd.f32 %v304, %v305
  %v307 = vsel %vm233, %v282, 0.0
  %v308 = vadd.f32 %v306, %v307
  %v309 = vsel %vm233, %v283, 0.0
  %v310 = vadd.f32 %v308, %v309
  %v311 = vsel %vm233, %v284, 0.0
  %v312 = vadd.f32 %v310, %v311
  %v313 = vsel %vm233, %v285, 0.0
  %v314 = vadd.f32 %v312, %v313
  %v315 = vsel %vm233, %v286, 0.0
  %v316 = vadd.f32 %v314, %v315
  %v317 = vsel %vm233, %v287, 0.0
  %v318 = vadd.f32 %v316, %v317
  %v319 = vrot.slane %v318, 4
  %v320 = vadd.f32 %v318, %v319
  %v321 = vrot.slane %v320, 2
  %v322 = vadd.f32 %v320, %v321
  %v323 = vrot.slane %v322, 1
  %v324 = vadd.f32 %v322, %v323
  %v325 = vmul.f32 %v324, 0.0078125
  %v326 = vmul.f32 %v271, %v271
  %v327 = vsub.f32 %v325, %v326
  %v328 = vld [vmem:[%s8] sm:$0x1]
  %v329 = vld [vmem:[%s8 + $0x1] sm:$0x1]
  %v330 = vadd.f32 %v327, 1e-05
  %v331 = vrsqrt.pop %v330
  %v332 = vmul.f32 %v328, %v331
  %v333 = vlaneseq
  %v334 = vshrl.u32 %v333, 7
  %v335 = vsub.s32 0, %v334
  %v336 = vrot.slane %v332, %v335
  %v337 = vmul.f32 %v171, %v336
  %v338 = vmul.f32 %v174, %v336
  %v339 = vmul.f32 %v179, %v336
  %v340 = vmul.f32 %v182, %v336
  %v341 = vmul.f32 %v187, %v336
  %v342 = vmul.f32 %v190, %v336
  %v343 = vmul.f32 %v195, %v336
  %v344 = vmul.f32 %v198, %v336
  %v345 = vmul.f32 %v203, %v336
  %v346 = vmul.f32 %v206, %v336
  %v347 = vmul.f32 %v211, %v336
  %v348 = vmul.f32 %v214, %v336
  %v349 = vmul.f32 %v219, %v336
  %v350 = vmul.f32 %v222, %v336
  %v351 = vmul.f32 %v227, %v336
  %v352 = vmul.f32 %v230, %v336
  %v353 = vmul.f32 %v271, %v332
  %v354 = vsub.f32 %v329, %v353
  %v355 = vlaneseq
  %v356 = vshrl.u32 %v355, 7
  %v357 = vsub.s32 0, %v356
  %v358 = vrot.slane %v354, %v357
  %v359 = vadd.f32 %v337, %v358
  %v360 = vadd.f32 %v338, %v358
  %v361 = vadd.f32 %v339, %v358
  %v362 = vadd.f32 %v340, %v358
  %v363 = vadd.f32 %v341, %v358
  %v364 = vadd.f32 %v342, %v358
  %v365 = vadd.f32 %v343, %v358
  %v366 = vadd.f32 %v344, %v358
  %v367 = vadd.f32 %v345, %v358
  %v368 = vadd.f32 %v346, %v358
  %v369 = vadd.f32 %v347, %v358
  %v370 = vadd.f32 %v348, %v358
  %v371 = vadd.f32 %v349, %v358
  %v372 = vadd.f32 %v350, %v358
  %v373 = vadd.f32 %v351, %v358
  %v374 = vadd.f32 %v352, %v358
  %vm375 = vcmp.gt.f32.partialorder %v359, 0.0
  %vm376 = vcmp.gt.f32.partialorder %v360, 0.0
  %vm377 = vcmp.gt.f32.partialorder %v361, 0.0
  %vm378 = vcmp.gt.f32.partialorder %v362, 0.0
  %vm379 = vcmp.gt.f32.partialorder %v363, 0.0
  %vm380 = vcmp.gt.f32.partialorder %v364, 0.0
  %vm381 = vcmp.gt.f32.partialorder %v365, 0.0
  %vm382 = vcmp.gt.f32.partialorder %v366, 0.0
  %vm383 = vcmp.gt.f32.partialorder %v367, 0.0
  %vm384 = vcmp.gt.f32.partialorder %v368, 0.0
  %vm385 = vcmp.gt.f32.partialorder %v369, 0.0
  %vm386 = vcmp.gt.f32.partialorder %v370, 0.0
  %vm387 = vcmp.gt.f32.partialorder %v371, 0.0
  %vm388 = vcmp.gt.f32.partialorder %v372, 0.0
  %vm389 = vcmp.gt.f32.partialorder %v373, 0.0
  %vm390 = vcmp.gt.f32.partialorder %v374, 0.0
  %v391 = vmul.f32 %v359, 0.01
  %v392 = vmul.f32 %v360, 0.01
  %v393 = vmul.f32 %v361, 0.01
  %v394 = vmul.f32 %v362, 0.01
  %v395 = vmul.f32 %v363, 0.01
  %v396 = vmul.f32 %v364, 0.01
  %v397 = vmul.f32 %v365, 0.01
  %v398 = vmul.f32 %v366, 0.01
  %v399 = vmul.f32 %v367, 0.01
  %v400 = vmul.f32 %v368, 0.01
  %v401 = vmul.f32 %v369, 0.01
  %v402 = vmul.f32 %v370, 0.01
  %v403 = vmul.f32 %v371, 0.01
  %v404 = vmul.f32 %v372, 0.01
  %v405 = vmul.f32 %v373, 0.01
  %v406 = vmul.f32 %v374, 0.01
  %v407 = vsel %vm375, %v359, %v391
  %v408 = vsel %vm376, %v360, %v392
  %v409 = vsel %vm377, %v361, %v393
  %v410 = vsel %vm378, %v362, %v394
  %v411 = vsel %vm379, %v363, %v395
  %v412 = vsel %vm380, %v364, %v396
  %v413 = vsel %vm381, %v365, %v397
  %v414 = vsel %vm382, %v366, %v398
  %v415 = vsel %vm383, %v367, %v399
  %v416 = vsel %vm384, %v368, %v400
  %v417 = vsel %vm385, %v369, %v401
  %v418 = vsel %vm386, %v370, %v402
  %v419 = vsel %vm387, %v371, %v403
  %v420 = vsel %vm388, %v372, %v404
  %v421 = vsel %vm389, %v373, %v405
  %v422 = vsel %vm390, %v374, %v406
  %v423 = vpack.c.bf16 %v408, %v407
  %v424 = vpack.c.bf16 %v410, %v409
  %v425 = vpack.c.bf16 %v412, %v411
  %v426 = vpack.c.bf16 %v414, %v413
  %v427 = vpack.c.bf16 %v416, %v415
  %v428 = vpack.c.bf16 %v418, %v417
  %v429 = vpack.c.bf16 %v420, %v419
  %v430 = vpack.c.bf16 %v422, %v421
  %v431 = vld [vmem:[%s2] sm:$0xf]
  %v432 = vld [vmem:[%s2 + $0x4] sm:$0xf]
  %v433 = vld [vmem:[%s2 + $0x8] sm:$0xf]
  %v434 = vld [vmem:[%s2 + $0xc] sm:$0xf]
  %v435 = vld [vmem:[%s2 + $0x10] sm:$0xf]
  %v436 = vld [vmem:[%s2 + $0x14] sm:$0xf]
  %v437 = vld [vmem:[%s2 + $0x18] sm:$0xf]
  %v438 = vld [vmem:[%s2 + $0x1c] sm:$0xf]
  %v439 = vld [vmem:[%s2 + $0x20] sm:$0xf]
  %v440 = vld [vmem:[%s2 + $0x24] sm:$0xf]
  %v441 = vld [vmem:[%s2 + $0x28] sm:$0xf]
  %v442 = vld [vmem:[%s2 + $0x2c] sm:$0xf]
  %v443 = vld [vmem:[%s2 + $0x30] sm:$0xf]
  %v444 = vld [vmem:[%s2 + $0x34] sm:$0xf]
  %v445 = vld [vmem:[%s2 + $0x38] sm:$0xf]
  %v446 = vld [vmem:[%s2 + $0x3c] sm:$0xf]
  %v447 = vld [vmem:[%s2 + $0x40] sm:$0xf]
  %v448 = vld [vmem:[%s2 + $0x44] sm:$0xf]
  %v449 = vld [vmem:[%s2 + $0x48] sm:$0xf]
  %v450 = vld [vmem:[%s2 + $0x4c] sm:$0xf]
  %v451 = vld [vmem:[%s2 + $0x50] sm:$0xf]
  %v452 = vld [vmem:[%s2 + $0x54] sm:$0xf]
  %v453 = vld [vmem:[%s2 + $0x58] sm:$0xf]
  %v454 = vld [vmem:[%s2 + $0x5c] sm:$0xf]
  %v455 = vld [vmem:[%s2 + $0x60] sm:$0xf]
  %v456 = vld [vmem:[%s2 + $0x64] sm:$0xf]
  %v457 = vld [vmem:[%s2 + $0x68] sm:$0xf]
  %v458 = vld [vmem:[%s2 + $0x6c] sm:$0xf]
  %v459 = vld [vmem:[%s2 + $0x70] sm:$0xf]
  %v460 = vld [vmem:[%s2 + $0x74] sm:$0xf]
  %v461 = vld [vmem:[%s2 + $0x78] sm:$0xf]
  %v462 = vld [vmem:[%s2 + $0x7c] sm:$0xf]
  %v463 = vld [vmem:[%s2 + $0x80] sm:$0xf]
  %v464 = vld [vmem:[%s2 + $0x84] sm:$0xf]
  %v465 = vld [vmem:[%s2 + $0x88] sm:$0xf]
  %v466 = vld [vmem:[%s2 + $0x8c] sm:$0xf]
  %v467 = vld [vmem:[%s2 + $0x90] sm:$0xf]
  %v468 = vld [vmem:[%s2 + $0x94] sm:$0xf]
  %v469 = vld [vmem:[%s2 + $0x98] sm:$0xf]
  %v470 = vld [vmem:[%s2 + $0x9c] sm:$0xf]
  %v471 = vld [vmem:[%s2 + $0xa0] sm:$0xf]
  %v472 = vld [vmem:[%s2 + $0xa4] sm:$0xf]
  %v473 = vld [vmem:[%s2 + $0xa8] sm:$0xf]
  %v474 = vld [vmem:[%s2 + $0xac] sm:$0xf]
  %v475 = vld [vmem:[%s2 + $0xb0] sm:$0xf]
  %v476 = vld [vmem:[%s2 + $0xb4] sm:$0xf]
  %v477 = vld [vmem:[%s2 + $0xb8] sm:$0xf]
  %v478 = vld [vmem:[%s2 + $0xbc] sm:$0xf]
  %v479 = vld [vmem:[%s2 + $0xc0] sm:$0xf]
  %v480 = vld [vmem:[%s2 + $0xc4] sm:$0xf]
  %v481 = vld [vmem:[%s2 + $0xc8] sm:$0xf]
  %v482 = vld [vmem:[%s2 + $0xcc] sm:$0xf]
  %v483 = vld [vmem:[%s2 + $0xd0] sm:$0xf]
  %v484 = vld [vmem:[%s2 + $0xd4] sm:$0xf]
  %v485 = vld [vmem:[%s2 + $0xd8] sm:$0xf]
  %v486 = vld [vmem:[%s2 + $0xdc] sm:$0xf]
  %v487 = vld [vmem:[%s2 + $0xe0] sm:$0xf]
  %v488 = vld [vmem:[%s2 + $0xe4] sm:$0xf]
  %v489 = vld [vmem:[%s2 + $0xe8] sm:$0xf]
  %v490 = vld [vmem:[%s2 + $0xec] sm:$0xf]
  %v491 = vld [vmem:[%s2 + $0xf0] sm:$0xf]
  %v492 = vld [vmem:[%s2 + $0xf4] sm:$0xf]
  %v493 = vld [vmem:[%s2 + $0xf8] sm:$0xf]
  %v494 = vld [vmem:[%s2 + $0xfc] sm:$0xf]
  %v495 = vld [vmem:[%s2 + $0x100] sm:$0xf]
  %v496 = vld [vmem:[%s2 + $0x104] sm:$0xf]
  %v497 = vld [vmem:[%s2 + $0x108] sm:$0xf]
  %v498 = vld [vmem:[%s2 + $0x10c] sm:$0xf]
  %v499 = vld [vmem:[%s2 + $0x110] sm:$0xf]
  %v500 = vld [vmem:[%s2 + $0x114] sm:$0xf]
  %v501 = vld [vmem:[%s2 + $0x118] sm:$0xf]
  %v502 = vld [vmem:[%s2 + $0x11c] sm:$0xf]
  %v503 = vld [vmem:[%s2 + $0x120] sm:$0xf]
  %v504 = vld [vmem:[%s2 + $0x124] sm:$0xf]
  %v505 = vld [vmem:[%s2 + $0x128] sm:$0xf]
  %v506 = vld [vmem:[%s2 + $0x12c] sm:$0xf]
  %v507 = vld [vmem:[%s2 + $0x130] sm:$0xf]
  %v508 = vld [vmem:[%s2 + $0x134] sm:$0xf]
  %v509 = vld [vmem:[%s2 + $0x138] sm:$0xf]
  %v510 = vld [vmem:[%s2 + $0x13c] sm:$0xf]
  %v511 = vld [vmem:[%s2 + $0x140] sm:$0xf]
  %v512 = vld [vmem:[%s2 + $0x144] sm:$0xf]
  %v513 = vld [vmem:[%s2 + $0x148] sm:$0xf]
  %v514 = vld [vmem:[%s2 + $0x14c] sm:$0xf]
  %v515 = vld [vmem:[%s2 + $0x150] sm:$0xf]
  %v516 = vld [vmem:[%s2 + $0x154] sm:$0xf]
  %v517 = vld [vmem:[%s2 + $0x158] sm:$0xf]
  %v518 = vld [vmem:[%s2 + $0x15c] sm:$0xf]
  %v519 = vld [vmem:[%s2 + $0x160] sm:$0xf]
  %v520 = vld [vmem:[%s2 + $0x164] sm:$0xf]
  %v521 = vld [vmem:[%s2 + $0x168] sm:$0xf]
  %v522 = vld [vmem:[%s2 + $0x16c] sm:$0xf]
  %v523 = vld [vmem:[%s2 + $0x170] sm:$0xf]
  %v524 = vld [vmem:[%s2 + $0x174] sm:$0xf]
  %v525 = vld [vmem:[%s2 + $0x178] sm:$0xf]
  %v526 = vld [vmem:[%s2 + $0x17c] sm:$0xf]
  %v527 = vld [vmem:[%s2 + $0x180] sm:$0xf]
  %v528 = vld [vmem:[%s2 + $0x184] sm:$0xf]
  %v529 = vld [vmem:[%s2 + $0x188] sm:$0xf]
  %v530 = vld [vmem:[%s2 + $0x18c] sm:$0xf]
  %v631 = vunpack.c.l.b16 %v431
  %v632 = vunpack.c.l.b16 %v432
  %v633 = vunpack.c.l.b16 %v433
  %v634 = vunpack.c.l.b16 %v434
  %v635 = vunpack.c.l.b16 %v435
  %v636 = vunpack.c.l.b16 %v436
  %v637 = vunpack.c.l.b16 %v437
  %v638 = vunpack.c.l.b16 %v438
  %v639 = vunpack.c.l.b16 %v439
  %v640 = vunpack.c.l.b16 %v440
  %v641 = vunpack.c.l.b16 %v441
  %v642 = vunpack.c.l.b16 %v442
  %v643 = vunpack.c.l.b16 %v443
  %v644 = vunpack.c.l.b16 %v444
  %v645 = vunpack.c.l.b16 %v445
  %v646 = vunpack.c.l.b16 %v446
  %v647 = vunpack.c.l.b16 %v447
  %v648 = vunpack.c.l.b16 %v448
  %v649 = vunpack.c.l.b16 %v449
  %v650 = vunpack.c.l.b16 %v450
  %v651 = vunpack.c.l.b16 %v451
  %v652 = vunpack.c.l.b16 %v452
  %v653 = vunpack.c.l.b16 %v453
  %v654 = vunpack.c.l.b16 %v454
  %v655 = vunpack.c.l.b16 %v455
  %v656 = vunpack.c.l.b16 %v456
  %v657 = vunpack.c.l.b16 %v457
  %v658 = vunpack.c.l.b16 %v458
  %v659 = vunpack.c.l.b16 %v459
  %v660 = vunpack.c.l.b16 %v460
  %v661 = vunpack.c.l.b16 %v461
  %v662 = vunpack.c.l.b16 %v462
  %v663 = vunpack.c.l.b16 %v463
  %v664 = vunpack.c.l.b16 %v464
  %v665 = vunpack.c.l.b16 %v465
  %v666 = vunpack.c.l.b16 %v466
  %v667 = vunpack.c.l.b16 %v467
  %v668 = vunpack.c.l.b16 %v468
  %v669 = vunpack.c.l.b16 %v469
  %v670 = vunpack.c.l.b16 %v470
  %v671 = vunpack.c.l.b16 %v471
  %v672 = vunpack.c.l.b16 %v472
  %v673 = vunpack.c.l.b16 %v473
  %v674 = vunpack.c.l.b16 %v474
  %v675 = vunpack.c.l.b16 %v475
  %v676 = vunpack.c.l.b16 %v476
  %v677 = vunpack.c.l.b16 %v477
  %v678 = vunpack.c.l.b16 %v478
  %v679 = vunpack.c.l.b16 %v479
  %v680 = vunpack.c.l.b16 %v480
  %v681 = vunpack.c.l.b16 %v481
  %v682 = vunpack.c.l.b16 %v482
  %v683 = vunpack.c.l.b16 %v483
  %v684 = vunpack.c.l.b16 %v484
  %v685 = vunpack.c.l.b16 %v485
  %v686 = vunpack.c.l.b16 %v486
  %v687 = vunpack.c.l.b16 %v487
  %v688 = vunpack.c.l.b16 %v488
  %v689 = vunpack.c.l.b16 %v489
  %v690 = vunpack.c.l.b16 %v490
  %v691 = vunpack.c.l.b16 %v491
  %v692 = vunpack.c.l.b16 %v492
  %v693 = vunpack.c.l.b16 %v493
  %v694 = vunpack.c.l.b16 %v494
  %v695 = vunpack.c.l.b16 %v495
  %v696 = vunpack.c.l.b16 %v496
  %v697 = vunpack.c.l.b16 %v497
  %v698 = vunpack.c.l.b16 %v498
  %v699 = vunpack.c.l.b16 %v499
  %v700 = vunpack.c.l.b16 %v500
  %v701 = vunpack.c.l.b16 %v501
  %v702 = vunpack.c.l.b16 %v502
  %v703 = vunpack.c.l.b16 %v503
  %v704 = vunpack.c.l.b16 %v504
  %v705 = vunpack.c.l.b16 %v505
  %v706 = vunpack.c.l.b16 %v506
  %v707 = vunpack.c.l.b16 %v507
  %v708 = vunpack.c.l.b16 %v508
  %v709 = vunpack.c.l.b16 %v509
  %v710 = vunpack.c.l.b16 %v510
  %v711 = vunpack.c.l.b16 %v511
  %v712 = vunpack.c.l.b16 %v512
  %v713 = vunpack.c.l.b16 %v513
  %v714 = vunpack.c.l.b16 %v514
  %v715 = vunpack.c.l.b16 %v515
  %v716 = vunpack.c.l.b16 %v516
  %v717 = vunpack.c.l.b16 %v517
  %v718 = vunpack.c.l.b16 %v518
  %v719 = vunpack.c.l.b16 %v519
  %v720 = vunpack.c.l.b16 %v520
  %v721 = vunpack.c.l.b16 %v521
  %v722 = vunpack.c.l.b16 %v522
  %v723 = vunpack.c.l.b16 %v523
  %v724 = vunpack.c.l.b16 %v524
  %v725 = vunpack.c.l.b16 %v525
  %v726 = vunpack.c.l.b16 %v526
  %v727 = vunpack.c.l.b16 %v527
  %v728 = vunpack.c.l.b16 %v528
  %v729 = vunpack.c.l.b16 %v529
  %v730 = vunpack.c.l.b16 %v530
  %v731 = vpack.c.b16 %v632, %v631
  %v732 = vpack.c.b16 %v634, %v633
  %v733 = vpack.c.b16 %v636, %v635
  %v734 = vpack.c.b16 %v638, %v637
  %v735 = vpack.c.b16 %v640, %v639
  %v736 = vpack.c.b16 %v642, %v641
  %v737 = vpack.c.b16 %v644, %v643
  %v738 = vpack.c.b16 %v646, %v645
  %v739 = vpack.c.b16 %v648, %v647
  %v740 = vpack.c.b16 %v650, %v649
  %v741 = vpack.c.b16 %v652, %v651
  %v742 = vpack.c.b16 %v654, %v653
  %v743 = vpack.c.b16 %v656, %v655
  %v744 = vpack.c.b16 %v658, %v657
  %v745 = vpack.c.b16 %v660, %v659
  %v746 = vpack.c.b16 %v662, %v661
  %v747 = vpack.c.b16 %v664, %v663
  %v748 = vpack.c.b16 %v666, %v665
  %v749 = vpack.c.b16 %v668, %v667
  %v750 = vpack.c.b16 %v670, %v669
  %v751 = vpack.c.b16 %v672, %v671
  %v752 = vpack.c.b16 %v674, %v673
  %v753 = vpack.c.b16 %v676, %v675
  %v754 = vpack.c.b16 %v678, %v677
  %v755 = vpack.c.b16 %v680, %v679
  %v756 = vpack.c.b16 %v682, %v681
  %v757 = vpack.c.b16 %v684, %v683
  %v758 = vpack.c.b16 %v686, %v685
  %v759 = vpack.c.b16 %v688, %v687
  %v760 = vpack.c.b16 %v690, %v689
  %v761 = vpack.c.b16 %v692, %v691
  %v762 = vpack.c.b16 %v694, %v693
  %v763 = vpack.c.b16 %v696, %v695
  %v764 = vpack.c.b16 %v698, %v697
  %v765 = vpack.c.b16 %v700, %v699
  %v766 = vpack.c.b16 %v702, %v701
  %v767 = vpack.c.b16 %v704, %v703
  %v768 = vpack.c.b16 %v706, %v705
  %v769 = vpack.c.b16 %v708, %v707
  %v770 = vpack.c.b16 %v710, %v709
  %v771 = vpack.c.b16 %v712, %v711
  %v772 = vpack.c.b16 %v714, %v713
  %v773 = vpack.c.b16 %v716, %v715
  %v774 = vpack.c.b16 %v718, %v717
  %v775 = vpack.c.b16 %v720, %v719
  %v776 = vpack.c.b16 %v722, %v721
  %v777 = vpack.c.b16 %v724, %v723
  %v778 = vpack.c.b16 %v726, %v725
  %v779 = vpack.c.b16 %v728, %v727
  %v780 = vpack.c.b16 %v730, %v729
  %831 = vmatprep.subr.bf16.mxu0 0
  %832 = vmatpush1.bf16.msra.mxu0 %v430
  %833 = vmatprep.subr.bf16.mxu0 0
  %834 = vmatpush1.bf16.msra.mxu0 %v429
  %835 = vmatprep.subr.bf16.mxu0 0
  %836 = vmatpush1.bf16.msra.mxu0 %v428
  %837 = vmatprep.subr.bf16.mxu0 0
  %838 = vmatpush1.bf16.msra.mxu0 %v427
  %839 = vmatprep.subr.bf16.mxu0 0
  %840 = vmatpush1.bf16.msra.mxu0 %v426
  %841 = vmatprep.subr.bf16.mxu0 0
  %842 = vmatpush1.bf16.msra.mxu0 %v425
  %843 = vmatprep.subr.bf16.mxu0 0
  %844 = vmatpush1.bf16.msra.mxu0 %v424
  %845 = vmatprep.subr.bf16.mxu0 0
  %846 = vmatpush1.bf16.msra.mxu0 %v423
  %847 = vmatprep.subr.bf16.mxu0 0
  %848 = vmatpush2.bf16.msra.mxu0 0
  %849 = vmatprep.subr.bf16.mxu0 0
  %850 = vmatpush2.bf16.msra.mxu0 0
  %851 = vmatprep.subr.bf16.mxu0 0
  %852 = vmatpush2.bf16.msra.mxu0 0
  %853 = vmatprep.subr.bf16.mxu0 0
  %854 = vmatpush2.bf16.msra.mxu0 0
  %855 = vmatprep.subr.bf16.mxu0 0
  %856 = vmatpush2.bf16.msra.mxu0 0
  %857 = vmatprep.subr.bf16.mxu0 0
  %858 = vmatpush2.bf16.msra.mxu0 0
  %859 = vmatprep.subr.bf16.mxu0 0
  %860 = vmatpush2.bf16.msra.mxu0 0
  %861 = vmatprep.subr.bf16.mxu0 0
  %862 = vmatpush2.bf16.msra.mxu0 0
  %863 = vmatprep.mubr.bf16.mxu0 0
  %864 = vmatmul.mubr.bf16.gmra.mxu0 %v731
  %v865 = vpop.f32.mrf.mxu0
  %v866 = vadd.f32 0.0, %v865
  %v867 = vpop.f32.mrf.mxu0
  %v868 = vpop.f32.mrf.mxu0
  %v869 = vadd.f32 0.0, %v868
  %v870 = vpop.f32.mrf.mxu0
  %871 = vmatprep.mubr.bf16.mxu0 0
  %872 = vmatmul.mubr.bf16.gmra.mxu0 %v732
  %v873 = vpop.f32.mrf.mxu0
  %v874 = vadd.f32 0.0, %v873
  %v875 = vpop.f32.mrf.mxu0
  %v876 = vpop.f32.mrf.mxu0
  %v877 = vadd.f32 0.0, %v876
  %v878 = vpop.f32.mrf.mxu0
  %879 = vmatprep.mubr.bf16.mxu0 0
  %880 = vmatmul.mubr.bf16.gmra.mxu0 %v733
  %v881 = vpop.f32.mrf.mxu0
  %v882 = vadd.f32 0.0, %v881
  %v883 = vpop.f32.mrf.mxu0
  %v884 = vpop.f32.mrf.mxu0
  %v885 = vadd.f32 0.0, %v884
  %v886 = vpop.f32.mrf.mxu0
  %887 = vmatprep.mubr.bf16.mxu0 0
  %888 = vmatmul.mubr.bf16.gmra.mxu0 %v734
  %v889 = vpop.f32.mrf.mxu0
  %v890 = vadd.f32 0.0, %v889
  %v891 = vpop.f32.mrf.mxu0
  %v892 = vpop.f32.mrf.mxu0
  %v893 = vadd.f32 0.0, %v892
  %v894 = vpop.f32.mrf.mxu0
  %895 = vmatprep.mubr.bf16.mxu0 0
  %896 = vmatmul.mubr.bf16.gmra.mxu0 %v735
  %v897 = vpop.f32.mrf.mxu0
  %v898 = vadd.f32 0.0, %v897
  %v899 = vpop.f32.mrf.mxu0
  %v900 = vpop.f32.mrf.mxu0
  %v901 = vadd.f32 0.0, %v900
  %v902 = vpop.f32.mrf.mxu0
  %903 = vmatprep.mubr.bf16.mxu0 0
  %904 = vmatmul.mubr.bf16.gmra.mxu0 %v736
  %v905 = vpop.f32.mrf.mxu0
  %v906 = vadd.f32 0.0, %v905
  %v907 = vpop.f32.mrf.mxu0
  %v908 = vpop.f32.mrf.mxu0
  %v909 = vadd.f32 0.0, %v908
  %v910 = vpop.f32.mrf.mxu0
  %911 = vmatprep.mubr.bf16.mxu0 0
  %912 = vmatmul.mubr.bf16.gmra.mxu0 %v737
  %v913 = vpop.f32.mrf.mxu0
  %v914 = vadd.f32 0.0, %v913
  %v915 = vpop.f32.mrf.mxu0
  %v916 = vpop.f32.mrf.mxu0
  %v917 = vadd.f32 0.0, %v916
  %v918 = vpop.f32.mrf.mxu0
  %919 = vmatprep.mubr.bf16.mxu0 0
  %920 = vmatmul.mubr.bf16.gmra.mxu0 %v738
  %v921 = vpop.f32.mrf.mxu0
  %v922 = vadd.f32 0.0, %v921
  %v923 = vpop.f32.mrf.mxu0
  %v924 = vpop.f32.mrf.mxu0
  %v925 = vadd.f32 0.0, %v924
  %v926 = vpop.f32.mrf.mxu0
  %927 = vmatprep.mubr.bf16.mxu0 0
  %928 = vmatmul.mubr.bf16.gmra.mxu0 %v739
  %v929 = vpop.f32.mrf.mxu0
  %v930 = vadd.f32 0.0, %v929
  %v931 = vpop.f32.mrf.mxu0
  %v932 = vpop.f32.mrf.mxu0
  %v933 = vadd.f32 0.0, %v932
  %v934 = vpop.f32.mrf.mxu0
  %935 = vmatprep.mubr.bf16.mxu0 0
  %936 = vmatmul.mubr.bf16.gmra.mxu0 %v740
  %v937 = vpop.f32.mrf.mxu0
  %v938 = vadd.f32 0.0, %v937
  %v939 = vpop.f32.mrf.mxu0
  %v940 = vpop.f32.mrf.mxu0
  %v941 = vadd.f32 0.0, %v940
  %v942 = vpop.f32.mrf.mxu0
  %943 = vmatprep.mubr.bf16.mxu0 0
  %944 = vmatmul.mubr.bf16.gmra.mxu0 %v741
  %v945 = vpop.f32.mrf.mxu0
  %v946 = vadd.f32 0.0, %v945
  %v947 = vpop.f32.mrf.mxu0
  %v948 = vpop.f32.mrf.mxu0
  %v949 = vadd.f32 0.0, %v948
  %v950 = vpop.f32.mrf.mxu0
  %951 = vmatprep.mubr.bf16.mxu0 0
  %952 = vmatmul.mubr.bf16.gmra.mxu0 %v742
  %v953 = vpop.f32.mrf.mxu0
  %v954 = vadd.f32 0.0, %v953
  %v955 = vpop.f32.mrf.mxu0
  %v956 = vpop.f32.mrf.mxu0
  %v957 = vadd.f32 0.0, %v956
  %v958 = vpop.f32.mrf.mxu0
  %959 = vmatprep.mubr.bf16.mxu0 0
  %960 = vmatmul.mubr.bf16.gmra.mxu0 %v743
  %v961 = vpop.f32.mrf.mxu0
  %v962 = vadd.f32 0.0, %v961
  %v963 = vpop.f32.mrf.mxu0
  %v964 = vpop.f32.mrf.mxu0
  %v965 = vadd.f32 0.0, %v964
  %v966 = vpop.f32.mrf.mxu0
  %967 = vmatprep.mubr.bf16.mxu0 0
  %968 = vmatmul.mubr.bf16.gmra.mxu0 %v744
  %v969 = vpop.f32.mrf.mxu0
  %v970 = vadd.f32 0.0, %v969
  %v971 = vpop.f32.mrf.mxu0
  %v972 = vpop.f32.mrf.mxu0
  %v973 = vadd.f32 0.0, %v972
  %v974 = vpop.f32.mrf.mxu0
  %975 = vmatprep.mubr.bf16.mxu0 0
  %976 = vmatmul.mubr.bf16.gmra.mxu0 %v745
  %v977 = vpop.f32.mrf.mxu0
  %v978 = vadd.f32 0.0, %v977
  %v979 = vpop.f32.mrf.mxu0
  %v980 = vpop.f32.mrf.mxu0
  %v981 = vadd.f32 0.0, %v980
  %v982 = vpop.f32.mrf.mxu0
  %983 = vmatprep.mubr.bf16.mxu0 0
  %984 = vmatmul.mubr.bf16.gmra.mxu0 %v746
  %v985 = vpop.f32.mrf.mxu0
  %v986 = vadd.f32 0.0, %v985
  %v987 = vpop.f32.mrf.mxu0
  %v988 = vpop.f32.mrf.mxu0
  %v989 = vadd.f32 0.0, %v988
  %v990 = vpop.f32.mrf.mxu0
  %991 = vmatprep.mubr.bf16.mxu0 0
  %992 = vmatmul.mubr.bf16.gmra.mxu0 %v747
  %v993 = vpop.f32.mrf.mxu0
  %v994 = vadd.f32 0.0, %v993
  %v995 = vpop.f32.mrf.mxu0
  %v996 = vpop.f32.mrf.mxu0
  %v997 = vadd.f32 0.0, %v996
  %v998 = vpop.f32.mrf.mxu0
  %999 = vmatprep.mubr.bf16.mxu0 0
  %1000 = vmatmul.mubr.bf16.gmra.mxu0 %v748
  %v1001 = vpop.f32.mrf.mxu0
  %v1002 = vadd.f32 0.0, %v1001
  %v1003 = vpop.f32.mrf.mxu0
  %v1004 = vpop.f32.mrf.mxu0
  %v1005 = vadd.f32 0.0, %v1004
  %v1006 = vpop.f32.mrf.mxu0
  %1007 = vmatprep.mubr.bf16.mxu0 0
  %1008 = vmatmul.mubr.bf16.gmra.mxu0 %v749
  %v1009 = vpop.f32.mrf.mxu0
  %v1010 = vadd.f32 0.0, %v1009
  %v1011 = vpop.f32.mrf.mxu0
  %v1012 = vpop.f32.mrf.mxu0
  %v1013 = vadd.f32 0.0, %v1012
  %v1014 = vpop.f32.mrf.mxu0
  %1015 = vmatprep.mubr.bf16.mxu0 0
  %1016 = vmatmul.mubr.bf16.gmra.mxu0 %v750
  %v1017 = vpop.f32.mrf.mxu0
  %v1018 = vadd.f32 0.0, %v1017
  %v1019 = vpop.f32.mrf.mxu0
  %v1020 = vpop.f32.mrf.mxu0
  %v1021 = vadd.f32 0.0, %v1020
  %v1022 = vpop.f32.mrf.mxu0
  %1023 = vmatprep.mubr.bf16.mxu0 0
  %1024 = vmatmul.mubr.bf16.gmra.mxu0 %v751
  %v1025 = vpop.f32.mrf.mxu0
  %v1026 = vadd.f32 0.0, %v1025
  %v1027 = vpop.f32.mrf.mxu0
  %v1028 = vpop.f32.mrf.mxu0
  %v1029 = vadd.f32 0.0, %v1028
  %v1030 = vpop.f32.mrf.mxu0
  %1031 = vmatprep.mubr.bf16.mxu0 0
  %1032 = vmatmul.mubr.bf16.gmra.mxu0 %v752
  %v1033 = vpop.f32.mrf.mxu0
  %v1034 = vadd.f32 0.0, %v1033
  %v1035 = vpop.f32.mrf.mxu0
  %v1036 = vpop.f32.mrf.mxu0
  %v1037 = vadd.f32 0.0, %v1036
  %v1038 = vpop.f32.mrf.mxu0
  %1039 = vmatprep.mubr.bf16.mxu0 0
  %1040 = vmatmul.mubr.bf16.gmra.mxu0 %v753
  %v1041 = vpop.f32.mrf.mxu0
  %v1042 = vadd.f32 0.0, %v1041
  %v1043 = vpop.f32.mrf.mxu0
  %v1044 = vpop.f32.mrf.mxu0
  %v1045 = vadd.f32 0.0, %v1044
  %v1046 = vpop.f32.mrf.mxu0
  %1047 = vmatprep.mubr.bf16.mxu0 0
  %1048 = vmatmul.mubr.bf16.gmra.mxu0 %v754
  %v1049 = vpop.f32.mrf.mxu0
  %v1050 = vadd.f32 0.0, %v1049
  %v1051 = vpop.f32.mrf.mxu0
  %v1052 = vpop.f32.mrf.mxu0
  %v1053 = vadd.f32 0.0, %v1052
  %v1054 = vpop.f32.mrf.mxu0
  %1055 = vmatprep.mubr.bf16.mxu0 0
  %1056 = vmatmul.mubr.bf16.gmra.mxu0 %v755
  %v1057 = vpop.f32.mrf.mxu0
  %v1058 = vadd.f32 0.0, %v1057
  %v1059 = vpop.f32.mrf.mxu0
  %v1060 = vpop.f32.mrf.mxu0
  %v1061 = vadd.f32 0.0, %v1060
  %v1062 = vpop.f32.mrf.mxu0
  %1063 = vmatprep.mubr.bf16.mxu0 0
  %1064 = vmatmul.mubr.bf16.gmra.mxu0 %v756
  %v1065 = vpop.f32.mrf.mxu0
  %v1066 = vadd.f32 0.0, %v1065
  %v1067 = vpop.f32.mrf.mxu0
  %v1068 = vpop.f32.mrf.mxu0
  %v1069 = vadd.f32 0.0, %v1068
  %v1070 = vpop.f32.mrf.mxu0
  %1071 = vmatprep.mubr.bf16.mxu0 0
  %1072 = vmatmul.mubr.bf16.gmra.mxu0 %v757
  %v1073 = vpop.f32.mrf.mxu0
  %v1074 = vadd.f32 0.0, %v1073
  %v1075 = vpop.f32.mrf.mxu0
  %v1076 = vpop.f32.mrf.mxu0
  %v1077 = vadd.f32 0.0, %v1076
  %v1078 = vpop.f32.mrf.mxu0
  %1079 = vmatprep.mubr.bf16.mxu0 0
  %1080 = vmatmul.mubr.bf16.gmra.mxu0 %v758
  %v1081 = vpop.f32.mrf.mxu0
  %v1082 = vadd.f32 0.0, %v1081
  %v1083 = vpop.f32.mrf.mxu0
  %v1084 = vpop.f32.mrf.mxu0
  %v1085 = vadd.f32 0.0, %v1084
  %v1086 = vpop.f32.mrf.mxu0
  %1087 = vmatprep.mubr.bf16.mxu0 0
  %1088 = vmatmul.mubr.bf16.gmra.mxu0 %v759
  %v1089 = vpop.f32.mrf.mxu0
  %v1090 = vadd.f32 0.0, %v1089
  %v1091 = vpop.f32.mrf.mxu0
  %v1092 = vpop.f32.mrf.mxu0
  %v1093 = vadd.f32 0.0, %v1092
  %v1094 = vpop.f32.mrf.mxu0
  %1095 = vmatprep.mubr.bf16.mxu0 0
  %1096 = vmatmul.mubr.bf16.gmra.mxu0 %v760
  %v1097 = vpop.f32.mrf.mxu0
  %v1098 = vadd.f32 0.0, %v1097
  %v1099 = vpop.f32.mrf.mxu0
  %v1100 = vpop.f32.mrf.mxu0
  %v1101 = vadd.f32 0.0, %v1100
  %v1102 = vpop.f32.mrf.mxu0
  %1103 = vmatprep.mubr.bf16.mxu0 0
  %1104 = vmatmul.mubr.bf16.gmra.mxu0 %v761
  %v1105 = vpop.f32.mrf.mxu0
  %v1106 = vadd.f32 0.0, %v1105
  %v1107 = vpop.f32.mrf.mxu0
  %v1108 = vpop.f32.mrf.mxu0
  %v1109 = vadd.f32 0.0, %v1108
  %v1110 = vpop.f32.mrf.mxu0
  %1111 = vmatprep.mubr.bf16.mxu0 0
  %1112 = vmatmul.mubr.bf16.gmra.mxu0 %v762
  %v1113 = vpop.f32.mrf.mxu0
  %v1114 = vadd.f32 0.0, %v1113
  %v1115 = vpop.f32.mrf.mxu0
  %v1116 = vpop.f32.mrf.mxu0
  %v1117 = vadd.f32 0.0, %v1116
  %v1118 = vpop.f32.mrf.mxu0
  %1119 = vmatprep.mubr.bf16.mxu0 0
  %1120 = vmatmul.mubr.bf16.gmra.mxu0 %v763
  %v1121 = vpop.f32.mrf.mxu0
  %v1122 = vadd.f32 0.0, %v1121
  %v1123 = vpop.f32.mrf.mxu0
  %v1124 = vpop.f32.mrf.mxu0
  %v1125 = vadd.f32 0.0, %v1124
  %v1126 = vpop.f32.mrf.mxu0
  %1127 = vmatprep.mubr.bf16.mxu0 0
  %1128 = vmatmul.mubr.bf16.gmra.mxu0 %v764
  %v1129 = vpop.f32.mrf.mxu0
  %v1130 = vadd.f32 0.0, %v1129
  %v1131 = vpop.f32.mrf.mxu0
  %v1132 = vpop.f32.mrf.mxu0
  %v1133 = vadd.f32 0.0, %v1132
  %v1134 = vpop.f32.mrf.mxu0
  %1135 = vmatprep.mubr.bf16.mxu0 0
  %1136 = vmatmul.mubr.bf16.gmra.mxu0 %v765
  %v1137 = vpop.f32.mrf.mxu0
  %v1138 = vadd.f32 0.0, %v1137
  %v1139 = vpop.f32.mrf.mxu0
  %v1140 = vpop.f32.mrf.mxu0
  %v1141 = vadd.f32 0.0, %v1140
  %v1142 = vpop.f32.mrf.mxu0
  %1143 = vmatprep.mubr.bf16.mxu0 0
  %1144 = vmatmul.mubr.bf16.gmra.mxu0 %v766
  %v1145 = vpop.f32.mrf.mxu0
  %v1146 = vadd.f32 0.0, %v1145
  %v1147 = vpop.f32.mrf.mxu0
  %v1148 = vpop.f32.mrf.mxu0
  %v1149 = vadd.f32 0.0, %v1148
  %v1150 = vpop.f32.mrf.mxu0
  %1151 = vmatprep.mubr.bf16.mxu0 0
  %1152 = vmatmul.mubr.bf16.gmra.mxu0 %v767
  %v1153 = vpop.f32.mrf.mxu0
  %v1154 = vadd.f32 0.0, %v1153
  %v1155 = vpop.f32.mrf.mxu0
  %v1156 = vpop.f32.mrf.mxu0
  %v1157 = vadd.f32 0.0, %v1156
  %v1158 = vpop.f32.mrf.mxu0
  %1159 = vmatprep.mubr.bf16.mxu0 0
  %1160 = vmatmul.mubr.bf16.gmra.mxu0 %v768
  %v1161 = vpop.f32.mrf.mxu0
  %v1162 = vadd.f32 0.0, %v1161
  %v1163 = vpop.f32.mrf.mxu0
  %v1164 = vpop.f32.mrf.mxu0
  %v1165 = vadd.f32 0.0, %v1164
  %v1166 = vpop.f32.mrf.mxu0
  %1167 = vmatprep.mubr.bf16.mxu0 0
  %1168 = vmatmul.mubr.bf16.gmra.mxu0 %v769
  %v1169 = vpop.f32.mrf.mxu0
  %v1170 = vadd.f32 0.0, %v1169
  %v1171 = vpop.f32.mrf.mxu0
  %v1172 = vpop.f32.mrf.mxu0
  %v1173 = vadd.f32 0.0, %v1172
  %v1174 = vpop.f32.mrf.mxu0
  %1175 = vmatprep.mubr.bf16.mxu0 0
  %1176 = vmatmul.mubr.bf16.gmra.mxu0 %v770
  %v1177 = vpop.f32.mrf.mxu0
  %v1178 = vadd.f32 0.0, %v1177
  %v1179 = vpop.f32.mrf.mxu0
  %v1180 = vpop.f32.mrf.mxu0
  %v1181 = vadd.f32 0.0, %v1180
  %v1182 = vpop.f32.mrf.mxu0
  %1183 = vmatprep.mubr.bf16.mxu0 0
  %1184 = vmatmul.mubr.bf16.gmra.mxu0 %v771
  %v1185 = vpop.f32.mrf.mxu0
  %v1186 = vadd.f32 0.0, %v1185
  %v1187 = vpop.f32.mrf.mxu0
  %v1188 = vpop.f32.mrf.mxu0
  %v1189 = vadd.f32 0.0, %v1188
  %v1190 = vpop.f32.mrf.mxu0
  %1191 = vmatprep.mubr.bf16.mxu0 0
  %1192 = vmatmul.mubr.bf16.gmra.mxu0 %v772
  %v1193 = vpop.f32.mrf.mxu0
  %v1194 = vadd.f32 0.0, %v1193
  %v1195 = vpop.f32.mrf.mxu0
  %v1196 = vpop.f32.mrf.mxu0
  %v1197 = vadd.f32 0.0, %v1196
  %v1198 = vpop.f32.mrf.mxu0
  %1199 = vmatprep.mubr.bf16.mxu0 0
  %1200 = vmatmul.mubr.bf16.gmra.mxu0 %v773
  %v1201 = vpop.f32.mrf.mxu0
  %v1202 = vadd.f32 0.0, %v1201
  %v1203 = vpop.f32.mrf.mxu0
  %v1204 = vpop.f32.mrf.mxu0
  %v1205 = vadd.f32 0.0, %v1204
  %v1206 = vpop.f32.mrf.mxu0
  %1207 = vmatprep.mubr.bf16.mxu0 0
  %1208 = vmatmul.mubr.bf16.gmra.mxu0 %v774
  %v1209 = vpop.f32.mrf.mxu0
  %v1210 = vadd.f32 0.0, %v1209
  %v1211 = vpop.f32.mrf.mxu0
  %v1212 = vpop.f32.mrf.mxu0
  %v1213 = vadd.f32 0.0, %v1212
  %v1214 = vpop.f32.mrf.mxu0
  %1215 = vmatprep.mubr.bf16.mxu0 0
  %1216 = vmatmul.mubr.bf16.gmra.mxu0 %v775
  %v1217 = vpop.f32.mrf.mxu0
  %v1218 = vadd.f32 0.0, %v1217
  %v1219 = vpop.f32.mrf.mxu0
  %v1220 = vpop.f32.mrf.mxu0
  %v1221 = vadd.f32 0.0, %v1220
  %v1222 = vpop.f32.mrf.mxu0
  %1223 = vmatprep.mubr.bf16.mxu0 0
  %1224 = vmatmul.mubr.bf16.gmra.mxu0 %v776
  %v1225 = vpop.f32.mrf.mxu0
  %v1226 = vadd.f32 0.0, %v1225
  %v1227 = vpop.f32.mrf.mxu0
  %v1228 = vpop.f32.mrf.mxu0
  %v1229 = vadd.f32 0.0, %v1228
  %v1230 = vpop.f32.mrf.mxu0
  %1231 = vmatprep.mubr.bf16.mxu0 0
  %1232 = vmatmul.mubr.bf16.gmra.mxu0 %v777
  %v1233 = vpop.f32.mrf.mxu0
  %v1234 = vadd.f32 0.0, %v1233
  %v1235 = vpop.f32.mrf.mxu0
  %v1236 = vpop.f32.mrf.mxu0
  %v1237 = vadd.f32 0.0, %v1236
  %v1238 = vpop.f32.mrf.mxu0
  %1239 = vmatprep.mubr.bf16.mxu0 0
  %1240 = vmatmul.mubr.bf16.gmra.mxu0 %v778
  %v1241 = vpop.f32.mrf.mxu0
  %v1242 = vadd.f32 0.0, %v1241
  %v1243 = vpop.f32.mrf.mxu0
  %v1244 = vpop.f32.mrf.mxu0
  %v1245 = vadd.f32 0.0, %v1244
  %v1246 = vpop.f32.mrf.mxu0
  %1247 = vmatprep.mubr.bf16.mxu0 0
  %1248 = vmatmul.mubr.bf16.gmra.mxu0 %v779
  %v1249 = vpop.f32.mrf.mxu0
  %v1250 = vadd.f32 0.0, %v1249
  %v1251 = vpop.f32.mrf.mxu0
  %v1252 = vpop.f32.mrf.mxu0
  %v1253 = vadd.f32 0.0, %v1252
  %v1254 = vpop.f32.mrf.mxu0
  %1255 = vmatprep.mubr.bf16.mxu0 0
  %1256 = vmatmul.mubr.bf16.gmra.mxu0 %v780
  %v1257 = vpop.f32.mrf.mxu0
  %v1258 = vadd.f32 0.0, %v1257
  %v1259 = vpop.f32.mrf.mxu0
  %v1260 = vpop.f32.mrf.mxu0
  %v1261 = vadd.f32 0.0, %v1260
  %v1262 = vpop.f32.mrf.mxu0
  %1263 = vdwg.mxu0
  %v1264 = vpack.c.bf16 %v869, %v866
  %v1265 = vpack.c.bf16 %v877, %v874
  %v1266 = vpack.c.bf16 %v885, %v882
  %v1267 = vpack.c.bf16 %v893, %v890
  %v1268 = vpack.c.bf16 %v901, %v898
  %v1269 = vpack.c.bf16 %v909, %v906
  %v1270 = vpack.c.bf16 %v917, %v914
  %v1271 = vpack.c.bf16 %v925, %v922
  %v1272 = vpack.c.bf16 %v933, %v930
  %v1273 = vpack.c.bf16 %v941, %v938
  %v1274 = vpack.c.bf16 %v949, %v946
  %v1275 = vpack.c.bf16 %v957, %v954
  %v1276 = vpack.c.bf16 %v965, %v962
  %v1277 = vpack.c.bf16 %v973, %v970
  %v1278 = vpack.c.bf16 %v981, %v978
  %v1279 = vpack.c.bf16 %v989, %v986
  %v1280 = vpack.c.bf16 %v997, %v994
  %v1281 = vpack.c.bf16 %v1005, %v1002
  %v1282 = vpack.c.bf16 %v1013, %v1010
  %v1283 = vpack.c.bf16 %v1021, %v1018
  %v1284 = vpack.c.bf16 %v1029, %v1026
  %v1285 = vpack.c.bf16 %v1037, %v1034
  %v1286 = vpack.c.bf16 %v1045, %v1042
  %v1287 = vpack.c.bf16 %v1053, %v1050
  %v1288 = vpack.c.bf16 %v1061, %v1058
  %v1289 = vpack.c.bf16 %v1069, %v1066
  %v1290 = vpack.c.bf16 %v1077, %v1074
  %v1291 = vpack.c.bf16 %v1085, %v1082
  %v1292 = vpack.c.bf16 %v1093, %v1090
  %v1293 = vpack.c.bf16 %v1101, %v1098
  %v1294 = vpack.c.bf16 %v1109, %v1106
  %v1295 = vpack.c.bf16 %v1117, %v1114
  %v1296 = vpack.c.bf16 %v1125, %v1122
  %v1297 = vpack.c.bf16 %v1133, %v1130
  %v1298 = vpack.c.bf16 %v1141, %v1138
  %v1299 = vpack.c.bf16 %v1149, %v1146
  %v1300 = vpack.c.bf16 %v1157, %v1154
  %v1301 = vpack.c.bf16 %v1165, %v1162
  %v1302 = vpack.c.bf16 %v1173, %v1170
  %v1303 = vpack.c.bf16 %v1181, %v1178
  %v1304 = vpack.c.bf16 %v1189, %v1186
  %v1305 = vpack.c.bf16 %v1197, %v1194
  %v1306 = vpack.c.bf16 %v1205, %v1202
  %v1307 = vpack.c.bf16 %v1213, %v1210
  %v1308 = vpack.c.bf16 %v1221, %v1218
  %v1309 = vpack.c.bf16 %v1229, %v1226
  %v1310 = vpack.c.bf16 %v1237, %v1234
  %v1311 = vpack.c.bf16 %v1245, %v1242
  %v1312 = vpack.c.bf16 %v1253, %v1250
  %v1313 = vpack.c.bf16 %v1261, %v1258
  %v1314 = vld [vmem:[%s3] sm:$0xf]
  %s1315 = scalar_lea.vmem %s3, 4
  %v1316 = vld [vmem:[%s1315] sm:$0xf]
  %v1318 = vsel %vm233, %v1266, 0
  %v1321 = vsel %vm233, %v1267, 0
  %v1324 = vsel %vm129, %v1316, 0
  %1326 = vmatprep.subr.bf16.mxu0 0
  %1327 = vmatpush1.bf16.msra.mxu0 0
  %1328 = vmatprep.subr.bf16.mxu0 0
  %1329 = vmatpush1.bf16.msra.mxu0 0
  %1330 = vmatprep.subr.bf16.mxu0 0
  %1331 = vmatpush1.bf16.msra.mxu0 0
  %1332 = vmatprep.subr.bf16.mxu0 0
  %1333 = vmatpush1.bf16.msra.mxu0 0
  %1334 = vmatprep.subr.bf16.mxu0 0
  %1335 = vmatpush1.bf16.msra.mxu0 0
  %1336 = vmatprep.subr.bf16.mxu0 0
  %1337 = vmatpush1.bf16.msra.mxu0 0
  %1338 = vmatprep.subr.bf16.mxu0 0
  %1339 = vmatpush1.bf16.msra.mxu0 0
  %1340 = vmatprep.subr.bf16.mxu0 0
  %1341 = vmatpush1.bf16.msra.mxu0 %v1324
  %1342 = vmatprep.subr.bf16.mxu0 0
  %1343 = vmatpush2.bf16.msra.mxu0 0
  %1344 = vmatprep.subr.bf16.mxu0 0
  %1345 = vmatpush2.bf16.msra.mxu0 0
  %1346 = vmatprep.subr.bf16.mxu0 0
  %1347 = vmatpush2.bf16.msra.mxu0 0
  %1348 = vmatprep.subr.bf16.mxu0 0
  %1349 = vmatpush2.bf16.msra.mxu0 0
  %1350 = vmatprep.subr.bf16.mxu0 0
  %1351 = vmatpush2.bf16.msra.mxu0 0
  %1352 = vmatprep.subr.bf16.mxu0 0
  %1353 = vmatpush2.bf16.msra.mxu0 0
  %1354 = vmatprep.subr.bf16.mxu0 0
  %1355 = vmatpush2.bf16.msra.mxu0 0
  %1356 = vmatprep.subr.bf16.mxu0 0
  %1357 = vmatpush2.bf16.msra.mxu0 0
  %1358 = vmatprep.mubr.bf16.mxu0 0
  %1359 = vmatmul.mubr.bf16.gmra.mxu0 %v1318
  %v1360 = vpop.f32.mrf.mxu0
  %v1361 = vadd.f32 0.0, %v1360
  %v1362 = vpop.f32.mrf.mxu0
  %v1363 = vpop.f32.mrf.mxu0
  %v1364 = vadd.f32 0.0, %v1363
  %v1365 = vpop.f32.mrf.mxu0
  %1366 = vmatprep.mubr.bf16.mxu0 0
  %1367 = vmatmul.mubr.bf16.gmra.mxu0 %v1321
  %v1368 = vpop.f32.mrf.mxu0
  %v1369 = vadd.f32 0.0, %v1368
  %v1370 = vpop.f32.mrf.mxu0
  %v1371 = vpop.f32.mrf.mxu0
  %v1372 = vadd.f32 0.0, %v1371
  %v1373 = vpop.f32.mrf.mxu0
  %1374 = vdwg.mxu0
  %s1375 = scalar_lea.vmem %s3, 8
  %v1376 = vld [vmem:[%s1375] sm:$0xf]
  %s1377 = scalar_lea.vmem %s3, 12
  %v1378 = vld [vmem:[%s1377] sm:$0xf]
  %v1380 = vsel %vm233, %v1270, 0
  %v1383 = vsel %vm233, %v1271, 0
  %v1386 = vsel %vm129, %v1378, 0
  %1388 = vmatprep.subr.bf16.mxu0 0
  %1389 = vmatpush1.bf16.msra.mxu0 0
  %1390 = vmatprep.subr.bf16.mxu0 0
  %1391 = vmatpush1.bf16.msra.mxu0 0
  %1392 = vmatprep.subr.bf16.mxu0 0
  %1393 = vmatpush1.bf16.msra.mxu0 0
  %1394 = vmatprep.subr.bf16.mxu0 0
  %1395 = vmatpush1.bf16.msra.mxu0 0
  %1396 = vmatprep.subr.bf16.mxu0 0
  %1397 = vmatpush1.bf16.msra.mxu0 0
  %1398 = vmatprep.subr.bf16.mxu0 0
  %1399 = vmatpush1.bf16.msra.mxu0 0
  %1400 = vmatprep.subr.bf16.mxu0 0
  %1401 = vmatpush1.bf16.msra.mxu0 0
  %1402 = vmatprep.subr.bf16.mxu0 0
  %1403 = vmatpush1.bf16.msra.mxu0 %v1386
  %1404 = vmatprep.subr.bf16.mxu0 0
  %1405 = vmatpush2.bf16.msra.mxu0 0
  %1406 = vmatprep.subr.bf16.mxu0 0
  %1407 = vmatpush2.bf16.msra.mxu0 0
  %1408 = vmatprep.subr.bf16.mxu0 0
  %1409 = vmatpush2.bf16.msra.mxu0 0
  %1410 = vmatprep.subr.bf16.mxu0 0
  %1411 = vmatpush2.bf16.msra.mxu0 0
  %1412 = vmatprep.subr.bf16.mxu0 0
  %1413 = vmatpush2.bf16.msra.mxu0 0
  %1414 = vmatprep.subr.bf16.mxu0 0
  %1415 = vmatpush2.bf16.msra.mxu0 0
  %1416 = vmatprep.subr.bf16.mxu0 0
  %1417 = vmatpush2.bf16.msra.mxu0 0
  %1418 = vmatprep.subr.bf16.mxu0 0
  %1419 = vmatpush2.bf16.msra.mxu0 0
  %1420 = vmatprep.mubr.bf16.mxu0 0
  %1421 = vmatmul.mubr.bf16.gmra.mxu0 %v1380
  %v1422 = vpop.f32.mrf.mxu0
  %v1423 = vadd.f32 0.0, %v1422
  %v1424 = vpop.f32.mrf.mxu0
  %v1425 = vpop.f32.mrf.mxu0
  %v1426 = vadd.f32 0.0, %v1425
  %v1427 = vpop.f32.mrf.mxu0
  %1428 = vmatprep.mubr.bf16.mxu0 0
  %1429 = vmatmul.mubr.bf16.gmra.mxu0 %v1383
  %v1430 = vpop.f32.mrf.mxu0
  %v1431 = vadd.f32 0.0, %v1430
  %v1432 = vpop.f32.mrf.mxu0
  %v1433 = vpop.f32.mrf.mxu0
  %v1434 = vadd.f32 0.0, %v1433
  %v1435 = vpop.f32.mrf.mxu0
  %1436 = vdwg.mxu0
  %s1437 = scalar_lea.vmem %s3, 16
  %v1438 = vld [vmem:[%s1437] sm:$0xf]
  %s1439 = scalar_lea.vmem %s3, 20
  %v1440 = vld [vmem:[%s1439] sm:$0xf]
  %v1442 = vsel %vm233, %v1274, 0
  %v1445 = vsel %vm233, %v1275, 0
  %v1448 = vsel %vm129, %v1440, 0
  %1450 = vmatprep.subr.bf16.mxu0 0
  %1451 = vmatpush1.bf16.msra.mxu0 0
  %1452 = vmatprep.subr.bf16.mxu0 0
  %1453 = vmatpush1.bf16.msra.mxu0 0
  %1454 = vmatprep.subr.bf16.mxu0 0
  %1455 = vmatpush1.bf16.msra.mxu0 0
  %1456 = vmatprep.subr.bf16.mxu0 0
  %1457 = vmatpush1.bf16.msra.mxu0 0
  %1458 = vmatprep.subr.bf16.mxu0 0
  %1459 = vmatpush1.bf16.msra.mxu0 0
  %1460 = vmatprep.subr.bf16.mxu0 0
  %1461 = vmatpush1.bf16.msra.mxu0 0
  %1462 = vmatprep.subr.bf16.mxu0 0
  %1463 = vmatpush1.bf16.msra.mxu0 0
  %1464 = vmatprep.subr.bf16.mxu0 0
  %1465 = vmatpush1.bf16.msra.mxu0 %v1448
  %1466 = vmatprep.subr.bf16.mxu0 0
  %1467 = vmatpush2.bf16.msra.mxu0 0
  %1468 = vmatprep.subr.bf16.mxu0 0
  %1469 = vmatpush2.bf16.msra.mxu0 0
  %1470 = vmatprep.subr.bf16.mxu0 0
  %1471 = vmatpush2.bf16.msra.mxu0 0
  %1472 = vmatprep.subr.bf16.mxu0 0
  %1473 = vmatpush2.bf16.msra.mxu0 0
  %1474 = vmatprep.subr.bf16.mxu0 0
  %1475 = vmatpush2.bf16.msra.mxu0 0
  %1476 = vmatprep.subr.bf16.mxu0 0
  %1477 = vmatpush2.bf16.msra.mxu0 0
  %1478 = vmatprep.subr.bf16.mxu0 0
  %1479 = vmatpush2.bf16.msra.mxu0 0
  %1480 = vmatprep.subr.bf16.mxu0 0
  %1481 = vmatpush2.bf16.msra.mxu0 0
  %1482 = vmatprep.mubr.bf16.mxu0 0
  %1483 = vmatmul.mubr.bf16.gmra.mxu0 %v1442
  %v1484 = vpop.f32.mrf.mxu0
  %v1485 = vadd.f32 0.0, %v1484
  %v1486 = vpop.f32.mrf.mxu0
  %v1487 = vpop.f32.mrf.mxu0
  %v1488 = vadd.f32 0.0, %v1487
  %v1489 = vpop.f32.mrf.mxu0
  %1490 = vmatprep.mubr.bf16.mxu0 0
  %1491 = vmatmul.mubr.bf16.gmra.mxu0 %v1445
  %v1492 = vpop.f32.mrf.mxu0
  %v1493 = vadd.f32 0.0, %v1492
  %v1494 = vpop.f32.mrf.mxu0
  %v1495 = vpop.f32.mrf.mxu0
  %v1496 = vadd.f32 0.0, %v1495
  %v1497 = vpop.f32.mrf.mxu0
  %1498 = vdwg.mxu0
  %s1499 = scalar_lea.vmem %s3, 24
  %v1500 = vld [vmem:[%s1499] sm:$0xf]
  %s1501 = scalar_lea.vmem %s3, 28
  %v1502 = vld [vmem:[%s1501] sm:$0xf]
  %v1504 = vsel %vm233, %v1278, 0
  %v1507 = vsel %vm233, %v1279, 0
  %v1510 = vsel %vm129, %v1502, 0
  %1512 = vmatprep.subr.bf16.mxu0 0
  %1513 = vmatpush1.bf16.msra.mxu0 0
  %1514 = vmatprep.subr.bf16.mxu0 0
  %1515 = vmatpush1.bf16.msra.mxu0 0
  %1516 = vmatprep.subr.bf16.mxu0 0
  %1517 = vmatpush1.bf16.msra.mxu0 0
  %1518 = vmatprep.subr.bf16.mxu0 0
  %1519 = vmatpush1.bf16.msra.mxu0 0
  %1520 = vmatprep.subr.bf16.mxu0 0
  %1521 = vmatpush1.bf16.msra.mxu0 0
  %1522 = vmatprep.subr.bf16.mxu0 0
  %1523 = vmatpush1.bf16.msra.mxu0 0
  %1524 = vmatprep.subr.bf16.mxu0 0
  %1525 = vmatpush1.bf16.msra.mxu0 0
  %1526 = vmatprep.subr.bf16.mxu0 0
  %1527 = vmatpush1.bf16.msra.mxu0 %v1510
  %1528 = vmatprep.subr.bf16.mxu0 0
  %1529 = vmatpush2.bf16.msra.mxu0 0
  %1530 = vmatprep.subr.bf16.mxu0 0
  %1531 = vmatpush2.bf16.msra.mxu0 0
  %1532 = vmatprep.subr.bf16.mxu0 0
  %1533 = vmatpush2.bf16.msra.mxu0 0
  %1534 = vmatprep.subr.bf16.mxu0 0
  %1535 = vmatpush2.bf16.msra.mxu0 0
  %1536 = vmatprep.subr.bf16.mxu0 0
  %1537 = vmatpush2.bf16.msra.mxu0 0
  %1538 = vmatprep.subr.bf16.mxu0 0
  %1539 = vmatpush2.bf16.msra.mxu0 0
  %1540 = vmatprep.subr.bf16.mxu0 0
  %1541 = vmatpush2.bf16.msra.mxu0 0
  %1542 = vmatprep.subr.bf16.mxu0 0
  %1543 = vmatpush2.bf16.msra.mxu0 0
  %1544 = vmatprep.mubr.bf16.mxu0 0
  %1545 = vmatmul.mubr.bf16.gmra.mxu0 %v1504
  %v1546 = vpop.f32.mrf.mxu0
  %v1547 = vadd.f32 0.0, %v1546
  %v1548 = vpop.f32.mrf.mxu0
  %v1549 = vpop.f32.mrf.mxu0
  %v1550 = vadd.f32 0.0, %v1549
  %v1551 = vpop.f32.mrf.mxu0
  %1552 = vmatprep.mubr.bf16.mxu0 0
  %1553 = vmatmul.mubr.bf16.gmra.mxu0 %v1507
  %v1554 = vpop.f32.mrf.mxu0
  %v1555 = vadd.f32 0.0, %v1554
  %v1556 = vpop.f32.mrf.mxu0
  %v1557 = vpop.f32.mrf.mxu0
  %v1558 = vadd.f32 0.0, %v1557
  %v1559 = vpop.f32.mrf.mxu0
  %1560 = vdwg.mxu0
  %s1561 = scalar_lea.vmem %s3, 32
  %v1562 = vld [vmem:[%s1561] sm:$0xf]
  %s1563 = scalar_lea.vmem %s3, 36
  %v1564 = vld [vmem:[%s1563] sm:$0xf]
  %v1566 = vsel %vm233, %v1282, 0
  %v1569 = vsel %vm233, %v1283, 0
  %v1572 = vsel %vm129, %v1564, 0
  %1574 = vmatprep.subr.bf16.mxu0 0
  %1575 = vmatpush1.bf16.msra.mxu0 0
  %1576 = vmatprep.subr.bf16.mxu0 0
  %1577 = vmatpush1.bf16.msra.mxu0 0
  %1578 = vmatprep.subr.bf16.mxu0 0
  %1579 = vmatpush1.bf16.msra.mxu0 0
  %1580 = vmatprep.subr.bf16.mxu0 0
  %1581 = vmatpush1.bf16.msra.mxu0 0
  %1582 = vmatprep.subr.bf16.mxu0 0
  %1583 = vmatpush1.bf16.msra.mxu0 0
  %1584 = vmatprep.subr.bf16.mxu0 0
  %1585 = vmatpush1.bf16.msra.mxu0 0
  %1586 = vmatprep.subr.bf16.mxu0 0
  %1587 = vmatpush1.bf16.msra.mxu0 0
  %1588 = vmatprep.subr.bf16.mxu0 0
  %1589 = vmatpush1.bf16.msra.mxu0 %v1572
  %1590 = vmatprep.subr.bf16.mxu0 0
  %1591 = vmatpush2.bf16.msra.mxu0 0
  %1592 = vmatprep.subr.bf16.mxu0 0
  %1593 = vmatpush2.bf16.msra.mxu0 0
  %1594 = vmatprep.subr.bf16.mxu0 0
  %1595 = vmatpush2.bf16.msra.mxu0 0
  %1596 = vmatprep.subr.bf16.mxu0 0
  %1597 = vmatpush2.bf16.msra.mxu0 0
  %1598 = vmatprep.subr.bf16.mxu0 0
  %1599 = vmatpush2.bf16.msra.mxu0 0
  %1600 = vmatprep.subr.bf16.mxu0 0
  %1601 = vmatpush2.bf16.msra.mxu0 0
  %1602 = vmatprep.subr.bf16.mxu0 0
  %1603 = vmatpush2.bf16.msra.mxu0 0
  %1604 = vmatprep.subr.bf16.mxu0 0
  %1605 = vmatpush2.bf16.msra.mxu0 0
  %1606 = vmatprep.mubr.bf16.mxu0 0
  %1607 = vmatmul.mubr.bf16.gmra.mxu0 %v1566
  %v1608 = vpop.f32.mrf.mxu0
  %v1609 = vadd.f32 0.0, %v1608
  %v1610 = vpop.f32.mrf.mxu0
  %v1611 = vpop.f32.mrf.mxu0
  %v1612 = vadd.f32 0.0, %v1611
  %v1613 = vpop.f32.mrf.mxu0
  %1614 = vmatprep.mubr.bf16.mxu0 0
  %1615 = vmatmul.mubr.bf16.gmra.mxu0 %v1569
  %v1616 = vpop.f32.mrf.mxu0
  %v1617 = vadd.f32 0.0, %v1616
  %v1618 = vpop.f32.mrf.mxu0
  %v1619 = vpop.f32.mrf.mxu0
  %v1620 = vadd.f32 0.0, %v1619
  %v1621 = vpop.f32.mrf.mxu0
  %1622 = vdwg.mxu0
  %s1623 = scalar_lea.vmem %s3, 40
  %v1624 = vld [vmem:[%s1623] sm:$0xf]
  %s1625 = scalar_lea.vmem %s3, 44
  %v1626 = vld [vmem:[%s1625] sm:$0xf]
  %v1628 = vsel %vm233, %v1286, 0
  %v1631 = vsel %vm233, %v1287, 0
  %v1634 = vsel %vm129, %v1626, 0
  %1636 = vmatprep.subr.bf16.mxu0 0
  %1637 = vmatpush1.bf16.msra.mxu0 0
  %1638 = vmatprep.subr.bf16.mxu0 0
  %1639 = vmatpush1.bf16.msra.mxu0 0
  %1640 = vmatprep.subr.bf16.mxu0 0
  %1641 = vmatpush1.bf16.msra.mxu0 0
  %1642 = vmatprep.subr.bf16.mxu0 0
  %1643 = vmatpush1.bf16.msra.mxu0 0
  %1644 = vmatprep.subr.bf16.mxu0 0
  %1645 = vmatpush1.bf16.msra.mxu0 0
  %1646 = vmatprep.subr.bf16.mxu0 0
  %1647 = vmatpush1.bf16.msra.mxu0 0
  %1648 = vmatprep.subr.bf16.mxu0 0
  %1649 = vmatpush1.bf16.msra.mxu0 0
  %1650 = vmatprep.subr.bf16.mxu0 0
  %1651 = vmatpush1.bf16.msra.mxu0 %v1634
  %1652 = vmatprep.subr.bf16.mxu0 0
  %1653 = vmatpush2.bf16.msra.mxu0 0
  %1654 = vmatprep.subr.bf16.mxu0 0
  %1655 = vmatpush2.bf16.msra.mxu0 0
  %1656 = vmatprep.subr.bf16.mxu0 0
  %1657 = vmatpush2.bf16.msra.mxu0 0
  %1658 = vmatprep.subr.bf16.mxu0 0
  %1659 = vmatpush2.bf16.msra.mxu0 0
  %1660 = vmatprep.subr.bf16.mxu0 0
  %1661 = vmatpush2.bf16.msra.mxu0 0
  %1662 = vmatprep.subr.bf16.mxu0 0
  %1663 = vmatpush2.bf16.msra.mxu0 0
  %1664 = vmatprep.subr.bf16.mxu0 0
  %1665 = vmatpush2.bf16.msra.mxu0 0
  %1666 = vmatprep.subr.bf16.mxu0 0
  %1667 = vmatpush2.bf16.msra.mxu0 0
  %1668 = vmatprep.mubr.bf16.mxu0 0
  %1669 = vmatmul.mubr.bf16.gmra.mxu0 %v1628
  %v1670 = vpop.f32.mrf.mxu0
  %v1671 = vadd.f32 0.0, %v1670
  %v1672 = vpop.f32.mrf.mxu0
  %v1673 = vpop.f32.mrf.mxu0
  %v1674 = vadd.f32 0.0, %v1673
  %v1675 = vpop.f32.mrf.mxu0
  %1676 = vmatprep.mubr.bf16.mxu0 0
  %1677 = vmatmul.mubr.bf16.gmra.mxu0 %v1631
  %v1678 = vpop.f32.mrf.mxu0
  %v1679 = vadd.f32 0.0, %v1678
  %v1680 = vpop.f32.mrf.mxu0
  %v1681 = vpop.f32.mrf.mxu0
  %v1682 = vadd.f32 0.0, %v1681
  %v1683 = vpop.f32.mrf.mxu0
  %1684 = vdwg.mxu0
  %s1685 = scalar_lea.vmem %s3, 48
  %v1686 = vld [vmem:[%s1685] sm:$0xf]
  %s1687 = scalar_lea.vmem %s3, 52
  %v1688 = vld [vmem:[%s1687] sm:$0xf]
  %v1690 = vsel %vm233, %v1290, 0
  %v1693 = vsel %vm233, %v1291, 0
  %v1696 = vsel %vm129, %v1688, 0
  %1698 = vmatprep.subr.bf16.mxu0 0
  %1699 = vmatpush1.bf16.msra.mxu0 0
  %1700 = vmatprep.subr.bf16.mxu0 0
  %1701 = vmatpush1.bf16.msra.mxu0 0
  %1702 = vmatprep.subr.bf16.mxu0 0
  %1703 = vmatpush1.bf16.msra.mxu0 0
  %1704 = vmatprep.subr.bf16.mxu0 0
  %1705 = vmatpush1.bf16.msra.mxu0 0
  %1706 = vmatprep.subr.bf16.mxu0 0
  %1707 = vmatpush1.bf16.msra.mxu0 0
  %1708 = vmatprep.subr.bf16.mxu0 0
  %1709 = vmatpush1.bf16.msra.mxu0 0
  %1710 = vmatprep.subr.bf16.mxu0 0
  %1711 = vmatpush1.bf16.msra.mxu0 0
  %1712 = vmatprep.subr.bf16.mxu0 0
  %1713 = vmatpush1.bf16.msra.mxu0 %v1696
  %1714 = vmatprep.subr.bf16.mxu0 0
  %1715 = vmatpush2.bf16.msra.mxu0 0
  %1716 = vmatprep.subr.bf16.mxu0 0
  %1717 = vmatpush2.bf16.msra.mxu0 0
  %1718 = vmatprep.subr.bf16.mxu0 0
  %1719 = vmatpush2.bf16.msra.mxu0 0
  %1720 = vmatprep.subr.bf16.mxu0 0
  %1721 = vmatpush2.bf16.msra.mxu0 0
  %1722 = vmatprep.subr.bf16.mxu0 0
  %1723 = vmatpush2.bf16.msra.mxu0 0
  %1724 = vmatprep.subr.bf16.mxu0 0
  %1725 = vmatpush2.bf16.msra.mxu0 0
  %1726 = vmatprep.subr.bf16.mxu0 0
  %1727 = vmatpush2.bf16.msra.mxu0 0
  %1728 = vmatprep.subr.bf16.mxu0 0
  %1729 = vmatpush2.bf16.msra.mxu0 0
  %1730 = vmatprep.mubr.bf16.mxu0 0
  %1731 = vmatmul.mubr.bf16.gmra.mxu0 %v1690
  %v1732 = vpop.f32.mrf.mxu0
  %v1733 = vadd.f32 0.0, %v1732
  %v1734 = vpop.f32.mrf.mxu0
  %v1735 = vpop.f32.mrf.mxu0
  %v1736 = vadd.f32 0.0, %v1735
  %v1737 = vpop.f32.mrf.mxu0
  %1738 = vmatprep.mubr.bf16.mxu0 0
  %1739 = vmatmul.mubr.bf16.gmra.mxu0 %v1693
  %v1740 = vpop.f32.mrf.mxu0
  %v1741 = vadd.f32 0.0, %v1740
  %v1742 = vpop.f32.mrf.mxu0
  %v1743 = vpop.f32.mrf.mxu0
  %v1744 = vadd.f32 0.0, %v1743
  %v1745 = vpop.f32.mrf.mxu0
  %1746 = vdwg.mxu0
  %s1747 = scalar_lea.vmem %s3, 56
  %v1748 = vld [vmem:[%s1747] sm:$0xf]
  %s1749 = scalar_lea.vmem %s3, 60
  %v1750 = vld [vmem:[%s1749] sm:$0xf]
  %v1752 = vsel %vm233, %v1294, 0
  %v1755 = vsel %vm233, %v1295, 0
  %v1758 = vsel %vm129, %v1750, 0
  %1760 = vmatprep.subr.bf16.mxu0 0
  %1761 = vmatpush1.bf16.msra.mxu0 0
  %1762 = vmatprep.subr.bf16.mxu0 0
  %1763 = vmatpush1.bf16.msra.mxu0 0
  %1764 = vmatprep.subr.bf16.mxu0 0
  %1765 = vmatpush1.bf16.msra.mxu0 0
  %1766 = vmatprep.subr.bf16.mxu0 0
  %1767 = vmatpush1.bf16.msra.mxu0 0
  %1768 = vmatprep.subr.bf16.mxu0 0
  %1769 = vmatpush1.bf16.msra.mxu0 0
  %1770 = vmatprep.subr.bf16.mxu0 0
  %1771 = vmatpush1.bf16.msra.mxu0 0
  %1772 = vmatprep.subr.bf16.mxu0 0
  %1773 = vmatpush1.bf16.msra.mxu0 0
  %1774 = vmatprep.subr.bf16.mxu0 0
  %1775 = vmatpush1.bf16.msra.mxu0 %v1758
  %1776 = vmatprep.subr.bf16.mxu0 0
  %1777 = vmatpush2.bf16.msra.mxu0 0
  %1778 = vmatprep.subr.bf16.mxu0 0
  %1779 = vmatpush2.bf16.msra.mxu0 0
  %1780 = vmatprep.subr.bf16.mxu0 0
  %1781 = vmatpush2.bf16.msra.mxu0 0
  %1782 = vmatprep.subr.bf16.mxu0 0
  %1783 = vmatpush2.bf16.msra.mxu0 0
  %1784 = vmatprep.subr.bf16.mxu0 0
  %1785 = vmatpush2.bf16.msra.mxu0 0
  %1786 = vmatprep.subr.bf16.mxu0 0
  %1787 = vmatpush2.bf16.msra.mxu0 0
  %1788 = vmatprep.subr.bf16.mxu0 0
  %1789 = vmatpush2.bf16.msra.mxu0 0
  %1790 = vmatprep.subr.bf16.mxu0 0
  %1791 = vmatpush2.bf16.msra.mxu0 0
  %1792 = vmatprep.mubr.bf16.mxu0 0
  %1793 = vmatmul.mubr.bf16.gmra.mxu0 %v1752
  %v1794 = vpop.f32.mrf.mxu0
  %v1795 = vadd.f32 0.0, %v1794
  %v1796 = vpop.f32.mrf.mxu0
  %v1797 = vpop.f32.mrf.mxu0
  %v1798 = vadd.f32 0.0, %v1797
  %v1799 = vpop.f32.mrf.mxu0
  %1800 = vmatprep.mubr.bf16.mxu0 0
  %1801 = vmatmul.mubr.bf16.gmra.mxu0 %v1755
  %v1802 = vpop.f32.mrf.mxu0
  %v1803 = vadd.f32 0.0, %v1802
  %v1804 = vpop.f32.mrf.mxu0
  %v1805 = vpop.f32.mrf.mxu0
  %v1806 = vadd.f32 0.0, %v1805
  %v1807 = vpop.f32.mrf.mxu0
  %1808 = vdwg.mxu0
  %s1809 = scalar_lea.vmem %s3, 64
  %v1810 = vld [vmem:[%s1809] sm:$0xf]
  %s1811 = scalar_lea.vmem %s3, 68
  %v1812 = vld [vmem:[%s1811] sm:$0xf]
  %v1814 = vsel %vm233, %v1298, 0
  %v1817 = vsel %vm233, %v1299, 0
  %v1820 = vsel %vm129, %v1812, 0
  %1822 = vmatprep.subr.bf16.mxu0 0
  %1823 = vmatpush1.bf16.msra.mxu0 0
  %1824 = vmatprep.subr.bf16.mxu0 0
  %1825 = vmatpush1.bf16.msra.mxu0 0
  %1826 = vmatprep.subr.bf16.mxu0 0
  %1827 = vmatpush1.bf16.msra.mxu0 0
  %1828 = vmatprep.subr.bf16.mxu0 0
  %1829 = vmatpush1.bf16.msra.mxu0 0
  %1830 = vmatprep.subr.bf16.mxu0 0
  %1831 = vmatpush1.bf16.msra.mxu0 0
  %1832 = vmatprep.subr.bf16.mxu0 0
  %1833 = vmatpush1.bf16.msra.mxu0 0
  %1834 = vmatprep.subr.bf16.mxu0 0
  %1835 = vmatpush1.bf16.msra.mxu0 0
  %1836 = vmatprep.subr.bf16.mxu0 0
  %1837 = vmatpush1.bf16.msra.mxu0 %v1820
  %1838 = vmatprep.subr.bf16.mxu0 0
  %1839 = vmatpush2.bf16.msra.mxu0 0
  %1840 = vmatprep.subr.bf16.mxu0 0
  %1841 = vmatpush2.bf16.msra.mxu0 0
  %1842 = vmatprep.subr.bf16.mxu0 0
  %1843 = vmatpush2.bf16.msra.mxu0 0
  %1844 = vmatprep.subr.bf16.mxu0 0
  %1845 = vmatpush2.bf16.msra.mxu0 0
  %1846 = vmatprep.subr.bf16.mxu0 0
  %1847 = vmatpush2.bf16.msra.mxu0 0
  %1848 = vmatprep.subr.bf16.mxu0 0
  %1849 = vmatpush2.bf16.msra.mxu0 0
  %1850 = vmatprep.subr.bf16.mxu0 0
  %1851 = vmatpush2.bf16.msra.mxu0 0
  %1852 = vmatprep.subr.bf16.mxu0 0
  %1853 = vmatpush2.bf16.msra.mxu0 0
  %1854 = vmatprep.mubr.bf16.mxu0 0
  %1855 = vmatmul.mubr.bf16.gmra.mxu0 %v1814
  %v1856 = vpop.f32.mrf.mxu0
  %v1857 = vadd.f32 0.0, %v1856
  %v1858 = vpop.f32.mrf.mxu0
  %v1859 = vpop.f32.mrf.mxu0
  %v1860 = vadd.f32 0.0, %v1859
  %v1861 = vpop.f32.mrf.mxu0
  %1862 = vmatprep.mubr.bf16.mxu0 0
  %1863 = vmatmul.mubr.bf16.gmra.mxu0 %v1817
  %v1864 = vpop.f32.mrf.mxu0
  %v1865 = vadd.f32 0.0, %v1864
  %v1866 = vpop.f32.mrf.mxu0
  %v1867 = vpop.f32.mrf.mxu0
  %v1868 = vadd.f32 0.0, %v1867
  %v1869 = vpop.f32.mrf.mxu0
  %1870 = vdwg.mxu0
  %s1871 = scalar_lea.vmem %s3, 72
  %v1872 = vld [vmem:[%s1871] sm:$0xf]
  %s1873 = scalar_lea.vmem %s3, 76
  %v1874 = vld [vmem:[%s1873] sm:$0xf]
  %v1876 = vsel %vm233, %v1302, 0
  %v1879 = vsel %vm233, %v1303, 0
  %v1882 = vsel %vm129, %v1874, 0
  %1884 = vmatprep.subr.bf16.mxu0 0
  %1885 = vmatpush1.bf16.msra.mxu0 0
  %1886 = vmatprep.subr.bf16.mxu0 0
  %1887 = vmatpush1.bf16.msra.mxu0 0
  %1888 = vmatprep.subr.bf16.mxu0 0
  %1889 = vmatpush1.bf16.msra.mxu0 0
  %1890 = vmatprep.subr.bf16.mxu0 0
  %1891 = vmatpush1.bf16.msra.mxu0 0
  %1892 = vmatprep.subr.bf16.mxu0 0
  %1893 = vmatpush1.bf16.msra.mxu0 0
  %1894 = vmatprep.subr.bf16.mxu0 0
  %1895 = vmatpush1.bf16.msra.mxu0 0
  %1896 = vmatprep.subr.bf16.mxu0 0
  %1897 = vmatpush1.bf16.msra.mxu0 0
  %1898 = vmatprep.subr.bf16.mxu0 0
  %1899 = vmatpush1.bf16.msra.mxu0 %v1882
  %1900 = vmatprep.subr.bf16.mxu0 0
  %1901 = vmatpush2.bf16.msra.mxu0 0
  %1902 = vmatprep.subr.bf16.mxu0 0
  %1903 = vmatpush2.bf16.msra.mxu0 0
  %1904 = vmatprep.subr.bf16.mxu0 0
  %1905 = vmatpush2.bf16.msra.mxu0 0
  %1906 = vmatprep.subr.bf16.mxu0 0
  %1907 = vmatpush2.bf16.msra.mxu0 0
  %1908 = vmatprep.subr.bf16.mxu0 0
  %1909 = vmatpush2.bf16.msra.mxu0 0
  %1910 = vmatprep.subr.bf16.mxu0 0
  %1911 = vmatpush2.bf16.msra.mxu0 0
  %1912 = vmatprep.subr.bf16.mxu0 0
  %1913 = vmatpush2.bf16.msra.mxu0 0
  %1914 = vmatprep.subr.bf16.mxu0 0
  %1915 = vmatpush2.bf16.msra.mxu0 0
  %1916 = vmatprep.mubr.bf16.mxu0 0
  %1917 = vmatmul.mubr.bf16.gmra.mxu0 %v1876
  %v1918 = vpop.f32.mrf.mxu0
  %v1919 = vadd.f32 0.0, %v1918
  %v1920 = vpop.f32.mrf.mxu0
  %v1921 = vpop.f32.mrf.mxu0
  %v1922 = vadd.f32 0.0, %v1921
  %v1923 = vpop.f32.mrf.mxu0
  %1924 = vmatprep.mubr.bf16.mxu0 0
  %1925 = vmatmul.mubr.bf16.gmra.mxu0 %v1879
  %v1926 = vpop.f32.mrf.mxu0
  %v1927 = vadd.f32 0.0, %v1926
  %v1928 = vpop.f32.mrf.mxu0
  %v1929 = vpop.f32.mrf.mxu0
  %v1930 = vadd.f32 0.0, %v1929
  %v1931 = vpop.f32.mrf.mxu0
  %1932 = vdwg.mxu0
  %s1933 = scalar_lea.vmem %s3, 80
  %v1934 = vld [vmem:[%s1933] sm:$0xf]
  %s1935 = scalar_lea.vmem %s3, 84
  %v1936 = vld [vmem:[%s1935] sm:$0xf]
  %v1938 = vsel %vm233, %v1306, 0
  %v1941 = vsel %vm233, %v1307, 0
  %v1944 = vsel %vm129, %v1936, 0
  %1946 = vmatprep.subr.bf16.mxu0 0
  %1947 = vmatpush1.bf16.msra.mxu0 0
  %1948 = vmatprep.subr.bf16.mxu0 0
  %1949 = vmatpush1.bf16.msra.mxu0 0
  %1950 = vmatprep.subr.bf16.mxu0 0
  %1951 = vmatpush1.bf16.msra.mxu0 0
  %1952 = vmatprep.subr.bf16.mxu0 0
  %1953 = vmatpush1.bf16.msra.mxu0 0
  %1954 = vmatprep.subr.bf16.mxu0 0
  %1955 = vmatpush1.bf16.msra.mxu0 0
  %1956 = vmatprep.subr.bf16.mxu0 0
  %1957 = vmatpush1.bf16.msra.mxu0 0
  %1958 = vmatprep.subr.bf16.mxu0 0
  %1959 = vmatpush1.bf16.msra.mxu0 0
  %1960 = vmatprep.subr.bf16.mxu0 0
  %1961 = vmatpush1.bf16.msra.mxu0 %v1944
  %1962 = vmatprep.subr.bf16.mxu0 0
  %1963 = vmatpush2.bf16.msra.mxu0 0
  %1964 = vmatprep.subr.bf16.mxu0 0
  %1965 = vmatpush2.bf16.msra.mxu0 0
  %1966 = vmatprep.subr.bf16.mxu0 0
  %1967 = vmatpush2.bf16.msra.mxu0 0
  %1968 = vmatprep.subr.bf16.mxu0 0
  %1969 = vmatpush2.bf16.msra.mxu0 0
  %1970 = vmatprep.subr.bf16.mxu0 0
  %1971 = vmatpush2.bf16.msra.mxu0 0
  %1972 = vmatprep.subr.bf16.mxu0 0
  %1973 = vmatpush2.bf16.msra.mxu0 0
  %1974 = vmatprep.subr.bf16.mxu0 0
  %1975 = vmatpush2.bf16.msra.mxu0 0
  %1976 = vmatprep.subr.bf16.mxu0 0
  %1977 = vmatpush2.bf16.msra.mxu0 0
  %1978 = vmatprep.mubr.bf16.mxu0 0
  %1979 = vmatmul.mubr.bf16.gmra.mxu0 %v1938
  %v1980 = vpop.f32.mrf.mxu0
  %v1981 = vadd.f32 0.0, %v1980
  %v1982 = vpop.f32.mrf.mxu0
  %v1983 = vpop.f32.mrf.mxu0
  %v1984 = vadd.f32 0.0, %v1983
  %v1985 = vpop.f32.mrf.mxu0
  %1986 = vmatprep.mubr.bf16.mxu0 0
  %1987 = vmatmul.mubr.bf16.gmra.mxu0 %v1941
  %v1988 = vpop.f32.mrf.mxu0
  %v1989 = vadd.f32 0.0, %v1988
  %v1990 = vpop.f32.mrf.mxu0
  %v1991 = vpop.f32.mrf.mxu0
  %v1992 = vadd.f32 0.0, %v1991
  %v1993 = vpop.f32.mrf.mxu0
  %1994 = vdwg.mxu0
  %s1995 = scalar_lea.vmem %s3, 88
  %v1996 = vld [vmem:[%s1995] sm:$0xf]
  %s1997 = scalar_lea.vmem %s3, 92
  %v1998 = vld [vmem:[%s1997] sm:$0xf]
  %v2000 = vsel %vm233, %v1310, 0
  %v2003 = vsel %vm233, %v1311, 0
  %v2006 = vsel %vm129, %v1998, 0
  %2008 = vmatprep.subr.bf16.mxu0 0
  %2009 = vmatpush1.bf16.msra.mxu0 0
  %2010 = vmatprep.subr.bf16.mxu0 0
  %2011 = vmatpush1.bf16.msra.mxu0 0
  %2012 = vmatprep.subr.bf16.mxu0 0
  %2013 = vmatpush1.bf16.msra.mxu0 0
  %2014 = vmatprep.subr.bf16.mxu0 0
  %2015 = vmatpush1.bf16.msra.mxu0 0
  %2016 = vmatprep.subr.bf16.mxu0 0
  %2017 = vmatpush1.bf16.msra.mxu0 0
  %2018 = vmatprep.subr.bf16.mxu0 0
  %2019 = vmatpush1.bf16.msra.mxu0 0
  %2020 = vmatprep.subr.bf16.mxu0 0
  %2021 = vmatpush1.bf16.msra.mxu0 0
  %2022 = vmatprep.subr.bf16.mxu0 0
  %2023 = vmatpush1.bf16.msra.mxu0 %v2006
  %2024 = vmatprep.subr.bf16.mxu0 0
  %2025 = vmatpush2.bf16.msra.mxu0 0
  %2026 = vmatprep.subr.bf16.mxu0 0
  %2027 = vmatpush2.bf16.msra.mxu0 0
  %2028 = vmatprep.subr.bf16.mxu0 0
  %2029 = vmatpush2.bf16.msra.mxu0 0
  %2030 = vmatprep.subr.bf16.mxu0 0
  %2031 = vmatpush2.bf16.msra.mxu0 0
  %2032 = vmatprep.subr.bf16.mxu0 0
  %2033 = vmatpush2.bf16.msra.mxu0 0
  %2034 = vmatprep.subr.bf16.mxu0 0
  %2035 = vmatpush2.bf16.msra.mxu0 0
  %2036 = vmatprep.subr.bf16.mxu0 0
  %2037 = vmatpush2.bf16.msra.mxu0 0
  %2038 = vmatprep.subr.bf16.mxu0 0
  %2039 = vmatpush2.bf16.msra.mxu0 0
  %2040 = vmatprep.mubr.bf16.mxu0 0
  %2041 = vmatmul.mubr.bf16.gmra.mxu0 %v2000
  %v2042 = vpop.f32.mrf.mxu0
  %v2043 = vadd.f32 0.0, %v2042
  %v2044 = vpop.f32.mrf.mxu0
  %v2045 = vpop.f32.mrf.mxu0
  %v2046 = vadd.f32 0.0, %v2045
  %v2047 = vpop.f32.mrf.mxu0
  %2048 = vmatprep.mubr.bf16.mxu0 0
  %2049 = vmatmul.mubr.bf16.gmra.mxu0 %v2003
  %v2050 = vpop.f32.mrf.mxu0
  %v2051 = vadd.f32 0.0, %v2050
  %v2052 = vpop.f32.mrf.mxu0
  %v2053 = vpop.f32.mrf.mxu0
  %v2054 = vadd.f32 0.0, %v2053
  %v2055 = vpop.f32.mrf.mxu0
  %2056 = vdwg.mxu0
  %s2057 = scalar_lea.vmem %s3, 96
  %v2058 = vld [vmem:[%s2057] sm:$0xf]
  %v2060 = vsel %vm233, %v1312, 0
  %v2063 = vsel %vm233, %v1313, 0
  %v2066 = vsel %vm129, %v2058, 0
  %2068 = vmatprep.subr.bf16.mxu0 0
  %2069 = vmatpush1.bf16.msra.mxu0 0
  %2070 = vmatprep.subr.bf16.mxu0 0
  %2071 = vmatpush1.bf16.msra.mxu0 0
  %2072 = vmatprep.subr.bf16.mxu0 0
  %2073 = vmatpush1.bf16.msra.mxu0 0
  %2074 = vmatprep.subr.bf16.mxu0 0
  %2075 = vmatpush1.bf16.msra.mxu0 0
  %2076 = vmatprep.subr.bf16.mxu0 0
  %2077 = vmatpush1.bf16.msra.mxu0 0
  %2078 = vmatprep.subr.bf16.mxu0 0
  %2079 = vmatpush1.bf16.msra.mxu0 0
  %2080 = vmatprep.subr.bf16.mxu0 0
  %2081 = vmatpush1.bf16.msra.mxu0 0
  %2082 = vmatprep.subr.bf16.mxu0 0
  %2083 = vmatpush1.bf16.msra.mxu0 %v2066
  %2084 = vmatprep.subr.bf16.mxu0 0
  %2085 = vmatpush2.bf16.msra.mxu0 0
  %2086 = vmatprep.subr.bf16.mxu0 0
  %2087 = vmatpush2.bf16.msra.mxu0 0
  %2088 = vmatprep.subr.bf16.mxu0 0
  %2089 = vmatpush2.bf16.msra.mxu0 0
  %2090 = vmatprep.subr.bf16.mxu0 0
  %2091 = vmatpush2.bf16.msra.mxu0 0
  %2092 = vmatprep.subr.bf16.mxu0 0
  %2093 = vmatpush2.bf16.msra.mxu0 0
  %2094 = vmatprep.subr.bf16.mxu0 0
  %2095 = vmatpush2.bf16.msra.mxu0 0
  %2096 = vmatprep.subr.bf16.mxu0 0
  %2097 = vmatpush2.bf16.msra.mxu0 0
  %2098 = vmatprep.subr.bf16.mxu0 0
  %2099 = vmatpush2.bf16.msra.mxu0 0
  %2100 = vmatprep.mubr.bf16.mxu0 0
  %2101 = vmatmul.mubr.bf16.gmra.mxu0 %v2060
  %v2102 = vpop.f32.mrf.mxu0
  %v2103 = vadd.f32 0.0, %v2102
  %v2104 = vpop.f32.mrf.mxu0
  %v2105 = vpop.f32.mrf.mxu0
  %v2106 = vadd.f32 0.0, %v2105
  %v2107 = vpop.f32.mrf.mxu0
  %2108 = vmatprep.mubr.bf16.mxu0 0
  %2109 = vmatmul.mubr.bf16.gmra.mxu0 %v2063
  %v2110 = vpop.f32.mrf.mxu0
  %v2111 = vadd.f32 0.0, %v2110
  %v2112 = vpop.f32.mrf.mxu0
  %v2113 = vpop.f32.mrf.mxu0
  %v2114 = vadd.f32 0.0, %v2113
  %v2115 = vpop.f32.mrf.mxu0
  %2116 = vdwg.mxu0
  %v2118 = vsel %vm233, %v1264, 0
  %v2121 = vsel %vm233, %v1265, 0
  %v2124 = vsel %vm129, %v1314, 0
  %2126 = vmatprep.subr.bf16.mxu0 0
  %2127 = vmatpush1.bf16.msra.mxu0 0
  %2128 = vmatprep.subr.bf16.mxu0 0
  %2129 = vmatpush1.bf16.msra.mxu0 0
  %2130 = vmatprep.subr.bf16.mxu0 0
  %2131 = vmatpush1.bf16.msra.mxu0 0
  %2132 = vmatprep.subr.bf16.mxu0 0
  %2133 = vmatpush1.bf16.msra.mxu0 0
  %2134 = vmatprep.subr.bf16.mxu0 0
  %2135 = vmatpush1.bf16.msra.mxu0 0
  %2136 = vmatprep.subr.bf16.mxu0 0
  %2137 = vmatpush1.bf16.msra.mxu0 0
  %2138 = vmatprep.subr.bf16.mxu0 0
  %2139 = vmatpush1.bf16.msra.mxu0 0
  %2140 = vmatprep.subr.bf16.mxu0 0
  %2141 = vmatpush1.bf16.msra.mxu0 %v2124
  %2142 = vmatprep.subr.bf16.mxu0 0
  %2143 = vmatpush2.bf16.msra.mxu0 0
  %2144 = vmatprep.subr.bf16.mxu0 0
  %2145 = vmatpush2.bf16.msra.mxu0 0
  %2146 = vmatprep.subr.bf16.mxu0 0
  %2147 = vmatpush2.bf16.msra.mxu0 0
  %2148 = vmatprep.subr.bf16.mxu0 0
  %2149 = vmatpush2.bf16.msra.mxu0 0
  %2150 = vmatprep.subr.bf16.mxu0 0
  %2151 = vmatpush2.bf16.msra.mxu0 0
  %2152 = vmatprep.subr.bf16.mxu0 0
  %2153 = vmatpush2.bf16.msra.mxu0 0
  %2154 = vmatprep.subr.bf16.mxu0 0
  %2155 = vmatpush2.bf16.msra.mxu0 0
  %2156 = vmatprep.subr.bf16.mxu0 0
  %2157 = vmatpush2.bf16.msra.mxu0 0
  %2158 = vmatprep.mubr.bf16.mxu0 0
  %2159 = vmatmul.mubr.bf16.gmra.mxu0 %v2118
  %v2160 = vpop.f32.mrf.mxu0
  %v2161 = vadd.f32 %v1361, %v2160
  %v2162 = vpop.f32.mrf.mxu0
  %v2163 = vpop.f32.mrf.mxu0
  %v2164 = vadd.f32 %v1364, %v2163
  %v2165 = vpop.f32.mrf.mxu0
  %2166 = vmatprep.mubr.bf16.mxu0 0
  %2167 = vmatmul.mubr.bf16.gmra.mxu0 %v2121
  %v2168 = vpop.f32.mrf.mxu0
  %v2169 = vadd.f32 %v1369, %v2168
  %v2170 = vpop.f32.mrf.mxu0
  %v2171 = vpop.f32.mrf.mxu0
  %v2172 = vadd.f32 %v1372, %v2171
  %v2173 = vpop.f32.mrf.mxu0
  %2174 = vdwg.mxu0
  %v2176 = vsel %vm233, %v1268, 0
  %v2179 = vsel %vm233, %v1269, 0
  %v2182 = vsel %vm129, %v1376, 0
  %2184 = vmatprep.subr.bf16.mxu0 0
  %2185 = vmatpush1.bf16.msra.mxu0 0
  %2186 = vmatprep.subr.bf16.mxu0 0
  %2187 = vmatpush1.bf16.msra.mxu0 0
  %2188 = vmatprep.subr.bf16.mxu0 0
  %2189 = vmatpush1.bf16.msra.mxu0 0
  %2190 = vmatprep.subr.bf16.mxu0 0
  %2191 = vmatpush1.bf16.msra.mxu0 0
  %2192 = vmatprep.subr.bf16.mxu0 0
  %2193 = vmatpush1.bf16.msra.mxu0 0
  %2194 = vmatprep.subr.bf16.mxu0 0
  %2195 = vmatpush1.bf16.msra.mxu0 0
  %2196 = vmatprep.subr.bf16.mxu0 0
  %2197 = vmatpush1.bf16.msra.mxu0 0
  %2198 = vmatprep.subr.bf16.mxu0 0
  %2199 = vmatpush1.bf16.msra.mxu0 %v2182
  %2200 = vmatprep.subr.bf16.mxu0 0
  %2201 = vmatpush2.bf16.msra.mxu0 0
  %2202 = vmatprep.subr.bf16.mxu0 0
  %2203 = vmatpush2.bf16.msra.mxu0 0
  %2204 = vmatprep.subr.bf16.mxu0 0
  %2205 = vmatpush2.bf16.msra.mxu0 0
  %2206 = vmatprep.subr.bf16.mxu0 0
  %2207 = vmatpush2.bf16.msra.mxu0 0
  %2208 = vmatprep.subr.bf16.mxu0 0
  %2209 = vmatpush2.bf16.msra.mxu0 0
  %2210 = vmatprep.subr.bf16.mxu0 0
  %2211 = vmatpush2.bf16.msra.mxu0 0
  %2212 = vmatprep.subr.bf16.mxu0 0
  %2213 = vmatpush2.bf16.msra.mxu0 0
  %2214 = vmatprep.subr.bf16.mxu0 0
  %2215 = vmatpush2.bf16.msra.mxu0 0
  %2216 = vmatprep.mubr.bf16.mxu0 0
  %2217 = vmatmul.mubr.bf16.gmra.mxu0 %v2176
  %v2218 = vpop.f32.mrf.mxu0
  %v2219 = vadd.f32 %v1423, %v2218
  %v2220 = vpop.f32.mrf.mxu0
  %v2221 = vpop.f32.mrf.mxu0
  %v2222 = vadd.f32 %v1426, %v2221
  %v2223 = vpop.f32.mrf.mxu0
  %2224 = vmatprep.mubr.bf16.mxu0 0
  %2225 = vmatmul.mubr.bf16.gmra.mxu0 %v2179
  %v2226 = vpop.f32.mrf.mxu0
  %v2227 = vadd.f32 %v1431, %v2226
  %v2228 = vpop.f32.mrf.mxu0
  %v2229 = vpop.f32.mrf.mxu0
  %v2230 = vadd.f32 %v1434, %v2229
  %v2231 = vpop.f32.mrf.mxu0
  %2232 = vdwg.mxu0
  %v2234 = vsel %vm233, %v1272, 0
  %v2237 = vsel %vm233, %v1273, 0
  %v2240 = vsel %vm129, %v1438, 0
  %2242 = vmatprep.subr.bf16.mxu0 0
  %2243 = vmatpush1.bf16.msra.mxu0 0
  %2244 = vmatprep.subr.bf16.mxu0 0
  %2245 = vmatpush1.bf16.msra.mxu0 0
  %2246 = vmatprep.subr.bf16.mxu0 0
  %2247 = vmatpush1.bf16.msra.mxu0 0
  %2248 = vmatprep.subr.bf16.mxu0 0
  %2249 = vmatpush1.bf16.msra.mxu0 0
  %2250 = vmatprep.subr.bf16.mxu0 0
  %2251 = vmatpush1.bf16.msra.mxu0 0
  %2252 = vmatprep.subr.bf16.mxu0 0
  %2253 = vmatpush1.bf16.msra.mxu0 0
  %2254 = vmatprep.subr.bf16.mxu0 0
  %2255 = vmatpush1.bf16.msra.mxu0 0
  %2256 = vmatprep.subr.bf16.mxu0 0
  %2257 = vmatpush1.bf16.msra.mxu0 %v2240
  %2258 = vmatprep.subr.bf16.mxu0 0
  %2259 = vmatpush2.bf16.msra.mxu0 0
  %2260 = vmatprep.subr.bf16.mxu0 0
  %2261 = vmatpush2.bf16.msra.mxu0 0
  %2262 = vmatprep.subr.bf16.mxu0 0
  %2263 = vmatpush2.bf16.msra.mxu0 0
  %2264 = vmatprep.subr.bf16.mxu0 0
  %2265 = vmatpush2.bf16.msra.mxu0 0
  %2266 = vmatprep.subr.bf16.mxu0 0
  %2267 = vmatpush2.bf16.msra.mxu0 0
  %2268 = vmatprep.subr.bf16.mxu0 0
  %2269 = vmatpush2.bf16.msra.mxu0 0
  %2270 = vmatprep.subr.bf16.mxu0 0
  %2271 = vmatpush2.bf16.msra.mxu0 0
  %2272 = vmatprep.subr.bf16.mxu0 0
  %2273 = vmatpush2.bf16.msra.mxu0 0
  %2274 = vmatprep.mubr.bf16.mxu0 0
  %2275 = vmatmul.mubr.bf16.gmra.mxu0 %v2234
  %v2276 = vpop.f32.mrf.mxu0
  %v2277 = vadd.f32 %v1485, %v2276
  %v2278 = vpop.f32.mrf.mxu0
  %v2279 = vpop.f32.mrf.mxu0
  %v2280 = vadd.f32 %v1488, %v2279
  %v2281 = vpop.f32.mrf.mxu0
  %2282 = vmatprep.mubr.bf16.mxu0 0
  %2283 = vmatmul.mubr.bf16.gmra.mxu0 %v2237
  %v2284 = vpop.f32.mrf.mxu0
  %v2285 = vadd.f32 %v1493, %v2284
  %v2286 = vpop.f32.mrf.mxu0
  %v2287 = vpop.f32.mrf.mxu0
  %v2288 = vadd.f32 %v1496, %v2287
  %v2289 = vpop.f32.mrf.mxu0
  %2290 = vdwg.mxu0
  %v2292 = vsel %vm233, %v1276, 0
  %v2295 = vsel %vm233, %v1277, 0
  %v2298 = vsel %vm129, %v1500, 0
  %2300 = vmatprep.subr.bf16.mxu0 0
  %2301 = vmatpush1.bf16.msra.mxu0 0
  %2302 = vmatprep.subr.bf16.mxu0 0
  %2303 = vmatpush1.bf16.msra.mxu0 0
  %2304 = vmatprep.subr.bf16.mxu0 0
  %2305 = vmatpush1.bf16.msra.mxu0 0
  %2306 = vmatprep.subr.bf16.mxu0 0
  %2307 = vmatpush1.bf16.msra.mxu0 0
  %2308 = vmatprep.subr.bf16.mxu0 0
  %2309 = vmatpush1.bf16.msra.mxu0 0
  %2310 = vmatprep.subr.bf16.mxu0 0
  %2311 = vmatpush1.bf16.msra.mxu0 0
  %2312 = vmatprep.subr.bf16.mxu0 0
  %2313 = vmatpush1.bf16.msra.mxu0 0
  %2314 = vmatprep.subr.bf16.mxu0 0
  %2315 = vmatpush1.bf16.msra.mxu0 %v2298
  %2316 = vmatprep.subr.bf16.mxu0 0
  %2317 = vmatpush2.bf16.msra.mxu0 0
  %2318 = vmatprep.subr.bf16.mxu0 0
  %2319 = vmatpush2.bf16.msra.mxu0 0
  %2320 = vmatprep.subr.bf16.mxu0 0
  %2321 = vmatpush2.bf16.msra.mxu0 0
  %2322 = vmatprep.subr.bf16.mxu0 0
  %2323 = vmatpush2.bf16.msra.mxu0 0
  %2324 = vmatprep.subr.bf16.mxu0 0
  %2325 = vmatpush2.bf16.msra.mxu0 0
  %2326 = vmatprep.subr.bf16.mxu0 0
  %2327 = vmatpush2.bf16.msra.mxu0 0
  %2328 = vmatprep.subr.bf16.mxu0 0
  %2329 = vmatpush2.bf16.msra.mxu0 0
  %2330 = vmatprep.subr.bf16.mxu0 0
  %2331 = vmatpush2.bf16.msra.mxu0 0
  %2332 = vmatprep.mubr.bf16.mxu0 0
  %2333 = vmatmul.mubr.bf16.gmra.mxu0 %v2292
  %v2334 = vpop.f32.mrf.mxu0
  %v2335 = vadd.f32 %v1547, %v2334
  %v2336 = vpop.f32.mrf.mxu0
  %v2337 = vpop.f32.mrf.mxu0
  %v2338 = vadd.f32 %v1550, %v2337
  %v2339 = vpop.f32.mrf.mxu0
  %2340 = vmatprep.mubr.bf16.mxu0 0
  %2341 = vmatmul.mubr.bf16.gmra.mxu0 %v2295
  %v2342 = vpop.f32.mrf.mxu0
  %v2343 = vadd.f32 %v1555, %v2342
  %v2344 = vpop.f32.mrf.mxu0
  %v2345 = vpop.f32.mrf.mxu0
  %v2346 = vadd.f32 %v1558, %v2345
  %v2347 = vpop.f32.mrf.mxu0
  %2348 = vdwg.mxu0
  %v2350 = vsel %vm233, %v1280, 0
  %v2353 = vsel %vm233, %v1281, 0
  %v2356 = vsel %vm129, %v1562, 0
  %2358 = vmatprep.subr.bf16.mxu0 0
  %2359 = vmatpush1.bf16.msra.mxu0 0
  %2360 = vmatprep.subr.bf16.mxu0 0
  %2361 = vmatpush1.bf16.msra.mxu0 0
  %2362 = vmatprep.subr.bf16.mxu0 0
  %2363 = vmatpush1.bf16.msra.mxu0 0
  %2364 = vmatprep.subr.bf16.mxu0 0
  %2365 = vmatpush1.bf16.msra.mxu0 0
  %2366 = vmatprep.subr.bf16.mxu0 0
  %2367 = vmatpush1.bf16.msra.mxu0 0
  %2368 = vmatprep.subr.bf16.mxu0 0
  %2369 = vmatpush1.bf16.msra.mxu0 0
  %2370 = vmatprep.subr.bf16.mxu0 0
  %2371 = vmatpush1.bf16.msra.mxu0 0
  %2372 = vmatprep.subr.bf16.mxu0 0
  %2373 = vmatpush1.bf16.msra.mxu0 %v2356
  %2374 = vmatprep.subr.bf16.mxu0 0
  %2375 = vmatpush2.bf16.msra.mxu0 0
  %2376 = vmatprep.subr.bf16.mxu0 0
  %2377 = vmatpush2.bf16.msra.mxu0 0
  %2378 = vmatprep.subr.bf16.mxu0 0
  %2379 = vmatpush2.bf16.msra.mxu0 0
  %2380 = vmatprep.subr.bf16.mxu0 0
  %2381 = vmatpush2.bf16.msra.mxu0 0
  %2382 = vmatprep.subr.bf16.mxu0 0
  %2383 = vmatpush2.bf16.msra.mxu0 0
  %2384 = vmatprep.subr.bf16.mxu0 0
  %2385 = vmatpush2.bf16.msra.mxu0 0
  %2386 = vmatprep.subr.bf16.mxu0 0
  %2387 = vmatpush2.bf16.msra.mxu0 0
  %2388 = vmatprep.subr.bf16.mxu0 0
  %2389 = vmatpush2.bf16.msra.mxu0 0
  %2390 = vmatprep.mubr.bf16.mxu0 0
  %2391 = vmatmul.mubr.bf16.gmra.mxu0 %v2350
  %v2392 = vpop.f32.mrf.mxu0
  %v2393 = vadd.f32 %v1609, %v2392
  %v2394 = vpop.f32.mrf.mxu0
  %v2395 = vpop.f32.mrf.mxu0
  %v2396 = vadd.f32 %v1612, %v2395
  %v2397 = vpop.f32.mrf.mxu0
  %2398 = vmatprep.mubr.bf16.mxu0 0
  %2399 = vmatmul.mubr.bf16.gmra.mxu0 %v2353
  %v2400 = vpop.f32.mrf.mxu0
  %v2401 = vadd.f32 %v1617, %v2400
  %v2402 = vpop.f32.mrf.mxu0
  %v2403 = vpop.f32.mrf.mxu0
  %v2404 = vadd.f32 %v1620, %v2403
  %v2405 = vpop.f32.mrf.mxu0
  %2406 = vdwg.mxu0
  %v2408 = vsel %vm233, %v1284, 0
  %v2411 = vsel %vm233, %v1285, 0
  %v2414 = vsel %vm129, %v1624, 0
  %2416 = vmatprep.subr.bf16.mxu0 0
  %2417 = vmatpush1.bf16.msra.mxu0 0
  %2418 = vmatprep.subr.bf16.mxu0 0
  %2419 = vmatpush1.bf16.msra.mxu0 0
  %2420 = vmatprep.subr.bf16.mxu0 0
  %2421 = vmatpush1.bf16.msra.mxu0 0
  %2422 = vmatprep.subr.bf16.mxu0 0
  %2423 = vmatpush1.bf16.msra.mxu0 0
  %2424 = vmatprep.subr.bf16.mxu0 0
  %2425 = vmatpush1.bf16.msra.mxu0 0
  %2426 = vmatprep.subr.bf16.mxu0 0
  %2427 = vmatpush1.bf16.msra.mxu0 0
  %2428 = vmatprep.subr.bf16.mxu0 0
  %2429 = vmatpush1.bf16.msra.mxu0 0
  %2430 = vmatprep.subr.bf16.mxu0 0
  %2431 = vmatpush1.bf16.msra.mxu0 %v2414
  %2432 = vmatprep.subr.bf16.mxu0 0
  %2433 = vmatpush2.bf16.msra.mxu0 0
  %2434 = vmatprep.subr.bf16.mxu0 0
  %2435 = vmatpush2.bf16.msra.mxu0 0
  %2436 = vmatprep.subr.bf16.mxu0 0
  %2437 = vmatpush2.bf16.msra.mxu0 0
  %2438 = vmatprep.subr.bf16.mxu0 0
  %2439 = vmatpush2.bf16.msra.mxu0 0
  %2440 = vmatprep.subr.bf16.mxu0 0
  %2441 = vmatpush2.bf16.msra.mxu0 0
  %2442 = vmatprep.subr.bf16.mxu0 0
  %2443 = vmatpush2.bf16.msra.mxu0 0
  %2444 = vmatprep.subr.bf16.mxu0 0
  %2445 = vmatpush2.bf16.msra.mxu0 0
  %2446 = vmatprep.subr.bf16.mxu0 0
  %2447 = vmatpush2.bf16.msra.mxu0 0
  %2448 = vmatprep.mubr.bf16.mxu0 0
  %2449 = vmatmul.mubr.bf16.gmra.mxu0 %v2408
  %v2450 = vpop.f32.mrf.mxu0
  %v2451 = vadd.f32 %v1671, %v2450
  %v2452 = vpop.f32.mrf.mxu0
  %v2453 = vpop.f32.mrf.mxu0
  %v2454 = vadd.f32 %v1674, %v2453
  %v2455 = vpop.f32.mrf.mxu0
  %2456 = vmatprep.mubr.bf16.mxu0 0
  %2457 = vmatmul.mubr.bf16.gmra.mxu0 %v2411
  %v2458 = vpop.f32.mrf.mxu0
  %v2459 = vadd.f32 %v1679, %v2458
  %v2460 = vpop.f32.mrf.mxu0
  %v2461 = vpop.f32.mrf.mxu0
  %v2462 = vadd.f32 %v1682, %v2461
  %v2463 = vpop.f32.mrf.mxu0
  %2464 = vdwg.mxu0
  %v2466 = vsel %vm233, %v1288, 0
  %v2469 = vsel %vm233, %v1289, 0
  %v2472 = vsel %vm129, %v1686, 0
  %2474 = vmatprep.subr.bf16.mxu0 0
  %2475 = vmatpush1.bf16.msra.mxu0 0
  %2476 = vmatprep.subr.bf16.mxu0 0
  %2477 = vmatpush1.bf16.msra.mxu0 0
  %2478 = vmatprep.subr.bf16.mxu0 0
  %2479 = vmatpush1.bf16.msra.mxu0 0
  %2480 = vmatprep.subr.bf16.mxu0 0
  %2481 = vmatpush1.bf16.msra.mxu0 0
  %2482 = vmatprep.subr.bf16.mxu0 0
  %2483 = vmatpush1.bf16.msra.mxu0 0
  %2484 = vmatprep.subr.bf16.mxu0 0
  %2485 = vmatpush1.bf16.msra.mxu0 0
  %2486 = vmatprep.subr.bf16.mxu0 0
  %2487 = vmatpush1.bf16.msra.mxu0 0
  %2488 = vmatprep.subr.bf16.mxu0 0
  %2489 = vmatpush1.bf16.msra.mxu0 %v2472
  %2490 = vmatprep.subr.bf16.mxu0 0
  %2491 = vmatpush2.bf16.msra.mxu0 0
  %2492 = vmatprep.subr.bf16.mxu0 0
  %2493 = vmatpush2.bf16.msra.mxu0 0
  %2494 = vmatprep.subr.bf16.mxu0 0
  %2495 = vmatpush2.bf16.msra.mxu0 0
  %2496 = vmatprep.subr.bf16.mxu0 0
  %2497 = vmatpush2.bf16.msra.mxu0 0
  %2498 = vmatprep.subr.bf16.mxu0 0
  %2499 = vmatpush2.bf16.msra.mxu0 0
  %2500 = vmatprep.subr.bf16.mxu0 0
  %2501 = vmatpush2.bf16.msra.mxu0 0
  %2502 = vmatprep.subr.bf16.mxu0 0
  %2503 = vmatpush2.bf16.msra.mxu0 0
  %2504 = vmatprep.subr.bf16.mxu0 0
  %2505 = vmatpush2.bf16.msra.mxu0 0
  %2506 = vmatprep.mubr.bf16.mxu0 0
  %2507 = vmatmul.mubr.bf16.gmra.mxu0 %v2466
  %v2508 = vpop.f32.mrf.mxu0
  %v2509 = vadd.f32 %v1733, %v2508
  %v2510 = vpop.f32.mrf.mxu0
  %v2511 = vpop.f32.mrf.mxu0
  %v2512 = vadd.f32 %v1736, %v2511
  %v2513 = vpop.f32.mrf.mxu0
  %2514 = vmatprep.mubr.bf16.mxu0 0
  %2515 = vmatmul.mubr.bf16.gmra.mxu0 %v2469
  %v2516 = vpop.f32.mrf.mxu0
  %v2517 = vadd.f32 %v1741, %v2516
  %v2518 = vpop.f32.mrf.mxu0
  %v2519 = vpop.f32.mrf.mxu0
  %v2520 = vadd.f32 %v1744, %v2519
  %v2521 = vpop.f32.mrf.mxu0
  %2522 = vdwg.mxu0
  %v2524 = vsel %vm233, %v1292, 0
  %v2527 = vsel %vm233, %v1293, 0
  %v2530 = vsel %vm129, %v1748, 0
  %2532 = vmatprep.subr.bf16.mxu0 0
  %2533 = vmatpush1.bf16.msra.mxu0 0
  %2534 = vmatprep.subr.bf16.mxu0 0
  %2535 = vmatpush1.bf16.msra.mxu0 0
  %2536 = vmatprep.subr.bf16.mxu0 0
  %2537 = vmatpush1.bf16.msra.mxu0 0
  %2538 = vmatprep.subr.bf16.mxu0 0
  %2539 = vmatpush1.bf16.msra.mxu0 0
  %2540 = vmatprep.subr.bf16.mxu0 0
  %2541 = vmatpush1.bf16.msra.mxu0 0
  %2542 = vmatprep.subr.bf16.mxu0 0
  %2543 = vmatpush1.bf16.msra.mxu0 0
  %2544 = vmatprep.subr.bf16.mxu0 0
  %2545 = vmatpush1.bf16.msra.mxu0 0
  %2546 = vmatprep.subr.bf16.mxu0 0
  %2547 = vmatpush1.bf16.msra.mxu0 %v2530
  %2548 = vmatprep.subr.bf16.mxu0 0
  %2549 = vmatpush2.bf16.msra.mxu0 0
  %2550 = vmatprep.subr.bf16.mxu0 0
  %2551 = vmatpush2.bf16.msra.mxu0 0
  %2552 = vmatprep.subr.bf16.mxu0 0
  %2553 = vmatpush2.bf16.msra.mxu0 0
  %2554 = vmatprep.subr.bf16.mxu0 0
  %2555 = vmatpush2.bf16.msra.mxu0 0
  %2556 = vmatprep.subr.bf16.mxu0 0
  %2557 = vmatpush2.bf16.msra.mxu0 0
  %2558 = vmatprep.subr.bf16.mxu0 0
  %2559 = vmatpush2.bf16.msra.mxu0 0
  %2560 = vmatprep.subr.bf16.mxu0 0
  %2561 = vmatpush2.bf16.msra.mxu0 0
  %2562 = vmatprep.subr.bf16.mxu0 0
  %2563 = vmatpush2.bf16.msra.mxu0 0
  %2564 = vmatprep.mubr.bf16.mxu0 0
  %2565 = vmatmul.mubr.bf16.gmra.mxu0 %v2524
  %v2566 = vpop.f32.mrf.mxu0
  %v2567 = vadd.f32 %v1795, %v2566
  %v2568 = vpop.f32.mrf.mxu0
  %v2569 = vpop.f32.mrf.mxu0
  %v2570 = vadd.f32 %v1798, %v2569
  %v2571 = vpop.f32.mrf.mxu0
  %2572 = vmatprep.mubr.bf16.mxu0 0
  %2573 = vmatmul.mubr.bf16.gmra.mxu0 %v2527
  %v2574 = vpop.f32.mrf.mxu0
  %v2575 = vadd.f32 %v1803, %v2574
  %v2576 = vpop.f32.mrf.mxu0
  %v2577 = vpop.f32.mrf.mxu0
  %v2578 = vadd.f32 %v1806, %v2577
  %v2579 = vpop.f32.mrf.mxu0
  %2580 = vdwg.mxu0
  %v2582 = vsel %vm233, %v1296, 0
  %v2585 = vsel %vm233, %v1297, 0
  %v2588 = vsel %vm129, %v1810, 0
  %2590 = vmatprep.subr.bf16.mxu0 0
  %2591 = vmatpush1.bf16.msra.mxu0 0
  %2592 = vmatprep.subr.bf16.mxu0 0
  %2593 = vmatpush1.bf16.msra.mxu0 0
  %2594 = vmatprep.subr.bf16.mxu0 0
  %2595 = vmatpush1.bf16.msra.mxu0 0
  %2596 = vmatprep.subr.bf16.mxu0 0
  %2597 = vmatpush1.bf16.msra.mxu0 0
  %2598 = vmatprep.subr.bf16.mxu0 0
  %2599 = vmatpush1.bf16.msra.mxu0 0
  %2600 = vmatprep.subr.bf16.mxu0 0
  %2601 = vmatpush1.bf16.msra.mxu0 0
  %2602 = vmatprep.subr.bf16.mxu0 0
  %2603 = vmatpush1.bf16.msra.mxu0 0
  %2604 = vmatprep.subr.bf16.mxu0 0
  %2605 = vmatpush1.bf16.msra.mxu0 %v2588
  %2606 = vmatprep.subr.bf16.mxu0 0
  %2607 = vmatpush2.bf16.msra.mxu0 0
  %2608 = vmatprep.subr.bf16.mxu0 0
  %2609 = vmatpush2.bf16.msra.mxu0 0
  %2610 = vmatprep.subr.bf16.mxu0 0
  %2611 = vmatpush2.bf16.msra.mxu0 0
  %2612 = vmatprep.subr.bf16.mxu0 0
  %2613 = vmatpush2.bf16.msra.mxu0 0
  %2614 = vmatprep.subr.bf16.mxu0 0
  %2615 = vmatpush2.bf16.msra.mxu0 0
  %2616 = vmatprep.subr.bf16.mxu0 0
  %2617 = vmatpush2.bf16.msra.mxu0 0
  %2618 = vmatprep.subr.bf16.mxu0 0
  %2619 = vmatpush2.bf16.msra.mxu0 0
  %2620 = vmatprep.subr.bf16.mxu0 0
  %2621 = vmatpush2.bf16.msra.mxu0 0
  %2622 = vmatprep.mubr.bf16.mxu0 0
  %2623 = vmatmul.mubr.bf16.gmra.mxu0 %v2582
  %v2624 = vpop.f32.mrf.mxu0
  %v2625 = vadd.f32 %v1857, %v2624
  %v2626 = vpop.f32.mrf.mxu0
  %v2627 = vpop.f32.mrf.mxu0
  %v2628 = vadd.f32 %v1860, %v2627
  %v2629 = vpop.f32.mrf.mxu0
  %2630 = vmatprep.mubr.bf16.mxu0 0
  %2631 = vmatmul.mubr.bf16.gmra.mxu0 %v2585
  %v2632 = vpop.f32.mrf.mxu0
  %v2633 = vadd.f32 %v1865, %v2632
  %v2634 = vpop.f32.mrf.mxu0
  %v2635 = vpop.f32.mrf.mxu0
  %v2636 = vadd.f32 %v1868, %v2635
  %v2637 = vpop.f32.mrf.mxu0
  %2638 = vdwg.mxu0
  %v2640 = vsel %vm233, %v1300, 0
  %v2643 = vsel %vm233, %v1301, 0
  %v2646 = vsel %vm129, %v1872, 0
  %2648 = vmatprep.subr.bf16.mxu0 0
  %2649 = vmatpush1.bf16.msra.mxu0 0
  %2650 = vmatprep.subr.bf16.mxu0 0
  %2651 = vmatpush1.bf16.msra.mxu0 0
  %2652 = vmatprep.subr.bf16.mxu0 0
  %2653 = vmatpush1.bf16.msra.mxu0 0
  %2654 = vmatprep.subr.bf16.mxu0 0
  %2655 = vmatpush1.bf16.msra.mxu0 0
  %2656 = vmatprep.subr.bf16.mxu0 0
  %2657 = vmatpush1.bf16.msra.mxu0 0
  %2658 = vmatprep.subr.bf16.mxu0 0
  %2659 = vmatpush1.bf16.msra.mxu0 0
  %2660 = vmatprep.subr.bf16.mxu0 0
  %2661 = vmatpush1.bf16.msra.mxu0 0
  %2662 = vmatprep.subr.bf16.mxu0 0
  %2663 = vmatpush1.bf16.msra.mxu0 %v2646
  %2664 = vmatprep.subr.bf16.mxu0 0
  %2665 = vmatpush2.bf16.msra.mxu0 0
  %2666 = vmatprep.subr.bf16.mxu0 0
  %2667 = vmatpush2.bf16.msra.mxu0 0
  %2668 = vmatprep.subr.bf16.mxu0 0
  %2669 = vmatpush2.bf16.msra.mxu0 0
  %2670 = vmatprep.subr.bf16.mxu0 0
  %2671 = vmatpush2.bf16.msra.mxu0 0
  %2672 = vmatprep.subr.bf16.mxu0 0
  %2673 = vmatpush2.bf16.msra.mxu0 0
  %2674 = vmatprep.subr.bf16.mxu0 0
  %2675 = vmatpush2.bf16.msra.mxu0 0
  %2676 = vmatprep.subr.bf16.mxu0 0
  %2677 = vmatpush2.bf16.msra.mxu0 0
  %2678 = vmatprep.subr.bf16.mxu0 0
  %2679 = vmatpush2.bf16.msra.mxu0 0
  %2680 = vmatprep.mubr.bf16.mxu0 0
  %2681 = vmatmul.mubr.bf16.gmra.mxu0 %v2640
  %v2682 = vpop.f32.mrf.mxu0
  %v2683 = vadd.f32 %v1919, %v2682
  %v2684 = vpop.f32.mrf.mxu0
  %v2685 = vpop.f32.mrf.mxu0
  %v2686 = vadd.f32 %v1922, %v2685
  %v2687 = vpop.f32.mrf.mxu0
  %2688 = vmatprep.mubr.bf16.mxu0 0
  %2689 = vmatmul.mubr.bf16.gmra.mxu0 %v2643
  %v2690 = vpop.f32.mrf.mxu0
  %v2691 = vadd.f32 %v1927, %v2690
  %v2692 = vpop.f32.mrf.mxu0
  %v2693 = vpop.f32.mrf.mxu0
  %v2694 = vadd.f32 %v1930, %v2693
  %v2695 = vpop.f32.mrf.mxu0
  %2696 = vdwg.mxu0
  %v2698 = vsel %vm233, %v1304, 0
  %v2701 = vsel %vm233, %v1305, 0
  %v2704 = vsel %vm129, %v1934, 0
  %2706 = vmatprep.subr.bf16.mxu0 0
  %2707 = vmatpush1.bf16.msra.mxu0 0
  %2708 = vmatprep.subr.bf16.mxu0 0
  %2709 = vmatpush1.bf16.msra.mxu0 0
  %2710 = vmatprep.subr.bf16.mxu0 0
  %2711 = vmatpush1.bf16.msra.mxu0 0
  %2712 = vmatprep.subr.bf16.mxu0 0
  %2713 = vmatpush1.bf16.msra.mxu0 0
  %2714 = vmatprep.subr.bf16.mxu0 0
  %2715 = vmatpush1.bf16.msra.mxu0 0
  %2716 = vmatprep.subr.bf16.mxu0 0
  %2717 = vmatpush1.bf16.msra.mxu0 0
  %2718 = vmatprep.subr.bf16.mxu0 0
  %2719 = vmatpush1.bf16.msra.mxu0 0
  %2720 = vmatprep.subr.bf16.mxu0 0
  %2721 = vmatpush1.bf16.msra.mxu0 %v2704
  %2722 = vmatprep.subr.bf16.mxu0 0
  %2723 = vmatpush2.bf16.msra.mxu0 0
  %2724 = vmatprep.subr.bf16.mxu0 0
  %2725 = vmatpush2.bf16.msra.mxu0 0
  %2726 = vmatprep.subr.bf16.mxu0 0
  %2727 = vmatpush2.bf16.msra.mxu0 0
  %2728 = vmatprep.subr.bf16.mxu0 0
  %2729 = vmatpush2.bf16.msra.mxu0 0
  %2730 = vmatprep.subr.bf16.mxu0 0
  %2731 = vmatpush2.bf16.msra.mxu0 0
  %2732 = vmatprep.subr.bf16.mxu0 0
  %2733 = vmatpush2.bf16.msra.mxu0 0
  %2734 = vmatprep.subr.bf16.mxu0 0
  %2735 = vmatpush2.bf16.msra.mxu0 0
  %2736 = vmatprep.subr.bf16.mxu0 0
  %2737 = vmatpush2.bf16.msra.mxu0 0
  %2738 = vmatprep.mubr.bf16.mxu0 0
  %2739 = vmatmul.mubr.bf16.gmra.mxu0 %v2698
  %v2740 = vpop.f32.mrf.mxu0
  %v2741 = vadd.f32 %v1981, %v2740
  %v2742 = vpop.f32.mrf.mxu0
  %v2743 = vpop.f32.mrf.mxu0
  %v2744 = vadd.f32 %v1984, %v2743
  %v2745 = vpop.f32.mrf.mxu0
  %2746 = vmatprep.mubr.bf16.mxu0 0
  %2747 = vmatmul.mubr.bf16.gmra.mxu0 %v2701
  %v2748 = vpop.f32.mrf.mxu0
  %v2749 = vadd.f32 %v1989, %v2748
  %v2750 = vpop.f32.mrf.mxu0
  %v2751 = vpop.f32.mrf.mxu0
  %v2752 = vadd.f32 %v1992, %v2751
  %v2753 = vpop.f32.mrf.mxu0
  %2754 = vdwg.mxu0
  %v2756 = vsel %vm233, %v1308, 0
  %v2759 = vsel %vm233, %v1309, 0
  %v2762 = vsel %vm129, %v1996, 0
  %2764 = vmatprep.subr.bf16.mxu0 0
  %2765 = vmatpush1.bf16.msra.mxu0 0
  %2766 = vmatprep.subr.bf16.mxu0 0
  %2767 = vmatpush1.bf16.msra.mxu0 0
  %2768 = vmatprep.subr.bf16.mxu0 0
  %2769 = vmatpush1.bf16.msra.mxu0 0
  %2770 = vmatprep.subr.bf16.mxu0 0
  %2771 = vmatpush1.bf16.msra.mxu0 0
  %2772 = vmatprep.subr.bf16.mxu0 0
  %2773 = vmatpush1.bf16.msra.mxu0 0
  %2774 = vmatprep.subr.bf16.mxu0 0
  %2775 = vmatpush1.bf16.msra.mxu0 0
  %2776 = vmatprep.subr.bf16.mxu0 0
  %2777 = vmatpush1.bf16.msra.mxu0 0
  %2778 = vmatprep.subr.bf16.mxu0 0
  %2779 = vmatpush1.bf16.msra.mxu0 %v2762
  %2780 = vmatprep.subr.bf16.mxu0 0
  %2781 = vmatpush2.bf16.msra.mxu0 0
  %2782 = vmatprep.subr.bf16.mxu0 0
  %2783 = vmatpush2.bf16.msra.mxu0 0
  %2784 = vmatprep.subr.bf16.mxu0 0
  %2785 = vmatpush2.bf16.msra.mxu0 0
  %2786 = vmatprep.subr.bf16.mxu0 0
  %2787 = vmatpush2.bf16.msra.mxu0 0
  %2788 = vmatprep.subr.bf16.mxu0 0
  %2789 = vmatpush2.bf16.msra.mxu0 0
  %2790 = vmatprep.subr.bf16.mxu0 0
  %2791 = vmatpush2.bf16.msra.mxu0 0
  %2792 = vmatprep.subr.bf16.mxu0 0
  %2793 = vmatpush2.bf16.msra.mxu0 0
  %2794 = vmatprep.subr.bf16.mxu0 0
  %2795 = vmatpush2.bf16.msra.mxu0 0
  %2796 = vmatprep.mubr.bf16.mxu0 0
  %2797 = vmatmul.mubr.bf16.gmra.mxu0 %v2756
  %v2798 = vpop.f32.mrf.mxu0
  %v2799 = vadd.f32 %v2043, %v2798
  %v2800 = vpop.f32.mrf.mxu0
  %v2801 = vpop.f32.mrf.mxu0
  %v2802 = vadd.f32 %v2046, %v2801
  %v2803 = vpop.f32.mrf.mxu0
  %2804 = vmatprep.mubr.bf16.mxu0 0
  %2805 = vmatmul.mubr.bf16.gmra.mxu0 %v2759
  %v2806 = vpop.f32.mrf.mxu0
  %v2807 = vadd.f32 %v2051, %v2806
  %v2808 = vpop.f32.mrf.mxu0
  %v2809 = vpop.f32.mrf.mxu0
  %v2810 = vadd.f32 %v2054, %v2809
  %v2811 = vpop.f32.mrf.mxu0
  %2812 = vdwg.mxu0
  %v2813 = vadd.f32 %v2161, %v2219
  %v2814 = vadd.f32 %v2164, %v2222
  %v2815 = vadd.f32 %v2169, %v2227
  %v2816 = vadd.f32 %v2172, %v2230
  %v2817 = vadd.f32 %v2277, %v2335
  %v2818 = vadd.f32 %v2280, %v2338
  %v2819 = vadd.f32 %v2285, %v2343
  %v2820 = vadd.f32 %v2288, %v2346
  %v2821 = vadd.f32 %v2393, %v2451
  %v2822 = vadd.f32 %v2396, %v2454
  %v2823 = vadd.f32 %v2401, %v2459
  %v2824 = vadd.f32 %v2404, %v2462
  %v2825 = vadd.f32 %v2509, %v2567
  %v2826 = vadd.f32 %v2512, %v2570
  %v2827 = vadd.f32 %v2517, %v2575
  %v2828 = vadd.f32 %v2520, %v2578
  %v2829 = vadd.f32 %v2625, %v2683
  %v2830 = vadd.f32 %v2628, %v2686
  %v2831 = vadd.f32 %v2633, %v2691
  %v2832 = vadd.f32 %v2636, %v2694
  %v2833 = vadd.f32 %v2741, %v2799
  %v2834 = vadd.f32 %v2744, %v2802
  %v2835 = vadd.f32 %v2749, %v2807
  %v2836 = vadd.f32 %v2752, %v2810
  %v2837 = vadd.f32 %v2813, %v2817
  %v2838 = vadd.f32 %v2814, %v2818
  %v2839 = vadd.f32 %v2815, %v2819
  %v2840 = vadd.f32 %v2816, %v2820
  %v2841 = vadd.f32 %v2821, %v2825
  %v2842 = vadd.f32 %v2822, %v2826
  %v2843 = vadd.f32 %v2823, %v2827
  %v2844 = vadd.f32 %v2824, %v2828
  %v2845 = vadd.f32 %v2829, %v2833
  %v2846 = vadd.f32 %v2830, %v2834
  %v2847 = vadd.f32 %v2831, %v2835
  %v2848 = vadd.f32 %v2832, %v2836
  %v2849 = vadd.f32 %v2837, %v2841
  %v2850 = vadd.f32 %v2838, %v2842
  %v2851 = vadd.f32 %v2839, %v2843
  %v2852 = vadd.f32 %v2840, %v2844
  %v2853 = vadd.f32 %v2845, %v2103
  %v2854 = vadd.f32 %v2846, %v2106
  %v2855 = vadd.f32 %v2847, %v2111
  %v2856 = vadd.f32 %v2848, %v2114
  %v2857 = vadd.f32 %v2849, %v2853
  %v2858 = vadd.f32 %v2850, %v2854
  %v2859 = vadd.f32 %v2851, %v2855
  %v2860 = vadd.f32 %v2852, %v2856
  %vm2861 = vcmask 130048
  %v2862 = vsel %vm2861, %v2857, 0.0
  %v2863 = vsel %vm2861, %v2858, 0.0
  %v2864 = vadd.f32 %v2862, %v2863
  %v2865 = vsel %vm2861, %v2859, 0.0
  %v2866 = vadd.f32 %v2864, %v2865
  %v2867 = vsel %vm2861, %v2860, 0.0
  %v2868 = vadd.f32 %v2866, %v2867
  %v2869 = vrot.slane %v2868, 4
  %v2870 = vadd.f32 %v2868, %v2869
  %v2871 = vrot.slane %v2870, 2
  %v2872 = vadd.f32 %v2870, %v2871
  %v2873 = vrot.slane %v2872, 1
  %v2874 = vadd.f32 %v2872, %v2873
  %v2875 = vmul.f32 %v2874, 0.03125
  %v2876 = vmul.f32 %v2857, %v2857
  %v2877 = vmul.f32 %v2858, %v2858
  %v2878 = vmul.f32 %v2859, %v2859
  %v2879 = vmul.f32 %v2860, %v2860
  %v2880 = vsel %vm2861, %v2876, 0.0
  %v2881 = vsel %vm2861, %v2877, 0.0
  %v2882 = vadd.f32 %v2880, %v2881
  %v2883 = vsel %vm2861, %v2878, 0.0
  %v2884 = vadd.f32 %v2882, %v2883
  %v2885 = vsel %vm2861, %v2879, 0.0
  %v2886 = vadd.f32 %v2884, %v2885
  %v2887 = vrot.slane %v2886, 4
  %v2888 = vadd.f32 %v2886, %v2887
  %v2889 = vrot.slane %v2888, 2
  %v2890 = vadd.f32 %v2888, %v2889
  %v2891 = vrot.slane %v2890, 1
  %v2892 = vadd.f32 %v2890, %v2891
  %v2893 = vmul.f32 %v2892, 0.03125
  %v2894 = vmul.f32 %v2875, %v2875
  %v2895 = vsub.f32 %v2893, %v2894
  %v2896 = vld [vmem:[%s8 + $0x2] sm:$0x1]
  %v2897 = vld [vmem:[%s8 + $0x3] sm:$0x1]
  %v2898 = vadd.f32 %v2895, 1e-05
  %v2899 = vrsqrt.pop %v2898
  %v2900 = vmul.f32 %v2896, %v2899
  %v2901 = vlaneseq
  %v2902 = vshrl.u32 %v2901, 7
  %v2903 = vsub.s32 0, %v2902
  %v2904 = vrot.slane %v2900, %v2903
  %v2905 = vmul.f32 %v2857, %v2904
  %v2906 = vmul.f32 %v2858, %v2904
  %v2907 = vmul.f32 %v2859, %v2904
  %v2908 = vmul.f32 %v2860, %v2904
  %v2909 = vmul.f32 %v2875, %v2900
  %v2910 = vsub.f32 %v2897, %v2909
  %v2911 = vlaneseq
  %v2912 = vshrl.u32 %v2911, 7
  %v2913 = vsub.s32 0, %v2912
  %v2914 = vrot.slane %v2910, %v2913
  %v2915 = vadd.f32 %v2905, %v2914
  %v2916 = vadd.f32 %v2906, %v2914
  %v2917 = vadd.f32 %v2907, %v2914
  %v2918 = vadd.f32 %v2908, %v2914
  %vm2919 = vcmp.gt.f32.partialorder %v2915, 0.0
  %vm2920 = vcmp.gt.f32.partialorder %v2916, 0.0
  %vm2921 = vcmp.gt.f32.partialorder %v2917, 0.0
  %vm2922 = vcmp.gt.f32.partialorder %v2918, 0.0
  %v2923 = vmul.f32 %v2915, 0.01
  %v2924 = vmul.f32 %v2916, 0.01
  %v2925 = vmul.f32 %v2917, 0.01
  %v2926 = vmul.f32 %v2918, 0.01
  %v2927 = vsel %vm2919, %v2915, %v2923
  %v2928 = vsel %vm2920, %v2916, %v2924
  %v2929 = vsel %vm2921, %v2917, %v2925
  %v2930 = vsel %vm2922, %v2918, %v2926
  %v2931 = vpack.c.bf16 %v2928, %v2927
  %v2932 = vpack.c.bf16 %v2930, %v2929
  %v2933 = vld [vmem:[%s4] sm:$0xf]
  %v2934 = vld [vmem:[%s4 + $0x4] sm:$0xf]
  %v2935 = vld [vmem:[%s4 + $0x8] sm:$0xf]
  %v2936 = vld [vmem:[%s4 + $0xc] sm:$0xf]
  %v2937 = vld [vmem:[%s4 + $0x10] sm:$0xf]
  %v2938 = vld [vmem:[%s4 + $0x14] sm:$0xf]
  %v2939 = vld [vmem:[%s4 + $0x18] sm:$0xf]
  %v2940 = vld [vmem:[%s4 + $0x1c] sm:$0xf]
  %v2941 = vld [vmem:[%s4 + $0x20] sm:$0xf]
  %v2942 = vld [vmem:[%s4 + $0x24] sm:$0xf]
  %v2943 = vld [vmem:[%s4 + $0x28] sm:$0xf]
  %v2944 = vld [vmem:[%s4 + $0x2c] sm:$0xf]
  %v2945 = vld [vmem:[%s4 + $0x30] sm:$0xf]
  %v2946 = vld [vmem:[%s4 + $0x34] sm:$0xf]
  %v2947 = vld [vmem:[%s4 + $0x38] sm:$0xf]
  %v2948 = vld [vmem:[%s4 + $0x3c] sm:$0xf]
  %v2949 = vld [vmem:[%s4 + $0x40] sm:$0xf]
  %v2950 = vld [vmem:[%s4 + $0x44] sm:$0xf]
  %v2951 = vld [vmem:[%s4 + $0x48] sm:$0xf]
  %v2952 = vld [vmem:[%s4 + $0x4c] sm:$0xf]
  %v2953 = vld [vmem:[%s4 + $0x50] sm:$0xf]
  %v2954 = vld [vmem:[%s4 + $0x54] sm:$0xf]
  %v2955 = vld [vmem:[%s4 + $0x58] sm:$0xf]
  %v2956 = vld [vmem:[%s4 + $0x5c] sm:$0xf]
  %v2957 = vld [vmem:[%s4 + $0x60] sm:$0xf]
  %v2983 = vunpack.c.l.b16 %v2933
  %v2984 = vunpack.c.l.b16 %v2934
  %v2985 = vunpack.c.l.b16 %v2935
  %v2986 = vunpack.c.l.b16 %v2936
  %v2987 = vunpack.c.l.b16 %v2937
  %v2988 = vunpack.c.l.b16 %v2938
  %v2989 = vunpack.c.l.b16 %v2939
  %v2990 = vunpack.c.l.b16 %v2940
  %v2991 = vunpack.c.l.b16 %v2941
  %v2992 = vunpack.c.l.b16 %v2942
  %v2993 = vunpack.c.l.b16 %v2943
  %v2994 = vunpack.c.l.b16 %v2944
  %v2995 = vunpack.c.l.b16 %v2945
  %v2996 = vunpack.c.l.b16 %v2946
  %v2997 = vunpack.c.l.b16 %v2947
  %v2998 = vunpack.c.l.b16 %v2948
  %v2999 = vunpack.c.l.b16 %v2949
  %v3000 = vunpack.c.l.b16 %v2950
  %v3001 = vunpack.c.l.b16 %v2951
  %v3002 = vunpack.c.l.b16 %v2952
  %v3003 = vunpack.c.l.b16 %v2953
  %v3004 = vunpack.c.l.b16 %v2954
  %v3005 = vunpack.c.l.b16 %v2955
  %v3006 = vunpack.c.l.b16 %v2956
  %v3007 = vunpack.c.l.b16 %v2957
  %v3008 = vpack.c.b16 %v2984, %v2983
  %v3009 = vpack.c.b16 %v2986, %v2985
  %v3010 = vpack.c.b16 %v2988, %v2987
  %v3011 = vpack.c.b16 %v2990, %v2989
  %v3012 = vpack.c.b16 %v2992, %v2991
  %v3013 = vpack.c.b16 %v2994, %v2993
  %v3014 = vpack.c.b16 %v2996, %v2995
  %v3015 = vpack.c.b16 %v2998, %v2997
  %v3016 = vpack.c.b16 %v3000, %v2999
  %v3017 = vpack.c.b16 %v3002, %v3001
  %v3018 = vpack.c.b16 %v3004, %v3003
  %v3019 = vpack.c.b16 %v3006, %v3005
  %v3020 = vpack.c.b16 %v3007, %v3007
  %vm3021 = vcmask 261120
  %v3023 = vsel %vm3021, %v3008, 0
  %v3026 = vsel %vm3021, %v3009, 0
  %v3029 = vsel %vm3021, %v3010, 0
  %v3032 = vsel %vm3021, %v3011, 0
  %v3035 = vsel %vm3021, %v3012, 0
  %v3038 = vsel %vm3021, %v3013, 0
  %v3041 = vsel %vm3021, %v3014, 0
  %v3044 = vsel %vm3021, %v3015, 0
  %v3047 = vsel %vm3021, %v3016, 0
  %v3050 = vsel %vm3021, %v3017, 0
  %v3053 = vsel %vm3021, %v3018, 0
  %v3056 = vsel %vm3021, %v3019, 0
  %v3059 = vsel %vm3021, %v3020, 0
  %3061 = vmatprep.subr.bf16.mxu0 0
  %3062 = vmatpush1.bf16.msra.mxu0 0
  %3063 = vmatprep.subr.bf16.mxu0 0
  %3064 = vmatpush1.bf16.msra.mxu0 0
  %3065 = vmatprep.subr.bf16.mxu0 0
  %3066 = vmatpush1.bf16.msra.mxu0 0
  %3067 = vmatprep.subr.bf16.mxu0 0
  %3068 = vmatpush1.bf16.msra.mxu0 0
  %3069 = vmatprep.subr.bf16.mxu0 0
  %3070 = vmatpush1.bf16.msra.mxu0 0
  %3071 = vmatprep.subr.bf16.mxu0 0
  %3072 = vmatpush1.bf16.msra.mxu0 0
  %3073 = vmatprep.subr.bf16.mxu0 0
  %3074 = vmatpush1.bf16.msra.mxu0 %v2932
  %3075 = vmatprep.subr.bf16.mxu0 0
  %3076 = vmatpush1.bf16.msra.mxu0 %v2931
  %3077 = vmatprep.subr.bf16.mxu0 0
  %3078 = vmatpush2.bf16.msra.mxu0 0
  %3079 = vmatprep.subr.bf16.mxu0 0
  %3080 = vmatpush2.bf16.msra.mxu0 0
  %3081 = vmatprep.subr.bf16.mxu0 0
  %3082 = vmatpush2.bf16.msra.mxu0 0
  %3083 = vmatprep.subr.bf16.mxu0 0
  %3084 = vmatpush2.bf16.msra.mxu0 0
  %3085 = vmatprep.subr.bf16.mxu0 0
  %3086 = vmatpush2.bf16.msra.mxu0 0
  %3087 = vmatprep.subr.bf16.mxu0 0
  %3088 = vmatpush2.bf16.msra.mxu0 0
  %3089 = vmatprep.subr.bf16.mxu0 0
  %3090 = vmatpush2.bf16.msra.mxu0 0
  %3091 = vmatprep.subr.bf16.mxu0 0
  %3092 = vmatpush2.bf16.msra.mxu0 0
  %3093 = vmatprep.mubr.bf16.mxu0 0
  %3094 = vmatmul.mubr.bf16.gmra.mxu0 %v3023
  %v3095 = vpop.f32.mrf.mxu0
  %v3096 = vadd.f32 0.0, %v3095
  %v3097 = vpop.f32.mrf.mxu0
  %v3098 = vpop.f32.mrf.mxu0
  %v3099 = vadd.f32 0.0, %v3098
  %v3100 = vpop.f32.mrf.mxu0
  %3101 = vmatprep.mubr.bf16.mxu0 0
  %3102 = vmatmul.mubr.bf16.gmra.mxu0 %v3026
  %v3103 = vpop.f32.mrf.mxu0
  %v3104 = vadd.f32 0.0, %v3103
  %v3105 = vpop.f32.mrf.mxu0
  %v3106 = vpop.f32.mrf.mxu0
  %v3107 = vadd.f32 0.0, %v3106
  %v3108 = vpop.f32.mrf.mxu0
  %3109 = vmatprep.mubr.bf16.mxu0 0
  %3110 = vmatmul.mubr.bf16.gmra.mxu0 %v3029
  %v3111 = vpop.f32.mrf.mxu0
  %v3112 = vadd.f32 0.0, %v3111
  %v3113 = vpop.f32.mrf.mxu0
  %v3114 = vpop.f32.mrf.mxu0
  %v3115 = vadd.f32 0.0, %v3114
  %v3116 = vpop.f32.mrf.mxu0
  %3117 = vmatprep.mubr.bf16.mxu0 0
  %3118 = vmatmul.mubr.bf16.gmra.mxu0 %v3032
  %v3119 = vpop.f32.mrf.mxu0
  %v3120 = vadd.f32 0.0, %v3119
  %v3121 = vpop.f32.mrf.mxu0
  %v3122 = vpop.f32.mrf.mxu0
  %v3123 = vadd.f32 0.0, %v3122
  %v3124 = vpop.f32.mrf.mxu0
  %3125 = vmatprep.mubr.bf16.mxu0 0
  %3126 = vmatmul.mubr.bf16.gmra.mxu0 %v3035
  %v3127 = vpop.f32.mrf.mxu0
  %v3128 = vadd.f32 0.0, %v3127
  %v3129 = vpop.f32.mrf.mxu0
  %v3130 = vpop.f32.mrf.mxu0
  %v3131 = vadd.f32 0.0, %v3130
  %v3132 = vpop.f32.mrf.mxu0
  %3133 = vmatprep.mubr.bf16.mxu0 0
  %3134 = vmatmul.mubr.bf16.gmra.mxu0 %v3038
  %v3135 = vpop.f32.mrf.mxu0
  %v3136 = vadd.f32 0.0, %v3135
  %v3137 = vpop.f32.mrf.mxu0
  %v3138 = vpop.f32.mrf.mxu0
  %v3139 = vadd.f32 0.0, %v3138
  %v3140 = vpop.f32.mrf.mxu0
  %3141 = vmatprep.mubr.bf16.mxu0 0
  %3142 = vmatmul.mubr.bf16.gmra.mxu0 %v3041
  %v3143 = vpop.f32.mrf.mxu0
  %v3144 = vadd.f32 0.0, %v3143
  %v3145 = vpop.f32.mrf.mxu0
  %v3146 = vpop.f32.mrf.mxu0
  %v3147 = vadd.f32 0.0, %v3146
  %v3148 = vpop.f32.mrf.mxu0
  %3149 = vmatprep.mubr.bf16.mxu0 0
  %3150 = vmatmul.mubr.bf16.gmra.mxu0 %v3044
  %v3151 = vpop.f32.mrf.mxu0
  %v3152 = vadd.f32 0.0, %v3151
  %v3153 = vpop.f32.mrf.mxu0
  %v3154 = vpop.f32.mrf.mxu0
  %v3155 = vadd.f32 0.0, %v3154
  %v3156 = vpop.f32.mrf.mxu0
  %3157 = vmatprep.mubr.bf16.mxu0 0
  %3158 = vmatmul.mubr.bf16.gmra.mxu0 %v3047
  %v3159 = vpop.f32.mrf.mxu0
  %v3160 = vadd.f32 0.0, %v3159
  %v3161 = vpop.f32.mrf.mxu0
  %v3162 = vpop.f32.mrf.mxu0
  %v3163 = vadd.f32 0.0, %v3162
  %v3164 = vpop.f32.mrf.mxu0
  %3165 = vmatprep.mubr.bf16.mxu0 0
  %3166 = vmatmul.mubr.bf16.gmra.mxu0 %v3050
  %v3167 = vpop.f32.mrf.mxu0
  %v3168 = vadd.f32 0.0, %v3167
  %v3169 = vpop.f32.mrf.mxu0
  %v3170 = vpop.f32.mrf.mxu0
  %v3171 = vadd.f32 0.0, %v3170
  %v3172 = vpop.f32.mrf.mxu0
  %3173 = vmatprep.mubr.bf16.mxu0 0
  %3174 = vmatmul.mubr.bf16.gmra.mxu0 %v3053
  %v3175 = vpop.f32.mrf.mxu0
  %v3176 = vadd.f32 0.0, %v3175
  %v3177 = vpop.f32.mrf.mxu0
  %v3178 = vpop.f32.mrf.mxu0
  %v3179 = vadd.f32 0.0, %v3178
  %v3180 = vpop.f32.mrf.mxu0
  %3181 = vmatprep.mubr.bf16.mxu0 0
  %3182 = vmatmul.mubr.bf16.gmra.mxu0 %v3056
  %v3183 = vpop.f32.mrf.mxu0
  %v3184 = vadd.f32 0.0, %v3183
  %v3185 = vpop.f32.mrf.mxu0
  %v3186 = vpop.f32.mrf.mxu0
  %v3187 = vadd.f32 0.0, %v3186
  %v3188 = vpop.f32.mrf.mxu0
  %3189 = vmatprep.mubr.bf16.mxu0 0
  %3190 = vmatmul.mubr.bf16.gmra.mxu0 %v3059
  %v3191 = vpop.f32.mrf.mxu0
  %v3192 = vadd.f32 0.0, %v3191
  %v3193 = vpop.f32.mrf.mxu0
  %v3194 = vpop.f32.mrf.mxu0
  %v3195 = vpop.f32.mrf.mxu0
  %3196 = vdwg.mxu0
  %v3197 = vpack.c.bf16 %v3099, %v3096
  %v3198 = vpack.c.bf16 %v3107, %v3104
  %v3199 = vpack.c.bf16 %v3115, %v3112
  %v3200 = vpack.c.bf16 %v3123, %v3120
  %v3201 = vpack.c.bf16 %v3131, %v3128
  %v3202 = vpack.c.bf16 %v3139, %v3136
  %v3203 = vpack.c.bf16 %v3147, %v3144
  %v3204 = vpack.c.bf16 %v3155, %v3152
  %v3205 = vpack.c.bf16 %v3163, %v3160
  %v3206 = vpack.c.bf16 %v3171, %v3168
  %v3207 = vpack.c.bf16 %v3179, %v3176
  %v3208 = vpack.c.bf16 %v3187, %v3184
  %v3209 = vpack.c.bf16 %v3192, %v3192
  %v3210 = vld [vmem:[%s5] sm:$0xf]
  %v3211 = vld [vmem:[%s5 + $0x4] sm:$0xf]
  %s3212 = scalar_lea.vmem %s5, 8
  %v3213 = vld [vmem:[%s3212] sm:$0xf]
  %v3214 = vld [vmem:[%s3212 + $0x4] sm:$0xf]
  %v3216 = vrot.slane %v3197, 4
  %v3219 = vunpack.c.l.b16 %v3213
  %v3220 = vunpack.c.l.b16 %v3214
  %v3221 = vpack.c.b16 %v3220, %v3219
  %v3224 = vsel %vm2861, %v3216, 0
  %3226 = vmatprep.subr.bf16.mxu0 0
  %3227 = vmatpush1.bf16.msra.mxu0 0
  %3228 = vmatprep.subr.bf16.mxu0 0
  %3229 = vmatpush1.bf16.msra.mxu0 0
  %3230 = vmatprep.subr.bf16.mxu0 0
  %3231 = vmatpush1.bf16.msra.mxu0 0
  %3232 = vmatprep.subr.bf16.mxu0 0
  %3233 = vmatpush1.bf16.msra.mxu0 0
  %3234 = vmatprep.subr.bf16.mxu0 0
  %3235 = vmatpush1.bf16.msra.mxu0 0
  %3236 = vmatprep.subr.bf16.mxu0 0
  %3237 = vmatpush1.bf16.msra.mxu0 0
  %3238 = vmatprep.subr.bf16.mxu0 0
  %3239 = vmatpush1.bf16.msra.mxu0 0
  %3240 = vmatprep.subr.bf16.mxu0 0
  %3241 = vmatpush1.bf16.msra.mxu0 %v3221
  %3242 = vmatprep.subr.bf16.mxu0 0
  %3243 = vmatpush2.bf16.msra.mxu0 0
  %3244 = vmatprep.subr.bf16.mxu0 0
  %3245 = vmatpush2.bf16.msra.mxu0 0
  %3246 = vmatprep.subr.bf16.mxu0 0
  %3247 = vmatpush2.bf16.msra.mxu0 0
  %3248 = vmatprep.subr.bf16.mxu0 0
  %3249 = vmatpush2.bf16.msra.mxu0 0
  %3250 = vmatprep.subr.bf16.mxu0 0
  %3251 = vmatpush2.bf16.msra.mxu0 0
  %3252 = vmatprep.subr.bf16.mxu0 0
  %3253 = vmatpush2.bf16.msra.mxu0 0
  %3254 = vmatprep.subr.bf16.mxu0 0
  %3255 = vmatpush2.bf16.msra.mxu0 0
  %3256 = vmatprep.subr.bf16.mxu0 0
  %3257 = vmatpush2.bf16.msra.mxu0 0
  %3258 = vmatprep.mubr.bf16.mxu0 0
  %3259 = vmatmul.mubr.bf16.gmra.mxu0 %v3224
  %v3260 = vpop.f32.mrf.mxu0
  %v3261 = vadd.f32 0.0, %v3260
  %v3262 = vpop.f32.mrf.mxu0
  %v3263 = vpop.f32.mrf.mxu0
  %v3264 = vpop.f32.mrf.mxu0
  %3265 = vdwg.mxu0
  %s3266 = scalar_lea.vmem %s5, 16
  %v3267 = vld [vmem:[%s3266] sm:$0xf]
  %v3268 = vld [vmem:[%s3266 + $0x4] sm:$0xf]
  %s3269 = scalar_lea.vmem %s5, 24
  %v3270 = vld [vmem:[%s3269] sm:$0xf]
  %v3271 = vld [vmem:[%s3269 + $0x4] sm:$0xf]
  %v3273 = vrot.slane %v3198, 4
  %v3276 = vunpack.c.l.b16 %v3270
  %v3277 = vunpack.c.l.b16 %v3271
  %v3278 = vpack.c.b16 %v3277, %v3276
  %v3281 = vsel %vm2861, %v3273, 0
  %3283 = vmatprep.subr.bf16.mxu0 0
  %3284 = vmatpush1.bf16.msra.mxu0 0
  %3285 = vmatprep.subr.bf16.mxu0 0
  %3286 = vmatpush1.bf16.msra.mxu0 0
  %3287 = vmatprep.subr.bf16.mxu0 0
  %3288 = vmatpush1.bf16.msra.mxu0 0
  %3289 = vmatprep.subr.bf16.mxu0 0
  %3290 = vmatpush1.bf16.msra.mxu0 0
  %3291 = vmatprep.subr.bf16.mxu0 0
  %3292 = vmatpush1.bf16.msra.mxu0 0
  %3293 = vmatprep.subr.bf16.mxu0 0
  %3294 = vmatpush1.bf16.msra.mxu0 0
  %3295 = vmatprep.subr.bf16.mxu0 0
  %3296 = vmatpush1.bf16.msra.mxu0 0
  %3297 = vmatprep.subr.bf16.mxu0 0
  %3298 = vmatpush1.bf16.msra.mxu0 %v3278
  %3299 = vmatprep.subr.bf16.mxu0 0
  %3300 = vmatpush2.bf16.msra.mxu0 0
  %3301 = vmatprep.subr.bf16.mxu0 0
  %3302 = vmatpush2.bf16.msra.mxu0 0
  %3303 = vmatprep.subr.bf16.mxu0 0
  %3304 = vmatpush2.bf16.msra.mxu0 0
  %3305 = vmatprep.subr.bf16.mxu0 0
  %3306 = vmatpush2.bf16.msra.mxu0 0
  %3307 = vmatprep.subr.bf16.mxu0 0
  %3308 = vmatpush2.bf16.msra.mxu0 0
  %3309 = vmatprep.subr.bf16.mxu0 0
  %3310 = vmatpush2.bf16.msra.mxu0 0
  %3311 = vmatprep.subr.bf16.mxu0 0
  %3312 = vmatpush2.bf16.msra.mxu0 0
  %3313 = vmatprep.subr.bf16.mxu0 0
  %3314 = vmatpush2.bf16.msra.mxu0 0
  %3315 = vmatprep.mubr.bf16.mxu0 0
  %3316 = vmatmul.mubr.bf16.gmra.mxu0 %v3281
  %v3317 = vpop.f32.mrf.mxu0
  %v3318 = vadd.f32 0.0, %v3317
  %v3319 = vpop.f32.mrf.mxu0
  %v3320 = vpop.f32.mrf.mxu0
  %v3321 = vpop.f32.mrf.mxu0
  %3322 = vdwg.mxu0
  %s3323 = scalar_lea.vmem %s5, 32
  %v3324 = vld [vmem:[%s3323] sm:$0xf]
  %v3325 = vld [vmem:[%s3323 + $0x4] sm:$0xf]
  %s3326 = scalar_lea.vmem %s5, 40
  %v3327 = vld [vmem:[%s3326] sm:$0xf]
  %v3328 = vld [vmem:[%s3326 + $0x4] sm:$0xf]
  %v3330 = vrot.slane %v3199, 4
  %v3333 = vunpack.c.l.b16 %v3327
  %v3334 = vunpack.c.l.b16 %v3328
  %v3335 = vpack.c.b16 %v3334, %v3333
  %v3338 = vsel %vm2861, %v3330, 0
  %3340 = vmatprep.subr.bf16.mxu0 0
  %3341 = vmatpush1.bf16.msra.mxu0 0
  %3342 = vmatprep.subr.bf16.mxu0 0
  %3343 = vmatpush1.bf16.msra.mxu0 0
  %3344 = vmatprep.subr.bf16.mxu0 0
  %3345 = vmatpush1.bf16.msra.mxu0 0
  %3346 = vmatprep.subr.bf16.mxu0 0
  %3347 = vmatpush1.bf16.msra.mxu0 0
  %3348 = vmatprep.subr.bf16.mxu0 0
  %3349 = vmatpush1.bf16.msra.mxu0 0
  %3350 = vmatprep.subr.bf16.mxu0 0
  %3351 = vmatpush1.bf16.msra.mxu0 0
  %3352 = vmatprep.subr.bf16.mxu0 0
  %3353 = vmatpush1.bf16.msra.mxu0 0
  %3354 = vmatprep.subr.bf16.mxu0 0
  %3355 = vmatpush1.bf16.msra.mxu0 %v3335
  %3356 = vmatprep.subr.bf16.mxu0 0
  %3357 = vmatpush2.bf16.msra.mxu0 0
  %3358 = vmatprep.subr.bf16.mxu0 0
  %3359 = vmatpush2.bf16.msra.mxu0 0
  %3360 = vmatprep.subr.bf16.mxu0 0
  %3361 = vmatpush2.bf16.msra.mxu0 0
  %3362 = vmatprep.subr.bf16.mxu0 0
  %3363 = vmatpush2.bf16.msra.mxu0 0
  %3364 = vmatprep.subr.bf16.mxu0 0
  %3365 = vmatpush2.bf16.msra.mxu0 0
  %3366 = vmatprep.subr.bf16.mxu0 0
  %3367 = vmatpush2.bf16.msra.mxu0 0
  %3368 = vmatprep.subr.bf16.mxu0 0
  %3369 = vmatpush2.bf16.msra.mxu0 0
  %3370 = vmatprep.subr.bf16.mxu0 0
  %3371 = vmatpush2.bf16.msra.mxu0 0
  %3372 = vmatprep.mubr.bf16.mxu0 0
  %3373 = vmatmul.mubr.bf16.gmra.mxu0 %v3338
  %v3374 = vpop.f32.mrf.mxu0
  %v3375 = vadd.f32 0.0, %v3374
  %v3376 = vpop.f32.mrf.mxu0
  %v3377 = vpop.f32.mrf.mxu0
  %v3378 = vpop.f32.mrf.mxu0
  %3379 = vdwg.mxu0
  %s3380 = scalar_lea.vmem %s5, 48
  %v3381 = vld [vmem:[%s3380] sm:$0xf]
  %v3382 = vld [vmem:[%s3380 + $0x4] sm:$0xf]
  %s3383 = scalar_lea.vmem %s5, 56
  %v3384 = vld [vmem:[%s3383] sm:$0xf]
  %v3385 = vld [vmem:[%s3383 + $0x4] sm:$0xf]
  %v3387 = vrot.slane %v3200, 4
  %v3390 = vunpack.c.l.b16 %v3384
  %v3391 = vunpack.c.l.b16 %v3385
  %v3392 = vpack.c.b16 %v3391, %v3390
  %v3395 = vsel %vm2861, %v3387, 0
  %3397 = vmatprep.subr.bf16.mxu0 0
  %3398 = vmatpush1.bf16.msra.mxu0 0
  %3399 = vmatprep.subr.bf16.mxu0 0
  %3400 = vmatpush1.bf16.msra.mxu0 0
  %3401 = vmatprep.subr.bf16.mxu0 0
  %3402 = vmatpush1.bf16.msra.mxu0 0
  %3403 = vmatprep.subr.bf16.mxu0 0
  %3404 = vmatpush1.bf16.msra.mxu0 0
  %3405 = vmatprep.subr.bf16.mxu0 0
  %3406 = vmatpush1.bf16.msra.mxu0 0
  %3407 = vmatprep.subr.bf16.mxu0 0
  %3408 = vmatpush1.bf16.msra.mxu0 0
  %3409 = vmatprep.subr.bf16.mxu0 0
  %3410 = vmatpush1.bf16.msra.mxu0 0
  %3411 = vmatprep.subr.bf16.mxu0 0
  %3412 = vmatpush1.bf16.msra.mxu0 %v3392
  %3413 = vmatprep.subr.bf16.mxu0 0
  %3414 = vmatpush2.bf16.msra.mxu0 0
  %3415 = vmatprep.subr.bf16.mxu0 0
  %3416 = vmatpush2.bf16.msra.mxu0 0
  %3417 = vmatprep.subr.bf16.mxu0 0
  %3418 = vmatpush2.bf16.msra.mxu0 0
  %3419 = vmatprep.subr.bf16.mxu0 0
  %3420 = vmatpush2.bf16.msra.mxu0 0
  %3421 = vmatprep.subr.bf16.mxu0 0
  %3422 = vmatpush2.bf16.msra.mxu0 0
  %3423 = vmatprep.subr.bf16.mxu0 0
  %3424 = vmatpush2.bf16.msra.mxu0 0
  %3425 = vmatprep.subr.bf16.mxu0 0
  %3426 = vmatpush2.bf16.msra.mxu0 0
  %3427 = vmatprep.subr.bf16.mxu0 0
  %3428 = vmatpush2.bf16.msra.mxu0 0
  %3429 = vmatprep.mubr.bf16.mxu0 0
  %3430 = vmatmul.mubr.bf16.gmra.mxu0 %v3395
  %v3431 = vpop.f32.mrf.mxu0
  %v3432 = vadd.f32 0.0, %v3431
  %v3433 = vpop.f32.mrf.mxu0
  %v3434 = vpop.f32.mrf.mxu0
  %v3435 = vpop.f32.mrf.mxu0
  %3436 = vdwg.mxu0
  %s3437 = scalar_lea.vmem %s5, 64
  %v3438 = vld [vmem:[%s3437] sm:$0xf]
  %v3439 = vld [vmem:[%s3437 + $0x4] sm:$0xf]
  %s3440 = scalar_lea.vmem %s5, 72
  %v3441 = vld [vmem:[%s3440] sm:$0xf]
  %v3442 = vld [vmem:[%s3440 + $0x4] sm:$0xf]
  %v3444 = vrot.slane %v3201, 4
  %v3447 = vunpack.c.l.b16 %v3441
  %v3448 = vunpack.c.l.b16 %v3442
  %v3449 = vpack.c.b16 %v3448, %v3447
  %v3452 = vsel %vm2861, %v3444, 0
  %3454 = vmatprep.subr.bf16.mxu0 0
  %3455 = vmatpush1.bf16.msra.mxu0 0
  %3456 = vmatprep.subr.bf16.mxu0 0
  %3457 = vmatpush1.bf16.msra.mxu0 0
  %3458 = vmatprep.subr.bf16.mxu0 0
  %3459 = vmatpush1.bf16.msra.mxu0 0
  %3460 = vmatprep.subr.bf16.mxu0 0
  %3461 = vmatpush1.bf16.msra.mxu0 0
  %3462 = vmatprep.subr.bf16.mxu0 0
  %3463 = vmatpush1.bf16.msra.mxu0 0
  %3464 = vmatprep.subr.bf16.mxu0 0
  %3465 = vmatpush1.bf16.msra.mxu0 0
  %3466 = vmatprep.subr.bf16.mxu0 0
  %3467 = vmatpush1.bf16.msra.mxu0 0
  %3468 = vmatprep.subr.bf16.mxu0 0
  %3469 = vmatpush1.bf16.msra.mxu0 %v3449
  %3470 = vmatprep.subr.bf16.mxu0 0
  %3471 = vmatpush2.bf16.msra.mxu0 0
  %3472 = vmatprep.subr.bf16.mxu0 0
  %3473 = vmatpush2.bf16.msra.mxu0 0
  %3474 = vmatprep.subr.bf16.mxu0 0
  %3475 = vmatpush2.bf16.msra.mxu0 0
  %3476 = vmatprep.subr.bf16.mxu0 0
  %3477 = vmatpush2.bf16.msra.mxu0 0
  %3478 = vmatprep.subr.bf16.mxu0 0
  %3479 = vmatpush2.bf16.msra.mxu0 0
  %3480 = vmatprep.subr.bf16.mxu0 0
  %3481 = vmatpush2.bf16.msra.mxu0 0
  %3482 = vmatprep.subr.bf16.mxu0 0
  %3483 = vmatpush2.bf16.msra.mxu0 0
  %3484 = vmatprep.subr.bf16.mxu0 0
  %3485 = vmatpush2.bf16.msra.mxu0 0
  %3486 = vmatprep.mubr.bf16.mxu0 0
  %3487 = vmatmul.mubr.bf16.gmra.mxu0 %v3452
  %v3488 = vpop.f32.mrf.mxu0
  %v3489 = vadd.f32 0.0, %v3488
  %v3490 = vpop.f32.mrf.mxu0
  %v3491 = vpop.f32.mrf.mxu0
  %v3492 = vpop.f32.mrf.mxu0
  %3493 = vdwg.mxu0
  %s3494 = scalar_lea.vmem %s5, 80
  %v3495 = vld [vmem:[%s3494] sm:$0xf]
  %v3496 = vld [vmem:[%s3494 + $0x4] sm:$0xf]
  %s3497 = scalar_lea.vmem %s5, 88
  %v3498 = vld [vmem:[%s3497] sm:$0xf]
  %v3499 = vld [vmem:[%s3497 + $0x4] sm:$0xf]
  %v3501 = vrot.slane %v3202, 4
  %v3504 = vunpack.c.l.b16 %v3498
  %v3505 = vunpack.c.l.b16 %v3499
  %v3506 = vpack.c.b16 %v3505, %v3504
  %v3509 = vsel %vm2861, %v3501, 0
  %3511 = vmatprep.subr.bf16.mxu0 0
  %3512 = vmatpush1.bf16.msra.mxu0 0
  %3513 = vmatprep.subr.bf16.mxu0 0
  %3514 = vmatpush1.bf16.msra.mxu0 0
  %3515 = vmatprep.subr.bf16.mxu0 0
  %3516 = vmatpush1.bf16.msra.mxu0 0
  %3517 = vmatprep.subr.bf16.mxu0 0
  %3518 = vmatpush1.bf16.msra.mxu0 0
  %3519 = vmatprep.subr.bf16.mxu0 0
  %3520 = vmatpush1.bf16.msra.mxu0 0
  %3521 = vmatprep.subr.bf16.mxu0 0
  %3522 = vmatpush1.bf16.msra.mxu0 0
  %3523 = vmatprep.subr.bf16.mxu0 0
  %3524 = vmatpush1.bf16.msra.mxu0 0
  %3525 = vmatprep.subr.bf16.mxu0 0
  %3526 = vmatpush1.bf16.msra.mxu0 %v3506
  %3527 = vmatprep.subr.bf16.mxu0 0
  %3528 = vmatpush2.bf16.msra.mxu0 0
  %3529 = vmatprep.subr.bf16.mxu0 0
  %3530 = vmatpush2.bf16.msra.mxu0 0
  %3531 = vmatprep.subr.bf16.mxu0 0
  %3532 = vmatpush2.bf16.msra.mxu0 0
  %3533 = vmatprep.subr.bf16.mxu0 0
  %3534 = vmatpush2.bf16.msra.mxu0 0
  %3535 = vmatprep.subr.bf16.mxu0 0
  %3536 = vmatpush2.bf16.msra.mxu0 0
  %3537 = vmatprep.subr.bf16.mxu0 0
  %3538 = vmatpush2.bf16.msra.mxu0 0
  %3539 = vmatprep.subr.bf16.mxu0 0
  %3540 = vmatpush2.bf16.msra.mxu0 0
  %3541 = vmatprep.subr.bf16.mxu0 0
  %3542 = vmatpush2.bf16.msra.mxu0 0
  %3543 = vmatprep.mubr.bf16.mxu0 0
  %3544 = vmatmul.mubr.bf16.gmra.mxu0 %v3509
  %v3545 = vpop.f32.mrf.mxu0
  %v3546 = vadd.f32 0.0, %v3545
  %v3547 = vpop.f32.mrf.mxu0
  %v3548 = vpop.f32.mrf.mxu0
  %v3549 = vpop.f32.mrf.mxu0
  %3550 = vdwg.mxu0
  %s3551 = scalar_lea.vmem %s5, 96
  %v3552 = vld [vmem:[%s3551] sm:$0xf]
  %v3553 = vld [vmem:[%s3551 + $0x4] sm:$0xf]
  %s3554 = scalar_lea.vmem %s5, 104
  %v3555 = vld [vmem:[%s3554] sm:$0xf]
  %v3556 = vld [vmem:[%s3554 + $0x4] sm:$0xf]
  %v3558 = vrot.slane %v3203, 4
  %v3561 = vunpack.c.l.b16 %v3555
  %v3562 = vunpack.c.l.b16 %v3556
  %v3563 = vpack.c.b16 %v3562, %v3561
  %v3566 = vsel %vm2861, %v3558, 0
  %3568 = vmatprep.subr.bf16.mxu0 0
  %3569 = vmatpush1.bf16.msra.mxu0 0
  %3570 = vmatprep.subr.bf16.mxu0 0
  %3571 = vmatpush1.bf16.msra.mxu0 0
  %3572 = vmatprep.subr.bf16.mxu0 0
  %3573 = vmatpush1.bf16.msra.mxu0 0
  %3574 = vmatprep.subr.bf16.mxu0 0
  %3575 = vmatpush1.bf16.msra.mxu0 0
  %3576 = vmatprep.subr.bf16.mxu0 0
  %3577 = vmatpush1.bf16.msra.mxu0 0
  %3578 = vmatprep.subr.bf16.mxu0 0
  %3579 = vmatpush1.bf16.msra.mxu0 0
  %3580 = vmatprep.subr.bf16.mxu0 0
  %3581 = vmatpush1.bf16.msra.mxu0 0
  %3582 = vmatprep.subr.bf16.mxu0 0
  %3583 = vmatpush1.bf16.msra.mxu0 %v3563
  %3584 = vmatprep.subr.bf16.mxu0 0
  %3585 = vmatpush2.bf16.msra.mxu0 0
  %3586 = vmatprep.subr.bf16.mxu0 0
  %3587 = vmatpush2.bf16.msra.mxu0 0
  %3588 = vmatprep.subr.bf16.mxu0 0
  %3589 = vmatpush2.bf16.msra.mxu0 0
  %3590 = vmatprep.subr.bf16.mxu0 0
  %3591 = vmatpush2.bf16.msra.mxu0 0
  %3592 = vmatprep.subr.bf16.mxu0 0
  %3593 = vmatpush2.bf16.msra.mxu0 0
  %3594 = vmatprep.subr.bf16.mxu0 0
  %3595 = vmatpush2.bf16.msra.mxu0 0
  %3596 = vmatprep.subr.bf16.mxu0 0
  %3597 = vmatpush2.bf16.msra.mxu0 0
  %3598 = vmatprep.subr.bf16.mxu0 0
  %3599 = vmatpush2.bf16.msra.mxu0 0
  %3600 = vmatprep.mubr.bf16.mxu0 0
  %3601 = vmatmul.mubr.bf16.gmra.mxu0 %v3566
  %v3602 = vpop.f32.mrf.mxu0
  %v3603 = vadd.f32 0.0, %v3602
  %v3604 = vpop.f32.mrf.mxu0
  %v3605 = vpop.f32.mrf.mxu0
  %v3606 = vpop.f32.mrf.mxu0
  %3607 = vdwg.mxu0
  %s3608 = scalar_lea.vmem %s5, 112
  %v3609 = vld [vmem:[%s3608] sm:$0xf]
  %v3610 = vld [vmem:[%s3608 + $0x4] sm:$0xf]
  %s3611 = scalar_lea.vmem %s5, 120
  %v3612 = vld [vmem:[%s3611] sm:$0xf]
  %v3613 = vld [vmem:[%s3611 + $0x4] sm:$0xf]
  %v3615 = vrot.slane %v3204, 4
  %v3618 = vunpack.c.l.b16 %v3612
  %v3619 = vunpack.c.l.b16 %v3613
  %v3620 = vpack.c.b16 %v3619, %v3618
  %v3623 = vsel %vm2861, %v3615, 0
  %3625 = vmatprep.subr.bf16.mxu0 0
  %3626 = vmatpush1.bf16.msra.mxu0 0
  %3627 = vmatprep.subr.bf16.mxu0 0
  %3628 = vmatpush1.bf16.msra.mxu0 0
  %3629 = vmatprep.subr.bf16.mxu0 0
  %3630 = vmatpush1.bf16.msra.mxu0 0
  %3631 = vmatprep.subr.bf16.mxu0 0
  %3632 = vmatpush1.bf16.msra.mxu0 0
  %3633 = vmatprep.subr.bf16.mxu0 0
  %3634 = vmatpush1.bf16.msra.mxu0 0
  %3635 = vmatprep.subr.bf16.mxu0 0
  %3636 = vmatpush1.bf16.msra.mxu0 0
  %3637 = vmatprep.subr.bf16.mxu0 0
  %3638 = vmatpush1.bf16.msra.mxu0 0
  %3639 = vmatprep.subr.bf16.mxu0 0
  %3640 = vmatpush1.bf16.msra.mxu0 %v3620
  %3641 = vmatprep.subr.bf16.mxu0 0
  %3642 = vmatpush2.bf16.msra.mxu0 0
  %3643 = vmatprep.subr.bf16.mxu0 0
  %3644 = vmatpush2.bf16.msra.mxu0 0
  %3645 = vmatprep.subr.bf16.mxu0 0
  %3646 = vmatpush2.bf16.msra.mxu0 0
  %3647 = vmatprep.subr.bf16.mxu0 0
  %3648 = vmatpush2.bf16.msra.mxu0 0
  %3649 = vmatprep.subr.bf16.mxu0 0
  %3650 = vmatpush2.bf16.msra.mxu0 0
  %3651 = vmatprep.subr.bf16.mxu0 0
  %3652 = vmatpush2.bf16.msra.mxu0 0
  %3653 = vmatprep.subr.bf16.mxu0 0
  %3654 = vmatpush2.bf16.msra.mxu0 0
  %3655 = vmatprep.subr.bf16.mxu0 0
  %3656 = vmatpush2.bf16.msra.mxu0 0
  %3657 = vmatprep.mubr.bf16.mxu0 0
  %3658 = vmatmul.mubr.bf16.gmra.mxu0 %v3623
  %v3659 = vpop.f32.mrf.mxu0
  %v3660 = vadd.f32 0.0, %v3659
  %v3661 = vpop.f32.mrf.mxu0
  %v3662 = vpop.f32.mrf.mxu0
  %v3663 = vpop.f32.mrf.mxu0
  %3664 = vdwg.mxu0
  %s3665 = scalar_lea.vmem %s5, 128
  %v3666 = vld [vmem:[%s3665] sm:$0xf]
  %v3667 = vld [vmem:[%s3665 + $0x4] sm:$0xf]
  %s3668 = scalar_lea.vmem %s5, 136
  %v3669 = vld [vmem:[%s3668] sm:$0xf]
  %v3670 = vld [vmem:[%s3668 + $0x4] sm:$0xf]
  %v3672 = vrot.slane %v3205, 4
  %v3675 = vunpack.c.l.b16 %v3669
  %v3676 = vunpack.c.l.b16 %v3670
  %v3677 = vpack.c.b16 %v3676, %v3675
  %v3680 = vsel %vm2861, %v3672, 0
  %3682 = vmatprep.subr.bf16.mxu0 0
  %3683 = vmatpush1.bf16.msra.mxu0 0
  %3684 = vmatprep.subr.bf16.mxu0 0
  %3685 = vmatpush1.bf16.msra.mxu0 0
  %3686 = vmatprep.subr.bf16.mxu0 0
  %3687 = vmatpush1.bf16.msra.mxu0 0
  %3688 = vmatprep.subr.bf16.mxu0 0
  %3689 = vmatpush1.bf16.msra.mxu0 0
  %3690 = vmatprep.subr.bf16.mxu0 0
  %3691 = vmatpush1.bf16.msra.mxu0 0
  %3692 = vmatprep.subr.bf16.mxu0 0
  %3693 = vmatpush1.bf16.msra.mxu0 0
  %3694 = vmatprep.subr.bf16.mxu0 0
  %3695 = vmatpush1.bf16.msra.mxu0 0
  %3696 = vmatprep.subr.bf16.mxu0 0
  %3697 = vmatpush1.bf16.msra.mxu0 %v3677
  %3698 = vmatprep.subr.bf16.mxu0 0
  %3699 = vmatpush2.bf16.msra.mxu0 0
  %3700 = vmatprep.subr.bf16.mxu0 0
  %3701 = vmatpush2.bf16.msra.mxu0 0
  %3702 = vmatprep.subr.bf16.mxu0 0
  %3703 = vmatpush2.bf16.msra.mxu0 0
  %3704 = vmatprep.subr.bf16.mxu0 0
  %3705 = vmatpush2.bf16.msra.mxu0 0
  %3706 = vmatprep.subr.bf16.mxu0 0
  %3707 = vmatpush2.bf16.msra.mxu0 0
  %3708 = vmatprep.subr.bf16.mxu0 0
  %3709 = vmatpush2.bf16.msra.mxu0 0
  %3710 = vmatprep.subr.bf16.mxu0 0
  %3711 = vmatpush2.bf16.msra.mxu0 0
  %3712 = vmatprep.subr.bf16.mxu0 0
  %3713 = vmatpush2.bf16.msra.mxu0 0
  %3714 = vmatprep.mubr.bf16.mxu0 0
  %3715 = vmatmul.mubr.bf16.gmra.mxu0 %v3680
  %v3716 = vpop.f32.mrf.mxu0
  %v3717 = vadd.f32 0.0, %v3716
  %v3718 = vpop.f32.mrf.mxu0
  %v3719 = vpop.f32.mrf.mxu0
  %v3720 = vpop.f32.mrf.mxu0
  %3721 = vdwg.mxu0
  %s3722 = scalar_lea.vmem %s5, 144
  %v3723 = vld [vmem:[%s3722] sm:$0xf]
  %v3724 = vld [vmem:[%s3722 + $0x4] sm:$0xf]
  %s3725 = scalar_lea.vmem %s5, 152
  %v3726 = vld [vmem:[%s3725] sm:$0xf]
  %v3727 = vld [vmem:[%s3725 + $0x4] sm:$0xf]
  %v3729 = vrot.slane %v3206, 4
  %v3732 = vunpack.c.l.b16 %v3726
  %v3733 = vunpack.c.l.b16 %v3727
  %v3734 = vpack.c.b16 %v3733, %v3732
  %v3737 = vsel %vm2861, %v3729, 0
  %3739 = vmatprep.subr.bf16.mxu0 0
  %3740 = vmatpush1.bf16.msra.mxu0 0
  %3741 = vmatprep.subr.bf16.mxu0 0
  %3742 = vmatpush1.bf16.msra.mxu0 0
  %3743 = vmatprep.subr.bf16.mxu0 0
  %3744 = vmatpush1.bf16.msra.mxu0 0
  %3745 = vmatprep.subr.bf16.mxu0 0
  %3746 = vmatpush1.bf16.msra.mxu0 0
  %3747 = vmatprep.subr.bf16.mxu0 0
  %3748 = vmatpush1.bf16.msra.mxu0 0
  %3749 = vmatprep.subr.bf16.mxu0 0
  %3750 = vmatpush1.bf16.msra.mxu0 0
  %3751 = vmatprep.subr.bf16.mxu0 0
  %3752 = vmatpush1.bf16.msra.mxu0 0
  %3753 = vmatprep.subr.bf16.mxu0 0
  %3754 = vmatpush1.bf16.msra.mxu0 %v3734
  %3755 = vmatprep.subr.bf16.mxu0 0
  %3756 = vmatpush2.bf16.msra.mxu0 0
  %3757 = vmatprep.subr.bf16.mxu0 0
  %3758 = vmatpush2.bf16.msra.mxu0 0
  %3759 = vmatprep.subr.bf16.mxu0 0
  %3760 = vmatpush2.bf16.msra.mxu0 0
  %3761 = vmatprep.subr.bf16.mxu0 0
  %3762 = vmatpush2.bf16.msra.mxu0 0
  %3763 = vmatprep.subr.bf16.mxu0 0
  %3764 = vmatpush2.bf16.msra.mxu0 0
  %3765 = vmatprep.subr.bf16.mxu0 0
  %3766 = vmatpush2.bf16.msra.mxu0 0
  %3767 = vmatprep.subr.bf16.mxu0 0
  %3768 = vmatpush2.bf16.msra.mxu0 0
  %3769 = vmatprep.subr.bf16.mxu0 0
  %3770 = vmatpush2.bf16.msra.mxu0 0
  %3771 = vmatprep.mubr.bf16.mxu0 0
  %3772 = vmatmul.mubr.bf16.gmra.mxu0 %v3737
  %v3773 = vpop.f32.mrf.mxu0
  %v3774 = vadd.f32 0.0, %v3773
  %v3775 = vpop.f32.mrf.mxu0
  %v3776 = vpop.f32.mrf.mxu0
  %v3777 = vpop.f32.mrf.mxu0
  %3778 = vdwg.mxu0
  %s3779 = scalar_lea.vmem %s5, 160
  %v3780 = vld [vmem:[%s3779] sm:$0xf]
  %v3781 = vld [vmem:[%s3779 + $0x4] sm:$0xf]
  %s3782 = scalar_lea.vmem %s5, 168
  %v3783 = vld [vmem:[%s3782] sm:$0xf]
  %v3784 = vld [vmem:[%s3782 + $0x4] sm:$0xf]
  %v3786 = vrot.slane %v3207, 4
  %v3789 = vunpack.c.l.b16 %v3783
  %v3790 = vunpack.c.l.b16 %v3784
  %v3791 = vpack.c.b16 %v3790, %v3789
  %v3794 = vsel %vm2861, %v3786, 0
  %3796 = vmatprep.subr.bf16.mxu0 0
  %3797 = vmatpush1.bf16.msra.mxu0 0
  %3798 = vmatprep.subr.bf16.mxu0 0
  %3799 = vmatpush1.bf16.msra.mxu0 0
  %3800 = vmatprep.subr.bf16.mxu0 0
  %3801 = vmatpush1.bf16.msra.mxu0 0
  %3802 = vmatprep.subr.bf16.mxu0 0
  %3803 = vmatpush1.bf16.msra.mxu0 0
  %3804 = vmatprep.subr.bf16.mxu0 0
  %3805 = vmatpush1.bf16.msra.mxu0 0
  %3806 = vmatprep.subr.bf16.mxu0 0
  %3807 = vmatpush1.bf16.msra.mxu0 0
  %3808 = vmatprep.subr.bf16.mxu0 0
  %3809 = vmatpush1.bf16.msra.mxu0 0
  %3810 = vmatprep.subr.bf16.mxu0 0
  %3811 = vmatpush1.bf16.msra.mxu0 %v3791
  %3812 = vmatprep.subr.bf16.mxu0 0
  %3813 = vmatpush2.bf16.msra.mxu0 0
  %3814 = vmatprep.subr.bf16.mxu0 0
  %3815 = vmatpush2.bf16.msra.mxu0 0
  %3816 = vmatprep.subr.bf16.mxu0 0
  %3817 = vmatpush2.bf16.msra.mxu0 0
  %3818 = vmatprep.subr.bf16.mxu0 0
  %3819 = vmatpush2.bf16.msra.mxu0 0
  %3820 = vmatprep.subr.bf16.mxu0 0
  %3821 = vmatpush2.bf16.msra.mxu0 0
  %3822 = vmatprep.subr.bf16.mxu0 0
  %3823 = vmatpush2.bf16.msra.mxu0 0
  %3824 = vmatprep.subr.bf16.mxu0 0
  %3825 = vmatpush2.bf16.msra.mxu0 0
  %3826 = vmatprep.subr.bf16.mxu0 0
  %3827 = vmatpush2.bf16.msra.mxu0 0
  %3828 = vmatprep.mubr.bf16.mxu0 0
  %3829 = vmatmul.mubr.bf16.gmra.mxu0 %v3794
  %v3830 = vpop.f32.mrf.mxu0
  %v3831 = vadd.f32 0.0, %v3830
  %v3832 = vpop.f32.mrf.mxu0
  %v3833 = vpop.f32.mrf.mxu0
  %v3834 = vpop.f32.mrf.mxu0
  %3835 = vdwg.mxu0
  %s3836 = scalar_lea.vmem %s5, 176
  %v3837 = vld [vmem:[%s3836] sm:$0xf]
  %v3838 = vld [vmem:[%s3836 + $0x4] sm:$0xf]
  %s3839 = scalar_lea.vmem %s5, 184
  %v3840 = vld [vmem:[%s3839] sm:$0xf]
  %v3841 = vld [vmem:[%s3839 + $0x4] sm:$0xf]
  %v3843 = vrot.slane %v3208, 4
  %v3846 = vunpack.c.l.b16 %v3840
  %v3847 = vunpack.c.l.b16 %v3841
  %v3848 = vpack.c.b16 %v3847, %v3846
  %v3851 = vsel %vm2861, %v3843, 0
  %3853 = vmatprep.subr.bf16.mxu0 0
  %3854 = vmatpush1.bf16.msra.mxu0 0
  %3855 = vmatprep.subr.bf16.mxu0 0
  %3856 = vmatpush1.bf16.msra.mxu0 0
  %3857 = vmatprep.subr.bf16.mxu0 0
  %3858 = vmatpush1.bf16.msra.mxu0 0
  %3859 = vmatprep.subr.bf16.mxu0 0
  %3860 = vmatpush1.bf16.msra.mxu0 0
  %3861 = vmatprep.subr.bf16.mxu0 0
  %3862 = vmatpush1.bf16.msra.mxu0 0
  %3863 = vmatprep.subr.bf16.mxu0 0
  %3864 = vmatpush1.bf16.msra.mxu0 0
  %3865 = vmatprep.subr.bf16.mxu0 0
  %3866 = vmatpush1.bf16.msra.mxu0 0
  %3867 = vmatprep.subr.bf16.mxu0 0
  %3868 = vmatpush1.bf16.msra.mxu0 %v3848
  %3869 = vmatprep.subr.bf16.mxu0 0
  %3870 = vmatpush2.bf16.msra.mxu0 0
  %3871 = vmatprep.subr.bf16.mxu0 0
  %3872 = vmatpush2.bf16.msra.mxu0 0
  %3873 = vmatprep.subr.bf16.mxu0 0
  %3874 = vmatpush2.bf16.msra.mxu0 0
  %3875 = vmatprep.subr.bf16.mxu0 0
  %3876 = vmatpush2.bf16.msra.mxu0 0
  %3877 = vmatprep.subr.bf16.mxu0 0
  %3878 = vmatpush2.bf16.msra.mxu0 0
  %3879 = vmatprep.subr.bf16.mxu0 0
  %3880 = vmatpush2.bf16.msra.mxu0 0
  %3881 = vmatprep.subr.bf16.mxu0 0
  %3882 = vmatpush2.bf16.msra.mxu0 0
  %3883 = vmatprep.subr.bf16.mxu0 0
  %3884 = vmatpush2.bf16.msra.mxu0 0
  %3885 = vmatprep.mubr.bf16.mxu0 0
  %3886 = vmatmul.mubr.bf16.gmra.mxu0 %v3851
  %v3887 = vpop.f32.mrf.mxu0
  %v3888 = vadd.f32 0.0, %v3887
  %v3889 = vpop.f32.mrf.mxu0
  %v3890 = vpop.f32.mrf.mxu0
  %v3891 = vpop.f32.mrf.mxu0
  %3892 = vdwg.mxu0
  %s3893 = scalar_lea.vmem %s5, 192
  %v3894 = vld [vmem:[%s3893] sm:$0xf]
  %v3895 = vld [vmem:[%s3893 + $0x4] sm:$0xf]
  %v3898 = vunpack.c.l.b16 %v3894
  %v3899 = vunpack.c.l.b16 %v3895
  %v3900 = vpack.c.b16 %v3899, %v3898
  %v3903 = vsel %vm2861, %v3209, 0
  %3905 = vmatprep.subr.bf16.mxu0 0
  %3906 = vmatpush1.bf16.msra.mxu0 0
  %3907 = vmatprep.subr.bf16.mxu0 0
  %3908 = vmatpush1.bf16.msra.mxu0 0
  %3909 = vmatprep.subr.bf16.mxu0 0
  %3910 = vmatpush1.bf16.msra.mxu0 0
  %3911 = vmatprep.subr.bf16.mxu0 0
  %3912 = vmatpush1.bf16.msra.mxu0 0
  %3913 = vmatprep.subr.bf16.mxu0 0
  %3914 = vmatpush1.bf16.msra.mxu0 0
  %3915 = vmatprep.subr.bf16.mxu0 0
  %3916 = vmatpush1.bf16.msra.mxu0 0
  %3917 = vmatprep.subr.bf16.mxu0 0
  %3918 = vmatpush1.bf16.msra.mxu0 0
  %3919 = vmatprep.subr.bf16.mxu0 0
  %3920 = vmatpush1.bf16.msra.mxu0 %v3900
  %3921 = vmatprep.subr.bf16.mxu0 0
  %3922 = vmatpush2.bf16.msra.mxu0 0
  %3923 = vmatprep.subr.bf16.mxu0 0
  %3924 = vmatpush2.bf16.msra.mxu0 0
  %3925 = vmatprep.subr.bf16.mxu0 0
  %3926 = vmatpush2.bf16.msra.mxu0 0
  %3927 = vmatprep.subr.bf16.mxu0 0
  %3928 = vmatpush2.bf16.msra.mxu0 0
  %3929 = vmatprep.subr.bf16.mxu0 0
  %3930 = vmatpush2.bf16.msra.mxu0 0
  %3931 = vmatprep.subr.bf16.mxu0 0
  %3932 = vmatpush2.bf16.msra.mxu0 0
  %3933 = vmatprep.subr.bf16.mxu0 0
  %3934 = vmatpush2.bf16.msra.mxu0 0
  %3935 = vmatprep.subr.bf16.mxu0 0
  %3936 = vmatpush2.bf16.msra.mxu0 0
  %3937 = vmatprep.mubr.bf16.mxu0 0
  %3938 = vmatmul.mubr.bf16.gmra.mxu0 %v3903
  %v3939 = vpop.f32.mrf.mxu0
  %v3940 = vadd.f32 0.0, %v3939
  %v3941 = vpop.f32.mrf.mxu0
  %v3942 = vpop.f32.mrf.mxu0
  %v3943 = vpop.f32.mrf.mxu0
  %3944 = vdwg.mxu0
  %v3947 = vunpack.c.l.b16 %v3210
  %v3948 = vunpack.c.l.b16 %v3211
  %v3949 = vpack.c.b16 %v3948, %v3947
  %v3952 = vsel %vm2861, %v3197, 0
  %3954 = vmatprep.subr.bf16.mxu0 0
  %3955 = vmatpush1.bf16.msra.mxu0 0
  %3956 = vmatprep.subr.bf16.mxu0 0
  %3957 = vmatpush1.bf16.msra.mxu0 0
  %3958 = vmatprep.subr.bf16.mxu0 0
  %3959 = vmatpush1.bf16.msra.mxu0 0
  %3960 = vmatprep.subr.bf16.mxu0 0
  %3961 = vmatpush1.bf16.msra.mxu0 0
  %3962 = vmatprep.subr.bf16.mxu0 0
  %3963 = vmatpush1.bf16.msra.mxu0 0
  %3964 = vmatprep.subr.bf16.mxu0 0
  %3965 = vmatpush1.bf16.msra.mxu0 0
  %3966 = vmatprep.subr.bf16.mxu0 0
  %3967 = vmatpush1.bf16.msra.mxu0 0
  %3968 = vmatprep.subr.bf16.mxu0 0
  %3969 = vmatpush1.bf16.msra.mxu0 %v3949
  %3970 = vmatprep.subr.bf16.mxu0 0
  %3971 = vmatpush2.bf16.msra.mxu0 0
  %3972 = vmatprep.subr.bf16.mxu0 0
  %3973 = vmatpush2.bf16.msra.mxu0 0
  %3974 = vmatprep.subr.bf16.mxu0 0
  %3975 = vmatpush2.bf16.msra.mxu0 0
  %3976 = vmatprep.subr.bf16.mxu0 0
  %3977 = vmatpush2.bf16.msra.mxu0 0
  %3978 = vmatprep.subr.bf16.mxu0 0
  %3979 = vmatpush2.bf16.msra.mxu0 0
  %3980 = vmatprep.subr.bf16.mxu0 0
  %3981 = vmatpush2.bf16.msra.mxu0 0
  %3982 = vmatprep.subr.bf16.mxu0 0
  %3983 = vmatpush2.bf16.msra.mxu0 0
  %3984 = vmatprep.subr.bf16.mxu0 0
  %3985 = vmatpush2.bf16.msra.mxu0 0
  %3986 = vmatprep.mubr.bf16.mxu0 0
  %3987 = vmatmul.mubr.bf16.gmra.mxu0 %v3952
  %v3988 = vpop.f32.mrf.mxu0
  %v3989 = vadd.f32 %v3261, %v3988
  %v3990 = vpop.f32.mrf.mxu0
  %v3991 = vpop.f32.mrf.mxu0
  %v3992 = vpop.f32.mrf.mxu0
  %3993 = vdwg.mxu0
  %v3996 = vunpack.c.l.b16 %v3267
  %v3997 = vunpack.c.l.b16 %v3268
  %v3998 = vpack.c.b16 %v3997, %v3996
  %v4001 = vsel %vm2861, %v3198, 0
  %4003 = vmatprep.subr.bf16.mxu0 0
  %4004 = vmatpush1.bf16.msra.mxu0 0
  %4005 = vmatprep.subr.bf16.mxu0 0
  %4006 = vmatpush1.bf16.msra.mxu0 0
  %4007 = vmatprep.subr.bf16.mxu0 0
  %4008 = vmatpush1.bf16.msra.mxu0 0
  %4009 = vmatprep.subr.bf16.mxu0 0
  %4010 = vmatpush1.bf16.msra.mxu0 0
  %4011 = vmatprep.subr.bf16.mxu0 0
  %4012 = vmatpush1.bf16.msra.mxu0 0
  %4013 = vmatprep.subr.bf16.mxu0 0
  %4014 = vmatpush1.bf16.msra.mxu0 0
  %4015 = vmatprep.subr.bf16.mxu0 0
  %4016 = vmatpush1.bf16.msra.mxu0 0
  %4017 = vmatprep.subr.bf16.mxu0 0
  %4018 = vmatpush1.bf16.msra.mxu0 %v3998
  %4019 = vmatprep.subr.bf16.mxu0 0
  %4020 = vmatpush2.bf16.msra.mxu0 0
  %4021 = vmatprep.subr.bf16.mxu0 0
  %4022 = vmatpush2.bf16.msra.mxu0 0
  %4023 = vmatprep.subr.bf16.mxu0 0
  %4024 = vmatpush2.bf16.msra.mxu0 0
  %4025 = vmatprep.subr.bf16.mxu0 0
  %4026 = vmatpush2.bf16.msra.mxu0 0
  %4027 = vmatprep.subr.bf16.mxu0 0
  %4028 = vmatpush2.bf16.msra.mxu0 0
  %4029 = vmatprep.subr.bf16.mxu0 0
  %4030 = vmatpush2.bf16.msra.mxu0 0
  %4031 = vmatprep.subr.bf16.mxu0 0
  %4032 = vmatpush2.bf16.msra.mxu0 0
  %4033 = vmatprep.subr.bf16.mxu0 0
  %4034 = vmatpush2.bf16.msra.mxu0 0
  %4035 = vmatprep.mubr.bf16.mxu0 0
  %4036 = vmatmul.mubr.bf16.gmra.mxu0 %v4001
  %v4037 = vpop.f32.mrf.mxu0
  %v4038 = vadd.f32 %v3318, %v4037
  %v4039 = vpop.f32.mrf.mxu0
  %v4040 = vpop.f32.mrf.mxu0
  %v4041 = vpop.f32.mrf.mxu0
  %4042 = vdwg.mxu0
  %v4045 = vunpack.c.l.b16 %v3324
  %v4046 = vunpack.c.l.b16 %v3325
  %v4047 = vpack.c.b16 %v4046, %v4045
  %v4050 = vsel %vm2861, %v3199, 0
  %4052 = vmatprep.subr.bf16.mxu0 0
  %4053 = vmatpush1.bf16.msra.mxu0 0
  %4054 = vmatprep.subr.bf16.mxu0 0
  %4055 = vmatpush1.bf16.msra.mxu0 0
  %4056 = vmatprep.subr.bf16.mxu0 0
  %4057 = vmatpush1.bf16.msra.mxu0 0
  %4058 = vmatprep.subr.bf16.mxu0 0
  %4059 = vmatpush1.bf16.msra.mxu0 0
  %4060 = vmatprep.subr.bf16.mxu0 0
  %4061 = vmatpush1.bf16.msra.mxu0 0
  %4062 = vmatprep.subr.bf16.mxu0 0
  %4063 = vmatpush1.bf16.msra.mxu0 0
  %4064 = vmatprep.subr.bf16.mxu0 0
  %4065 = vmatpush1.bf16.msra.mxu0 0
  %4066 = vmatprep.subr.bf16.mxu0 0
  %4067 = vmatpush1.bf16.msra.mxu0 %v4047
  %4068 = vmatprep.subr.bf16.mxu0 0
  %4069 = vmatpush2.bf16.msra.mxu0 0
  %4070 = vmatprep.subr.bf16.mxu0 0
  %4071 = vmatpush2.bf16.msra.mxu0 0
  %4072 = vmatprep.subr.bf16.mxu0 0
  %4073 = vmatpush2.bf16.msra.mxu0 0
  %4074 = vmatprep.subr.bf16.mxu0 0
  %4075 = vmatpush2.bf16.msra.mxu0 0
  %4076 = vmatprep.subr.bf16.mxu0 0
  %4077 = vmatpush2.bf16.msra.mxu0 0
  %4078 = vmatprep.subr.bf16.mxu0 0
  %4079 = vmatpush2.bf16.msra.mxu0 0
  %4080 = vmatprep.subr.bf16.mxu0 0
  %4081 = vmatpush2.bf16.msra.mxu0 0
  %4082 = vmatprep.subr.bf16.mxu0 0
  %4083 = vmatpush2.bf16.msra.mxu0 0
  %4084 = vmatprep.mubr.bf16.mxu0 0
  %4085 = vmatmul.mubr.bf16.gmra.mxu0 %v4050
  %v4086 = vpop.f32.mrf.mxu0
  %v4087 = vadd.f32 %v3375, %v4086
  %v4088 = vpop.f32.mrf.mxu0
  %v4089 = vpop.f32.mrf.mxu0
  %v4090 = vpop.f32.mrf.mxu0
  %4091 = vdwg.mxu0
  %v4094 = vunpack.c.l.b16 %v3381
  %v4095 = vunpack.c.l.b16 %v3382
  %v4096 = vpack.c.b16 %v4095, %v4094
  %v4099 = vsel %vm2861, %v3200, 0
  %4101 = vmatprep.subr.bf16.mxu0 0
  %4102 = vmatpush1.bf16.msra.mxu0 0
  %4103 = vmatprep.subr.bf16.mxu0 0
  %4104 = vmatpush1.bf16.msra.mxu0 0
  %4105 = vmatprep.subr.bf16.mxu0 0
  %4106 = vmatpush1.bf16.msra.mxu0 0
  %4107 = vmatprep.subr.bf16.mxu0 0
  %4108 = vmatpush1.bf16.msra.mxu0 0
  %4109 = vmatprep.subr.bf16.mxu0 0
  %4110 = vmatpush1.bf16.msra.mxu0 0
  %4111 = vmatprep.subr.bf16.mxu0 0
  %4112 = vmatpush1.bf16.msra.mxu0 0
  %4113 = vmatprep.subr.bf16.mxu0 0
  %4114 = vmatpush1.bf16.msra.mxu0 0
  %4115 = vmatprep.subr.bf16.mxu0 0
  %4116 = vmatpush1.bf16.msra.mxu0 %v4096
  %4117 = vmatprep.subr.bf16.mxu0 0
  %4118 = vmatpush2.bf16.msra.mxu0 0
  %4119 = vmatprep.subr.bf16.mxu0 0
  %4120 = vmatpush2.bf16.msra.mxu0 0
  %4121 = vmatprep.subr.bf16.mxu0 0
  %4122 = vmatpush2.bf16.msra.mxu0 0
  %4123 = vmatprep.subr.bf16.mxu0 0
  %4124 = vmatpush2.bf16.msra.mxu0 0
  %4125 = vmatprep.subr.bf16.mxu0 0
  %4126 = vmatpush2.bf16.msra.mxu0 0
  %4127 = vmatprep.subr.bf16.mxu0 0
  %4128 = vmatpush2.bf16.msra.mxu0 0
  %4129 = vmatprep.subr.bf16.mxu0 0
  %4130 = vmatpush2.bf16.msra.mxu0 0
  %4131 = vmatprep.subr.bf16.mxu0 0
  %4132 = vmatpush2.bf16.msra.mxu0 0
  %4133 = vmatprep.mubr.bf16.mxu0 0
  %4134 = vmatmul.mubr.bf16.gmra.mxu0 %v4099
  %v4135 = vpop.f32.mrf.mxu0
  %v4136 = vadd.f32 %v3432, %v4135
  %v4137 = vpop.f32.mrf.mxu0
  %v4138 = vpop.f32.mrf.mxu0
  %v4139 = vpop.f32.mrf.mxu0
  %4140 = vdwg.mxu0
  %v4143 = vunpack.c.l.b16 %v3438
  %v4144 = vunpack.c.l.b16 %v3439
  %v4145 = vpack.c.b16 %v4144, %v4143
  %v4148 = vsel %vm2861, %v3201, 0
  %4150 = vmatprep.subr.bf16.mxu0 0
  %4151 = vmatpush1.bf16.msra.mxu0 0
  %4152 = vmatprep.subr.bf16.mxu0 0
  %4153 = vmatpush1.bf16.msra.mxu0 0
  %4154 = vmatprep.subr.bf16.mxu0 0
  %4155 = vmatpush1.bf16.msra.mxu0 0
  %4156 = vmatprep.subr.bf16.mxu0 0
  %4157 = vmatpush1.bf16.msra.mxu0 0
  %4158 = vmatprep.subr.bf16.mxu0 0
  %4159 = vmatpush1.bf16.msra.mxu0 0
  %4160 = vmatprep.subr.bf16.mxu0 0
  %4161 = vmatpush1.bf16.msra.mxu0 0
  %4162 = vmatprep.subr.bf16.mxu0 0
  %4163 = vmatpush1.bf16.msra.mxu0 0
  %4164 = vmatprep.subr.bf16.mxu0 0
  %4165 = vmatpush1.bf16.msra.mxu0 %v4145
  %4166 = vmatprep.subr.bf16.mxu0 0
  %4167 = vmatpush2.bf16.msra.mxu0 0
  %4168 = vmatprep.subr.bf16.mxu0 0
  %4169 = vmatpush2.bf16.msra.mxu0 0
  %4170 = vmatprep.subr.bf16.mxu0 0
  %4171 = vmatpush2.bf16.msra.mxu0 0
  %4172 = vmatprep.subr.bf16.mxu0 0
  %4173 = vmatpush2.bf16.msra.mxu0 0
  %4174 = vmatprep.subr.bf16.mxu0 0
  %4175 = vmatpush2.bf16.msra.mxu0 0
  %4176 = vmatprep.subr.bf16.mxu0 0
  %4177 = vmatpush2.bf16.msra.mxu0 0
  %4178 = vmatprep.subr.bf16.mxu0 0
  %4179 = vmatpush2.bf16.msra.mxu0 0
  %4180 = vmatprep.subr.bf16.mxu0 0
  %4181 = vmatpush2.bf16.msra.mxu0 0
  %4182 = vmatprep.mubr.bf16.mxu0 0
  %4183 = vmatmul.mubr.bf16.gmra.mxu0 %v4148
  %v4184 = vpop.f32.mrf.mxu0
  %v4185 = vadd.f32 %v3489, %v4184
  %v4186 = vpop.f32.mrf.mxu0
  %v4187 = vpop.f32.mrf.mxu0
  %v4188 = vpop.f32.mrf.mxu0
  %4189 = vdwg.mxu0
  %v4192 = vunpack.c.l.b16 %v3495
  %v4193 = vunpack.c.l.b16 %v3496
  %v4194 = vpack.c.b16 %v4193, %v4192
  %v4197 = vsel %vm2861, %v3202, 0
  %4199 = vmatprep.subr.bf16.mxu0 0
  %4200 = vmatpush1.bf16.msra.mxu0 0
  %4201 = vmatprep.subr.bf16.mxu0 0
  %4202 = vmatpush1.bf16.msra.mxu0 0
  %4203 = vmatprep.subr.bf16.mxu0 0
  %4204 = vmatpush1.bf16.msra.mxu0 0
  %4205 = vmatprep.subr.bf16.mxu0 0
  %4206 = vmatpush1.bf16.msra.mxu0 0
  %4207 = vmatprep.subr.bf16.mxu0 0
  %4208 = vmatpush1.bf16.msra.mxu0 0
  %4209 = vmatprep.subr.bf16.mxu0 0
  %4210 = vmatpush1.bf16.msra.mxu0 0
  %4211 = vmatprep.subr.bf16.mxu0 0
  %4212 = vmatpush1.bf16.msra.mxu0 0
  %4213 = vmatprep.subr.bf16.mxu0 0
  %4214 = vmatpush1.bf16.msra.mxu0 %v4194
  %4215 = vmatprep.subr.bf16.mxu0 0
  %4216 = vmatpush2.bf16.msra.mxu0 0
  %4217 = vmatprep.subr.bf16.mxu0 0
  %4218 = vmatpush2.bf16.msra.mxu0 0
  %4219 = vmatprep.subr.bf16.mxu0 0
  %4220 = vmatpush2.bf16.msra.mxu0 0
  %4221 = vmatprep.subr.bf16.mxu0 0
  %4222 = vmatpush2.bf16.msra.mxu0 0
  %4223 = vmatprep.subr.bf16.mxu0 0
  %4224 = vmatpush2.bf16.msra.mxu0 0
  %4225 = vmatprep.subr.bf16.mxu0 0
  %4226 = vmatpush2.bf16.msra.mxu0 0
  %4227 = vmatprep.subr.bf16.mxu0 0
  %4228 = vmatpush2.bf16.msra.mxu0 0
  %4229 = vmatprep.subr.bf16.mxu0 0
  %4230 = vmatpush2.bf16.msra.mxu0 0
  %4231 = vmatprep.mubr.bf16.mxu0 0
  %4232 = vmatmul.mubr.bf16.gmra.mxu0 %v4197
  %v4233 = vpop.f32.mrf.mxu0
  %v4234 = vadd.f32 %v3546, %v4233
  %v4235 = vpop.f32.mrf.mxu0
  %v4236 = vpop.f32.mrf.mxu0
  %v4237 = vpop.f32.mrf.mxu0
  %4238 = vdwg.mxu0
  %v4241 = vunpack.c.l.b16 %v3552
  %v4242 = vunpack.c.l.b16 %v3553
  %v4243 = vpack.c.b16 %v4242, %v4241
  %v4246 = vsel %vm2861, %v3203, 0
  %4248 = vmatprep.subr.bf16.mxu0 0
  %4249 = vmatpush1.bf16.msra.mxu0 0
  %4250 = vmatprep.subr.bf16.mxu0 0
  %4251 = vmatpush1.bf16.msra.mxu0 0
  %4252 = vmatprep.subr.bf16.mxu0 0
  %4253 = vmatpush1.bf16.msra.mxu0 0
  %4254 = vmatprep.subr.bf16.mxu0 0
  %4255 = vmatpush1.bf16.msra.mxu0 0
  %4256 = vmatprep.subr.bf16.mxu0 0
  %4257 = vmatpush1.bf16.msra.mxu0 0
  %4258 = vmatprep.subr.bf16.mxu0 0
  %4259 = vmatpush1.bf16.msra.mxu0 0
  %4260 = vmatprep.subr.bf16.mxu0 0
  %4261 = vmatpush1.bf16.msra.mxu0 0
  %4262 = vmatprep.subr.bf16.mxu0 0
  %4263 = vmatpush1.bf16.msra.mxu0 %v4243
  %4264 = vmatprep.subr.bf16.mxu0 0
  %4265 = vmatpush2.bf16.msra.mxu0 0
  %4266 = vmatprep.subr.bf16.mxu0 0
  %4267 = vmatpush2.bf16.msra.mxu0 0
  %4268 = vmatprep.subr.bf16.mxu0 0
  %4269 = vmatpush2.bf16.msra.mxu0 0
  %4270 = vmatprep.subr.bf16.mxu0 0
  %4271 = vmatpush2.bf16.msra.mxu0 0
  %4272 = vmatprep.subr.bf16.mxu0 0
  %4273 = vmatpush2.bf16.msra.mxu0 0
  %4274 = vmatprep.subr.bf16.mxu0 0
  %4275 = vmatpush2.bf16.msra.mxu0 0
  %4276 = vmatprep.subr.bf16.mxu0 0
  %4277 = vmatpush2.bf16.msra.mxu0 0
  %4278 = vmatprep.subr.bf16.mxu0 0
  %4279 = vmatpush2.bf16.msra.mxu0 0
  %4280 = vmatprep.mubr.bf16.mxu0 0
  %4281 = vmatmul.mubr.bf16.gmra.mxu0 %v4246
  %v4282 = vpop.f32.mrf.mxu0
  %v4283 = vadd.f32 %v3603, %v4282
  %v4284 = vpop.f32.mrf.mxu0
  %v4285 = vpop.f32.mrf.mxu0
  %v4286 = vpop.f32.mrf.mxu0
  %4287 = vdwg.mxu0
  %v4290 = vunpack.c.l.b16 %v3609
  %v4291 = vunpack.c.l.b16 %v3610
  %v4292 = vpack.c.b16 %v4291, %v4290
  %v4295 = vsel %vm2861, %v3204, 0
  %4297 = vmatprep.subr.bf16.mxu0 0
  %4298 = vmatpush1.bf16.msra.mxu0 0
  %4299 = vmatprep.subr.bf16.mxu0 0
  %4300 = vmatpush1.bf16.msra.mxu0 0
  %4301 = vmatprep.subr.bf16.mxu0 0
  %4302 = vmatpush1.bf16.msra.mxu0 0
  %4303 = vmatprep.subr.bf16.mxu0 0
  %4304 = vmatpush1.bf16.msra.mxu0 0
  %4305 = vmatprep.subr.bf16.mxu0 0
  %4306 = vmatpush1.bf16.msra.mxu0 0
  %4307 = vmatprep.subr.bf16.mxu0 0
  %4308 = vmatpush1.bf16.msra.mxu0 0
  %4309 = vmatprep.subr.bf16.mxu0 0
  %4310 = vmatpush1.bf16.msra.mxu0 0
  %4311 = vmatprep.subr.bf16.mxu0 0
  %4312 = vmatpush1.bf16.msra.mxu0 %v4292
  %4313 = vmatprep.subr.bf16.mxu0 0
  %4314 = vmatpush2.bf16.msra.mxu0 0
  %4315 = vmatprep.subr.bf16.mxu0 0
  %4316 = vmatpush2.bf16.msra.mxu0 0
  %4317 = vmatprep.subr.bf16.mxu0 0
  %4318 = vmatpush2.bf16.msra.mxu0 0
  %4319 = vmatprep.subr.bf16.mxu0 0
  %4320 = vmatpush2.bf16.msra.mxu0 0
  %4321 = vmatprep.subr.bf16.mxu0 0
  %4322 = vmatpush2.bf16.msra.mxu0 0
  %4323 = vmatprep.subr.bf16.mxu0 0
  %4324 = vmatpush2.bf16.msra.mxu0 0
  %4325 = vmatprep.subr.bf16.mxu0 0
  %4326 = vmatpush2.bf16.msra.mxu0 0
  %4327 = vmatprep.subr.bf16.mxu0 0
  %4328 = vmatpush2.bf16.msra.mxu0 0
  %4329 = vmatprep.mubr.bf16.mxu0 0
  %4330 = vmatmul.mubr.bf16.gmra.mxu0 %v4295
  %v4331 = vpop.f32.mrf.mxu0
  %v4332 = vadd.f32 %v3660, %v4331
  %v4333 = vpop.f32.mrf.mxu0
  %v4334 = vpop.f32.mrf.mxu0
  %v4335 = vpop.f32.mrf.mxu0
  %4336 = vdwg.mxu0
  %v4339 = vunpack.c.l.b16 %v3666
  %v4340 = vunpack.c.l.b16 %v3667
  %v4341 = vpack.c.b16 %v4340, %v4339
  %v4344 = vsel %vm2861, %v3205, 0
  %4346 = vmatprep.subr.bf16.mxu0 0
  %4347 = vmatpush1.bf16.msra.mxu0 0
  %4348 = vmatprep.subr.bf16.mxu0 0
  %4349 = vmatpush1.bf16.msra.mxu0 0
  %4350 = vmatprep.subr.bf16.mxu0 0
  %4351 = vmatpush1.bf16.msra.mxu0 0
  %4352 = vmatprep.subr.bf16.mxu0 0
  %4353 = vmatpush1.bf16.msra.mxu0 0
  %4354 = vmatprep.subr.bf16.mxu0 0
  %4355 = vmatpush1.bf16.msra.mxu0 0
  %4356 = vmatprep.subr.bf16.mxu0 0
  %4357 = vmatpush1.bf16.msra.mxu0 0
  %4358 = vmatprep.subr.bf16.mxu0 0
  %4359 = vmatpush1.bf16.msra.mxu0 0
  %4360 = vmatprep.subr.bf16.mxu0 0
  %4361 = vmatpush1.bf16.msra.mxu0 %v4341
  %4362 = vmatprep.subr.bf16.mxu0 0
  %4363 = vmatpush2.bf16.msra.mxu0 0
  %4364 = vmatprep.subr.bf16.mxu0 0
  %4365 = vmatpush2.bf16.msra.mxu0 0
  %4366 = vmatprep.subr.bf16.mxu0 0
  %4367 = vmatpush2.bf16.msra.mxu0 0
  %4368 = vmatprep.subr.bf16.mxu0 0
  %4369 = vmatpush2.bf16.msra.mxu0 0
  %4370 = vmatprep.subr.bf16.mxu0 0
  %4371 = vmatpush2.bf16.msra.mxu0 0
  %4372 = vmatprep.subr.bf16.mxu0 0
  %4373 = vmatpush2.bf16.msra.mxu0 0
  %4374 = vmatprep.subr.bf16.mxu0 0
  %4375 = vmatpush2.bf16.msra.mxu0 0
  %4376 = vmatprep.subr.bf16.mxu0 0
  %4377 = vmatpush2.bf16.msra.mxu0 0
  %4378 = vmatprep.mubr.bf16.mxu0 0
  %4379 = vmatmul.mubr.bf16.gmra.mxu0 %v4344
  %v4380 = vpop.f32.mrf.mxu0
  %v4381 = vadd.f32 %v3717, %v4380
  %v4382 = vpop.f32.mrf.mxu0
  %v4383 = vpop.f32.mrf.mxu0
  %v4384 = vpop.f32.mrf.mxu0
  %4385 = vdwg.mxu0
  %v4388 = vunpack.c.l.b16 %v3723
  %v4389 = vunpack.c.l.b16 %v3724
  %v4390 = vpack.c.b16 %v4389, %v4388
  %v4393 = vsel %vm2861, %v3206, 0
  %4395 = vmatprep.subr.bf16.mxu0 0
  %4396 = vmatpush1.bf16.msra.mxu0 0
  %4397 = vmatprep.subr.bf16.mxu0 0
  %4398 = vmatpush1.bf16.msra.mxu0 0
  %4399 = vmatprep.subr.bf16.mxu0 0
  %4400 = vmatpush1.bf16.msra.mxu0 0
  %4401 = vmatprep.subr.bf16.mxu0 0
  %4402 = vmatpush1.bf16.msra.mxu0 0
  %4403 = vmatprep.subr.bf16.mxu0 0
  %4404 = vmatpush1.bf16.msra.mxu0 0
  %4405 = vmatprep.subr.bf16.mxu0 0
  %4406 = vmatpush1.bf16.msra.mxu0 0
  %4407 = vmatprep.subr.bf16.mxu0 0
  %4408 = vmatpush1.bf16.msra.mxu0 0
  %4409 = vmatprep.subr.bf16.mxu0 0
  %4410 = vmatpush1.bf16.msra.mxu0 %v4390
  %4411 = vmatprep.subr.bf16.mxu0 0
  %4412 = vmatpush2.bf16.msra.mxu0 0
  %4413 = vmatprep.subr.bf16.mxu0 0
  %4414 = vmatpush2.bf16.msra.mxu0 0
  %4415 = vmatprep.subr.bf16.mxu0 0
  %4416 = vmatpush2.bf16.msra.mxu0 0
  %4417 = vmatprep.subr.bf16.mxu0 0
  %4418 = vmatpush2.bf16.msra.mxu0 0
  %4419 = vmatprep.subr.bf16.mxu0 0
  %4420 = vmatpush2.bf16.msra.mxu0 0
  %4421 = vmatprep.subr.bf16.mxu0 0
  %4422 = vmatpush2.bf16.msra.mxu0 0
  %4423 = vmatprep.subr.bf16.mxu0 0
  %4424 = vmatpush2.bf16.msra.mxu0 0
  %4425 = vmatprep.subr.bf16.mxu0 0
  %4426 = vmatpush2.bf16.msra.mxu0 0
  %4427 = vmatprep.mubr.bf16.mxu0 0
  %4428 = vmatmul.mubr.bf16.gmra.mxu0 %v4393
  %v4429 = vpop.f32.mrf.mxu0
  %v4430 = vadd.f32 %v3774, %v4429
  %v4431 = vpop.f32.mrf.mxu0
  %v4432 = vpop.f32.mrf.mxu0
  %v4433 = vpop.f32.mrf.mxu0
  %4434 = vdwg.mxu0
  %v4437 = vunpack.c.l.b16 %v3780
  %v4438 = vunpack.c.l.b16 %v3781
  %v4439 = vpack.c.b16 %v4438, %v4437
  %v4442 = vsel %vm2861, %v3207, 0
  %4444 = vmatprep.subr.bf16.mxu0 0
  %4445 = vmatpush1.bf16.msra.mxu0 0
  %4446 = vmatprep.subr.bf16.mxu0 0
  %4447 = vmatpush1.bf16.msra.mxu0 0
  %4448 = vmatprep.subr.bf16.mxu0 0
  %4449 = vmatpush1.bf16.msra.mxu0 0
  %4450 = vmatprep.subr.bf16.mxu0 0
  %4451 = vmatpush1.bf16.msra.mxu0 0
  %4452 = vmatprep.subr.bf16.mxu0 0
  %4453 = vmatpush1.bf16.msra.mxu0 0
  %4454 = vmatprep.subr.bf16.mxu0 0
  %4455 = vmatpush1.bf16.msra.mxu0 0
  %4456 = vmatprep.subr.bf16.mxu0 0
  %4457 = vmatpush1.bf16.msra.mxu0 0
  %4458 = vmatprep.subr.bf16.mxu0 0
  %4459 = vmatpush1.bf16.msra.mxu0 %v4439
  %4460 = vmatprep.subr.bf16.mxu0 0
  %4461 = vmatpush2.bf16.msra.mxu0 0
  %4462 = vmatprep.subr.bf16.mxu0 0
  %4463 = vmatpush2.bf16.msra.mxu0 0
  %4464 = vmatprep.subr.bf16.mxu0 0
  %4465 = vmatpush2.bf16.msra.mxu0 0
  %4466 = vmatprep.subr.bf16.mxu0 0
  %4467 = vmatpush2.bf16.msra.mxu0 0
  %4468 = vmatprep.subr.bf16.mxu0 0
  %4469 = vmatpush2.bf16.msra.mxu0 0
  %4470 = vmatprep.subr.bf16.mxu0 0
  %4471 = vmatpush2.bf16.msra.mxu0 0
  %4472 = vmatprep.subr.bf16.mxu0 0
  %4473 = vmatpush2.bf16.msra.mxu0 0
  %4474 = vmatprep.subr.bf16.mxu0 0
  %4475 = vmatpush2.bf16.msra.mxu0 0
  %4476 = vmatprep.mubr.bf16.mxu0 0
  %4477 = vmatmul.mubr.bf16.gmra.mxu0 %v4442
  %v4478 = vpop.f32.mrf.mxu0
  %v4479 = vadd.f32 %v3831, %v4478
  %v4480 = vpop.f32.mrf.mxu0
  %v4481 = vpop.f32.mrf.mxu0
  %v4482 = vpop.f32.mrf.mxu0
  %4483 = vdwg.mxu0
  %v4486 = vunpack.c.l.b16 %v3837
  %v4487 = vunpack.c.l.b16 %v3838
  %v4488 = vpack.c.b16 %v4487, %v4486
  %v4491 = vsel %vm2861, %v3208, 0
  %4493 = vmatprep.subr.bf16.mxu0 0
  %4494 = vmatpush1.bf16.msra.mxu0 0
  %4495 = vmatprep.subr.bf16.mxu0 0
  %4496 = vmatpush1.bf16.msra.mxu0 0
  %4497 = vmatprep.subr.bf16.mxu0 0
  %4498 = vmatpush1.bf16.msra.mxu0 0
  %4499 = vmatprep.subr.bf16.mxu0 0
  %4500 = vmatpush1.bf16.msra.mxu0 0
  %4501 = vmatprep.subr.bf16.mxu0 0
  %4502 = vmatpush1.bf16.msra.mxu0 0
  %4503 = vmatprep.subr.bf16.mxu0 0
  %4504 = vmatpush1.bf16.msra.mxu0 0
  %4505 = vmatprep.subr.bf16.mxu0 0
  %4506 = vmatpush1.bf16.msra.mxu0 0
  %4507 = vmatprep.subr.bf16.mxu0 0
  %4508 = vmatpush1.bf16.msra.mxu0 %v4488
  %4509 = vmatprep.subr.bf16.mxu0 0
  %4510 = vmatpush2.bf16.msra.mxu0 0
  %4511 = vmatprep.subr.bf16.mxu0 0
  %4512 = vmatpush2.bf16.msra.mxu0 0
  %4513 = vmatprep.subr.bf16.mxu0 0
  %4514 = vmatpush2.bf16.msra.mxu0 0
  %4515 = vmatprep.subr.bf16.mxu0 0
  %4516 = vmatpush2.bf16.msra.mxu0 0
  %4517 = vmatprep.subr.bf16.mxu0 0
  %4518 = vmatpush2.bf16.msra.mxu0 0
  %4519 = vmatprep.subr.bf16.mxu0 0
  %4520 = vmatpush2.bf16.msra.mxu0 0
  %4521 = vmatprep.subr.bf16.mxu0 0
  %4522 = vmatpush2.bf16.msra.mxu0 0
  %4523 = vmatprep.subr.bf16.mxu0 0
  %4524 = vmatpush2.bf16.msra.mxu0 0
  %4525 = vmatprep.mubr.bf16.mxu0 0
  %4526 = vmatmul.mubr.bf16.gmra.mxu0 %v4491
  %v4527 = vpop.f32.mrf.mxu0
  %v4528 = vadd.f32 %v3888, %v4527
  %v4529 = vpop.f32.mrf.mxu0
  %v4530 = vpop.f32.mrf.mxu0
  %v4531 = vpop.f32.mrf.mxu0
  %4532 = vdwg.mxu0
  %v4533 = vadd.f32 %v3989, %v4038
  %v4534 = vadd.f32 %v4087, %v4136
  %v4535 = vadd.f32 %v4185, %v4234
  %v4536 = vadd.f32 %v4283, %v4332
  %v4537 = vadd.f32 %v4381, %v4430
  %v4538 = vadd.f32 %v4479, %v4528
  %v4539 = vadd.f32 %v4533, %v4534
  %v4540 = vadd.f32 %v4535, %v4536
  %v4541 = vadd.f32 %v4537, %v4538
  %v4542 = vadd.f32 %v4539, %v4540
  %v4543 = vadd.f32 %v4541, %v3940
  %v4544 = vadd.f32 %v4542, %v4543
  %v4545 = vsel %vm3021, %v4544, 0.0
  %v4546 = vrot.slane %v4545, 4
  %v4547 = vadd.f32 %v4545, %v4546
  %v4548 = vrot.slane %v4547, 2
  %v4549 = vadd.f32 %v4547, %v4548
  %v4550 = vrot.slane %v4549, 1
  %v4551 = vadd.f32 %v4549, %v4550
  %v4552 = vmul.f32 %v4551, 0.125
  %v4553 = vmul.f32 %v4544, %v4544
  %v4554 = vsel %vm3021, %v4553, 0.0
  %v4555 = vrot.slane %v4554, 4
  %v4556 = vadd.f32 %v4554, %v4555
  %v4557 = vrot.slane %v4556, 2
  %v4558 = vadd.f32 %v4556, %v4557
  %v4559 = vrot.slane %v4558, 1
  %v4560 = vadd.f32 %v4558, %v4559
  %v4561 = vmul.f32 %v4560, 0.125
  %v4562 = vmul.f32 %v4552, %v4552
  %v4563 = vsub.f32 %v4561, %v4562
  %v4564 = vld [vmem:[%s8 + $0x4] sm:$0x1]
  %v4565 = vld [vmem:[%s8 + $0x5] sm:$0x1]
  %v4566 = vadd.f32 %v4563, 1e-05
  %v4567 = vrsqrt.pop %v4566
  %v4568 = vmul.f32 %v4564, %v4567
  %v4569 = vlaneseq
  %v4570 = vshrl.u32 %v4569, 7
  %v4571 = vsub.s32 0, %v4570
  %v4572 = vrot.slane %v4568, %v4571
  %v4573 = vmul.f32 %v4544, %v4572
  %v4574 = vmul.f32 %v4552, %v4568
  %v4575 = vsub.f32 %v4565, %v4574
  %v4576 = vlaneseq
  %v4577 = vshrl.u32 %v4576, 7
  %v4578 = vsub.s32 0, %v4577
  %v4579 = vrot.slane %v4575, %v4578
  %v4580 = vadd.f32 %v4573, %v4579
  %vm4581 = vcmp.gt.f32.partialorder %v4580, 0.0
  %v4582 = vmul.f32 %v4580, 0.01
  %v4583 = vsel %vm4581, %v4580, %v4582
  %v4584 = vpack.c.bf16 %v4583, %v4583
  %v4585 = vld [vmem:[%s6] sm:$0xf]
  %v4586 = vld [vmem:[%s6 + $0x4] sm:$0xf]
  %v4587 = vld [vmem:[%s6 + $0x8] sm:$0xf]
  %v4588 = vld [vmem:[%s6 + $0xc] sm:$0xf]
  %v4589 = vld [vmem:[%s6 + $0x10] sm:$0xf]
  %v4590 = vld [vmem:[%s6 + $0x14] sm:$0xf]
  %v4591 = vld [vmem:[%s6 + $0x18] sm:$0xf]
  %v4592 = vld [vmem:[%s6 + $0x1c] sm:$0xf]
  %v4593 = vld [vmem:[%s6 + $0x20] sm:$0xf]
  %v4594 = vld [vmem:[%s6 + $0x24] sm:$0xf]
  %v4595 = vld [vmem:[%s6 + $0x28] sm:$0xf]
  %v4596 = vld [vmem:[%s6 + $0x2c] sm:$0xf]
  %v4597 = vld [vmem:[%s6 + $0x30] sm:$0xf]
  %v4598 = vld [vmem:[%s6 + $0x34] sm:$0xf]
  %v4599 = vld [vmem:[%s6 + $0x38] sm:$0xf]
  %v4600 = vld [vmem:[%s6 + $0x3c] sm:$0xf]
  %v4601 = vld [vmem:[%s6 + $0x40] sm:$0xf]
  %v4602 = vld [vmem:[%s6 + $0x44] sm:$0xf]
  %v4603 = vld [vmem:[%s6 + $0x48] sm:$0xf]
  %v4604 = vld [vmem:[%s6 + $0x4c] sm:$0xf]
  %v4605 = vld [vmem:[%s6 + $0x50] sm:$0xf]
  %v4606 = vld [vmem:[%s6 + $0x54] sm:$0xf]
  %v4607 = vld [vmem:[%s6 + $0x58] sm:$0xf]
  %v4608 = vld [vmem:[%s6 + $0x5c] sm:$0xf]
  %v4609 = vld [vmem:[%s6 + $0x60] sm:$0xf]
  %v4635 = vunpack.c.l.b16 %v4585
  %v4636 = vunpack.c.l.b16 %v4586
  %v4637 = vunpack.c.l.b16 %v4587
  %v4638 = vunpack.c.l.b16 %v4588
  %v4639 = vunpack.c.l.b16 %v4589
  %v4640 = vunpack.c.l.b16 %v4590
  %v4641 = vunpack.c.l.b16 %v4591
  %v4642 = vunpack.c.l.b16 %v4592
  %v4643 = vunpack.c.l.b16 %v4593
  %v4644 = vunpack.c.l.b16 %v4594
  %v4645 = vunpack.c.l.b16 %v4595
  %v4646 = vunpack.c.l.b16 %v4596
  %v4647 = vunpack.c.l.b16 %v4597
  %v4648 = vunpack.c.l.b16 %v4598
  %v4649 = vunpack.c.l.b16 %v4599
  %v4650 = vunpack.c.l.b16 %v4600
  %v4651 = vunpack.c.l.b16 %v4601
  %v4652 = vunpack.c.l.b16 %v4602
  %v4653 = vunpack.c.l.b16 %v4603
  %v4654 = vunpack.c.l.b16 %v4604
  %v4655 = vunpack.c.l.b16 %v4605
  %v4656 = vunpack.c.l.b16 %v4606
  %v4657 = vunpack.c.l.b16 %v4607
  %v4658 = vunpack.c.l.b16 %v4608
  %v4659 = vunpack.c.l.b16 %v4609
  %v4660 = vpack.c.b16 %v4636, %v4635
  %v4661 = vpack.c.b16 %v4638, %v4637
  %v4662 = vpack.c.b16 %v4640, %v4639
  %v4663 = vpack.c.b16 %v4642, %v4641
  %v4664 = vpack.c.b16 %v4644, %v4643
  %v4665 = vpack.c.b16 %v4646, %v4645
  %v4666 = vpack.c.b16 %v4648, %v4647
  %v4667 = vpack.c.b16 %v4650, %v4649
  %v4668 = vpack.c.b16 %v4652, %v4651
  %v4669 = vpack.c.b16 %v4654, %v4653
  %v4670 = vpack.c.b16 %v4656, %v4655
  %v4671 = vpack.c.b16 %v4658, %v4657
  %v4672 = vpack.c.b16 %v4659, %v4659
  %v4674 = vsel %vm233, %v4660, 0
  %v4677 = vsel %vm233, %v4661, 0
  %v4680 = vsel %vm233, %v4662, 0
  %v4683 = vsel %vm233, %v4663, 0
  %v4686 = vsel %vm233, %v4664, 0
  %v4689 = vsel %vm233, %v4665, 0
  %v4692 = vsel %vm233, %v4666, 0
  %v4695 = vsel %vm233, %v4667, 0
  %v4698 = vsel %vm233, %v4668, 0
  %v4701 = vsel %vm233, %v4669, 0
  %v4704 = vsel %vm233, %v4670, 0
  %v4707 = vsel %vm233, %v4671, 0
  %v4710 = vsel %vm233, %v4672, 0
  %v4713 = vsel %vm129, %v4584, 0
  %4715 = vmatprep.subr.bf16.mxu0 0
  %4716 = vmatpush1.bf16.msra.mxu0 0
  %4717 = vmatprep.subr.bf16.mxu0 0
  %4718 = vmatpush1.bf16.msra.mxu0 0
  %4719 = vmatprep.subr.bf16.mxu0 0
  %4720 = vmatpush1.bf16.msra.mxu0 0
  %4721 = vmatprep.subr.bf16.mxu0 0
  %4722 = vmatpush1.bf16.msra.mxu0 0
  %4723 = vmatprep.subr.bf16.mxu0 0
  %4724 = vmatpush1.bf16.msra.mxu0 0
  %4725 = vmatprep.subr.bf16.mxu0 0
  %4726 = vmatpush1.bf16.msra.mxu0 0
  %4727 = vmatprep.subr.bf16.mxu0 0
  %4728 = vmatpush1.bf16.msra.mxu0 0
  %4729 = vmatprep.subr.bf16.mxu0 0
  %4730 = vmatpush1.bf16.msra.mxu0 %v4713
  %4731 = vmatprep.subr.bf16.mxu0 0
  %4732 = vmatpush2.bf16.msra.mxu0 0
  %4733 = vmatprep.subr.bf16.mxu0 0
  %4734 = vmatpush2.bf16.msra.mxu0 0
  %4735 = vmatprep.subr.bf16.mxu0 0
  %4736 = vmatpush2.bf16.msra.mxu0 0
  %4737 = vmatprep.subr.bf16.mxu0 0
  %4738 = vmatpush2.bf16.msra.mxu0 0
  %4739 = vmatprep.subr.bf16.mxu0 0
  %4740 = vmatpush2.bf16.msra.mxu0 0
  %4741 = vmatprep.subr.bf16.mxu0 0
  %4742 = vmatpush2.bf16.msra.mxu0 0
  %4743 = vmatprep.subr.bf16.mxu0 0
  %4744 = vmatpush2.bf16.msra.mxu0 0
  %4745 = vmatprep.subr.bf16.mxu0 0
  %4746 = vmatpush2.bf16.msra.mxu0 0
  %4747 = vmatprep.mubr.bf16.mxu0 0
  %4748 = vmatmul.mubr.bf16.gmra.mxu0 %v4674
  %v4749 = vpop.f32.mrf.mxu0
  %v4750 = vadd.f32 0.0, %v4749
  %v4751 = vpop.f32.mrf.mxu0
  %v4752 = vpop.f32.mrf.mxu0
  %v4753 = vadd.f32 0.0, %v4752
  %v4754 = vpop.f32.mrf.mxu0
  %4755 = vmatprep.mubr.bf16.mxu0 0
  %4756 = vmatmul.mubr.bf16.gmra.mxu0 %v4677
  %v4757 = vpop.f32.mrf.mxu0
  %v4758 = vadd.f32 0.0, %v4757
  %v4759 = vpop.f32.mrf.mxu0
  %v4760 = vpop.f32.mrf.mxu0
  %v4761 = vadd.f32 0.0, %v4760
  %v4762 = vpop.f32.mrf.mxu0
  %4763 = vmatprep.mubr.bf16.mxu0 0
  %4764 = vmatmul.mubr.bf16.gmra.mxu0 %v4680
  %v4765 = vpop.f32.mrf.mxu0
  %v4766 = vadd.f32 0.0, %v4765
  %v4767 = vpop.f32.mrf.mxu0
  %v4768 = vpop.f32.mrf.mxu0
  %v4769 = vadd.f32 0.0, %v4768
  %v4770 = vpop.f32.mrf.mxu0
  %4771 = vmatprep.mubr.bf16.mxu0 0
  %4772 = vmatmul.mubr.bf16.gmra.mxu0 %v4683
  %v4773 = vpop.f32.mrf.mxu0
  %v4774 = vadd.f32 0.0, %v4773
  %v4775 = vpop.f32.mrf.mxu0
  %v4776 = vpop.f32.mrf.mxu0
  %v4777 = vadd.f32 0.0, %v4776
  %v4778 = vpop.f32.mrf.mxu0
  %4779 = vmatprep.mubr.bf16.mxu0 0
  %4780 = vmatmul.mubr.bf16.gmra.mxu0 %v4686
  %v4781 = vpop.f32.mrf.mxu0
  %v4782 = vadd.f32 0.0, %v4781
  %v4783 = vpop.f32.mrf.mxu0
  %v4784 = vpop.f32.mrf.mxu0
  %v4785 = vadd.f32 0.0, %v4784
  %v4786 = vpop.f32.mrf.mxu0
  %4787 = vmatprep.mubr.bf16.mxu0 0
  %4788 = vmatmul.mubr.bf16.gmra.mxu0 %v4689
  %v4789 = vpop.f32.mrf.mxu0
  %v4790 = vadd.f32 0.0, %v4789
  %v4791 = vpop.f32.mrf.mxu0
  %v4792 = vpop.f32.mrf.mxu0
  %v4793 = vadd.f32 0.0, %v4792
  %v4794 = vpop.f32.mrf.mxu0
  %4795 = vmatprep.mubr.bf16.mxu0 0
  %4796 = vmatmul.mubr.bf16.gmra.mxu0 %v4692
  %v4797 = vpop.f32.mrf.mxu0
  %v4798 = vadd.f32 0.0, %v4797
  %v4799 = vpop.f32.mrf.mxu0
  %v4800 = vpop.f32.mrf.mxu0
  %v4801 = vadd.f32 0.0, %v4800
  %v4802 = vpop.f32.mrf.mxu0
  %4803 = vmatprep.mubr.bf16.mxu0 0
  %4804 = vmatmul.mubr.bf16.gmra.mxu0 %v4695
  %v4805 = vpop.f32.mrf.mxu0
  %v4806 = vadd.f32 0.0, %v4805
  %v4807 = vpop.f32.mrf.mxu0
  %v4808 = vpop.f32.mrf.mxu0
  %v4809 = vadd.f32 0.0, %v4808
  %v4810 = vpop.f32.mrf.mxu0
  %4811 = vmatprep.mubr.bf16.mxu0 0
  %4812 = vmatmul.mubr.bf16.gmra.mxu0 %v4698
  %v4813 = vpop.f32.mrf.mxu0
  %v4814 = vadd.f32 0.0, %v4813
  %v4815 = vpop.f32.mrf.mxu0
  %v4816 = vpop.f32.mrf.mxu0
  %v4817 = vadd.f32 0.0, %v4816
  %v4818 = vpop.f32.mrf.mxu0
  %4819 = vmatprep.mubr.bf16.mxu0 0
  %4820 = vmatmul.mubr.bf16.gmra.mxu0 %v4701
  %v4821 = vpop.f32.mrf.mxu0
  %v4822 = vadd.f32 0.0, %v4821
  %v4823 = vpop.f32.mrf.mxu0
  %v4824 = vpop.f32.mrf.mxu0
  %v4825 = vadd.f32 0.0, %v4824
  %v4826 = vpop.f32.mrf.mxu0
  %4827 = vmatprep.mubr.bf16.mxu0 0
  %4828 = vmatmul.mubr.bf16.gmra.mxu0 %v4704
  %v4829 = vpop.f32.mrf.mxu0
  %v4830 = vadd.f32 0.0, %v4829
  %v4831 = vpop.f32.mrf.mxu0
  %v4832 = vpop.f32.mrf.mxu0
  %v4833 = vadd.f32 0.0, %v4832
  %v4834 = vpop.f32.mrf.mxu0
  %4835 = vmatprep.mubr.bf16.mxu0 0
  %4836 = vmatmul.mubr.bf16.gmra.mxu0 %v4707
  %v4837 = vpop.f32.mrf.mxu0
  %v4838 = vadd.f32 0.0, %v4837
  %v4839 = vpop.f32.mrf.mxu0
  %v4840 = vpop.f32.mrf.mxu0
  %v4841 = vadd.f32 0.0, %v4840
  %v4842 = vpop.f32.mrf.mxu0
  %4843 = vmatprep.mubr.bf16.mxu0 0
  %4844 = vmatmul.mubr.bf16.gmra.mxu0 %v4710
  %v4845 = vpop.f32.mrf.mxu0
  %v4846 = vadd.f32 0.0, %v4845
  %v4847 = vpop.f32.mrf.mxu0
  %v4848 = vpop.f32.mrf.mxu0
  %v4849 = vpop.f32.mrf.mxu0
  %4850 = vdwg.mxu0
  %v4851 = vpack.c.bf16 %v4753, %v4750
  %v4852 = vpack.c.bf16 %v4761, %v4758
  %v4853 = vpack.c.bf16 %v4769, %v4766
  %v4854 = vpack.c.bf16 %v4777, %v4774
  %v4855 = vpack.c.bf16 %v4785, %v4782
  %v4856 = vpack.c.bf16 %v4793, %v4790
  %v4857 = vpack.c.bf16 %v4801, %v4798
  %v4858 = vpack.c.bf16 %v4809, %v4806
  %v4859 = vpack.c.bf16 %v4817, %v4814
  %v4860 = vpack.c.bf16 %v4825, %v4822
  %v4861 = vpack.c.bf16 %v4833, %v4830
  %v4862 = vpack.c.bf16 %v4841, %v4838
  %v4863 = vpack.c.bf16 %v4846, %v4846
  %v4864 = vld [vmem:[%s7] sm:$0xf]
  %v4865 = vld [vmem:[%s7 + $0x4] sm:$0xf]
  %v4866 = vld [vmem:[%s7 + $0x8] sm:$0xf]
  %v4867 = vld [vmem:[%s7 + $0xc] sm:$0xf]
  %s4868 = scalar_lea.vmem %s7, 16
  %v4869 = vld [vmem:[%s4868] sm:$0xf]
  %v4870 = vld [vmem:[%s4868 + $0x4] sm:$0xf]
  %v4871 = vld [vmem:[%s4868 + $0x8] sm:$0xf]
  %v4872 = vld [vmem:[%s4868 + $0xc] sm:$0xf]
  %v4874 = vrot.slane %v4851, 4
  %v4879 = vunpack.c.l.b16 %v4869
  %v4880 = vunpack.c.l.b16 %v4870
  %v4881 = vunpack.c.l.b16 %v4871
  %v4882 = vunpack.c.l.b16 %v4872
  %v4883 = vpack.c.b16 %v4880, %v4879
  %v4884 = vpack.c.b16 %v4882, %v4881
  %v4888 = vsel %vm3021, %v4874, 0
  %4890 = vmatprep.subr.bf16.mxu0 0
  %4891 = vmatpush1.bf16.msra.mxu0 0
  %4892 = vmatprep.subr.bf16.mxu0 0
  %4893 = vmatpush1.bf16.msra.mxu0 0
  %4894 = vmatprep.subr.bf16.mxu0 0
  %4895 = vmatpush1.bf16.msra.mxu0 0
  %4896 = vmatprep.subr.bf16.mxu0 0
  %4897 = vmatpush1.bf16.msra.mxu0 0
  %4898 = vmatprep.subr.bf16.mxu0 0
  %4899 = vmatpush1.bf16.msra.mxu0 0
  %4900 = vmatprep.subr.bf16.mxu0 0
  %4901 = vmatpush1.bf16.msra.mxu0 0
  %4902 = vmatprep.subr.bf16.mxu0 0
  %4903 = vmatpush1.bf16.msra.mxu0 %v4884
  %4904 = vmatprep.subr.bf16.mxu0 0
  %4905 = vmatpush1.bf16.msra.mxu0 %v4883
  %4906 = vmatprep.subr.bf16.mxu0 0
  %4907 = vmatpush2.bf16.msra.mxu0 0
  %4908 = vmatprep.subr.bf16.mxu0 0
  %4909 = vmatpush2.bf16.msra.mxu0 0
  %4910 = vmatprep.subr.bf16.mxu0 0
  %4911 = vmatpush2.bf16.msra.mxu0 0
  %4912 = vmatprep.subr.bf16.mxu0 0
  %4913 = vmatpush2.bf16.msra.mxu0 0
  %4914 = vmatprep.subr.bf16.mxu0 0
  %4915 = vmatpush2.bf16.msra.mxu0 0
  %4916 = vmatprep.subr.bf16.mxu0 0
  %4917 = vmatpush2.bf16.msra.mxu0 0
  %4918 = vmatprep.subr.bf16.mxu0 0
  %4919 = vmatpush2.bf16.msra.mxu0 0
  %4920 = vmatprep.subr.bf16.mxu0 0
  %4921 = vmatpush2.bf16.msra.mxu0 0
  %4922 = vmatprep.mubr.bf16.mxu0 0
  %4923 = vmatmul.mubr.bf16.gmra.mxu0 %v4888
  %v4924 = vpop.f32.mrf.mxu0
  %v4925 = vadd.f32 0.0, %v4924
  %v4926 = vpop.f32.mrf.mxu0
  %v4927 = vpop.f32.mrf.mxu0
  %v4928 = vpop.f32.mrf.mxu0
  %4929 = vdwg.mxu0
  %s4930 = scalar_lea.vmem %s7, 32
  %v4931 = vld [vmem:[%s4930] sm:$0xf]
  %v4932 = vld [vmem:[%s4930 + $0x4] sm:$0xf]
  %v4933 = vld [vmem:[%s4930 + $0x8] sm:$0xf]
  %v4934 = vld [vmem:[%s4930 + $0xc] sm:$0xf]
  %s4935 = scalar_lea.vmem %s7, 48
  %v4936 = vld [vmem:[%s4935] sm:$0xf]
  %v4937 = vld [vmem:[%s4935 + $0x4] sm:$0xf]
  %v4938 = vld [vmem:[%s4935 + $0x8] sm:$0xf]
  %v4939 = vld [vmem:[%s4935 + $0xc] sm:$0xf]
  %v4941 = vrot.slane %v4852, 4
  %v4946 = vunpack.c.l.b16 %v4936
  %v4947 = vunpack.c.l.b16 %v4937
  %v4948 = vunpack.c.l.b16 %v4938
  %v4949 = vunpack.c.l.b16 %v4939
  %v4950 = vpack.c.b16 %v4947, %v4946
  %v4951 = vpack.c.b16 %v4949, %v4948
  %v4955 = vsel %vm3021, %v4941, 0
  %4957 = vmatprep.subr.bf16.mxu0 0
  %4958 = vmatpush1.bf16.msra.mxu0 0
  %4959 = vmatprep.subr.bf16.mxu0 0
  %4960 = vmatpush1.bf16.msra.mxu0 0
  %4961 = vmatprep.subr.bf16.mxu0 0
  %4962 = vmatpush1.bf16.msra.mxu0 0
  %4963 = vmatprep.subr.bf16.mxu0 0
  %4964 = vmatpush1.bf16.msra.mxu0 0
  %4965 = vmatprep.subr.bf16.mxu0 0
  %4966 = vmatpush1.bf16.msra.mxu0 0
  %4967 = vmatprep.subr.bf16.mxu0 0
  %4968 = vmatpush1.bf16.msra.mxu0 0
  %4969 = vmatprep.subr.bf16.mxu0 0
  %4970 = vmatpush1.bf16.msra.mxu0 %v4951
  %4971 = vmatprep.subr.bf16.mxu0 0
  %4972 = vmatpush1.bf16.msra.mxu0 %v4950
  %4973 = vmatprep.subr.bf16.mxu0 0
  %4974 = vmatpush2.bf16.msra.mxu0 0
  %4975 = vmatprep.subr.bf16.mxu0 0
  %4976 = vmatpush2.bf16.msra.mxu0 0
  %4977 = vmatprep.subr.bf16.mxu0 0
  %4978 = vmatpush2.bf16.msra.mxu0 0
  %4979 = vmatprep.subr.bf16.mxu0 0
  %4980 = vmatpush2.bf16.msra.mxu0 0
  %4981 = vmatprep.subr.bf16.mxu0 0
  %4982 = vmatpush2.bf16.msra.mxu0 0
  %4983 = vmatprep.subr.bf16.mxu0 0
  %4984 = vmatpush2.bf16.msra.mxu0 0
  %4985 = vmatprep.subr.bf16.mxu0 0
  %4986 = vmatpush2.bf16.msra.mxu0 0
  %4987 = vmatprep.subr.bf16.mxu0 0
  %4988 = vmatpush2.bf16.msra.mxu0 0
  %4989 = vmatprep.mubr.bf16.mxu0 0
  %4990 = vmatmul.mubr.bf16.gmra.mxu0 %v4955
  %v4991 = vpop.f32.mrf.mxu0
  %v4992 = vadd.f32 0.0, %v4991
  %v4993 = vpop.f32.mrf.mxu0
  %v4994 = vpop.f32.mrf.mxu0
  %v4995 = vpop.f32.mrf.mxu0
  %4996 = vdwg.mxu0
  %s4997 = scalar_lea.vmem %s7, 64
  %v4998 = vld [vmem:[%s4997] sm:$0xf]
  %v4999 = vld [vmem:[%s4997 + $0x4] sm:$0xf]
  %v5000 = vld [vmem:[%s4997 + $0x8] sm:$0xf]
  %v5001 = vld [vmem:[%s4997 + $0xc] sm:$0xf]
  %s5002 = scalar_lea.vmem %s7, 80
  %v5003 = vld [vmem:[%s5002] sm:$0xf]
  %v5004 = vld [vmem:[%s5002 + $0x4] sm:$0xf]
  %v5005 = vld [vmem:[%s5002 + $0x8] sm:$0xf]
  %v5006 = vld [vmem:[%s5002 + $0xc] sm:$0xf]
  %v5008 = vrot.slane %v4853, 4
  %v5013 = vunpack.c.l.b16 %v5003
  %v5014 = vunpack.c.l.b16 %v5004
  %v5015 = vunpack.c.l.b16 %v5005
  %v5016 = vunpack.c.l.b16 %v5006
  %v5017 = vpack.c.b16 %v5014, %v5013
  %v5018 = vpack.c.b16 %v5016, %v5015
  %v5022 = vsel %vm3021, %v5008, 0
  %5024 = vmatprep.subr.bf16.mxu0 0
  %5025 = vmatpush1.bf16.msra.mxu0 0
  %5026 = vmatprep.subr.bf16.mxu0 0
  %5027 = vmatpush1.bf16.msra.mxu0 0
  %5028 = vmatprep.subr.bf16.mxu0 0
  %5029 = vmatpush1.bf16.msra.mxu0 0
  %5030 = vmatprep.subr.bf16.mxu0 0
  %5031 = vmatpush1.bf16.msra.mxu0 0
  %5032 = vmatprep.subr.bf16.mxu0 0
  %5033 = vmatpush1.bf16.msra.mxu0 0
  %5034 = vmatprep.subr.bf16.mxu0 0
  %5035 = vmatpush1.bf16.msra.mxu0 0
  %5036 = vmatprep.subr.bf16.mxu0 0
  %5037 = vmatpush1.bf16.msra.mxu0 %v5018
  %5038 = vmatprep.subr.bf16.mxu0 0
  %5039 = vmatpush1.bf16.msra.mxu0 %v5017
  %5040 = vmatprep.subr.bf16.mxu0 0
  %5041 = vmatpush2.bf16.msra.mxu0 0
  %5042 = vmatprep.subr.bf16.mxu0 0
  %5043 = vmatpush2.bf16.msra.mxu0 0
  %5044 = vmatprep.subr.bf16.mxu0 0
  %5045 = vmatpush2.bf16.msra.mxu0 0
  %5046 = vmatprep.subr.bf16.mxu0 0
  %5047 = vmatpush2.bf16.msra.mxu0 0
  %5048 = vmatprep.subr.bf16.mxu0 0
  %5049 = vmatpush2.bf16.msra.mxu0 0
  %5050 = vmatprep.subr.bf16.mxu0 0
  %5051 = vmatpush2.bf16.msra.mxu0 0
  %5052 = vmatprep.subr.bf16.mxu0 0
  %5053 = vmatpush2.bf16.msra.mxu0 0
  %5054 = vmatprep.subr.bf16.mxu0 0
  %5055 = vmatpush2.bf16.msra.mxu0 0
  %5056 = vmatprep.mubr.bf16.mxu0 0
  %5057 = vmatmul.mubr.bf16.gmra.mxu0 %v5022
  %v5058 = vpop.f32.mrf.mxu0
  %v5059 = vadd.f32 0.0, %v5058
  %v5060 = vpop.f32.mrf.mxu0
  %v5061 = vpop.f32.mrf.mxu0
  %v5062 = vpop.f32.mrf.mxu0
  %5063 = vdwg.mxu0
  %s5064 = scalar_lea.vmem %s7, 96
  %v5065 = vld [vmem:[%s5064] sm:$0xf]
  %v5066 = vld [vmem:[%s5064 + $0x4] sm:$0xf]
  %v5067 = vld [vmem:[%s5064 + $0x8] sm:$0xf]
  %v5068 = vld [vmem:[%s5064 + $0xc] sm:$0xf]
  %s5069 = scalar_lea.vmem %s7, 112
  %v5070 = vld [vmem:[%s5069] sm:$0xf]
  %v5071 = vld [vmem:[%s5069 + $0x4] sm:$0xf]
  %v5072 = vld [vmem:[%s5069 + $0x8] sm:$0xf]
  %v5073 = vld [vmem:[%s5069 + $0xc] sm:$0xf]
  %v5075 = vrot.slane %v4854, 4
  %v5080 = vunpack.c.l.b16 %v5070
  %v5081 = vunpack.c.l.b16 %v5071
  %v5082 = vunpack.c.l.b16 %v5072
  %v5083 = vunpack.c.l.b16 %v5073
  %v5084 = vpack.c.b16 %v5081, %v5080
  %v5085 = vpack.c.b16 %v5083, %v5082
  %v5089 = vsel %vm3021, %v5075, 0
  %5091 = vmatprep.subr.bf16.mxu0 0
  %5092 = vmatpush1.bf16.msra.mxu0 0
  %5093 = vmatprep.subr.bf16.mxu0 0
  %5094 = vmatpush1.bf16.msra.mxu0 0
  %5095 = vmatprep.subr.bf16.mxu0 0
  %5096 = vmatpush1.bf16.msra.mxu0 0
  %5097 = vmatprep.subr.bf16.mxu0 0
  %5098 = vmatpush1.bf16.msra.mxu0 0
  %5099 = vmatprep.subr.bf16.mxu0 0
  %5100 = vmatpush1.bf16.msra.mxu0 0
  %5101 = vmatprep.subr.bf16.mxu0 0
  %5102 = vmatpush1.bf16.msra.mxu0 0
  %5103 = vmatprep.subr.bf16.mxu0 0
  %5104 = vmatpush1.bf16.msra.mxu0 %v5085
  %5105 = vmatprep.subr.bf16.mxu0 0
  %5106 = vmatpush1.bf16.msra.mxu0 %v5084
  %5107 = vmatprep.subr.bf16.mxu0 0
  %5108 = vmatpush2.bf16.msra.mxu0 0
  %5109 = vmatprep.subr.bf16.mxu0 0
  %5110 = vmatpush2.bf16.msra.mxu0 0
  %5111 = vmatprep.subr.bf16.mxu0 0
  %5112 = vmatpush2.bf16.msra.mxu0 0
  %5113 = vmatprep.subr.bf16.mxu0 0
  %5114 = vmatpush2.bf16.msra.mxu0 0
  %5115 = vmatprep.subr.bf16.mxu0 0
  %5116 = vmatpush2.bf16.msra.mxu0 0
  %5117 = vmatprep.subr.bf16.mxu0 0
  %5118 = vmatpush2.bf16.msra.mxu0 0
  %5119 = vmatprep.subr.bf16.mxu0 0
  %5120 = vmatpush2.bf16.msra.mxu0 0
  %5121 = vmatprep.subr.bf16.mxu0 0
  %5122 = vmatpush2.bf16.msra.mxu0 0
  %5123 = vmatprep.mubr.bf16.mxu0 0
  %5124 = vmatmul.mubr.bf16.gmra.mxu0 %v5089
  %v5125 = vpop.f32.mrf.mxu0
  %v5126 = vadd.f32 0.0, %v5125
  %v5127 = vpop.f32.mrf.mxu0
  %v5128 = vpop.f32.mrf.mxu0
  %v5129 = vpop.f32.mrf.mxu0
  %5130 = vdwg.mxu0
  %s5131 = scalar_lea.vmem %s7, 128
  %v5132 = vld [vmem:[%s5131] sm:$0xf]
  %v5133 = vld [vmem:[%s5131 + $0x4] sm:$0xf]
  %v5134 = vld [vmem:[%s5131 + $0x8] sm:$0xf]
  %v5135 = vld [vmem:[%s5131 + $0xc] sm:$0xf]
  %s5136 = scalar_lea.vmem %s7, 144
  %v5137 = vld [vmem:[%s5136] sm:$0xf]
  %v5138 = vld [vmem:[%s5136 + $0x4] sm:$0xf]
  %v5139 = vld [vmem:[%s5136 + $0x8] sm:$0xf]
  %v5140 = vld [vmem:[%s5136 + $0xc] sm:$0xf]
  %v5142 = vrot.slane %v4855, 4
  %v5147 = vunpack.c.l.b16 %v5137
  %v5148 = vunpack.c.l.b16 %v5138
  %v5149 = vunpack.c.l.b16 %v5139
  %v5150 = vunpack.c.l.b16 %v5140
  %v5151 = vpack.c.b16 %v5148, %v5147
  %v5152 = vpack.c.b16 %v5150, %v5149
  %v5156 = vsel %vm3021, %v5142, 0
  %5158 = vmatprep.subr.bf16.mxu0 0
  %5159 = vmatpush1.bf16.msra.mxu0 0
  %5160 = vmatprep.subr.bf16.mxu0 0
  %5161 = vmatpush1.bf16.msra.mxu0 0
  %5162 = vmatprep.subr.bf16.mxu0 0
  %5163 = vmatpush1.bf16.msra.mxu0 0
  %5164 = vmatprep.subr.bf16.mxu0 0
  %5165 = vmatpush1.bf16.msra.mxu0 0
  %5166 = vmatprep.subr.bf16.mxu0 0
  %5167 = vmatpush1.bf16.msra.mxu0 0
  %5168 = vmatprep.subr.bf16.mxu0 0
  %5169 = vmatpush1.bf16.msra.mxu0 0
  %5170 = vmatprep.subr.bf16.mxu0 0
  %5171 = vmatpush1.bf16.msra.mxu0 %v5152
  %5172 = vmatprep.subr.bf16.mxu0 0
  %5173 = vmatpush1.bf16.msra.mxu0 %v5151
  %5174 = vmatprep.subr.bf16.mxu0 0
  %5175 = vmatpush2.bf16.msra.mxu0 0
  %5176 = vmatprep.subr.bf16.mxu0 0
  %5177 = vmatpush2.bf16.msra.mxu0 0
  %5178 = vmatprep.subr.bf16.mxu0 0
  %5179 = vmatpush2.bf16.msra.mxu0 0
  %5180 = vmatprep.subr.bf16.mxu0 0
  %5181 = vmatpush2.bf16.msra.mxu0 0
  %5182 = vmatprep.subr.bf16.mxu0 0
  %5183 = vmatpush2.bf16.msra.mxu0 0
  %5184 = vmatprep.subr.bf16.mxu0 0
  %5185 = vmatpush2.bf16.msra.mxu0 0
  %5186 = vmatprep.subr.bf16.mxu0 0
  %5187 = vmatpush2.bf16.msra.mxu0 0
  %5188 = vmatprep.subr.bf16.mxu0 0
  %5189 = vmatpush2.bf16.msra.mxu0 0
  %5190 = vmatprep.mubr.bf16.mxu0 0
  %5191 = vmatmul.mubr.bf16.gmra.mxu0 %v5156
  %v5192 = vpop.f32.mrf.mxu0
  %v5193 = vadd.f32 0.0, %v5192
  %v5194 = vpop.f32.mrf.mxu0
  %v5195 = vpop.f32.mrf.mxu0
  %v5196 = vpop.f32.mrf.mxu0
  %5197 = vdwg.mxu0
  %s5198 = scalar_lea.vmem %s7, 160
  %v5199 = vld [vmem:[%s5198] sm:$0xf]
  %v5200 = vld [vmem:[%s5198 + $0x4] sm:$0xf]
  %v5201 = vld [vmem:[%s5198 + $0x8] sm:$0xf]
  %v5202 = vld [vmem:[%s5198 + $0xc] sm:$0xf]
  %s5203 = scalar_lea.vmem %s7, 176
  %v5204 = vld [vmem:[%s5203] sm:$0xf]
  %v5205 = vld [vmem:[%s5203 + $0x4] sm:$0xf]
  %v5206 = vld [vmem:[%s5203 + $0x8] sm:$0xf]
  %v5207 = vld [vmem:[%s5203 + $0xc] sm:$0xf]
  %v5209 = vrot.slane %v4856, 4
  %v5214 = vunpack.c.l.b16 %v5204
  %v5215 = vunpack.c.l.b16 %v5205
  %v5216 = vunpack.c.l.b16 %v5206
  %v5217 = vunpack.c.l.b16 %v5207
  %v5218 = vpack.c.b16 %v5215, %v5214
  %v5219 = vpack.c.b16 %v5217, %v5216
  %v5223 = vsel %vm3021, %v5209, 0
  %5225 = vmatprep.subr.bf16.mxu0 0
  %5226 = vmatpush1.bf16.msra.mxu0 0
  %5227 = vmatprep.subr.bf16.mxu0 0
  %5228 = vmatpush1.bf16.msra.mxu0 0
  %5229 = vmatprep.subr.bf16.mxu0 0
  %5230 = vmatpush1.bf16.msra.mxu0 0
  %5231 = vmatprep.subr.bf16.mxu0 0
  %5232 = vmatpush1.bf16.msra.mxu0 0
  %5233 = vmatprep.subr.bf16.mxu0 0
  %5234 = vmatpush1.bf16.msra.mxu0 0
  %5235 = vmatprep.subr.bf16.mxu0 0
  %5236 = vmatpush1.bf16.msra.mxu0 0
  %5237 = vmatprep.subr.bf16.mxu0 0
  %5238 = vmatpush1.bf16.msra.mxu0 %v5219
  %5239 = vmatprep.subr.bf16.mxu0 0
  %5240 = vmatpush1.bf16.msra.mxu0 %v5218
  %5241 = vmatprep.subr.bf16.mxu0 0
  %5242 = vmatpush2.bf16.msra.mxu0 0
  %5243 = vmatprep.subr.bf16.mxu0 0
  %5244 = vmatpush2.bf16.msra.mxu0 0
  %5245 = vmatprep.subr.bf16.mxu0 0
  %5246 = vmatpush2.bf16.msra.mxu0 0
  %5247 = vmatprep.subr.bf16.mxu0 0
  %5248 = vmatpush2.bf16.msra.mxu0 0
  %5249 = vmatprep.subr.bf16.mxu0 0
  %5250 = vmatpush2.bf16.msra.mxu0 0
  %5251 = vmatprep.subr.bf16.mxu0 0
  %5252 = vmatpush2.bf16.msra.mxu0 0
  %5253 = vmatprep.subr.bf16.mxu0 0
  %5254 = vmatpush2.bf16.msra.mxu0 0
  %5255 = vmatprep.subr.bf16.mxu0 0
  %5256 = vmatpush2.bf16.msra.mxu0 0
  %5257 = vmatprep.mubr.bf16.mxu0 0
  %5258 = vmatmul.mubr.bf16.gmra.mxu0 %v5223
  %v5259 = vpop.f32.mrf.mxu0
  %v5260 = vadd.f32 0.0, %v5259
  %v5261 = vpop.f32.mrf.mxu0
  %v5262 = vpop.f32.mrf.mxu0
  %v5263 = vpop.f32.mrf.mxu0
  %5264 = vdwg.mxu0
  %s5265 = scalar_lea.vmem %s7, 192
  %v5266 = vld [vmem:[%s5265] sm:$0xf]
  %v5267 = vld [vmem:[%s5265 + $0x4] sm:$0xf]
  %v5268 = vld [vmem:[%s5265 + $0x8] sm:$0xf]
  %v5269 = vld [vmem:[%s5265 + $0xc] sm:$0xf]
  %s5270 = scalar_lea.vmem %s7, 208
  %v5271 = vld [vmem:[%s5270] sm:$0xf]
  %v5272 = vld [vmem:[%s5270 + $0x4] sm:$0xf]
  %v5273 = vld [vmem:[%s5270 + $0x8] sm:$0xf]
  %v5274 = vld [vmem:[%s5270 + $0xc] sm:$0xf]
  %v5276 = vrot.slane %v4857, 4
  %v5281 = vunpack.c.l.b16 %v5271
  %v5282 = vunpack.c.l.b16 %v5272
  %v5283 = vunpack.c.l.b16 %v5273
  %v5284 = vunpack.c.l.b16 %v5274
  %v5285 = vpack.c.b16 %v5282, %v5281
  %v5286 = vpack.c.b16 %v5284, %v5283
  %v5290 = vsel %vm3021, %v5276, 0
  %5292 = vmatprep.subr.bf16.mxu0 0
  %5293 = vmatpush1.bf16.msra.mxu0 0
  %5294 = vmatprep.subr.bf16.mxu0 0
  %5295 = vmatpush1.bf16.msra.mxu0 0
  %5296 = vmatprep.subr.bf16.mxu0 0
  %5297 = vmatpush1.bf16.msra.mxu0 0
  %5298 = vmatprep.subr.bf16.mxu0 0
  %5299 = vmatpush1.bf16.msra.mxu0 0
  %5300 = vmatprep.subr.bf16.mxu0 0
  %5301 = vmatpush1.bf16.msra.mxu0 0
  %5302 = vmatprep.subr.bf16.mxu0 0
  %5303 = vmatpush1.bf16.msra.mxu0 0
  %5304 = vmatprep.subr.bf16.mxu0 0
  %5305 = vmatpush1.bf16.msra.mxu0 %v5286
  %5306 = vmatprep.subr.bf16.mxu0 0
  %5307 = vmatpush1.bf16.msra.mxu0 %v5285
  %5308 = vmatprep.subr.bf16.mxu0 0
  %5309 = vmatpush2.bf16.msra.mxu0 0
  %5310 = vmatprep.subr.bf16.mxu0 0
  %5311 = vmatpush2.bf16.msra.mxu0 0
  %5312 = vmatprep.subr.bf16.mxu0 0
  %5313 = vmatpush2.bf16.msra.mxu0 0
  %5314 = vmatprep.subr.bf16.mxu0 0
  %5315 = vmatpush2.bf16.msra.mxu0 0
  %5316 = vmatprep.subr.bf16.mxu0 0
  %5317 = vmatpush2.bf16.msra.mxu0 0
  %5318 = vmatprep.subr.bf16.mxu0 0
  %5319 = vmatpush2.bf16.msra.mxu0 0
  %5320 = vmatprep.subr.bf16.mxu0 0
  %5321 = vmatpush2.bf16.msra.mxu0 0
  %5322 = vmatprep.subr.bf16.mxu0 0
  %5323 = vmatpush2.bf16.msra.mxu0 0
  %5324 = vmatprep.mubr.bf16.mxu0 0
  %5325 = vmatmul.mubr.bf16.gmra.mxu0 %v5290
  %v5326 = vpop.f32.mrf.mxu0
  %v5327 = vadd.f32 0.0, %v5326
  %v5328 = vpop.f32.mrf.mxu0
  %v5329 = vpop.f32.mrf.mxu0
  %v5330 = vpop.f32.mrf.mxu0
  %5331 = vdwg.mxu0
  %s5332 = scalar_lea.vmem %s7, 224
  %v5333 = vld [vmem:[%s5332] sm:$0xf]
  %v5334 = vld [vmem:[%s5332 + $0x4] sm:$0xf]
  %v5335 = vld [vmem:[%s5332 + $0x8] sm:$0xf]
  %v5336 = vld [vmem:[%s5332 + $0xc] sm:$0xf]
  %s5337 = scalar_lea.vmem %s7, 240
  %v5338 = vld [vmem:[%s5337] sm:$0xf]
  %v5339 = vld [vmem:[%s5337 + $0x4] sm:$0xf]
  %v5340 = vld [vmem:[%s5337 + $0x8] sm:$0xf]
  %v5341 = vld [vmem:[%s5337 + $0xc] sm:$0xf]
  %v5343 = vrot.slane %v4858, 4
  %v5348 = vunpack.c.l.b16 %v5338
  %v5349 = vunpack.c.l.b16 %v5339
  %v5350 = vunpack.c.l.b16 %v5340
  %v5351 = vunpack.c.l.b16 %v5341
  %v5352 = vpack.c.b16 %v5349, %v5348
  %v5353 = vpack.c.b16 %v5351, %v5350
  %v5357 = vsel %vm3021, %v5343, 0
  %5359 = vmatprep.subr.bf16.mxu0 0
  %5360 = vmatpush1.bf16.msra.mxu0 0
  %5361 = vmatprep.subr.bf16.mxu0 0
  %5362 = vmatpush1.bf16.msra.mxu0 0
  %5363 = vmatprep.subr.bf16.mxu0 0
  %5364 = vmatpush1.bf16.msra.mxu0 0
  %5365 = vmatprep.subr.bf16.mxu0 0
  %5366 = vmatpush1.bf16.msra.mxu0 0
  %5367 = vmatprep.subr.bf16.mxu0 0
  %5368 = vmatpush1.bf16.msra.mxu0 0
  %5369 = vmatprep.subr.bf16.mxu0 0
  %5370 = vmatpush1.bf16.msra.mxu0 0
  %5371 = vmatprep.subr.bf16.mxu0 0
  %5372 = vmatpush1.bf16.msra.mxu0 %v5353
  %5373 = vmatprep.subr.bf16.mxu0 0
  %5374 = vmatpush1.bf16.msra.mxu0 %v5352
  %5375 = vmatprep.subr.bf16.mxu0 0
  %5376 = vmatpush2.bf16.msra.mxu0 0
  %5377 = vmatprep.subr.bf16.mxu0 0
  %5378 = vmatpush2.bf16.msra.mxu0 0
  %5379 = vmatprep.subr.bf16.mxu0 0
  %5380 = vmatpush2.bf16.msra.mxu0 0
  %5381 = vmatprep.subr.bf16.mxu0 0
  %5382 = vmatpush2.bf16.msra.mxu0 0
  %5383 = vmatprep.subr.bf16.mxu0 0
  %5384 = vmatpush2.bf16.msra.mxu0 0
  %5385 = vmatprep.subr.bf16.mxu0 0
  %5386 = vmatpush2.bf16.msra.mxu0 0
  %5387 = vmatprep.subr.bf16.mxu0 0
  %5388 = vmatpush2.bf16.msra.mxu0 0
  %5389 = vmatprep.subr.bf16.mxu0 0
  %5390 = vmatpush2.bf16.msra.mxu0 0
  %5391 = vmatprep.mubr.bf16.mxu0 0
  %5392 = vmatmul.mubr.bf16.gmra.mxu0 %v5357
  %v5393 = vpop.f32.mrf.mxu0
  %v5394 = vadd.f32 0.0, %v5393
  %v5395 = vpop.f32.mrf.mxu0
  %v5396 = vpop.f32.mrf.mxu0
  %v5397 = vpop.f32.mrf.mxu0
  %5398 = vdwg.mxu0
  %s5399 = scalar_lea.vmem %s7, 256
  %v5400 = vld [vmem:[%s5399] sm:$0xf]
  %v5401 = vld [vmem:[%s5399 + $0x4] sm:$0xf]
  %v5402 = vld [vmem:[%s5399 + $0x8] sm:$0xf]
  %v5403 = vld [vmem:[%s5399 + $0xc] sm:$0xf]
  %s5404 = scalar_lea.vmem %s7, 272
  %v5405 = vld [vmem:[%s5404] sm:$0xf]
  %v5406 = vld [vmem:[%s5404 + $0x4] sm:$0xf]
  %v5407 = vld [vmem:[%s5404 + $0x8] sm:$0xf]
  %v5408 = vld [vmem:[%s5404 + $0xc] sm:$0xf]
  %v5410 = vrot.slane %v4859, 4
  %v5415 = vunpack.c.l.b16 %v5405
  %v5416 = vunpack.c.l.b16 %v5406
  %v5417 = vunpack.c.l.b16 %v5407
  %v5418 = vunpack.c.l.b16 %v5408
  %v5419 = vpack.c.b16 %v5416, %v5415
  %v5420 = vpack.c.b16 %v5418, %v5417
  %v5424 = vsel %vm3021, %v5410, 0
  %5426 = vmatprep.subr.bf16.mxu0 0
  %5427 = vmatpush1.bf16.msra.mxu0 0
  %5428 = vmatprep.subr.bf16.mxu0 0
  %5429 = vmatpush1.bf16.msra.mxu0 0
  %5430 = vmatprep.subr.bf16.mxu0 0
  %5431 = vmatpush1.bf16.msra.mxu0 0
  %5432 = vmatprep.subr.bf16.mxu0 0
  %5433 = vmatpush1.bf16.msra.mxu0 0
  %5434 = vmatprep.subr.bf16.mxu0 0
  %5435 = vmatpush1.bf16.msra.mxu0 0
  %5436 = vmatprep.subr.bf16.mxu0 0
  %5437 = vmatpush1.bf16.msra.mxu0 0
  %5438 = vmatprep.subr.bf16.mxu0 0
  %5439 = vmatpush1.bf16.msra.mxu0 %v5420
  %5440 = vmatprep.subr.bf16.mxu0 0
  %5441 = vmatpush1.bf16.msra.mxu0 %v5419
  %5442 = vmatprep.subr.bf16.mxu0 0
  %5443 = vmatpush2.bf16.msra.mxu0 0
  %5444 = vmatprep.subr.bf16.mxu0 0
  %5445 = vmatpush2.bf16.msra.mxu0 0
  %5446 = vmatprep.subr.bf16.mxu0 0
  %5447 = vmatpush2.bf16.msra.mxu0 0
  %5448 = vmatprep.subr.bf16.mxu0 0
  %5449 = vmatpush2.bf16.msra.mxu0 0
  %5450 = vmatprep.subr.bf16.mxu0 0
  %5451 = vmatpush2.bf16.msra.mxu0 0
  %5452 = vmatprep.subr.bf16.mxu0 0
  %5453 = vmatpush2.bf16.msra.mxu0 0
  %5454 = vmatprep.subr.bf16.mxu0 0
  %5455 = vmatpush2.bf16.msra.mxu0 0
  %5456 = vmatprep.subr.bf16.mxu0 0
  %5457 = vmatpush2.bf16.msra.mxu0 0
  %5458 = vmatprep.mubr.bf16.mxu0 0
  %5459 = vmatmul.mubr.bf16.gmra.mxu0 %v5424
  %v5460 = vpop.f32.mrf.mxu0
  %v5461 = vadd.f32 0.0, %v5460
  %v5462 = vpop.f32.mrf.mxu0
  %v5463 = vpop.f32.mrf.mxu0
  %v5464 = vpop.f32.mrf.mxu0
  %5465 = vdwg.mxu0
  %s5466 = scalar_lea.vmem %s7, 288
  %v5467 = vld [vmem:[%s5466] sm:$0xf]
  %v5468 = vld [vmem:[%s5466 + $0x4] sm:$0xf]
  %v5469 = vld [vmem:[%s5466 + $0x8] sm:$0xf]
  %v5470 = vld [vmem:[%s5466 + $0xc] sm:$0xf]
  %s5471 = scalar_lea.vmem %s7, 304
  %v5472 = vld [vmem:[%s5471] sm:$0xf]
  %v5473 = vld [vmem:[%s5471 + $0x4] sm:$0xf]
  %v5474 = vld [vmem:[%s5471 + $0x8] sm:$0xf]
  %v5475 = vld [vmem:[%s5471 + $0xc] sm:$0xf]
  %v5477 = vrot.slane %v4860, 4
  %v5482 = vunpack.c.l.b16 %v5472
  %v5483 = vunpack.c.l.b16 %v5473
  %v5484 = vunpack.c.l.b16 %v5474
  %v5485 = vunpack.c.l.b16 %v5475
  %v5486 = vpack.c.b16 %v5483, %v5482
  %v5487 = vpack.c.b16 %v5485, %v5484
  %v5491 = vsel %vm3021, %v5477, 0
  %5493 = vmatprep.subr.bf16.mxu0 0
  %5494 = vmatpush1.bf16.msra.mxu0 0
  %5495 = vmatprep.subr.bf16.mxu0 0
  %5496 = vmatpush1.bf16.msra.mxu0 0
  %5497 = vmatprep.subr.bf16.mxu0 0
  %5498 = vmatpush1.bf16.msra.mxu0 0
  %5499 = vmatprep.subr.bf16.mxu0 0
  %5500 = vmatpush1.bf16.msra.mxu0 0
  %5501 = vmatprep.subr.bf16.mxu0 0
  %5502 = vmatpush1.bf16.msra.mxu0 0
  %5503 = vmatprep.subr.bf16.mxu0 0
  %5504 = vmatpush1.bf16.msra.mxu0 0
  %5505 = vmatprep.subr.bf16.mxu0 0
  %5506 = vmatpush1.bf16.msra.mxu0 %v5487
  %5507 = vmatprep.subr.bf16.mxu0 0
  %5508 = vmatpush1.bf16.msra.mxu0 %v5486
  %5509 = vmatprep.subr.bf16.mxu0 0
  %5510 = vmatpush2.bf16.msra.mxu0 0
  %5511 = vmatprep.subr.bf16.mxu0 0
  %5512 = vmatpush2.bf16.msra.mxu0 0
  %5513 = vmatprep.subr.bf16.mxu0 0
  %5514 = vmatpush2.bf16.msra.mxu0 0
  %5515 = vmatprep.subr.bf16.mxu0 0
  %5516 = vmatpush2.bf16.msra.mxu0 0
  %5517 = vmatprep.subr.bf16.mxu0 0
  %5518 = vmatpush2.bf16.msra.mxu0 0
  %5519 = vmatprep.subr.bf16.mxu0 0
  %5520 = vmatpush2.bf16.msra.mxu0 0
  %5521 = vmatprep.subr.bf16.mxu0 0
  %5522 = vmatpush2.bf16.msra.mxu0 0
  %5523 = vmatprep.subr.bf16.mxu0 0
  %5524 = vmatpush2.bf16.msra.mxu0 0
  %5525 = vmatprep.mubr.bf16.mxu0 0
  %5526 = vmatmul.mubr.bf16.gmra.mxu0 %v5491
  %v5527 = vpop.f32.mrf.mxu0
  %v5528 = vadd.f32 0.0, %v5527
  %v5529 = vpop.f32.mrf.mxu0
  %v5530 = vpop.f32.mrf.mxu0
  %v5531 = vpop.f32.mrf.mxu0
  %5532 = vdwg.mxu0
  %s5533 = scalar_lea.vmem %s7, 320
  %v5534 = vld [vmem:[%s5533] sm:$0xf]
  %v5535 = vld [vmem:[%s5533 + $0x4] sm:$0xf]
  %v5536 = vld [vmem:[%s5533 + $0x8] sm:$0xf]
  %v5537 = vld [vmem:[%s5533 + $0xc] sm:$0xf]
  %s5538 = scalar_lea.vmem %s7, 336
  %v5539 = vld [vmem:[%s5538] sm:$0xf]
  %v5540 = vld [vmem:[%s5538 + $0x4] sm:$0xf]
  %v5541 = vld [vmem:[%s5538 + $0x8] sm:$0xf]
  %v5542 = vld [vmem:[%s5538 + $0xc] sm:$0xf]
  %v5544 = vrot.slane %v4861, 4
  %v5549 = vunpack.c.l.b16 %v5539
  %v5550 = vunpack.c.l.b16 %v5540
  %v5551 = vunpack.c.l.b16 %v5541
  %v5552 = vunpack.c.l.b16 %v5542
  %v5553 = vpack.c.b16 %v5550, %v5549
  %v5554 = vpack.c.b16 %v5552, %v5551
  %v5558 = vsel %vm3021, %v5544, 0
  %5560 = vmatprep.subr.bf16.mxu0 0
  %5561 = vmatpush1.bf16.msra.mxu0 0
  %5562 = vmatprep.subr.bf16.mxu0 0
  %5563 = vmatpush1.bf16.msra.mxu0 0
  %5564 = vmatprep.subr.bf16.mxu0 0
  %5565 = vmatpush1.bf16.msra.mxu0 0
  %5566 = vmatprep.subr.bf16.mxu0 0
  %5567 = vmatpush1.bf16.msra.mxu0 0
  %5568 = vmatprep.subr.bf16.mxu0 0
  %5569 = vmatpush1.bf16.msra.mxu0 0
  %5570 = vmatprep.subr.bf16.mxu0 0
  %5571 = vmatpush1.bf16.msra.mxu0 0
  %5572 = vmatprep.subr.bf16.mxu0 0
  %5573 = vmatpush1.bf16.msra.mxu0 %v5554
  %5574 = vmatprep.subr.bf16.mxu0 0
  %5575 = vmatpush1.bf16.msra.mxu0 %v5553
  %5576 = vmatprep.subr.bf16.mxu0 0
  %5577 = vmatpush2.bf16.msra.mxu0 0
  %5578 = vmatprep.subr.bf16.mxu0 0
  %5579 = vmatpush2.bf16.msra.mxu0 0
  %5580 = vmatprep.subr.bf16.mxu0 0
  %5581 = vmatpush2.bf16.msra.mxu0 0
  %5582 = vmatprep.subr.bf16.mxu0 0
  %5583 = vmatpush2.bf16.msra.mxu0 0
  %5584 = vmatprep.subr.bf16.mxu0 0
  %5585 = vmatpush2.bf16.msra.mxu0 0
  %5586 = vmatprep.subr.bf16.mxu0 0
  %5587 = vmatpush2.bf16.msra.mxu0 0
  %5588 = vmatprep.subr.bf16.mxu0 0
  %5589 = vmatpush2.bf16.msra.mxu0 0
  %5590 = vmatprep.subr.bf16.mxu0 0
  %5591 = vmatpush2.bf16.msra.mxu0 0
  %5592 = vmatprep.mubr.bf16.mxu0 0
  %5593 = vmatmul.mubr.bf16.gmra.mxu0 %v5558
  %v5594 = vpop.f32.mrf.mxu0
  %v5595 = vadd.f32 0.0, %v5594
  %v5596 = vpop.f32.mrf.mxu0
  %v5597 = vpop.f32.mrf.mxu0
  %v5598 = vpop.f32.mrf.mxu0
  %5599 = vdwg.mxu0
  %s5600 = scalar_lea.vmem %s7, 352
  %v5601 = vld [vmem:[%s5600] sm:$0xf]
  %v5602 = vld [vmem:[%s5600 + $0x4] sm:$0xf]
  %v5603 = vld [vmem:[%s5600 + $0x8] sm:$0xf]
  %v5604 = vld [vmem:[%s5600 + $0xc] sm:$0xf]
  %s5605 = scalar_lea.vmem %s7, 368
  %v5606 = vld [vmem:[%s5605] sm:$0xf]
  %v5607 = vld [vmem:[%s5605 + $0x4] sm:$0xf]
  %v5608 = vld [vmem:[%s5605 + $0x8] sm:$0xf]
  %v5609 = vld [vmem:[%s5605 + $0xc] sm:$0xf]
  %v5611 = vrot.slane %v4862, 4
  %v5616 = vunpack.c.l.b16 %v5606
  %v5617 = vunpack.c.l.b16 %v5607
  %v5618 = vunpack.c.l.b16 %v5608
  %v5619 = vunpack.c.l.b16 %v5609
  %v5620 = vpack.c.b16 %v5617, %v5616
  %v5621 = vpack.c.b16 %v5619, %v5618
  %v5625 = vsel %vm3021, %v5611, 0
  %5627 = vmatprep.subr.bf16.mxu0 0
  %5628 = vmatpush1.bf16.msra.mxu0 0
  %5629 = vmatprep.subr.bf16.mxu0 0
  %5630 = vmatpush1.bf16.msra.mxu0 0
  %5631 = vmatprep.subr.bf16.mxu0 0
  %5632 = vmatpush1.bf16.msra.mxu0 0
  %5633 = vmatprep.subr.bf16.mxu0 0
  %5634 = vmatpush1.bf16.msra.mxu0 0
  %5635 = vmatprep.subr.bf16.mxu0 0
  %5636 = vmatpush1.bf16.msra.mxu0 0
  %5637 = vmatprep.subr.bf16.mxu0 0
  %5638 = vmatpush1.bf16.msra.mxu0 0
  %5639 = vmatprep.subr.bf16.mxu0 0
  %5640 = vmatpush1.bf16.msra.mxu0 %v5621
  %5641 = vmatprep.subr.bf16.mxu0 0
  %5642 = vmatpush1.bf16.msra.mxu0 %v5620
  %5643 = vmatprep.subr.bf16.mxu0 0
  %5644 = vmatpush2.bf16.msra.mxu0 0
  %5645 = vmatprep.subr.bf16.mxu0 0
  %5646 = vmatpush2.bf16.msra.mxu0 0
  %5647 = vmatprep.subr.bf16.mxu0 0
  %5648 = vmatpush2.bf16.msra.mxu0 0
  %5649 = vmatprep.subr.bf16.mxu0 0
  %5650 = vmatpush2.bf16.msra.mxu0 0
  %5651 = vmatprep.subr.bf16.mxu0 0
  %5652 = vmatpush2.bf16.msra.mxu0 0
  %5653 = vmatprep.subr.bf16.mxu0 0
  %5654 = vmatpush2.bf16.msra.mxu0 0
  %5655 = vmatprep.subr.bf16.mxu0 0
  %5656 = vmatpush2.bf16.msra.mxu0 0
  %5657 = vmatprep.subr.bf16.mxu0 0
  %5658 = vmatpush2.bf16.msra.mxu0 0
  %5659 = vmatprep.mubr.bf16.mxu0 0
  %5660 = vmatmul.mubr.bf16.gmra.mxu0 %v5625
  %v5661 = vpop.f32.mrf.mxu0
  %v5662 = vadd.f32 0.0, %v5661
  %v5663 = vpop.f32.mrf.mxu0
  %v5664 = vpop.f32.mrf.mxu0
  %v5665 = vpop.f32.mrf.mxu0
  %5666 = vdwg.mxu0
  %s5667 = scalar_lea.vmem %s7, 384
  %v5668 = vld [vmem:[%s5667] sm:$0xf]
  %v5669 = vld [vmem:[%s5667 + $0x4] sm:$0xf]
  %v5670 = vld [vmem:[%s5667 + $0x8] sm:$0xf]
  %v5671 = vld [vmem:[%s5667 + $0xc] sm:$0xf]
  %v5676 = vunpack.c.l.b16 %v5668
  %v5677 = vunpack.c.l.b16 %v5669
  %v5678 = vunpack.c.l.b16 %v5670
  %v5679 = vunpack.c.l.b16 %v5671
  %v5680 = vpack.c.b16 %v5677, %v5676
  %v5681 = vpack.c.b16 %v5679, %v5678
  %v5685 = vsel %vm3021, %v4863, 0
  %5687 = vmatprep.subr.bf16.mxu0 0
  %5688 = vmatpush1.bf16.msra.mxu0 0
  %5689 = vmatprep.subr.bf16.mxu0 0
  %5690 = vmatpush1.bf16.msra.mxu0 0
  %5691 = vmatprep.subr.bf16.mxu0 0
  %5692 = vmatpush1.bf16.msra.mxu0 0
  %5693 = vmatprep.subr.bf16.mxu0 0
  %5694 = vmatpush1.bf16.msra.mxu0 0
  %5695 = vmatprep.subr.bf16.mxu0 0
  %5696 = vmatpush1.bf16.msra.mxu0 0
  %5697 = vmatprep.subr.bf16.mxu0 0
  %5698 = vmatpush1.bf16.msra.mxu0 0
  %5699 = vmatprep.subr.bf16.mxu0 0
  %5700 = vmatpush1.bf16.msra.mxu0 %v5681
  %5701 = vmatprep.subr.bf16.mxu0 0
  %5702 = vmatpush1.bf16.msra.mxu0 %v5680
  %5703 = vmatprep.subr.bf16.mxu0 0
  %5704 = vmatpush2.bf16.msra.mxu0 0
  %5705 = vmatprep.subr.bf16.mxu0 0
  %5706 = vmatpush2.bf16.msra.mxu0 0
  %5707 = vmatprep.subr.bf16.mxu0 0
  %5708 = vmatpush2.bf16.msra.mxu0 0
  %5709 = vmatprep.subr.bf16.mxu0 0
  %5710 = vmatpush2.bf16.msra.mxu0 0
  %5711 = vmatprep.subr.bf16.mxu0 0
  %5712 = vmatpush2.bf16.msra.mxu0 0
  %5713 = vmatprep.subr.bf16.mxu0 0
  %5714 = vmatpush2.bf16.msra.mxu0 0
  %5715 = vmatprep.subr.bf16.mxu0 0
  %5716 = vmatpush2.bf16.msra.mxu0 0
  %5717 = vmatprep.subr.bf16.mxu0 0
  %5718 = vmatpush2.bf16.msra.mxu0 0
  %5719 = vmatprep.mubr.bf16.mxu0 0
  %5720 = vmatmul.mubr.bf16.gmra.mxu0 %v5685
  %v5721 = vpop.f32.mrf.mxu0
  %v5722 = vadd.f32 0.0, %v5721
  %v5723 = vpop.f32.mrf.mxu0
  %v5724 = vpop.f32.mrf.mxu0
  %v5725 = vpop.f32.mrf.mxu0
  %5726 = vdwg.mxu0
  %v5731 = vunpack.c.l.b16 %v4864
  %v5732 = vunpack.c.l.b16 %v4865
  %v5733 = vunpack.c.l.b16 %v4866
  %v5734 = vunpack.c.l.b16 %v4867
  %v5735 = vpack.c.b16 %v5732, %v5731
  %v5736 = vpack.c.b16 %v5734, %v5733
  %v5740 = vsel %vm3021, %v4851, 0
  %5742 = vmatprep.subr.bf16.mxu0 0
  %5743 = vmatpush1.bf16.msra.mxu0 0
  %5744 = vmatprep.subr.bf16.mxu0 0
  %5745 = vmatpush1.bf16.msra.mxu0 0
  %5746 = vmatprep.subr.bf16.mxu0 0
  %5747 = vmatpush1.bf16.msra.mxu0 0
  %5748 = vmatprep.subr.bf16.mxu0 0
  %5749 = vmatpush1.bf16.msra.mxu0 0
  %5750 = vmatprep.subr.bf16.mxu0 0
  %5751 = vmatpush1.bf16.msra.mxu0 0
  %5752 = vmatprep.subr.bf16.mxu0 0
  %5753 = vmatpush1.bf16.msra.mxu0 0
  %5754 = vmatprep.subr.bf16.mxu0 0
  %5755 = vmatpush1.bf16.msra.mxu0 %v5736
  %5756 = vmatprep.subr.bf16.mxu0 0
  %5757 = vmatpush1.bf16.msra.mxu0 %v5735
  %5758 = vmatprep.subr.bf16.mxu0 0
  %5759 = vmatpush2.bf16.msra.mxu0 0
  %5760 = vmatprep.subr.bf16.mxu0 0
  %5761 = vmatpush2.bf16.msra.mxu0 0
  %5762 = vmatprep.subr.bf16.mxu0 0
  %5763 = vmatpush2.bf16.msra.mxu0 0
  %5764 = vmatprep.subr.bf16.mxu0 0
  %5765 = vmatpush2.bf16.msra.mxu0 0
  %5766 = vmatprep.subr.bf16.mxu0 0
  %5767 = vmatpush2.bf16.msra.mxu0 0
  %5768 = vmatprep.subr.bf16.mxu0 0
  %5769 = vmatpush2.bf16.msra.mxu0 0
  %5770 = vmatprep.subr.bf16.mxu0 0
  %5771 = vmatpush2.bf16.msra.mxu0 0
  %5772 = vmatprep.subr.bf16.mxu0 0
  %5773 = vmatpush2.bf16.msra.mxu0 0
  %5774 = vmatprep.mubr.bf16.mxu0 0
  %5775 = vmatmul.mubr.bf16.gmra.mxu0 %v5740
  %v5776 = vpop.f32.mrf.mxu0
  %v5777 = vadd.f32 %v4925, %v5776
  %v5778 = vpop.f32.mrf.mxu0
  %v5779 = vpop.f32.mrf.mxu0
  %v5780 = vpop.f32.mrf.mxu0
  %5781 = vdwg.mxu0
  %v5786 = vunpack.c.l.b16 %v4931
  %v5787 = vunpack.c.l.b16 %v4932
  %v5788 = vunpack.c.l.b16 %v4933
  %v5789 = vunpack.c.l.b16 %v4934
  %v5790 = vpack.c.b16 %v5787, %v5786
  %v5791 = vpack.c.b16 %v5789, %v5788
  %v5795 = vsel %vm3021, %v4852, 0
  %5797 = vmatprep.subr.bf16.mxu0 0
  %5798 = vmatpush1.bf16.msra.mxu0 0
  %5799 = vmatprep.subr.bf16.mxu0 0
  %5800 = vmatpush1.bf16.msra.mxu0 0
  %5801 = vmatprep.subr.bf16.mxu0 0
  %5802 = vmatpush1.bf16.msra.mxu0 0
  %5803 = vmatprep.subr.bf16.mxu0 0
  %5804 = vmatpush1.bf16.msra.mxu0 0
  %5805 = vmatprep.subr.bf16.mxu0 0
  %5806 = vmatpush1.bf16.msra.mxu0 0
  %5807 = vmatprep.subr.bf16.mxu0 0
  %5808 = vmatpush1.bf16.msra.mxu0 0
  %5809 = vmatprep.subr.bf16.mxu0 0
  %5810 = vmatpush1.bf16.msra.mxu0 %v5791
  %5811 = vmatprep.subr.bf16.mxu0 0
  %5812 = vmatpush1.bf16.msra.mxu0 %v5790
  %5813 = vmatprep.subr.bf16.mxu0 0
  %5814 = vmatpush2.bf16.msra.mxu0 0
  %5815 = vmatprep.subr.bf16.mxu0 0
  %5816 = vmatpush2.bf16.msra.mxu0 0
  %5817 = vmatprep.subr.bf16.mxu0 0
  %5818 = vmatpush2.bf16.msra.mxu0 0
  %5819 = vmatprep.subr.bf16.mxu0 0
  %5820 = vmatpush2.bf16.msra.mxu0 0
  %5821 = vmatprep.subr.bf16.mxu0 0
  %5822 = vmatpush2.bf16.msra.mxu0 0
  %5823 = vmatprep.subr.bf16.mxu0 0
  %5824 = vmatpush2.bf16.msra.mxu0 0
  %5825 = vmatprep.subr.bf16.mxu0 0
  %5826 = vmatpush2.bf16.msra.mxu0 0
  %5827 = vmatprep.subr.bf16.mxu0 0
  %5828 = vmatpush2.bf16.msra.mxu0 0
  %5829 = vmatprep.mubr.bf16.mxu0 0
  %5830 = vmatmul.mubr.bf16.gmra.mxu0 %v5795
  %v5831 = vpop.f32.mrf.mxu0
  %v5832 = vadd.f32 %v4992, %v5831
  %v5833 = vpop.f32.mrf.mxu0
  %v5834 = vpop.f32.mrf.mxu0
  %v5835 = vpop.f32.mrf.mxu0
  %5836 = vdwg.mxu0
  %v5841 = vunpack.c.l.b16 %v4998
  %v5842 = vunpack.c.l.b16 %v4999
  %v5843 = vunpack.c.l.b16 %v5000
  %v5844 = vunpack.c.l.b16 %v5001
  %v5845 = vpack.c.b16 %v5842, %v5841
  %v5846 = vpack.c.b16 %v5844, %v5843
  %v5850 = vsel %vm3021, %v4853, 0
  %5852 = vmatprep.subr.bf16.mxu0 0
  %5853 = vmatpush1.bf16.msra.mxu0 0
  %5854 = vmatprep.subr.bf16.mxu0 0
  %5855 = vmatpush1.bf16.msra.mxu0 0
  %5856 = vmatprep.subr.bf16.mxu0 0
  %5857 = vmatpush1.bf16.msra.mxu0 0
  %5858 = vmatprep.subr.bf16.mxu0 0
  %5859 = vmatpush1.bf16.msra.mxu0 0
  %5860 = vmatprep.subr.bf16.mxu0 0
  %5861 = vmatpush1.bf16.msra.mxu0 0
  %5862 = vmatprep.subr.bf16.mxu0 0
  %5863 = vmatpush1.bf16.msra.mxu0 0
  %5864 = vmatprep.subr.bf16.mxu0 0
  %5865 = vmatpush1.bf16.msra.mxu0 %v5846
  %5866 = vmatprep.subr.bf16.mxu0 0
  %5867 = vmatpush1.bf16.msra.mxu0 %v5845
  %5868 = vmatprep.subr.bf16.mxu0 0
  %5869 = vmatpush2.bf16.msra.mxu0 0
  %5870 = vmatprep.subr.bf16.mxu0 0
  %5871 = vmatpush2.bf16.msra.mxu0 0
  %5872 = vmatprep.subr.bf16.mxu0 0
  %5873 = vmatpush2.bf16.msra.mxu0 0
  %5874 = vmatprep.subr.bf16.mxu0 0
  %5875 = vmatpush2.bf16.msra.mxu0 0
  %5876 = vmatprep.subr.bf16.mxu0 0
  %5877 = vmatpush2.bf16.msra.mxu0 0
  %5878 = vmatprep.subr.bf16.mxu0 0
  %5879 = vmatpush2.bf16.msra.mxu0 0
  %5880 = vmatprep.subr.bf16.mxu0 0
  %5881 = vmatpush2.bf16.msra.mxu0 0
  %5882 = vmatprep.subr.bf16.mxu0 0
  %5883 = vmatpush2.bf16.msra.mxu0 0
  %5884 = vmatprep.mubr.bf16.mxu0 0
  %5885 = vmatmul.mubr.bf16.gmra.mxu0 %v5850
  %v5886 = vpop.f32.mrf.mxu0
  %v5887 = vadd.f32 %v5059, %v5886
  %v5888 = vpop.f32.mrf.mxu0
  %v5889 = vpop.f32.mrf.mxu0
  %v5890 = vpop.f32.mrf.mxu0
  %5891 = vdwg.mxu0
  %v5896 = vunpack.c.l.b16 %v5065
  %v5897 = vunpack.c.l.b16 %v5066
  %v5898 = vunpack.c.l.b16 %v5067
  %v5899 = vunpack.c.l.b16 %v5068
  %v5900 = vpack.c.b16 %v5897, %v5896
  %v5901 = vpack.c.b16 %v5899, %v5898
  %v5905 = vsel %vm3021, %v4854, 0
  %5907 = vmatprep.subr.bf16.mxu0 0
  %5908 = vmatpush1.bf16.msra.mxu0 0
  %5909 = vmatprep.subr.bf16.mxu0 0
  %5910 = vmatpush1.bf16.msra.mxu0 0
  %5911 = vmatprep.subr.bf16.mxu0 0
  %5912 = vmatpush1.bf16.msra.mxu0 0
  %5913 = vmatprep.subr.bf16.mxu0 0
  %5914 = vmatpush1.bf16.msra.mxu0 0
  %5915 = vmatprep.subr.bf16.mxu0 0
  %5916 = vmatpush1.bf16.msra.mxu0 0
  %5917 = vmatprep.subr.bf16.mxu0 0
  %5918 = vmatpush1.bf16.msra.mxu0 0
  %5919 = vmatprep.subr.bf16.mxu0 0
  %5920 = vmatpush1.bf16.msra.mxu0 %v5901
  %5921 = vmatprep.subr.bf16.mxu0 0
  %5922 = vmatpush1.bf16.msra.mxu0 %v5900
  %5923 = vmatprep.subr.bf16.mxu0 0
  %5924 = vmatpush2.bf16.msra.mxu0 0
  %5925 = vmatprep.subr.bf16.mxu0 0
  %5926 = vmatpush2.bf16.msra.mxu0 0
  %5927 = vmatprep.subr.bf16.mxu0 0
  %5928 = vmatpush2.bf16.msra.mxu0 0
  %5929 = vmatprep.subr.bf16.mxu0 0
  %5930 = vmatpush2.bf16.msra.mxu0 0
  %5931 = vmatprep.subr.bf16.mxu0 0
  %5932 = vmatpush2.bf16.msra.mxu0 0
  %5933 = vmatprep.subr.bf16.mxu0 0
  %5934 = vmatpush2.bf16.msra.mxu0 0
  %5935 = vmatprep.subr.bf16.mxu0 0
  %5936 = vmatpush2.bf16.msra.mxu0 0
  %5937 = vmatprep.subr.bf16.mxu0 0
  %5938 = vmatpush2.bf16.msra.mxu0 0
  %5939 = vmatprep.mubr.bf16.mxu0 0
  %5940 = vmatmul.mubr.bf16.gmra.mxu0 %v5905
  %v5941 = vpop.f32.mrf.mxu0
  %v5942 = vadd.f32 %v5126, %v5941
  %v5943 = vpop.f32.mrf.mxu0
  %v5944 = vpop.f32.mrf.mxu0
  %v5945 = vpop.f32.mrf.mxu0
  %5946 = vdwg.mxu0
  %v5951 = vunpack.c.l.b16 %v5132
  %v5952 = vunpack.c.l.b16 %v5133
  %v5953 = vunpack.c.l.b16 %v5134
  %v5954 = vunpack.c.l.b16 %v5135
  %v5955 = vpack.c.b16 %v5952, %v5951
  %v5956 = vpack.c.b16 %v5954, %v5953
  %v5960 = vsel %vm3021, %v4855, 0
  %5962 = vmatprep.subr.bf16.mxu0 0
  %5963 = vmatpush1.bf16.msra.mxu0 0
  %5964 = vmatprep.subr.bf16.mxu0 0
  %5965 = vmatpush1.bf16.msra.mxu0 0
  %5966 = vmatprep.subr.bf16.mxu0 0
  %5967 = vmatpush1.bf16.msra.mxu0 0
  %5968 = vmatprep.subr.bf16.mxu0 0
  %5969 = vmatpush1.bf16.msra.mxu0 0
  %5970 = vmatprep.subr.bf16.mxu0 0
  %5971 = vmatpush1.bf16.msra.mxu0 0
  %5972 = vmatprep.subr.bf16.mxu0 0
  %5973 = vmatpush1.bf16.msra.mxu0 0
  %5974 = vmatprep.subr.bf16.mxu0 0
  %5975 = vmatpush1.bf16.msra.mxu0 %v5956
  %5976 = vmatprep.subr.bf16.mxu0 0
  %5977 = vmatpush1.bf16.msra.mxu0 %v5955
  %5978 = vmatprep.subr.bf16.mxu0 0
  %5979 = vmatpush2.bf16.msra.mxu0 0
  %5980 = vmatprep.subr.bf16.mxu0 0
  %5981 = vmatpush2.bf16.msra.mxu0 0
  %5982 = vmatprep.subr.bf16.mxu0 0
  %5983 = vmatpush2.bf16.msra.mxu0 0
  %5984 = vmatprep.subr.bf16.mxu0 0
  %5985 = vmatpush2.bf16.msra.mxu0 0
  %5986 = vmatprep.subr.bf16.mxu0 0
  %5987 = vmatpush2.bf16.msra.mxu0 0
  %5988 = vmatprep.subr.bf16.mxu0 0
  %5989 = vmatpush2.bf16.msra.mxu0 0
  %5990 = vmatprep.subr.bf16.mxu0 0
  %5991 = vmatpush2.bf16.msra.mxu0 0
  %5992 = vmatprep.subr.bf16.mxu0 0
  %5993 = vmatpush2.bf16.msra.mxu0 0
  %5994 = vmatprep.mubr.bf16.mxu0 0
  %5995 = vmatmul.mubr.bf16.gmra.mxu0 %v5960
  %v5996 = vpop.f32.mrf.mxu0
  %v5997 = vadd.f32 %v5193, %v5996
  %v5998 = vpop.f32.mrf.mxu0
  %v5999 = vpop.f32.mrf.mxu0
  %v6000 = vpop.f32.mrf.mxu0
  %6001 = vdwg.mxu0
  %v6006 = vunpack.c.l.b16 %v5199
  %v6007 = vunpack.c.l.b16 %v5200
  %v6008 = vunpack.c.l.b16 %v5201
  %v6009 = vunpack.c.l.b16 %v5202
  %v6010 = vpack.c.b16 %v6007, %v6006
  %v6011 = vpack.c.b16 %v6009, %v6008
  %v6015 = vsel %vm3021, %v4856, 0
  %6017 = vmatprep.subr.bf16.mxu0 0
  %6018 = vmatpush1.bf16.msra.mxu0 0
  %6019 = vmatprep.subr.bf16.mxu0 0
  %6020 = vmatpush1.bf16.msra.mxu0 0
  %6021 = vmatprep.subr.bf16.mxu0 0
  %6022 = vmatpush1.bf16.msra.mxu0 0
  %6023 = vmatprep.subr.bf16.mxu0 0
  %6024 = vmatpush1.bf16.msra.mxu0 0
  %6025 = vmatprep.subr.bf16.mxu0 0
  %6026 = vmatpush1.bf16.msra.mxu0 0
  %6027 = vmatprep.subr.bf16.mxu0 0
  %6028 = vmatpush1.bf16.msra.mxu0 0
  %6029 = vmatprep.subr.bf16.mxu0 0
  %6030 = vmatpush1.bf16.msra.mxu0 %v6011
  %6031 = vmatprep.subr.bf16.mxu0 0
  %6032 = vmatpush1.bf16.msra.mxu0 %v6010
  %6033 = vmatprep.subr.bf16.mxu0 0
  %6034 = vmatpush2.bf16.msra.mxu0 0
  %6035 = vmatprep.subr.bf16.mxu0 0
  %6036 = vmatpush2.bf16.msra.mxu0 0
  %6037 = vmatprep.subr.bf16.mxu0 0
  %6038 = vmatpush2.bf16.msra.mxu0 0
  %6039 = vmatprep.subr.bf16.mxu0 0
  %6040 = vmatpush2.bf16.msra.mxu0 0
  %6041 = vmatprep.subr.bf16.mxu0 0
  %6042 = vmatpush2.bf16.msra.mxu0 0
  %6043 = vmatprep.subr.bf16.mxu0 0
  %6044 = vmatpush2.bf16.msra.mxu0 0
  %6045 = vmatprep.subr.bf16.mxu0 0
  %6046 = vmatpush2.bf16.msra.mxu0 0
  %6047 = vmatprep.subr.bf16.mxu0 0
  %6048 = vmatpush2.bf16.msra.mxu0 0
  %6049 = vmatprep.mubr.bf16.mxu0 0
  %6050 = vmatmul.mubr.bf16.gmra.mxu0 %v6015
  %v6051 = vpop.f32.mrf.mxu0
  %v6052 = vadd.f32 %v5260, %v6051
  %v6053 = vpop.f32.mrf.mxu0
  %v6054 = vpop.f32.mrf.mxu0
  %v6055 = vpop.f32.mrf.mxu0
  %6056 = vdwg.mxu0
  %v6061 = vunpack.c.l.b16 %v5266
  %v6062 = vunpack.c.l.b16 %v5267
  %v6063 = vunpack.c.l.b16 %v5268
  %v6064 = vunpack.c.l.b16 %v5269
  %v6065 = vpack.c.b16 %v6062, %v6061
  %v6066 = vpack.c.b16 %v6064, %v6063
  %v6070 = vsel %vm3021, %v4857, 0
  %6072 = vmatprep.subr.bf16.mxu0 0
  %6073 = vmatpush1.bf16.msra.mxu0 0
  %6074 = vmatprep.subr.bf16.mxu0 0
  %6075 = vmatpush1.bf16.msra.mxu0 0
  %6076 = vmatprep.subr.bf16.mxu0 0
  %6077 = vmatpush1.bf16.msra.mxu0 0
  %6078 = vmatprep.subr.bf16.mxu0 0
  %6079 = vmatpush1.bf16.msra.mxu0 0
  %6080 = vmatprep.subr.bf16.mxu0 0
  %6081 = vmatpush1.bf16.msra.mxu0 0
  %6082 = vmatprep.subr.bf16.mxu0 0
  %6083 = vmatpush1.bf16.msra.mxu0 0
  %6084 = vmatprep.subr.bf16.mxu0 0
  %6085 = vmatpush1.bf16.msra.mxu0 %v6066
  %6086 = vmatprep.subr.bf16.mxu0 0
  %6087 = vmatpush1.bf16.msra.mxu0 %v6065
  %6088 = vmatprep.subr.bf16.mxu0 0
  %6089 = vmatpush2.bf16.msra.mxu0 0
  %6090 = vmatprep.subr.bf16.mxu0 0
  %6091 = vmatpush2.bf16.msra.mxu0 0
  %6092 = vmatprep.subr.bf16.mxu0 0
  %6093 = vmatpush2.bf16.msra.mxu0 0
  %6094 = vmatprep.subr.bf16.mxu0 0
  %6095 = vmatpush2.bf16.msra.mxu0 0
  %6096 = vmatprep.subr.bf16.mxu0 0
  %6097 = vmatpush2.bf16.msra.mxu0 0
  %6098 = vmatprep.subr.bf16.mxu0 0
  %6099 = vmatpush2.bf16.msra.mxu0 0
  %6100 = vmatprep.subr.bf16.mxu0 0
  %6101 = vmatpush2.bf16.msra.mxu0 0
  %6102 = vmatprep.subr.bf16.mxu0 0
  %6103 = vmatpush2.bf16.msra.mxu0 0
  %6104 = vmatprep.mubr.bf16.mxu0 0
  %6105 = vmatmul.mubr.bf16.gmra.mxu0 %v6070
  %v6106 = vpop.f32.mrf.mxu0
  %v6107 = vadd.f32 %v5327, %v6106
  %v6108 = vpop.f32.mrf.mxu0
  %v6109 = vpop.f32.mrf.mxu0
  %v6110 = vpop.f32.mrf.mxu0
  %6111 = vdwg.mxu0
  %v6116 = vunpack.c.l.b16 %v5333
  %v6117 = vunpack.c.l.b16 %v5334
  %v6118 = vunpack.c.l.b16 %v5335
  %v6119 = vunpack.c.l.b16 %v5336
  %v6120 = vpack.c.b16 %v6117, %v6116
  %v6121 = vpack.c.b16 %v6119, %v6118
  %v6125 = vsel %vm3021, %v4858, 0
  %6127 = vmatprep.subr.bf16.mxu0 0
  %6128 = vmatpush1.bf16.msra.mxu0 0
  %6129 = vmatprep.subr.bf16.mxu0 0
  %6130 = vmatpush1.bf16.msra.mxu0 0
  %6131 = vmatprep.subr.bf16.mxu0 0
  %6132 = vmatpush1.bf16.msra.mxu0 0
  %6133 = vmatprep.subr.bf16.mxu0 0
  %6134 = vmatpush1.bf16.msra.mxu0 0
  %6135 = vmatprep.subr.bf16.mxu0 0
  %6136 = vmatpush1.bf16.msra.mxu0 0
  %6137 = vmatprep.subr.bf16.mxu0 0
  %6138 = vmatpush1.bf16.msra.mxu0 0
  %6139 = vmatprep.subr.bf16.mxu0 0
  %6140 = vmatpush1.bf16.msra.mxu0 %v6121
  %6141 = vmatprep.subr.bf16.mxu0 0
  %6142 = vmatpush1.bf16.msra.mxu0 %v6120
  %6143 = vmatprep.subr.bf16.mxu0 0
  %6144 = vmatpush2.bf16.msra.mxu0 0
  %6145 = vmatprep.subr.bf16.mxu0 0
  %6146 = vmatpush2.bf16.msra.mxu0 0
  %6147 = vmatprep.subr.bf16.mxu0 0
  %6148 = vmatpush2.bf16.msra.mxu0 0
  %6149 = vmatprep.subr.bf16.mxu0 0
  %6150 = vmatpush2.bf16.msra.mxu0 0
  %6151 = vmatprep.subr.bf16.mxu0 0
  %6152 = vmatpush2.bf16.msra.mxu0 0
  %6153 = vmatprep.subr.bf16.mxu0 0
  %6154 = vmatpush2.bf16.msra.mxu0 0
  %6155 = vmatprep.subr.bf16.mxu0 0
  %6156 = vmatpush2.bf16.msra.mxu0 0
  %6157 = vmatprep.subr.bf16.mxu0 0
  %6158 = vmatpush2.bf16.msra.mxu0 0
  %6159 = vmatprep.mubr.bf16.mxu0 0
  %6160 = vmatmul.mubr.bf16.gmra.mxu0 %v6125
  %v6161 = vpop.f32.mrf.mxu0
  %v6162 = vadd.f32 %v5394, %v6161
  %v6163 = vpop.f32.mrf.mxu0
  %v6164 = vpop.f32.mrf.mxu0
  %v6165 = vpop.f32.mrf.mxu0
  %6166 = vdwg.mxu0
  %v6171 = vunpack.c.l.b16 %v5400
  %v6172 = vunpack.c.l.b16 %v5401
  %v6173 = vunpack.c.l.b16 %v5402
  %v6174 = vunpack.c.l.b16 %v5403
  %v6175 = vpack.c.b16 %v6172, %v6171
  %v6176 = vpack.c.b16 %v6174, %v6173
  %v6180 = vsel %vm3021, %v4859, 0
  %6182 = vmatprep.subr.bf16.mxu0 0
  %6183 = vmatpush1.bf16.msra.mxu0 0
  %6184 = vmatprep.subr.bf16.mxu0 0
  %6185 = vmatpush1.bf16.msra.mxu0 0
  %6186 = vmatprep.subr.bf16.mxu0 0
  %6187 = vmatpush1.bf16.msra.mxu0 0
  %6188 = vmatprep.subr.bf16.mxu0 0
  %6189 = vmatpush1.bf16.msra.mxu0 0
  %6190 = vmatprep.subr.bf16.mxu0 0
  %6191 = vmatpush1.bf16.msra.mxu0 0
  %6192 = vmatprep.subr.bf16.mxu0 0
  %6193 = vmatpush1.bf16.msra.mxu0 0
  %6194 = vmatprep.subr.bf16.mxu0 0
  %6195 = vmatpush1.bf16.msra.mxu0 %v6176
  %6196 = vmatprep.subr.bf16.mxu0 0
  %6197 = vmatpush1.bf16.msra.mxu0 %v6175
  %6198 = vmatprep.subr.bf16.mxu0 0
  %6199 = vmatpush2.bf16.msra.mxu0 0
  %6200 = vmatprep.subr.bf16.mxu0 0
  %6201 = vmatpush2.bf16.msra.mxu0 0
  %6202 = vmatprep.subr.bf16.mxu0 0
  %6203 = vmatpush2.bf16.msra.mxu0 0
  %6204 = vmatprep.subr.bf16.mxu0 0
  %6205 = vmatpush2.bf16.msra.mxu0 0
  %6206 = vmatprep.subr.bf16.mxu0 0
  %6207 = vmatpush2.bf16.msra.mxu0 0
  %6208 = vmatprep.subr.bf16.mxu0 0
  %6209 = vmatpush2.bf16.msra.mxu0 0
  %6210 = vmatprep.subr.bf16.mxu0 0
  %6211 = vmatpush2.bf16.msra.mxu0 0
  %6212 = vmatprep.subr.bf16.mxu0 0
  %6213 = vmatpush2.bf16.msra.mxu0 0
  %6214 = vmatprep.mubr.bf16.mxu0 0
  %6215 = vmatmul.mubr.bf16.gmra.mxu0 %v6180
  %v6216 = vpop.f32.mrf.mxu0
  %v6217 = vadd.f32 %v5461, %v6216
  %v6218 = vpop.f32.mrf.mxu0
  %v6219 = vpop.f32.mrf.mxu0
  %v6220 = vpop.f32.mrf.mxu0
  %6221 = vdwg.mxu0
  %v6226 = vunpack.c.l.b16 %v5467
  %v6227 = vunpack.c.l.b16 %v5468
  %v6228 = vunpack.c.l.b16 %v5469
  %v6229 = vunpack.c.l.b16 %v5470
  %v6230 = vpack.c.b16 %v6227, %v6226
  %v6231 = vpack.c.b16 %v6229, %v6228
  %v6235 = vsel %vm3021, %v4860, 0
  %6237 = vmatprep.subr.bf16.mxu0 0
  %6238 = vmatpush1.bf16.msra.mxu0 0
  %6239 = vmatprep.subr.bf16.mxu0 0
  %6240 = vmatpush1.bf16.msra.mxu0 0
  %6241 = vmatprep.subr.bf16.mxu0 0
  %6242 = vmatpush1.bf16.msra.mxu0 0
  %6243 = vmatprep.subr.bf16.mxu0 0
  %6244 = vmatpush1.bf16.msra.mxu0 0
  %6245 = vmatprep.subr.bf16.mxu0 0
  %6246 = vmatpush1.bf16.msra.mxu0 0
  %6247 = vmatprep.subr.bf16.mxu0 0
  %6248 = vmatpush1.bf16.msra.mxu0 0
  %6249 = vmatprep.subr.bf16.mxu0 0
  %6250 = vmatpush1.bf16.msra.mxu0 %v6231
  %6251 = vmatprep.subr.bf16.mxu0 0
  %6252 = vmatpush1.bf16.msra.mxu0 %v6230
  %6253 = vmatprep.subr.bf16.mxu0 0
  %6254 = vmatpush2.bf16.msra.mxu0 0
  %6255 = vmatprep.subr.bf16.mxu0 0
  %6256 = vmatpush2.bf16.msra.mxu0 0
  %6257 = vmatprep.subr.bf16.mxu0 0
  %6258 = vmatpush2.bf16.msra.mxu0 0
  %6259 = vmatprep.subr.bf16.mxu0 0
  %6260 = vmatpush2.bf16.msra.mxu0 0
  %6261 = vmatprep.subr.bf16.mxu0 0
  %6262 = vmatpush2.bf16.msra.mxu0 0
  %6263 = vmatprep.subr.bf16.mxu0 0
  %6264 = vmatpush2.bf16.msra.mxu0 0
  %6265 = vmatprep.subr.bf16.mxu0 0
  %6266 = vmatpush2.bf16.msra.mxu0 0
  %6267 = vmatprep.subr.bf16.mxu0 0
  %6268 = vmatpush2.bf16.msra.mxu0 0
  %6269 = vmatprep.mubr.bf16.mxu0 0
  %6270 = vmatmul.mubr.bf16.gmra.mxu0 %v6235
  %v6271 = vpop.f32.mrf.mxu0
  %v6272 = vadd.f32 %v5528, %v6271
  %v6273 = vpop.f32.mrf.mxu0
  %v6274 = vpop.f32.mrf.mxu0
  %v6275 = vpop.f32.mrf.mxu0
  %6276 = vdwg.mxu0
  %v6281 = vunpack.c.l.b16 %v5534
  %v6282 = vunpack.c.l.b16 %v5535
  %v6283 = vunpack.c.l.b16 %v5536
  %v6284 = vunpack.c.l.b16 %v5537
  %v6285 = vpack.c.b16 %v6282, %v6281
  %v6286 = vpack.c.b16 %v6284, %v6283
  %v6290 = vsel %vm3021, %v4861, 0
  %6292 = vmatprep.subr.bf16.mxu0 0
  %6293 = vmatpush1.bf16.msra.mxu0 0
  %6294 = vmatprep.subr.bf16.mxu0 0
  %6295 = vmatpush1.bf16.msra.mxu0 0
  %6296 = vmatprep.subr.bf16.mxu0 0
  %6297 = vmatpush1.bf16.msra.mxu0 0
  %6298 = vmatprep.subr.bf16.mxu0 0
  %6299 = vmatpush1.bf16.msra.mxu0 0
  %6300 = vmatprep.subr.bf16.mxu0 0
  %6301 = vmatpush1.bf16.msra.mxu0 0
  %6302 = vmatprep.subr.bf16.mxu0 0
  %6303 = vmatpush1.bf16.msra.mxu0 0
  %6304 = vmatprep.subr.bf16.mxu0 0
  %6305 = vmatpush1.bf16.msra.mxu0 %v6286
  %6306 = vmatprep.subr.bf16.mxu0 0
  %6307 = vmatpush1.bf16.msra.mxu0 %v6285
  %6308 = vmatprep.subr.bf16.mxu0 0
  %6309 = vmatpush2.bf16.msra.mxu0 0
  %6310 = vmatprep.subr.bf16.mxu0 0
  %6311 = vmatpush2.bf16.msra.mxu0 0
  %6312 = vmatprep.subr.bf16.mxu0 0
  %6313 = vmatpush2.bf16.msra.mxu0 0
  %6314 = vmatprep.subr.bf16.mxu0 0
  %6315 = vmatpush2.bf16.msra.mxu0 0
  %6316 = vmatprep.subr.bf16.mxu0 0
  %6317 = vmatpush2.bf16.msra.mxu0 0
  %6318 = vmatprep.subr.bf16.mxu0 0
  %6319 = vmatpush2.bf16.msra.mxu0 0
  %6320 = vmatprep.subr.bf16.mxu0 0
  %6321 = vmatpush2.bf16.msra.mxu0 0
  %6322 = vmatprep.subr.bf16.mxu0 0
  %6323 = vmatpush2.bf16.msra.mxu0 0
  %6324 = vmatprep.mubr.bf16.mxu0 0
  %6325 = vmatmul.mubr.bf16.gmra.mxu0 %v6290
  %v6326 = vpop.f32.mrf.mxu0
  %v6327 = vadd.f32 %v5595, %v6326
  %v6328 = vpop.f32.mrf.mxu0
  %v6329 = vpop.f32.mrf.mxu0
  %v6330 = vpop.f32.mrf.mxu0
  %6331 = vdwg.mxu0
  %v6336 = vunpack.c.l.b16 %v5601
  %v6337 = vunpack.c.l.b16 %v5602
  %v6338 = vunpack.c.l.b16 %v5603
  %v6339 = vunpack.c.l.b16 %v5604
  %v6340 = vpack.c.b16 %v6337, %v6336
  %v6341 = vpack.c.b16 %v6339, %v6338
  %v6345 = vsel %vm3021, %v4862, 0
  %6347 = vmatprep.subr.bf16.mxu0 0
  %6348 = vmatpush1.bf16.msra.mxu0 0
  %6349 = vmatprep.subr.bf16.mxu0 0
  %6350 = vmatpush1.bf16.msra.mxu0 0
  %6351 = vmatprep.subr.bf16.mxu0 0
  %6352 = vmatpush1.bf16.msra.mxu0 0
  %6353 = vmatprep.subr.bf16.mxu0 0
  %6354 = vmatpush1.bf16.msra.mxu0 0
  %6355 = vmatprep.subr.bf16.mxu0 0
  %6356 = vmatpush1.bf16.msra.mxu0 0
  %6357 = vmatprep.subr.bf16.mxu0 0
  %6358 = vmatpush1.bf16.msra.mxu0 0
  %6359 = vmatprep.subr.bf16.mxu0 0
  %6360 = vmatpush1.bf16.msra.mxu0 %v6341
  %6361 = vmatprep.subr.bf16.mxu0 0
  %6362 = vmatpush1.bf16.msra.mxu0 %v6340
  %6363 = vmatprep.subr.bf16.mxu0 0
  %6364 = vmatpush2.bf16.msra.mxu0 0
  %6365 = vmatprep.subr.bf16.mxu0 0
  %6366 = vmatpush2.bf16.msra.mxu0 0
  %6367 = vmatprep.subr.bf16.mxu0 0
  %6368 = vmatpush2.bf16.msra.mxu0 0
  %6369 = vmatprep.subr.bf16.mxu0 0
  %6370 = vmatpush2.bf16.msra.mxu0 0
  %6371 = vmatprep.subr.bf16.mxu0 0
  %6372 = vmatpush2.bf16.msra.mxu0 0
  %6373 = vmatprep.subr.bf16.mxu0 0
  %6374 = vmatpush2.bf16.msra.mxu0 0
  %6375 = vmatprep.subr.bf16.mxu0 0
  %6376 = vmatpush2.bf16.msra.mxu0 0
  %6377 = vmatprep.subr.bf16.mxu0 0
  %6378 = vmatpush2.bf16.msra.mxu0 0
  %6379 = vmatprep.mubr.bf16.mxu0 0
  %6380 = vmatmul.mubr.bf16.gmra.mxu0 %v6345
  %v6381 = vpop.f32.mrf.mxu0
  %v6382 = vadd.f32 %v5662, %v6381
  %v6383 = vpop.f32.mrf.mxu0
  %v6384 = vpop.f32.mrf.mxu0
  %v6385 = vpop.f32.mrf.mxu0
  %6386 = vdwg.mxu0
  %v6387 = vadd.f32 %v5777, %v5832
  %v6388 = vadd.f32 %v5887, %v5942
  %v6389 = vadd.f32 %v5997, %v6052
  %v6390 = vadd.f32 %v6107, %v6162
  %v6391 = vadd.f32 %v6217, %v6272
  %v6392 = vadd.f32 %v6327, %v6382
  %v6393 = vadd.f32 %v6387, %v6388
  %v6394 = vadd.f32 %v6389, %v6390
  %v6395 = vadd.f32 %v6391, %v6392
  %v6396 = vadd.f32 %v6393, %v6394
  %v6397 = vadd.f32 %v6395, %v5722
  %v6398 = vadd.f32 %v6396, %v6397
  %v6399 = vrot.slane %v6398, 4
  %v6400 = vadd.f32 %v6398, %v6399
  %v6401 = vrot.slane %v6400, 2
  %v6402 = vadd.f32 %v6400, %v6401
  %v6403 = vrot.slane %v6402, 1
  %v6404 = vadd.f32 %v6402, %v6403
  %v6405 = vmul.f32 %v6404, 0.5
  %v6406 = vmul.f32 %v6398, %v6398
  %v6407 = vrot.slane %v6406, 4
  %v6408 = vadd.f32 %v6406, %v6407
  %v6409 = vrot.slane %v6408, 2
  %v6410 = vadd.f32 %v6408, %v6409
  %v6411 = vrot.slane %v6410, 1
  %v6412 = vadd.f32 %v6410, %v6411
  %v6413 = vmul.f32 %v6412, 0.5
  %v6414 = vmul.f32 %v6405, %v6405
  %v6415 = vsub.f32 %v6413, %v6414
  %v6416 = vld [vmem:[%s8 + $0x6] sm:$0x1]
  %v6417 = vld [vmem:[%s8 + $0x7] sm:$0x1]
  %v6418 = vadd.f32 %v6415, 1e-05
  %v6419 = vrsqrt.pop %v6418
  %v6420 = vmul.f32 %v6416, %v6419
  %v6421 = vlaneseq
  %v6422 = vshrl.u32 %v6421, 7
  %v6423 = vsub.s32 0, %v6422
  %v6424 = vrot.slane %v6420, %v6423
  %v6425 = vmul.f32 %v6398, %v6424
  %v6426 = vmul.f32 %v6405, %v6420
  %v6427 = vsub.f32 %v6417, %v6426
  %v6428 = vlaneseq
  %v6429 = vshrl.u32 %v6428, 7
  %v6430 = vsub.s32 0, %v6429
  %v6431 = vrot.slane %v6427, %v6430
  %v6432 = vadd.f32 %v6425, %v6431
  %6433 = vst [vmem:[%s9] sm:$0xff] %v6432
  // Predicated region
  $region38: #{cae_forward.1} parent=0 // pred_check
    _
  $region39: #{cae_forward.1} parent=0 // pred_check_branch
    %6435 = sbr.rel (0) target = $region41
  $region40: #{cae_forward.1} parent=0 // pred_region
    _
  $region41: #{cae_forward.1} parent=0 // pred_fallthru
    _
  // Predicated region
  $region42: #{cae_forward.1} parent=0 // pred_check
    _
  $region43: #{cae_forward.1} parent=0 // pred_check_branch
    %6437 = sbr.rel (0) target = $region45
  $region44: #{cae_forward.1} parent=0 // pred_region
    _
  $region45: #{cae_forward.1} parent=0 // pred_fallthru
    _

</llo_original>
